<compile_context>
chip_gen: v7x
topology: tpu7x:2x2x1
jax: 0.10.0
libtpu: 0.0.40
codegen_flags: <defaults>
</compile_context>

<pallas_src>
import functools

import jax
import jax.numpy as jnp
from jax.experimental import pallas as pl
from jax.experimental.pallas import tpu as pltpu


def _fused_head_kernel(x_ref, w1_ref, b1_ref, w2_ref, b2_ref,
                       p1_ref, m1_ref, p2_ref, m2_ref,
                       o_ref, u1_ref, u2_ref, *, nb, d, H, W):
    """Processes `nb` batch elements per grid step (grid=(N // nb,)).

    x_ref : VMEM (nb, d, H, W)       input feature maps (NCHW slab, W in lanes)
    w1_ref: SMEM (d*d*9,)            conv1 weights, flat OIHW
    b1_ref: SMEM (d,)                conv1 bias
    w2_ref: SMEM (d*9,)              conv2 weights, flat OIHW
    b2_ref: SMEM (1,)                conv2 bias
    p1_ref: VMEM (2H+2, H)           row-dup matrix, padding baked in
    m1_ref: VMEM (W, 2W+2)           col-dup matrix, padding baked in
    p2_ref: VMEM (4H+2, 2H)          stage-2 row-dup matrix
    m2_ref: VMEM (2W, 4W+2)          stage-2 col-dup matrix
    o_ref : VMEM (nb, 1, 4H, 4W)     output (NCHW)
    u1_ref: VMEM (d, 2H+2, 2W+2)     stage-1 upsampled + zero-bordered input
    u2_ref: VMEM (d, 4H+2, 4W+2)     stage-2 upsampled + zero-bordered input
    """
    f32 = jnp.float32
    H2, W2, H4, W4 = 2 * H, 2 * W, 4 * H, 4 * W

    for n in range(nb):
        # ---- stage 1: nearest x2 upsample (+ zero border) via MXU ----------
        p1 = p1_ref[...]
        if H % 8 == 0:
            # One column-duplication matmul batched across all d channels.
            rhs = jnp.dot(x_ref[n].astype(f32).reshape(d * H, W), m1_ref[...],
                          preferred_element_type=f32)             # (d*H, 2W+2)
            rows = [rhs[c * H:(c + 1) * H, :] for c in range(d)]  # tile-aligned
        else:
            rows = [jnp.dot(x_ref[n, c].astype(f32), m1_ref[...],
                            preferred_element_type=f32) for c in range(d)]
        for c in range(d):
            # Full padded plane written with a single aligned store at (0, 0);
            # the zero rows/cols of p1/m1 provide the 'same'-conv border.
            u1_ref[c] = jnp.dot(p1, rows[c], preferred_element_type=f32)

        # ---- stage 1: 3x3 conv (d->d) + bias + ReLU, then upsample x2 ------
        for co in range(d):
            a0 = jnp.zeros((H2, W2 + 2), f32)   # per-dx accumulators: all
            a1 = jnp.zeros((H2, W2 + 2), f32)   # reads below are lane-aligned
            a2 = jnp.zeros((H2, W2 + 2), f32)
            for ci in range(d):
                base = (co * d + ci) * 9
                for dy in range(3):
                    row = u1_ref[ci, dy:dy + H2, :]               # (H2, W2+2)
                    a0 = a0 + w1_ref[base + dy * 3 + 0] * row
                    a1 = a1 + w1_ref[base + dy * 3 + 1] * row
                    a2 = a2 + w1_ref[base + dy * 3 + 2] * row
            # Combine the three dx-shifted accumulators: only 2 lane shifts.
            y = a0[:, 0:W2] + a1[:, 1:W2 + 1] + a2[:, 2:W2 + 2] + b1_ref[co]
            y = jnp.maximum(y, 0.0)                                # ReLU
            # Stage-2 nearest x2 upsample straight into the padded scratch.
            u2_ref[co] = jnp.dot(
                jnp.dot(p2_ref[...], y, preferred_element_type=f32),
                m2_ref[...], preferred_element_type=f32)           # (4H+2, 4W+2)

        # ---- stage 2: 3x3 conv (d->1) + bias --------------------------------
        a0 = jnp.zeros((H4, W4 + 2), f32)
        a1 = jnp.zeros((H4, W4 + 2), f32)
        a2 = jnp.zeros((H4, W4 + 2), f32)
        for ci in range(d):
            base = ci * 9
            for dy in range(3):
                row = u2_ref[ci, dy:dy + H4, :]                    # (H4, W4+2)
                a0 = a0 + w2_ref[base + dy * 3 + 0] * row
                a1 = a1 + w2_ref[base + dy * 3 + 1] * row
                a2 = a2 + w2_ref[base + dy * 3 + 2] * row
        out = a0[:, 0:W4] + a1[:, 1:W4 + 1] + a2[:, 2:W4 + 2] + b2_ref[0]
        o_ref[n, 0] = out.astype(o_ref.dtype)


def _dup_mats(h, w):
    """0/1 nearest-x2 duplication matrices with the 1-px zero border baked in.

    P: (2h+2, h)  P[r, i] = 1 iff 1 <= r <= 2h and i == (r-1)//2
    M: (w, 2w+2)  M[j, s] = 1 iff 1 <= s <= 2w and j == (s-1)//2
    so  P @ x @ M  is the zero-padded nearest-x2 upsample of x (h, w).
    """
    f32 = jnp.float32
    r = jax.lax.broadcasted_iota(jnp.int32, (2 * h + 2, h), 0)
    i = jax.lax.broadcasted_iota(jnp.int32, (2 * h + 2, h), 1)
    P = ((r >= 1) & (r <= 2 * h) & (i == (r - 1) // 2)).astype(f32)
    j = jax.lax.broadcasted_iota(jnp.int32, (w, 2 * w + 2), 0)
    s = jax.lax.broadcasted_iota(jnp.int32, (w, 2 * w + 2), 1)
    M = ((s >= 1) & (s <= 2 * w) & (j == (s - 1) // 2)).astype(f32)
    return P, M


def _pick_batch_block(N, max_nb=8):
    """Largest Nb <= max_nb dividing N while keeping >= 2 grid steps (so the
    batch 'parallel' axis still splits across both v7x TensorCores)."""
    candidates = [nb for nb in range(1, min(N, max_nb) + 1)
                  if N % nb == 0 and N // nb >= 2]
    if candidates:
        return max(candidates)
    return N if N <= max_nb else 1


@jax.jit
def simple_segmentation_head_forward(x_nchw, w1, b1, w2, b2):
    """Forward pass of simple_segmentation_head (act='ReLU').

    x_nchw: (N, d, H, W); w1: (d, d, 3, 3) OIHW; b1: (d,);
    w2: (1, d, 3, 3) OIHW; b2: (1,).  Output: (N, 1, 4H, 4W) NCHW.
    """
    N, d, H, W = x_nchw.shape
    H4, W4 = 4 * H, 4 * W
    nb = _pick_batch_block(N)

    P1, M1 = _dup_mats(H, W)          # (2H+2, H), (W, 2W+2)
    P2, M2 = _dup_mats(2 * H, 2 * W)  # (4H+2, 2H), (2W, 4W+2)

    kernel = functools.partial(_fused_head_kernel, nb=nb, d=d, H=H, W=W)
    smem = pl.BlockSpec(memory_space=pltpu.MemorySpace.SMEM)

    def const2d(shape):
        # Constant block index => fetched once, never re-DMA'd across the grid.
        return pl.BlockSpec(shape, lambda n: (0, 0))

    return pl.pallas_call(
        kernel,
        out_shape=jax.ShapeDtypeStruct((N, 1, H4, W4), x_nchw.dtype),
        grid=(N // nb,),
        in_specs=[
            pl.BlockSpec((nb, d, H, W), lambda n: (n, 0, 0, 0)),  # lane-dense slab
            smem,   # w1 (flattened scalars)
            smem,   # b1
            smem,   # w2 (flattened scalars)
            smem,   # b2
            const2d((2 * H + 2, H)),      # P1 (padding baked in)
            const2d((W, 2 * W + 2)),      # M1
            const2d((4 * H + 2, 2 * H)),  # P2
            const2d((2 * W, 4 * W + 2)),  # M2
        ],
        out_specs=pl.BlockSpec((nb, 1, H4, W4), lambda n: (n, 0, 0, 0)),
        scratch_shapes=[
            pltpu.VMEM((d, 2 * H + 2, 2 * W + 2), jnp.float32),
            pltpu.VMEM((d, 4 * H + 2, 4 * W + 2), jnp.float32),
        ],
        compiler_params=pltpu.CompilerParams(
            dimension_semantics=("parallel",)),
    )(x_nchw, w1.reshape(-1), b1.reshape(-1), w2.reshape(-1), b2.reshape(-1),
      P1, M1, P2, M2)


def init_params(key, d):
    """Deterministic Conv2d-style init (uniform +/- 1/sqrt(fan_in)), OIHW layout."""
    k1, k2, k3, k4 = jax.random.split(key, 4)
    bound = 1.0 / jnp.sqrt(d * 9.0)
    w1 = jax.random.uniform(k1, (d, d, 3, 3), jnp.float32, -bound, bound)
    b1 = jax.random.uniform(k2, (d,), jnp.float32, -bound, bound)
    w2 = jax.random.uniform(k3, (1, d, 3, 3), jnp.float32, -bound, bound)
    b2 = jax.random.uniform(k4, (1,), jnp.float32, -bound, bound)
    return w1, b1, w2, b2


def _reference_forward(x, w1, b1, w2, b2):
    """Pure-JAX NCHW reference (lax conv) for validation."""
    def up2(t):
        return jnp.repeat(jnp.repeat(t, 2, axis=2), 2, axis=3)

    dn1 = jax.lax.conv_dimension_numbers(up2(x).shape, w1.shape,
                                         ("NCHW", "OIHW", "NCHW"))
    y = jax.lax.conv_general_dilated(up2(x), w1, (1, 1), "SAME",
                                     dimension_numbers=dn1)
    y = jnp.maximum(y + b1.reshape(1, -1, 1, 1), 0.0)
    y = up2(y)
    dn2 = jax.lax.conv_dimension_numbers(y.shape, w2.shape,
                                         ("NCHW", "OIHW", "NCHW"))
    z = jax.lax.conv_general_dilated(y, w2, (1, 1), "SAME",
                                     dimension_numbers=dn2)
    return z + b2.reshape(1, -1, 1, 1)


if __name__ == "__main__":
    key = jax.random.PRNGKey(0)
    k_x, k_p = jax.random.split(key)

    N, d, H, W = 2, 4, 16, 16                 # small FPN feature map (H/4, W/4)
    x = jax.random.normal(k_x, (N, d, H, W), jnp.float32)
    w1, b1, w2, b2 = init_params(k_p, d)

    out = jax.block_until_ready(simple_segmentation_head_forward(x, w1, b1, w2, b2))
    assert out.shape == (N, 1, 4 * H, 4 * W), out.shape

    ref = jax.block_until_ready(_reference_forward(x, w1, b1, w2, b2))
    max_err = float(jnp.max(jnp.abs(out - ref)))
    assert jnp.allclose(out, ref, atol=1e-3, rtol=1e-3), max_err

    print("KERNEL_OK")
</pallas_src>

<mosaic_0001>
module attributes {stable_mosaic.version = 11 : i64} {
  func.func @_fused_head_kernel(%arg0: i32, %arg1: memref<1x4x16x16xf32, #tpu.memory_space<vmem>>, %arg2: memref<144xf32, #tpu.memory_space<smem>>, %arg3: memref<4xf32, #tpu.memory_space<smem>>, %arg4: memref<36xf32, #tpu.memory_space<smem>>, %arg5: memref<1xf32, #tpu.memory_space<smem>>, %arg6: memref<34x16xf32, #tpu.memory_space<vmem>>, %arg7: memref<16x34xf32, #tpu.memory_space<vmem>>, %arg8: memref<66x32xf32, #tpu.memory_space<vmem>>, %arg9: memref<32x66xf32, #tpu.memory_space<vmem>>, %arg10: memref<1x1x64x64xf32, #tpu.memory_space<vmem>>, %arg11: memref<4x34x34xf32, #tpu.memory_space<vmem>>, %arg12: memref<4x66x66xf32, #tpu.memory_space<vmem>>) attributes {dimension_semantics = [#tpu.dimension_semantics<parallel>], iteration_bounds = array<i64: 2>, scalar_prefetch = 0 : i64, scratch_operands = 2 : i64, tpu.core_type = #tpu.core_type<tc>, window_params = [{transform_indices = @transform_0, window_bounds = array<i64: 1, 4, 16, 16>}, {transform_indices = @transform_1, window_bounds = array<i64: 144>}, {transform_indices = @transform_2, window_bounds = array<i64: 4>}, {transform_indices = @transform_3, window_bounds = array<i64: 36>}, {transform_indices = @transform_4, window_bounds = array<i64: 1>}, {pipeline_mode = #tpu.pipeline_mode<synchronous>, transform_indices = @transform_5, window_bounds = array<i64: 34, 16>}, {pipeline_mode = #tpu.pipeline_mode<synchronous>, transform_indices = @transform_6, window_bounds = array<i64: 16, 34>}, {pipeline_mode = #tpu.pipeline_mode<synchronous>, transform_indices = @transform_7, window_bounds = array<i64: 66, 32>}, {pipeline_mode = #tpu.pipeline_mode<synchronous>, transform_indices = @transform_8, window_bounds = array<i64: 32, 66>}, {transform_indices = @transform_9, window_bounds = array<i64: 1, 1, 64, 64>}]} {
    %c0 = arith.constant 0 : index
    %c0_0 = arith.constant 0 : index
    %0 = vector.load %arg6[%c0, %c0_0] : memref<34x16xf32, #tpu.memory_space<vmem>>, vector<34x16xf32>
    %c0_1 = arith.constant 0 : index
    %c0_2 = arith.constant 0 : index
    %c0_3 = arith.constant 0 : index
    %c0_4 = arith.constant 0 : index
    %1 = vector.load %arg1[%c0_1, %c0_2, %c0_3, %c0_4] : memref<1x4x16x16xf32, #tpu.memory_space<vmem>>, vector<1x4x16x16xf32>
    %2 = vector.shape_cast %1 : vector<1x4x16x16xf32> to vector<4x16x16xf32>
    %3 = vector.shape_cast %2 : vector<4x16x16xf32> to vector<64x16xf32>
    %c0_5 = arith.constant 0 : index
    %c0_6 = arith.constant 0 : index
    %4 = vector.load %arg7[%c0_5, %c0_6] : memref<16x34xf32, #tpu.memory_space<vmem>>, vector<16x34xf32>
    %cst = arith.constant dense<0.000000e+00> : vector<64x34xf32>
    %5 = tpu.matmul %3, %4, %cst {dimension_numbers = #tpu.dot_dimension_numbers<[1], [0], [0], [1], [0, 0, 1, 1], [], []>} : vector<64x16xf32>, vector<16x34xf32>, vector<64x34xf32> -> vector<64x34xf32>
    %6 = vector.extract_strided_slice %5 {offsets = [0, 0], sizes = [16, 34], strides = [1, 1]} : vector<64x34xf32> to vector<16x34xf32>
    %7 = vector.extract_strided_slice %5 {offsets = [16, 0], sizes = [16, 34], strides = [1, 1]} : vector<64x34xf32> to vector<16x34xf32>
    %8 = vector.extract_strided_slice %5 {offsets = [32, 0], sizes = [16, 34], strides = [1, 1]} : vector<64x34xf32> to vector<16x34xf32>
    %9 = vector.extract_strided_slice %5 {offsets = [48, 0], sizes = [16, 34], strides = [1, 1]} : vector<64x34xf32> to vector<16x34xf32>
    %cst_7 = arith.constant dense<0.000000e+00> : vector<34x34xf32>
    %10 = tpu.matmul %0, %6, %cst_7 {dimension_numbers = #tpu.dot_dimension_numbers<[1], [0], [0], [1], [0, 0, 1, 1], [], []>} : vector<34x16xf32>, vector<16x34xf32>, vector<34x34xf32> -> vector<34x34xf32>
    %c0_8 = arith.constant 0 : index
    %c0_9 = arith.constant 0 : index
    %c0_10 = arith.constant 0 : index
    %11 = vector.load %arg11[%c0_8, %c0_9, %c0_10] : memref<4x34x34xf32, #tpu.memory_space<vmem>>, vector<1x34x34xf32>
    %12 = vector.shape_cast %11 : vector<1x34x34xf32> to vector<34x34xf32>
    %13 = vector.shape_cast %10 : vector<34x34xf32> to vector<1x34x34xf32>
    tpu.vector_store %arg11[%c0_8, %c0_9, %c0_10], %13 {strides = array<i32>} : memref<4x34x34xf32, #tpu.memory_space<vmem>>, vector<1x34x34xf32>,
    %cst_11 = arith.constant dense<0.000000e+00> : vector<34x34xf32>
    %14 = tpu.matmul %0, %7, %cst_11 {dimension_numbers = #tpu.dot_dimension_numbers<[1], [0], [0], [1], [0, 0, 1, 1], [], []>} : vector<34x16xf32>, vector<16x34xf32>, vector<34x34xf32> -> vector<34x34xf32>
    %c1 = arith.constant 1 : index
    %c0_12 = arith.constant 0 : index
    %c0_13 = arith.constant 0 : index
    %15 = vector.load %arg11[%c1, %c0_12, %c0_13] : memref<4x34x34xf32, #tpu.memory_space<vmem>>, vector<1x34x34xf32>
    %16 = vector.shape_cast %15 : vector<1x34x34xf32> to vector<34x34xf32>
    %17 = vector.shape_cast %14 : vector<34x34xf32> to vector<1x34x34xf32>
    tpu.vector_store %arg11[%c1, %c0_12, %c0_13], %17 {strides = array<i32>} : memref<4x34x34xf32, #tpu.memory_space<vmem>>, vector<1x34x34xf32>,
    %cst_14 = arith.constant dense<0.000000e+00> : vector<34x34xf32>
    %18 = tpu.matmul %0, %8, %cst_14 {dimension_numbers = #tpu.dot_dimension_numbers<[1], [0], [0], [1], [0, 0, 1, 1], [], []>} : vector<34x16xf32>, vector<16x34xf32>, vector<34x34xf32> -> vector<34x34xf32>
    %c2 = arith.constant 2 : index
    %c0_15 = arith.constant 0 : index
    %c0_16 = arith.constant 0 : index
    %19 = vector.load %arg11[%c2, %c0_15, %c0_16] : memref<4x34x34xf32, #tpu.memory_space<vmem>>, vector<1x34x34xf32>
    %20 = vector.shape_cast %19 : vector<1x34x34xf32> to vector<34x34xf32>
    %21 = vector.shape_cast %18 : vector<34x34xf32> to vector<1x34x34xf32>
    tpu.vector_store %arg11[%c2, %c0_15, %c0_16], %21 {strides = array<i32>} : memref<4x34x34xf32, #tpu.memory_space<vmem>>, vector<1x34x34xf32>,
    %cst_17 = arith.constant dense<0.000000e+00> : vector<34x34xf32>
    %22 = tpu.matmul %0, %9, %cst_17 {dimension_numbers = #tpu.dot_dimension_numbers<[1], [0], [0], [1], [0, 0, 1, 1], [], []>} : vector<34x16xf32>, vector<16x34xf32>, vector<34x34xf32> -> vector<34x34xf32>
    %c3 = arith.constant 3 : index
    %c0_18 = arith.constant 0 : index
    %c0_19 = arith.constant 0 : index
    %23 = vector.load %arg11[%c3, %c0_18, %c0_19] : memref<4x34x34xf32, #tpu.memory_space<vmem>>, vector<1x34x34xf32>
    %24 = vector.shape_cast %23 : vector<1x34x34xf32> to vector<34x34xf32>
    %25 = vector.shape_cast %22 : vector<34x34xf32> to vector<1x34x34xf32>
    tpu.vector_store %arg11[%c3, %c0_18, %c0_19], %25 {strides = array<i32>} : memref<4x34x34xf32, #tpu.memory_space<vmem>>, vector<1x34x34xf32>,
    %cst_20 = arith.constant 0.000000e+00 : f32
    %26 = vector.broadcast %cst_20 : f32 to vector<32x34xf32>
    %cst_21 = arith.constant 0.000000e+00 : f32
    %27 = vector.broadcast %cst_21 : f32 to vector<32x34xf32>
    %cst_22 = arith.constant 0.000000e+00 : f32
    %28 = vector.broadcast %cst_22 : f32 to vector<32x34xf32>
    %c0_23 = arith.constant 0 : index
    %c0_24 = arith.constant 0 : index
    %c0_25 = arith.constant 0 : index
    %29 = vector.load %arg11[%c0_23, %c0_24, %c0_25] : memref<4x34x34xf32, #tpu.memory_space<vmem>>, vector<1x32x34xf32>
    %30 = vector.shape_cast %29 : vector<1x32x34xf32> to vector<32x34xf32>
    %c0_26 = arith.constant 0 : index
    %31 = memref.load %arg2[%c0_26] : memref<144xf32, #tpu.memory_space<smem>>
    %32 = vector.broadcast %31 : f32 to vector<32x34xf32>
    %33 = arith.mulf %32, %30 : vector<32x34xf32>
    %34 = arith.addf %26, %33 : vector<32x34xf32>
    %c1_27 = arith.constant 1 : index
    %35 = memref.load %arg2[%c1_27] : memref<144xf32, #tpu.memory_space<smem>>
    %36 = vector.broadcast %35 : f32 to vector<32x34xf32>
    %37 = arith.mulf %36, %30 : vector<32x34xf32>
    %38 = arith.addf %27, %37 : vector<32x34xf32>
    %c2_28 = arith.constant 2 : index
    %39 = memref.load %arg2[%c2_28] : memref<144xf32, #tpu.memory_space<smem>>
    %40 = vector.broadcast %39 : f32 to vector<32x34xf32>
    %41 = arith.mulf %40, %30 : vector<32x34xf32>
    %42 = arith.addf %28, %41 : vector<32x34xf32>
    %c0_29 = arith.constant 0 : index
    %c1_30 = arith.constant 1 : index
    %c0_31 = arith.constant 0 : index
    %43 = vector.load %arg11[%c0_29, %c1_30, %c0_31] : memref<4x34x34xf32, #tpu.memory_space<vmem>>, vector<1x32x34xf32>
    %44 = vector.shape_cast %43 : vector<1x32x34xf32> to vector<32x34xf32>
    %c3_32 = arith.constant 3 : index
    %45 = memref.load %arg2[%c3_32] : memref<144xf32, #tpu.memory_space<smem>>
    %46 = vector.broadcast %45 : f32 to vector<32x34xf32>
    %47 = arith.mulf %46, %44 : vector<32x34xf32>
    %48 = arith.addf %34, %47 : vector<32x34xf32>
    %c4 = arith.constant 4 : index
    %49 = memref.load %arg2[%c4] : memref<144xf32, #tpu.memory_space<smem>>
    %50 = vector.broadcast %49 : f32 to vector<32x34xf32>
    %51 = arith.mulf %50, %44 : vector<32x34xf32>
    %52 = arith.addf %38, %51 : vector<32x34xf32>
    %c5 = arith.constant 5 : index
    %53 = memref.load %arg2[%c5] : memref<144xf32, #tpu.memory_space<smem>>
    %54 = vector.broadcast %53 : f32 to vector<32x34xf32>
    %55 = arith.mulf %54, %44 : vector<32x34xf32>
    %56 = arith.addf %42, %55 : vector<32x34xf32>
    %c0_33 = arith.constant 0 : index
    %c2_34 = arith.constant 2 : index
    %c0_35 = arith.constant 0 : index
    %57 = vector.load %arg11[%c0_33, %c2_34, %c0_35] : memref<4x34x34xf32, #tpu.memory_space<vmem>>, vector<1x32x34xf32>
    %58 = vector.shape_cast %57 : vector<1x32x34xf32> to vector<32x34xf32>
    %c6 = arith.constant 6 : index
    %59 = memref.load %arg2[%c6] : memref<144xf32, #tpu.memory_space<smem>>
    %60 = vector.broadcast %59 : f32 to vector<32x34xf32>
    %61 = arith.mulf %60, %58 : vector<32x34xf32>
    %62 = arith.addf %48, %61 : vector<32x34xf32>
    %c7 = arith.constant 7 : index
    %63 = memref.load %arg2[%c7] : memref<144xf32, #tpu.memory_space<smem>>
    %64 = vector.broadcast %63 : f32 to vector<32x34xf32>
    %65 = arith.mulf %64, %58 : vector<32x34xf32>
    %66 = arith.addf %52, %65 : vector<32x34xf32>
    %c8 = arith.constant 8 : index
    %67 = memref.load %arg2[%c8] : memref<144xf32, #tpu.memory_space<smem>>
    %68 = vector.broadcast %67 : f32 to vector<32x34xf32>
    %69 = arith.mulf %68, %58 : vector<32x34xf32>
    %70 = arith.addf %56, %69 : vector<32x34xf32>
    %c1_36 = arith.constant 1 : index
    %c0_37 = arith.constant 0 : index
    %c0_38 = arith.constant 0 : index
    %71 = vector.load %arg11[%c1_36, %c0_37, %c0_38] : memref<4x34x34xf32, #tpu.memory_space<vmem>>, vector<1x32x34xf32>
    %72 = vector.shape_cast %71 : vector<1x32x34xf32> to vector<32x34xf32>
    %c9 = arith.constant 9 : index
    %73 = memref.load %arg2[%c9] : memref<144xf32, #tpu.memory_space<smem>>
    %74 = vector.broadcast %73 : f32 to vector<32x34xf32>
    %75 = arith.mulf %74, %72 : vector<32x34xf32>
    %76 = arith.addf %62, %75 : vector<32x34xf32>
    %c10 = arith.constant 10 : index
    %77 = memref.load %arg2[%c10] : memref<144xf32, #tpu.memory_space<smem>>
    %78 = vector.broadcast %77 : f32 to vector<32x34xf32>
    %79 = arith.mulf %78, %72 : vector<32x34xf32>
    %80 = arith.addf %66, %79 : vector<32x34xf32>
    %c11 = arith.constant 11 : index
    %81 = memref.load %arg2[%c11] : memref<144xf32, #tpu.memory_space<smem>>
    %82 = vector.broadcast %81 : f32 to vector<32x34xf32>
    %83 = arith.mulf %82, %72 : vector<32x34xf32>
    %84 = arith.addf %70, %83 : vector<32x34xf32>
    %c1_39 = arith.constant 1 : index
    %c1_40 = arith.constant 1 : index
    %c0_41 = arith.constant 0 : index
    %85 = vector.load %arg11[%c1_39, %c1_40, %c0_41] : memref<4x34x34xf32, #tpu.memory_space<vmem>>, vector<1x32x34xf32>
    %86 = vector.shape_cast %85 : vector<1x32x34xf32> to vector<32x34xf32>
    %c12 = arith.constant 12 : index
    %87 = memref.load %arg2[%c12] : memref<144xf32, #tpu.memory_space<smem>>
    %88 = vector.broadcast %87 : f32 to vector<32x34xf32>
    %89 = arith.mulf %88, %86 : vector<32x34xf32>
    %90 = arith.addf %76, %89 : vector<32x34xf32>
    %c13 = arith.constant 13 : index
    %91 = memref.load %arg2[%c13] : memref<144xf32, #tpu.memory_space<smem>>
    %92 = vector.broadcast %91 : f32 to vector<32x34xf32>
    %93 = arith.mulf %92, %86 : vector<32x34xf32>
    %94 = arith.addf %80, %93 : vector<32x34xf32>
    %c14 = arith.constant 14 : index
    %95 = memref.load %arg2[%c14] : memref<144xf32, #tpu.memory_space<smem>>
    %96 = vector.broadcast %95 : f32 to vector<32x34xf32>
    %97 = arith.mulf %96, %86 : vector<32x34xf32>
    %98 = arith.addf %84, %97 : vector<32x34xf32>
    %c1_42 = arith.constant 1 : index
    %c2_43 = arith.constant 2 : index
    %c0_44 = arith.constant 0 : index
    %99 = vector.load %arg11[%c1_42, %c2_43, %c0_44] : memref<4x34x34xf32, #tpu.memory_space<vmem>>, vector<1x32x34xf32>
    %100 = vector.shape_cast %99 : vector<1x32x34xf32> to vector<32x34xf32>
    %c15 = arith.constant 15 : index
    %101 = memref.load %arg2[%c15] : memref<144xf32, #tpu.memory_space<smem>>
    %102 = vector.broadcast %101 : f32 to vector<32x34xf32>
    %103 = arith.mulf %102, %100 : vector<32x34xf32>
    %104 = arith.addf %90, %103 : vector<32x34xf32>
    %c16 = arith.constant 16 : index
    %105 = memref.load %arg2[%c16] : memref<144xf32, #tpu.memory_space<smem>>
    %106 = vector.broadcast %105 : f32 to vector<32x34xf32>
    %107 = arith.mulf %106, %100 : vector<32x34xf32>
    %108 = arith.addf %94, %107 : vector<32x34xf32>
    %c17 = arith.constant 17 : index
    %109 = memref.load %arg2[%c17] : memref<144xf32, #tpu.memory_space<smem>>
    %110 = vector.broadcast %109 : f32 to vector<32x34xf32>
    %111 = arith.mulf %110, %100 : vector<32x34xf32>
    %112 = arith.addf %98, %111 : vector<32x34xf32>
    %c2_45 = arith.constant 2 : index
    %c0_46 = arith.constant 0 : index
    %c0_47 = arith.constant 0 : index
    %113 = vector.load %arg11[%c2_45, %c0_46, %c0_47] : memref<4x34x34xf32, #tpu.memory_space<vmem>>, vector<1x32x34xf32>
    %114 = vector.shape_cast %113 : vector<1x32x34xf32> to vector<32x34xf32>
    %c18 = arith.constant 18 : index
    %115 = memref.load %arg2[%c18] : memref<144xf32, #tpu.memory_space<smem>>
    %116 = vector.broadcast %115 : f32 to vector<32x34xf32>
    %117 = arith.mulf %116, %114 : vector<32x34xf32>
    %118 = arith.addf %104, %117 : vector<32x34xf32>
    %c19 = arith.constant 19 : index
    %119 = memref.load %arg2[%c19] : memref<144xf32, #tpu.memory_space<smem>>
    %120 = vector.broadcast %119 : f32 to vector<32x34xf32>
    %121 = arith.mulf %120, %114 : vector<32x34xf32>
    %122 = arith.addf %108, %121 : vector<32x34xf32>
    %c20 = arith.constant 20 : index
    %123 = memref.load %arg2[%c20] : memref<144xf32, #tpu.memory_space<smem>>
    %124 = vector.broadcast %123 : f32 to vector<32x34xf32>
    %125 = arith.mulf %124, %114 : vector<32x34xf32>
    %126 = arith.addf %112, %125 : vector<32x34xf32>
    %c2_48 = arith.constant 2 : index
    %c1_49 = arith.constant 1 : index
    %c0_50 = arith.constant 0 : index
    %127 = vector.load %arg11[%c2_48, %c1_49, %c0_50] : memref<4x34x34xf32, #tpu.memory_space<vmem>>, vector<1x32x34xf32>
    %128 = vector.shape_cast %127 : vector<1x32x34xf32> to vector<32x34xf32>
    %c21 = arith.constant 21 : index
    %129 = memref.load %arg2[%c21] : memref<144xf32, #tpu.memory_space<smem>>
    %130 = vector.broadcast %129 : f32 to vector<32x34xf32>
    %131 = arith.mulf %130, %128 : vector<32x34xf32>
    %132 = arith.addf %118, %131 : vector<32x34xf32>
    %c22 = arith.constant 22 : index
    %133 = memref.load %arg2[%c22] : memref<144xf32, #tpu.memory_space<smem>>
    %134 = vector.broadcast %133 : f32 to vector<32x34xf32>
    %135 = arith.mulf %134, %128 : vector<32x34xf32>
    %136 = arith.addf %122, %135 : vector<32x34xf32>
    %c23 = arith.constant 23 : index
    %137 = memref.load %arg2[%c23] : memref<144xf32, #tpu.memory_space<smem>>
    %138 = vector.broadcast %137 : f32 to vector<32x34xf32>
    %139 = arith.mulf %138, %128 : vector<32x34xf32>
    %140 = arith.addf %126, %139 : vector<32x34xf32>
    %c2_51 = arith.constant 2 : index
    %c2_52 = arith.constant 2 : index
    %c0_53 = arith.constant 0 : index
    %141 = vector.load %arg11[%c2_51, %c2_52, %c0_53] : memref<4x34x34xf32, #tpu.memory_space<vmem>>, vector<1x32x34xf32>
    %142 = vector.shape_cast %141 : vector<1x32x34xf32> to vector<32x34xf32>
    %c24 = arith.constant 24 : index
    %143 = memref.load %arg2[%c24] : memref<144xf32, #tpu.memory_space<smem>>
    %144 = vector.broadcast %143 : f32 to vector<32x34xf32>
    %145 = arith.mulf %144, %142 : vector<32x34xf32>
    %146 = arith.addf %132, %145 : vector<32x34xf32>
    %c25 = arith.constant 25 : index
    %147 = memref.load %arg2[%c25] : memref<144xf32, #tpu.memory_space<smem>>
    %148 = vector.broadcast %147 : f32 to vector<32x34xf32>
    %149 = arith.mulf %148, %142 : vector<32x34xf32>
    %150 = arith.addf %136, %149 : vector<32x34xf32>
    %c26 = arith.constant 26 : index
    %151 = memref.load %arg2[%c26] : memref<144xf32, #tpu.memory_space<smem>>
    %152 = vector.broadcast %151 : f32 to vector<32x34xf32>
    %153 = arith.mulf %152, %142 : vector<32x34xf32>
    %154 = arith.addf %140, %153 : vector<32x34xf32>
    %c3_54 = arith.constant 3 : index
    %c0_55 = arith.constant 0 : index
    %c0_56 = arith.constant 0 : index
    %155 = vector.load %arg11[%c3_54, %c0_55, %c0_56] : memref<4x34x34xf32, #tpu.memory_space<vmem>>, vector<1x32x34xf32>
    %156 = vector.shape_cast %155 : vector<1x32x34xf32> to vector<32x34xf32>
    %c27 = arith.constant 27 : index
    %157 = memref.load %arg2[%c27] : memref<144xf32, #tpu.memory_space<smem>>
    %158 = vector.broadcast %157 : f32 to vector<32x34xf32>
    %159 = arith.mulf %158, %156 : vector<32x34xf32>
    %160 = arith.addf %146, %159 : vector<32x34xf32>
    %c28 = arith.constant 28 : index
    %161 = memref.load %arg2[%c28] : memref<144xf32, #tpu.memory_space<smem>>
    %162 = vector.broadcast %161 : f32 to vector<32x34xf32>
    %163 = arith.mulf %162, %156 : vector<32x34xf32>
    %164 = arith.addf %150, %163 : vector<32x34xf32>
    %c29 = arith.constant 29 : index
    %165 = memref.load %arg2[%c29] : memref<144xf32, #tpu.memory_space<smem>>
    %166 = vector.broadcast %165 : f32 to vector<32x34xf32>
    %167 = arith.mulf %166, %156 : vector<32x34xf32>
    %168 = arith.addf %154, %167 : vector<32x34xf32>
    %c3_57 = arith.constant 3 : index
    %c1_58 = arith.constant 1 : index
    %c0_59 = arith.constant 0 : index
    %169 = vector.load %arg11[%c3_57, %c1_58, %c0_59] : memref<4x34x34xf32, #tpu.memory_space<vmem>>, vector<1x32x34xf32>
    %170 = vector.shape_cast %169 : vector<1x32x34xf32> to vector<32x34xf32>
    %c30 = arith.constant 30 : index
    %171 = memref.load %arg2[%c30] : memref<144xf32, #tpu.memory_space<smem>>
    %172 = vector.broadcast %171 : f32 to vector<32x34xf32>
    %173 = arith.mulf %172, %170 : vector<32x34xf32>
    %174 = arith.addf %160, %173 : vector<32x34xf32>
    %c31 = arith.constant 31 : index
    %175 = memref.load %arg2[%c31] : memref<144xf32, #tpu.memory_space<smem>>
    %176 = vector.broadcast %175 : f32 to vector<32x34xf32>
    %177 = arith.mulf %176, %170 : vector<32x34xf32>
    %178 = arith.addf %164, %177 : vector<32x34xf32>
    %c32 = arith.constant 32 : index
    %179 = memref.load %arg2[%c32] : memref<144xf32, #tpu.memory_space<smem>>
    %180 = vector.broadcast %179 : f32 to vector<32x34xf32>
    %181 = arith.mulf %180, %170 : vector<32x34xf32>
    %182 = arith.addf %168, %181 : vector<32x34xf32>
    %c3_60 = arith.constant 3 : index
    %c2_61 = arith.constant 2 : index
    %c0_62 = arith.constant 0 : index
    %183 = vector.load %arg11[%c3_60, %c2_61, %c0_62] : memref<4x34x34xf32, #tpu.memory_space<vmem>>, vector<1x32x34xf32>
    %184 = vector.shape_cast %183 : vector<1x32x34xf32> to vector<32x34xf32>
    %c33 = arith.constant 33 : index
    %185 = memref.load %arg2[%c33] : memref<144xf32, #tpu.memory_space<smem>>
    %186 = vector.broadcast %185 : f32 to vector<32x34xf32>
    %187 = arith.mulf %186, %184 : vector<32x34xf32>
    %188 = arith.addf %174, %187 : vector<32x34xf32>
    %c34 = arith.constant 34 : index
    %189 = memref.load %arg2[%c34] : memref<144xf32, #tpu.memory_space<smem>>
    %190 = vector.broadcast %189 : f32 to vector<32x34xf32>
    %191 = arith.mulf %190, %184 : vector<32x34xf32>
    %192 = arith.addf %178, %191 : vector<32x34xf32>
    %c35 = arith.constant 35 : index
    %193 = memref.load %arg2[%c35] : memref<144xf32, #tpu.memory_space<smem>>
    %194 = vector.broadcast %193 : f32 to vector<32x34xf32>
    %195 = arith.mulf %194, %184 : vector<32x34xf32>
    %196 = arith.addf %182, %195 : vector<32x34xf32>
    %197 = vector.extract_strided_slice %188 {offsets = [0, 0], sizes = [32, 32], strides = [1, 1]} : vector<32x34xf32> to vector<32x32xf32>
    %198 = vector.extract_strided_slice %192 {offsets = [0, 1], sizes = [32, 32], strides = [1, 1]} : vector<32x34xf32> to vector<32x32xf32>
    %199 = arith.addf %197, %198 : vector<32x32xf32>
    %200 = vector.extract_strided_slice %196 {offsets = [0, 2], sizes = [32, 32], strides = [1, 1]} : vector<32x34xf32> to vector<32x32xf32>
    %201 = arith.addf %199, %200 : vector<32x32xf32>
    %c0_63 = arith.constant 0 : index
    %202 = memref.load %arg3[%c0_63] : memref<4xf32, #tpu.memory_space<smem>>
    %203 = vector.broadcast %202 : f32 to vector<32x32xf32>
    %204 = arith.addf %201, %203 : vector<32x32xf32>
    %cst_64 = arith.constant 0.000000e+00 : f32
    %205 = vector.broadcast %cst_64 : f32 to vector<32x32xf32>
    %206 = arith.maximumf %204, %205 : vector<32x32xf32>
    %c0_65 = arith.constant 0 : index
    %c0_66 = arith.constant 0 : index
    %207 = vector.load %arg8[%c0_65, %c0_66] : memref<66x32xf32, #tpu.memory_space<vmem>>, vector<66x32xf32>
    %cst_67 = arith.constant dense<0.000000e+00> : vector<66x32xf32>
    %208 = tpu.matmul %207, %206, %cst_67 {dimension_numbers = #tpu.dot_dimension_numbers<[1], [0], [0], [1], [0, 0, 1, 1], [], []>} : vector<66x32xf32>, vector<32x32xf32>, vector<66x32xf32> -> vector<66x32xf32>
    %c0_68 = arith.constant 0 : index
    %c0_69 = arith.constant 0 : index
    %209 = vector.load %arg9[%c0_68, %c0_69] : memref<32x66xf32, #tpu.memory_space<vmem>>, vector<32x66xf32>
    %cst_70 = arith.constant dense<0.000000e+00> : vector<66x66xf32>
    %210 = tpu.matmul %208, %209, %cst_70 {dimension_numbers = #tpu.dot_dimension_numbers<[1], [0], [0], [1], [0, 0, 1, 1], [], []>} : vector<66x32xf32>, vector<32x66xf32>, vector<66x66xf32> -> vector<66x66xf32>
    %c0_71 = arith.constant 0 : index
    %c0_72 = arith.constant 0 : index
    %c0_73 = arith.constant 0 : index
    %211 = vector.load %arg12[%c0_71, %c0_72, %c0_73] : memref<4x66x66xf32, #tpu.memory_space<vmem>>, vector<1x66x66xf32>
    %212 = vector.shape_cast %211 : vector<1x66x66xf32> to vector<66x66xf32>
    %213 = vector.shape_cast %210 : vector<66x66xf32> to vector<1x66x66xf32>
    tpu.vector_store %arg12[%c0_71, %c0_72, %c0_73], %213 {strides = array<i32>} : memref<4x66x66xf32, #tpu.memory_space<vmem>>, vector<1x66x66xf32>,
    %cst_74 = arith.constant 0.000000e+00 : f32
    %214 = vector.broadcast %cst_74 : f32 to vector<32x34xf32>
    %cst_75 = arith.constant 0.000000e+00 : f32
    %215 = vector.broadcast %cst_75 : f32 to vector<32x34xf32>
    %cst_76 = arith.constant 0.000000e+00 : f32
    %216 = vector.broadcast %cst_76 : f32 to vector<32x34xf32>
    %c0_77 = arith.constant 0 : index
    %c0_78 = arith.constant 0 : index
    %c0_79 = arith.constant 0 : index
    %217 = vector.load %arg11[%c0_77, %c0_78, %c0_79] : memref<4x34x34xf32, #tpu.memory_space<vmem>>, vector<1x32x34xf32>
    %218 = vector.shape_cast %217 : vector<1x32x34xf32> to vector<32x34xf32>
    %c36 = arith.constant 36 : index
    %219 = memref.load %arg2[%c36] : memref<144xf32, #tpu.memory_space<smem>>
    %220 = vector.broadcast %219 : f32 to vector<32x34xf32>
    %221 = arith.mulf %220, %218 : vector<32x34xf32>
    %222 = arith.addf %214, %221 : vector<32x34xf32>
    %c37 = arith.constant 37 : index
    %223 = memref.load %arg2[%c37] : memref<144xf32, #tpu.memory_space<smem>>
    %224 = vector.broadcast %223 : f32 to vector<32x34xf32>
    %225 = arith.mulf %224, %218 : vector<32x34xf32>
    %226 = arith.addf %215, %225 : vector<32x34xf32>
    %c38 = arith.constant 38 : index
    %227 = memref.load %arg2[%c38] : memref<144xf32, #tpu.memory_space<smem>>
    %228 = vector.broadcast %227 : f32 to vector<32x34xf32>
    %229 = arith.mulf %228, %218 : vector<32x34xf32>
    %230 = arith.addf %216, %229 : vector<32x34xf32>
    %c0_80 = arith.constant 0 : index
    %c1_81 = arith.constant 1 : index
    %c0_82 = arith.constant 0 : index
    %231 = vector.load %arg11[%c0_80, %c1_81, %c0_82] : memref<4x34x34xf32, #tpu.memory_space<vmem>>, vector<1x32x34xf32>
    %232 = vector.shape_cast %231 : vector<1x32x34xf32> to vector<32x34xf32>
    %c39 = arith.constant 39 : index
    %233 = memref.load %arg2[%c39] : memref<144xf32, #tpu.memory_space<smem>>
    %234 = vector.broadcast %233 : f32 to vector<32x34xf32>
    %235 = arith.mulf %234, %232 : vector<32x34xf32>
    %236 = arith.addf %222, %235 : vector<32x34xf32>
    %c40 = arith.constant 40 : index
    %237 = memref.load %arg2[%c40] : memref<144xf32, #tpu.memory_space<smem>>
    %238 = vector.broadcast %237 : f32 to vector<32x34xf32>
    %239 = arith.mulf %238, %232 : vector<32x34xf32>
    %240 = arith.addf %226, %239 : vector<32x34xf32>
    %c41 = arith.constant 41 : index
    %241 = memref.load %arg2[%c41] : memref<144xf32, #tpu.memory_space<smem>>
    %242 = vector.broadcast %241 : f32 to vector<32x34xf32>
    %243 = arith.mulf %242, %232 : vector<32x34xf32>
    %244 = arith.addf %230, %243 : vector<32x34xf32>
    %c0_83 = arith.constant 0 : index
    %c2_84 = arith.constant 2 : index
    %c0_85 = arith.constant 0 : index
    %245 = vector.load %arg11[%c0_83, %c2_84, %c0_85] : memref<4x34x34xf32, #tpu.memory_space<vmem>>, vector<1x32x34xf32>
    %246 = vector.shape_cast %245 : vector<1x32x34xf32> to vector<32x34xf32>
    %c42 = arith.constant 42 : index
    %247 = memref.load %arg2[%c42] : memref<144xf32, #tpu.memory_space<smem>>
    %248 = vector.broadcast %247 : f32 to vector<32x34xf32>
    %249 = arith.mulf %248, %246 : vector<32x34xf32>
    %250 = arith.addf %236, %249 : vector<32x34xf32>
    %c43 = arith.constant 43 : index
    %251 = memref.load %arg2[%c43] : memref<144xf32, #tpu.memory_space<smem>>
    %252 = vector.broadcast %251 : f32 to vector<32x34xf32>
    %253 = arith.mulf %252, %246 : vector<32x34xf32>
    %254 = arith.addf %240, %253 : vector<32x34xf32>
    %c44 = arith.constant 44 : index
    %255 = memref.load %arg2[%c44] : memref<144xf32, #tpu.memory_space<smem>>
    %256 = vector.broadcast %255 : f32 to vector<32x34xf32>
    %257 = arith.mulf %256, %246 : vector<32x34xf32>
    %258 = arith.addf %244, %257 : vector<32x34xf32>
    %c1_86 = arith.constant 1 : index
    %c0_87 = arith.constant 0 : index
    %c0_88 = arith.constant 0 : index
    %259 = vector.load %arg11[%c1_86, %c0_87, %c0_88] : memref<4x34x34xf32, #tpu.memory_space<vmem>>, vector<1x32x34xf32>
    %260 = vector.shape_cast %259 : vector<1x32x34xf32> to vector<32x34xf32>
    %c45 = arith.constant 45 : index
    %261 = memref.load %arg2[%c45] : memref<144xf32, #tpu.memory_space<smem>>
    %262 = vector.broadcast %261 : f32 to vector<32x34xf32>
    %263 = arith.mulf %262, %260 : vector<32x34xf32>
    %264 = arith.addf %250, %263 : vector<32x34xf32>
    %c46 = arith.constant 46 : index
    %265 = memref.load %arg2[%c46] : memref<144xf32, #tpu.memory_space<smem>>
    %266 = vector.broadcast %265 : f32 to vector<32x34xf32>
    %267 = arith.mulf %266, %260 : vector<32x34xf32>
    %268 = arith.addf %254, %267 : vector<32x34xf32>
    %c47 = arith.constant 47 : index
    %269 = memref.load %arg2[%c47] : memref<144xf32, #tpu.memory_space<smem>>
    %270 = vector.broadcast %269 : f32 to vector<32x34xf32>
    %271 = arith.mulf %270, %260 : vector<32x34xf32>
    %272 = arith.addf %258, %271 : vector<32x34xf32>
    %c1_89 = arith.constant 1 : index
    %c1_90 = arith.constant 1 : index
    %c0_91 = arith.constant 0 : index
    %273 = vector.load %arg11[%c1_89, %c1_90, %c0_91] : memref<4x34x34xf32, #tpu.memory_space<vmem>>, vector<1x32x34xf32>
    %274 = vector.shape_cast %273 : vector<1x32x34xf32> to vector<32x34xf32>
    %c48 = arith.constant 48 : index
    %275 = memref.load %arg2[%c48] : memref<144xf32, #tpu.memory_space<smem>>
    %276 = vector.broadcast %275 : f32 to vector<32x34xf32>
    %277 = arith.mulf %276, %274 : vector<32x34xf32>
    %278 = arith.addf %264, %277 : vector<32x34xf32>
    %c49 = arith.constant 49 : index
    %279 = memref.load %arg2[%c49] : memref<144xf32, #tpu.memory_space<smem>>
    %280 = vector.broadcast %279 : f32 to vector<32x34xf32>
    %281 = arith.mulf %280, %274 : vector<32x34xf32>
    %282 = arith.addf %268, %281 : vector<32x34xf32>
    %c50 = arith.constant 50 : index
    %283 = memref.load %arg2[%c50] : memref<144xf32, #tpu.memory_space<smem>>
    %284 = vector.broadcast %283 : f32 to vector<32x34xf32>
    %285 = arith.mulf %284, %274 : vector<32x34xf32>
    %286 = arith.addf %272, %285 : vector<32x34xf32>
    %c1_92 = arith.constant 1 : index
    %c2_93 = arith.constant 2 : index
    %c0_94 = arith.constant 0 : index
    %287 = vector.load %arg11[%c1_92, %c2_93, %c0_94] : memref<4x34x34xf32, #tpu.memory_space<vmem>>, vector<1x32x34xf32>
    %288 = vector.shape_cast %287 : vector<1x32x34xf32> to vector<32x34xf32>
    %c51 = arith.constant 51 : index
    %289 = memref.load %arg2[%c51] : memref<144xf32, #tpu.memory_space<smem>>
    %290 = vector.broadcast %289 : f32 to vector<32x34xf32>
    %291 = arith.mulf %290, %288 : vector<32x34xf32>
    %292 = arith.addf %278, %291 : vector<32x34xf32>
    %c52 = arith.constant 52 : index
    %293 = memref.load %arg2[%c52] : memref<144xf32, #tpu.memory_space<smem>>
    %294 = vector.broadcast %293 : f32 to vector<32x34xf32>
    %295 = arith.mulf %294, %288 : vector<32x34xf32>
    %296 = arith.addf %282, %295 : vector<32x34xf32>
    %c53 = arith.constant 53 : index
    %297 = memref.load %arg2[%c53] : memref<144xf32, #tpu.memory_space<smem>>
    %298 = vector.broadcast %297 : f32 to vector<32x34xf32>
    %299 = arith.mulf %298, %288 : vector<32x34xf32>
    %300 = arith.addf %286, %299 : vector<32x34xf32>
    %c2_95 = arith.constant 2 : index
    %c0_96 = arith.constant 0 : index
    %c0_97 = arith.constant 0 : index
    %301 = vector.load %arg11[%c2_95, %c0_96, %c0_97] : memref<4x34x34xf32, #tpu.memory_space<vmem>>, vector<1x32x34xf32>
    %302 = vector.shape_cast %301 : vector<1x32x34xf32> to vector<32x34xf32>
    %c54 = arith.constant 54 : index
    %303 = memref.load %arg2[%c54] : memref<144xf32, #tpu.memory_space<smem>>
    %304 = vector.broadcast %303 : f32 to vector<32x34xf32>
    %305 = arith.mulf %304, %302 : vector<32x34xf32>
    %306 = arith.addf %292, %305 : vector<32x34xf32>
    %c55 = arith.constant 55 : index
    %307 = memref.load %arg2[%c55] : memref<144xf32, #tpu.memory_space<smem>>
    %308 = vector.broadcast %307 : f32 to vector<32x34xf32>
    %309 = arith.mulf %308, %302 : vector<32x34xf32>
    %310 = arith.addf %296, %309 : vector<32x34xf32>
    %c56 = arith.constant 56 : index
    %311 = memref.load %arg2[%c56] : memref<144xf32, #tpu.memory_space<smem>>
    %312 = vector.broadcast %311 : f32 to vector<32x34xf32>
    %313 = arith.mulf %312, %302 : vector<32x34xf32>
    %314 = arith.addf %300, %313 : vector<32x34xf32>
    %c2_98 = arith.constant 2 : index
    %c1_99 = arith.constant 1 : index
    %c0_100 = arith.constant 0 : index
    %315 = vector.load %arg11[%c2_98, %c1_99, %c0_100] : memref<4x34x34xf32, #tpu.memory_space<vmem>>, vector<1x32x34xf32>
    %316 = vector.shape_cast %315 : vector<1x32x34xf32> to vector<32x34xf32>
    %c57 = arith.constant 57 : index
    %317 = memref.load %arg2[%c57] : memref<144xf32, #tpu.memory_space<smem>>
    %318 = vector.broadcast %317 : f32 to vector<32x34xf32>
    %319 = arith.mulf %318, %316 : vector<32x34xf32>
    %320 = arith.addf %306, %319 : vector<32x34xf32>
    %c58 = arith.constant 58 : index
    %321 = memref.load %arg2[%c58] : memref<144xf32, #tpu.memory_space<smem>>
    %322 = vector.broadcast %321 : f32 to vector<32x34xf32>
    %323 = arith.mulf %322, %316 : vector<32x34xf32>
    %324 = arith.addf %310, %323 : vector<32x34xf32>
    %c59 = arith.constant 59 : index
    %325 = memref.load %arg2[%c59] : memref<144xf32, #tpu.memory_space<smem>>
    %326 = vector.broadcast %325 : f32 to vector<32x34xf32>
    %327 = arith.mulf %326, %316 : vector<32x34xf32>
    %328 = arith.addf %314, %327 : vector<32x34xf32>
    %c2_101 = arith.constant 2 : index
    %c2_102 = arith.constant 2 : index
    %c0_103 = arith.constant 0 : index
    %329 = vector.load %arg11[%c2_101, %c2_102, %c0_103] : memref<4x34x34xf32, #tpu.memory_space<vmem>>, vector<1x32x34xf32>
    %330 = vector.shape_cast %329 : vector<1x32x34xf32> to vector<32x34xf32>
    %c60 = arith.constant 60 : index
    %331 = memref.load %arg2[%c60] : memref<144xf32, #tpu.memory_space<smem>>
    %332 = vector.broadcast %331 : f32 to vector<32x34xf32>
    %333 = arith.mulf %332, %330 : vector<32x34xf32>
    %334 = arith.addf %320, %333 : vector<32x34xf32>
    %c61 = arith.constant 61 : index
    %335 = memref.load %arg2[%c61] : memref<144xf32, #tpu.memory_space<smem>>
    %336 = vector.broadcast %335 : f32 to vector<32x34xf32>
    %337 = arith.mulf %336, %330 : vector<32x34xf32>
    %338 = arith.addf %324, %337 : vector<32x34xf32>
    %c62 = arith.constant 62 : index
    %339 = memref.load %arg2[%c62] : memref<144xf32, #tpu.memory_space<smem>>
    %340 = vector.broadcast %339 : f32 to vector<32x34xf32>
    %341 = arith.mulf %340, %330 : vector<32x34xf32>
    %342 = arith.addf %328, %341 : vector<32x34xf32>
    %c3_104 = arith.constant 3 : index
    %c0_105 = arith.constant 0 : index
    %c0_106 = arith.constant 0 : index
    %343 = vector.load %arg11[%c3_104, %c0_105, %c0_106] : memref<4x34x34xf32, #tpu.memory_space<vmem>>, vector<1x32x34xf32>
    %344 = vector.shape_cast %343 : vector<1x32x34xf32> to vector<32x34xf32>
    %c63 = arith.constant 63 : index
    %345 = memref.load %arg2[%c63] : memref<144xf32, #tpu.memory_space<smem>>
    %346 = vector.broadcast %345 : f32 to vector<32x34xf32>
    %347 = arith.mulf %346, %344 : vector<32x34xf32>
    %348 = arith.addf %334, %347 : vector<32x34xf32>
    %c64 = arith.constant 64 : index
    %349 = memref.load %arg2[%c64] : memref<144xf32, #tpu.memory_space<smem>>
    %350 = vector.broadcast %349 : f32 to vector<32x34xf32>
    %351 = arith.mulf %350, %344 : vector<32x34xf32>
    %352 = arith.addf %338, %351 : vector<32x34xf32>
    %c65 = arith.constant 65 : index
    %353 = memref.load %arg2[%c65] : memref<144xf32, #tpu.memory_space<smem>>
    %354 = vector.broadcast %353 : f32 to vector<32x34xf32>
    %355 = arith.mulf %354, %344 : vector<32x34xf32>
    %356 = arith.addf %342, %355 : vector<32x34xf32>
    %c3_107 = arith.constant 3 : index
    %c1_108 = arith.constant 1 : index
    %c0_109 = arith.constant 0 : index
    %357 = vector.load %arg11[%c3_107, %c1_108, %c0_109] : memref<4x34x34xf32, #tpu.memory_space<vmem>>, vector<1x32x34xf32>
    %358 = vector.shape_cast %357 : vector<1x32x34xf32> to vector<32x34xf32>
    %c66 = arith.constant 66 : index
    %359 = memref.load %arg2[%c66] : memref<144xf32, #tpu.memory_space<smem>>
    %360 = vector.broadcast %359 : f32 to vector<32x34xf32>
    %361 = arith.mulf %360, %358 : vector<32x34xf32>
    %362 = arith.addf %348, %361 : vector<32x34xf32>
    %c67 = arith.constant 67 : index
    %363 = memref.load %arg2[%c67] : memref<144xf32, #tpu.memory_space<smem>>
    %364 = vector.broadcast %363 : f32 to vector<32x34xf32>
    %365 = arith.mulf %364, %358 : vector<32x34xf32>
    %366 = arith.addf %352, %365 : vector<32x34xf32>
    %c68 = arith.constant 68 : index
    %367 = memref.load %arg2[%c68] : memref<144xf32, #tpu.memory_space<smem>>
    %368 = vector.broadcast %367 : f32 to vector<32x34xf32>
    %369 = arith.mulf %368, %358 : vector<32x34xf32>
    %370 = arith.addf %356, %369 : vector<32x34xf32>
    %c3_110 = arith.constant 3 : index
    %c2_111 = arith.constant 2 : index
    %c0_112 = arith.constant 0 : index
    %371 = vector.load %arg11[%c3_110, %c2_111, %c0_112] : memref<4x34x34xf32, #tpu.memory_space<vmem>>, vector<1x32x34xf32>
    %372 = vector.shape_cast %371 : vector<1x32x34xf32> to vector<32x34xf32>
    %c69 = arith.constant 69 : index
    %373 = memref.load %arg2[%c69] : memref<144xf32, #tpu.memory_space<smem>>
    %374 = vector.broadcast %373 : f32 to vector<32x34xf32>
    %375 = arith.mulf %374, %372 : vector<32x34xf32>
    %376 = arith.addf %362, %375 : vector<32x34xf32>
    %c70 = arith.constant 70 : index
    %377 = memref.load %arg2[%c70] : memref<144xf32, #tpu.memory_space<smem>>
    %378 = vector.broadcast %377 : f32 to vector<32x34xf32>
    %379 = arith.mulf %378, %372 : vector<32x34xf32>
    %380 = arith.addf %366, %379 : vector<32x34xf32>
    %c71 = arith.constant 71 : index
    %381 = memref.load %arg2[%c71] : memref<144xf32, #tpu.memory_space<smem>>
    %382 = vector.broadcast %381 : f32 to vector<32x34xf32>
    %383 = arith.mulf %382, %372 : vector<32x34xf32>
    %384 = arith.addf %370, %383 : vector<32x34xf32>
    %385 = vector.extract_strided_slice %376 {offsets = [0, 0], sizes = [32, 32], strides = [1, 1]} : vector<32x34xf32> to vector<32x32xf32>
    %386 = vector.extract_strided_slice %380 {offsets = [0, 1], sizes = [32, 32], strides = [1, 1]} : vector<32x34xf32> to vector<32x32xf32>
    %387 = arith.addf %385, %386 : vector<32x32xf32>
    %388 = vector.extract_strided_slice %384 {offsets = [0, 2], sizes = [32, 32], strides = [1, 1]} : vector<32x34xf32> to vector<32x32xf32>
    %389 = arith.addf %387, %388 : vector<32x32xf32>
    %c1_113 = arith.constant 1 : index
    %390 = memref.load %arg3[%c1_113] : memref<4xf32, #tpu.memory_space<smem>>
    %391 = vector.broadcast %390 : f32 to vector<32x32xf32>
    %392 = arith.addf %389, %391 : vector<32x32xf32>
    %cst_114 = arith.constant 0.000000e+00 : f32
    %393 = vector.broadcast %cst_114 : f32 to vector<32x32xf32>
    %394 = arith.maximumf %392, %393 : vector<32x32xf32>
    %c0_115 = arith.constant 0 : index
    %c0_116 = arith.constant 0 : index
    %395 = vector.load %arg8[%c0_115, %c0_116] : memref<66x32xf32, #tpu.memory_space<vmem>>, vector<66x32xf32>
    %cst_117 = arith.constant dense<0.000000e+00> : vector<66x32xf32>
    %396 = tpu.matmul %395, %394, %cst_117 {dimension_numbers = #tpu.dot_dimension_numbers<[1], [0], [0], [1], [0, 0, 1, 1], [], []>} : vector<66x32xf32>, vector<32x32xf32>, vector<66x32xf32> -> vector<66x32xf32>
    %c0_118 = arith.constant 0 : index
    %c0_119 = arith.constant 0 : index
    %397 = vector.load %arg9[%c0_118, %c0_119] : memref<32x66xf32, #tpu.memory_space<vmem>>, vector<32x66xf32>
    %cst_120 = arith.constant dense<0.000000e+00> : vector<66x66xf32>
    %398 = tpu.matmul %396, %397, %cst_120 {dimension_numbers = #tpu.dot_dimension_numbers<[1], [0], [0], [1], [0, 0, 1, 1], [], []>} : vector<66x32xf32>, vector<32x66xf32>, vector<66x66xf32> -> vector<66x66xf32>
    %c1_121 = arith.constant 1 : index
    %c0_122 = arith.constant 0 : index
    %c0_123 = arith.constant 0 : index
    %399 = vector.load %arg12[%c1_121, %c0_122, %c0_123] : memref<4x66x66xf32, #tpu.memory_space<vmem>>, vector<1x66x66xf32>
    %400 = vector.shape_cast %399 : vector<1x66x66xf32> to vector<66x66xf32>
    %401 = vector.shape_cast %398 : vector<66x66xf32> to vector<1x66x66xf32>
    tpu.vector_store %arg12[%c1_121, %c0_122, %c0_123], %401 {strides = array<i32>} : memref<4x66x66xf32, #tpu.memory_space<vmem>>, vector<1x66x66xf32>,
    %cst_124 = arith.constant 0.000000e+00 : f32
    %402 = vector.broadcast %cst_124 : f32 to vector<32x34xf32>
    %cst_125 = arith.constant 0.000000e+00 : f32
    %403 = vector.broadcast %cst_125 : f32 to vector<32x34xf32>
    %cst_126 = arith.constant 0.000000e+00 : f32
    %404 = vector.broadcast %cst_126 : f32 to vector<32x34xf32>
    %c0_127 = arith.constant 0 : index
    %c0_128 = arith.constant 0 : index
    %c0_129 = arith.constant 0 : index
    %405 = vector.load %arg11[%c0_127, %c0_128, %c0_129] : memref<4x34x34xf32, #tpu.memory_space<vmem>>, vector<1x32x34xf32>
    %406 = vector.shape_cast %405 : vector<1x32x34xf32> to vector<32x34xf32>
    %c72 = arith.constant 72 : index
    %407 = memref.load %arg2[%c72] : memref<144xf32, #tpu.memory_space<smem>>
    %408 = vector.broadcast %407 : f32 to vector<32x34xf32>
    %409 = arith.mulf %408, %406 : vector<32x34xf32>
    %410 = arith.addf %402, %409 : vector<32x34xf32>
    %c73 = arith.constant 73 : index
    %411 = memref.load %arg2[%c73] : memref<144xf32, #tpu.memory_space<smem>>
    %412 = vector.broadcast %411 : f32 to vector<32x34xf32>
    %413 = arith.mulf %412, %406 : vector<32x34xf32>
    %414 = arith.addf %403, %413 : vector<32x34xf32>
    %c74 = arith.constant 74 : index
    %415 = memref.load %arg2[%c74] : memref<144xf32, #tpu.memory_space<smem>>
    %416 = vector.broadcast %415 : f32 to vector<32x34xf32>
    %417 = arith.mulf %416, %406 : vector<32x34xf32>
    %418 = arith.addf %404, %417 : vector<32x34xf32>
    %c0_130 = arith.constant 0 : index
    %c1_131 = arith.constant 1 : index
    %c0_132 = arith.constant 0 : index
    %419 = vector.load %arg11[%c0_130, %c1_131, %c0_132] : memref<4x34x34xf32, #tpu.memory_space<vmem>>, vector<1x32x34xf32>
    %420 = vector.shape_cast %419 : vector<1x32x34xf32> to vector<32x34xf32>
    %c75 = arith.constant 75 : index
    %421 = memref.load %arg2[%c75] : memref<144xf32, #tpu.memory_space<smem>>
    %422 = vector.broadcast %421 : f32 to vector<32x34xf32>
    %423 = arith.mulf %422, %420 : vector<32x34xf32>
    %424 = arith.addf %410, %423 : vector<32x34xf32>
    %c76 = arith.constant 76 : index
    %425 = memref.load %arg2[%c76] : memref<144xf32, #tpu.memory_space<smem>>
    %426 = vector.broadcast %425 : f32 to vector<32x34xf32>
    %427 = arith.mulf %426, %420 : vector<32x34xf32>
    %428 = arith.addf %414, %427 : vector<32x34xf32>
    %c77 = arith.constant 77 : index
    %429 = memref.load %arg2[%c77] : memref<144xf32, #tpu.memory_space<smem>>
    %430 = vector.broadcast %429 : f32 to vector<32x34xf32>
    %431 = arith.mulf %430, %420 : vector<32x34xf32>
    %432 = arith.addf %418, %431 : vector<32x34xf32>
    %c0_133 = arith.constant 0 : index
    %c2_134 = arith.constant 2 : index
    %c0_135 = arith.constant 0 : index
    %433 = vector.load %arg11[%c0_133, %c2_134, %c0_135] : memref<4x34x34xf32, #tpu.memory_space<vmem>>, vector<1x32x34xf32>
    %434 = vector.shape_cast %433 : vector<1x32x34xf32> to vector<32x34xf32>
    %c78 = arith.constant 78 : index
    %435 = memref.load %arg2[%c78] : memref<144xf32, #tpu.memory_space<smem>>
    %436 = vector.broadcast %435 : f32 to vector<32x34xf32>
    %437 = arith.mulf %436, %434 : vector<32x34xf32>
    %438 = arith.addf %424, %437 : vector<32x34xf32>
    %c79 = arith.constant 79 : index
    %439 = memref.load %arg2[%c79] : memref<144xf32, #tpu.memory_space<smem>>
    %440 = vector.broadcast %439 : f32 to vector<32x34xf32>
    %441 = arith.mulf %440, %434 : vector<32x34xf32>
    %442 = arith.addf %428, %441 : vector<32x34xf32>
    %c80 = arith.constant 80 : index
    %443 = memref.load %arg2[%c80] : memref<144xf32, #tpu.memory_space<smem>>
    %444 = vector.broadcast %443 : f32 to vector<32x34xf32>
    %445 = arith.mulf %444, %434 : vector<32x34xf32>
    %446 = arith.addf %432, %445 : vector<32x34xf32>
    %c1_136 = arith.constant 1 : index
    %c0_137 = arith.constant 0 : index
    %c0_138 = arith.constant 0 : index
    %447 = vector.load %arg11[%c1_136, %c0_137, %c0_138] : memref<4x34x34xf32, #tpu.memory_space<vmem>>, vector<1x32x34xf32>
    %448 = vector.shape_cast %447 : vector<1x32x34xf32> to vector<32x34xf32>
    %c81 = arith.constant 81 : index
    %449 = memref.load %arg2[%c81] : memref<144xf32, #tpu.memory_space<smem>>
    %450 = vector.broadcast %449 : f32 to vector<32x34xf32>
    %451 = arith.mulf %450, %448 : vector<32x34xf32>
    %452 = arith.addf %438, %451 : vector<32x34xf32>
    %c82 = arith.constant 82 : index
    %453 = memref.load %arg2[%c82] : memref<144xf32, #tpu.memory_space<smem>>
    %454 = vector.broadcast %453 : f32 to vector<32x34xf32>
    %455 = arith.mulf %454, %448 : vector<32x34xf32>
    %456 = arith.addf %442, %455 : vector<32x34xf32>
    %c83 = arith.constant 83 : index
    %457 = memref.load %arg2[%c83] : memref<144xf32, #tpu.memory_space<smem>>
    %458 = vector.broadcast %457 : f32 to vector<32x34xf32>
    %459 = arith.mulf %458, %448 : vector<32x34xf32>
    %460 = arith.addf %446, %459 : vector<32x34xf32>
    %c1_139 = arith.constant 1 : index
    %c1_140 = arith.constant 1 : index
    %c0_141 = arith.constant 0 : index
    %461 = vector.load %arg11[%c1_139, %c1_140, %c0_141] : memref<4x34x34xf32, #tpu.memory_space<vmem>>, vector<1x32x34xf32>
    %462 = vector.shape_cast %461 : vector<1x32x34xf32> to vector<32x34xf32>
    %c84 = arith.constant 84 : index
    %463 = memref.load %arg2[%c84] : memref<144xf32, #tpu.memory_space<smem>>
    %464 = vector.broadcast %463 : f32 to vector<32x34xf32>
    %465 = arith.mulf %464, %462 : vector<32x34xf32>
    %466 = arith.addf %452, %465 : vector<32x34xf32>
    %c85 = arith.constant 85 : index
    %467 = memref.load %arg2[%c85] : memref<144xf32, #tpu.memory_space<smem>>
    %468 = vector.broadcast %467 : f32 to vector<32x34xf32>
    %469 = arith.mulf %468, %462 : vector<32x34xf32>
    %470 = arith.addf %456, %469 : vector<32x34xf32>
    %c86 = arith.constant 86 : index
    %471 = memref.load %arg2[%c86] : memref<144xf32, #tpu.memory_space<smem>>
    %472 = vector.broadcast %471 : f32 to vector<32x34xf32>
    %473 = arith.mulf %472, %462 : vector<32x34xf32>
    %474 = arith.addf %460, %473 : vector<32x34xf32>
    %c1_142 = arith.constant 1 : index
    %c2_143 = arith.constant 2 : index
    %c0_144 = arith.constant 0 : index
    %475 = vector.load %arg11[%c1_142, %c2_143, %c0_144] : memref<4x34x34xf32, #tpu.memory_space<vmem>>, vector<1x32x34xf32>
    %476 = vector.shape_cast %475 : vector<1x32x34xf32> to vector<32x34xf32>
    %c87 = arith.constant 87 : index
    %477 = memref.load %arg2[%c87] : memref<144xf32, #tpu.memory_space<smem>>
    %478 = vector.broadcast %477 : f32 to vector<32x34xf32>
    %479 = arith.mulf %478, %476 : vector<32x34xf32>
    %480 = arith.addf %466, %479 : vector<32x34xf32>
    %c88 = arith.constant 88 : index
    %481 = memref.load %arg2[%c88] : memref<144xf32, #tpu.memory_space<smem>>
    %482 = vector.broadcast %481 : f32 to vector<32x34xf32>
    %483 = arith.mulf %482, %476 : vector<32x34xf32>
    %484 = arith.addf %470, %483 : vector<32x34xf32>
    %c89 = arith.constant 89 : index
    %485 = memref.load %arg2[%c89] : memref<144xf32, #tpu.memory_space<smem>>
    %486 = vector.broadcast %485 : f32 to vector<32x34xf32>
    %487 = arith.mulf %486, %476 : vector<32x34xf32>
    %488 = arith.addf %474, %487 : vector<32x34xf32>
    %c2_145 = arith.constant 2 : index
    %c0_146 = arith.constant 0 : index
    %c0_147 = arith.constant 0 : index
    %489 = vector.load %arg11[%c2_145, %c0_146, %c0_147] : memref<4x34x34xf32, #tpu.memory_space<vmem>>, vector<1x32x34xf32>
    %490 = vector.shape_cast %489 : vector<1x32x34xf32> to vector<32x34xf32>
    %c90 = arith.constant 90 : index
    %491 = memref.load %arg2[%c90] : memref<144xf32, #tpu.memory_space<smem>>
    %492 = vector.broadcast %491 : f32 to vector<32x34xf32>
    %493 = arith.mulf %492, %490 : vector<32x34xf32>
    %494 = arith.addf %480, %493 : vector<32x34xf32>
    %c91 = arith.constant 91 : index
    %495 = memref.load %arg2[%c91] : memref<144xf32, #tpu.memory_space<smem>>
    %496 = vector.broadcast %495 : f32 to vector<32x34xf32>
    %497 = arith.mulf %496, %490 : vector<32x34xf32>
    %498 = arith.addf %484, %497 : vector<32x34xf32>
    %c92 = arith.constant 92 : index
    %499 = memref.load %arg2[%c92] : memref<144xf32, #tpu.memory_space<smem>>
    %500 = vector.broadcast %499 : f32 to vector<32x34xf32>
    %501 = arith.mulf %500, %490 : vector<32x34xf32>
    %502 = arith.addf %488, %501 : vector<32x34xf32>
    %c2_148 = arith.constant 2 : index
    %c1_149 = arith.constant 1 : index
    %c0_150 = arith.constant 0 : index
    %503 = vector.load %arg11[%c2_148, %c1_149, %c0_150] : memref<4x34x34xf32, #tpu.memory_space<vmem>>, vector<1x32x34xf32>
    %504 = vector.shape_cast %503 : vector<1x32x34xf32> to vector<32x34xf32>
    %c93 = arith.constant 93 : index
    %505 = memref.load %arg2[%c93] : memref<144xf32, #tpu.memory_space<smem>>
    %506 = vector.broadcast %505 : f32 to vector<32x34xf32>
    %507 = arith.mulf %506, %504 : vector<32x34xf32>
    %508 = arith.addf %494, %507 : vector<32x34xf32>
    %c94 = arith.constant 94 : index
    %509 = memref.load %arg2[%c94] : memref<144xf32, #tpu.memory_space<smem>>
    %510 = vector.broadcast %509 : f32 to vector<32x34xf32>
    %511 = arith.mulf %510, %504 : vector<32x34xf32>
    %512 = arith.addf %498, %511 : vector<32x34xf32>
    %c95 = arith.constant 95 : index
    %513 = memref.load %arg2[%c95] : memref<144xf32, #tpu.memory_space<smem>>
    %514 = vector.broadcast %513 : f32 to vector<32x34xf32>
    %515 = arith.mulf %514, %504 : vector<32x34xf32>
    %516 = arith.addf %502, %515 : vector<32x34xf32>
    %c2_151 = arith.constant 2 : index
    %c2_152 = arith.constant 2 : index
    %c0_153 = arith.constant 0 : index
    %517 = vector.load %arg11[%c2_151, %c2_152, %c0_153] : memref<4x34x34xf32, #tpu.memory_space<vmem>>, vector<1x32x34xf32>
    %518 = vector.shape_cast %517 : vector<1x32x34xf32> to vector<32x34xf32>
    %c96 = arith.constant 96 : index
    %519 = memref.load %arg2[%c96] : memref<144xf32, #tpu.memory_space<smem>>
    %520 = vector.broadcast %519 : f32 to vector<32x34xf32>
    %521 = arith.mulf %520, %518 : vector<32x34xf32>
    %522 = arith.addf %508, %521 : vector<32x34xf32>
    %c97 = arith.constant 97 : index
    %523 = memref.load %arg2[%c97] : memref<144xf32, #tpu.memory_space<smem>>
    %524 = vector.broadcast %523 : f32 to vector<32x34xf32>
    %525 = arith.mulf %524, %518 : vector<32x34xf32>
    %526 = arith.addf %512, %525 : vector<32x34xf32>
    %c98 = arith.constant 98 : index
    %527 = memref.load %arg2[%c98] : memref<144xf32, #tpu.memory_space<smem>>
    %528 = vector.broadcast %527 : f32 to vector<32x34xf32>
    %529 = arith.mulf %528, %518 : vector<32x34xf32>
    %530 = arith.addf %516, %529 : vector<32x34xf32>
    %c3_154 = arith.constant 3 : index
    %c0_155 = arith.constant 0 : index
    %c0_156 = arith.constant 0 : index
    %531 = vector.load %arg11[%c3_154, %c0_155, %c0_156] : memref<4x34x34xf32, #tpu.memory_space<vmem>>, vector<1x32x34xf32>
    %532 = vector.shape_cast %531 : vector<1x32x34xf32> to vector<32x34xf32>
    %c99 = arith.constant 99 : index
    %533 = memref.load %arg2[%c99] : memref<144xf32, #tpu.memory_space<smem>>
    %534 = vector.broadcast %533 : f32 to vector<32x34xf32>
    %535 = arith.mulf %534, %532 : vector<32x34xf32>
    %536 = arith.addf %522, %535 : vector<32x34xf32>
    %c100 = arith.constant 100 : index
    %537 = memref.load %arg2[%c100] : memref<144xf32, #tpu.memory_space<smem>>
    %538 = vector.broadcast %537 : f32 to vector<32x34xf32>
    %539 = arith.mulf %538, %532 : vector<32x34xf32>
    %540 = arith.addf %526, %539 : vector<32x34xf32>
    %c101 = arith.constant 101 : index
    %541 = memref.load %arg2[%c101] : memref<144xf32, #tpu.memory_space<smem>>
    %542 = vector.broadcast %541 : f32 to vector<32x34xf32>
    %543 = arith.mulf %542, %532 : vector<32x34xf32>
    %544 = arith.addf %530, %543 : vector<32x34xf32>
    %c3_157 = arith.constant 3 : index
    %c1_158 = arith.constant 1 : index
    %c0_159 = arith.constant 0 : index
    %545 = vector.load %arg11[%c3_157, %c1_158, %c0_159] : memref<4x34x34xf32, #tpu.memory_space<vmem>>, vector<1x32x34xf32>
    %546 = vector.shape_cast %545 : vector<1x32x34xf32> to vector<32x34xf32>
    %c102 = arith.constant 102 : index
    %547 = memref.load %arg2[%c102] : memref<144xf32, #tpu.memory_space<smem>>
    %548 = vector.broadcast %547 : f32 to vector<32x34xf32>
    %549 = arith.mulf %548, %546 : vector<32x34xf32>
    %550 = arith.addf %536, %549 : vector<32x34xf32>
    %c103 = arith.constant 103 : index
    %551 = memref.load %arg2[%c103] : memref<144xf32, #tpu.memory_space<smem>>
    %552 = vector.broadcast %551 : f32 to vector<32x34xf32>
    %553 = arith.mulf %552, %546 : vector<32x34xf32>
    %554 = arith.addf %540, %553 : vector<32x34xf32>
    %c104 = arith.constant 104 : index
    %555 = memref.load %arg2[%c104] : memref<144xf32, #tpu.memory_space<smem>>
    %556 = vector.broadcast %555 : f32 to vector<32x34xf32>
    %557 = arith.mulf %556, %546 : vector<32x34xf32>
    %558 = arith.addf %544, %557 : vector<32x34xf32>
    %c3_160 = arith.constant 3 : index
    %c2_161 = arith.constant 2 : index
    %c0_162 = arith.constant 0 : index
    %559 = vector.load %arg11[%c3_160, %c2_161, %c0_162] : memref<4x34x34xf32, #tpu.memory_space<vmem>>, vector<1x32x34xf32>
    %560 = vector.shape_cast %559 : vector<1x32x34xf32> to vector<32x34xf32>
    %c105 = arith.constant 105 : index
    %561 = memref.load %arg2[%c105] : memref<144xf32, #tpu.memory_space<smem>>
    %562 = vector.broadcast %561 : f32 to vector<32x34xf32>
    %563 = arith.mulf %562, %560 : vector<32x34xf32>
    %564 = arith.addf %550, %563 : vector<32x34xf32>
    %c106 = arith.constant 106 : index
    %565 = memref.load %arg2[%c106] : memref<144xf32, #tpu.memory_space<smem>>
    %566 = vector.broadcast %565 : f32 to vector<32x34xf32>
    %567 = arith.mulf %566, %560 : vector<32x34xf32>
    %568 = arith.addf %554, %567 : vector<32x34xf32>
    %c107 = arith.constant 107 : index
    %569 = memref.load %arg2[%c107] : memref<144xf32, #tpu.memory_space<smem>>
    %570 = vector.broadcast %569 : f32 to vector<32x34xf32>
    %571 = arith.mulf %570, %560 : vector<32x34xf32>
    %572 = arith.addf %558, %571 : vector<32x34xf32>
    %573 = vector.extract_strided_slice %564 {offsets = [0, 0], sizes = [32, 32], strides = [1, 1]} : vector<32x34xf32> to vector<32x32xf32>
    %574 = vector.extract_strided_slice %568 {offsets = [0, 1], sizes = [32, 32], strides = [1, 1]} : vector<32x34xf32> to vector<32x32xf32>
    %575 = arith.addf %573, %574 : vector<32x32xf32>
    %576 = vector.extract_strided_slice %572 {offsets = [0, 2], sizes = [32, 32], strides = [1, 1]} : vector<32x34xf32> to vector<32x32xf32>
    %577 = arith.addf %575, %576 : vector<32x32xf32>
    %c2_163 = arith.constant 2 : index
    %578 = memref.load %arg3[%c2_163] : memref<4xf32, #tpu.memory_space<smem>>
    %579 = vector.broadcast %578 : f32 to vector<32x32xf32>
    %580 = arith.addf %577, %579 : vector<32x32xf32>
    %cst_164 = arith.constant 0.000000e+00 : f32
    %581 = vector.broadcast %cst_164 : f32 to vector<32x32xf32>
    %582 = arith.maximumf %580, %581 : vector<32x32xf32>
    %c0_165 = arith.constant 0 : index
    %c0_166 = arith.constant 0 : index
    %583 = vector.load %arg8[%c0_165, %c0_166] : memref<66x32xf32, #tpu.memory_space<vmem>>, vector<66x32xf32>
    %cst_167 = arith.constant dense<0.000000e+00> : vector<66x32xf32>
    %584 = tpu.matmul %583, %582, %cst_167 {dimension_numbers = #tpu.dot_dimension_numbers<[1], [0], [0], [1], [0, 0, 1, 1], [], []>} : vector<66x32xf32>, vector<32x32xf32>, vector<66x32xf32> -> vector<66x32xf32>
    %c0_168 = arith.constant 0 : index
    %c0_169 = arith.constant 0 : index
    %585 = vector.load %arg9[%c0_168, %c0_169] : memref<32x66xf32, #tpu.memory_space<vmem>>, vector<32x66xf32>
    %cst_170 = arith.constant dense<0.000000e+00> : vector<66x66xf32>
    %586 = tpu.matmul %584, %585, %cst_170 {dimension_numbers = #tpu.dot_dimension_numbers<[1], [0], [0], [1], [0, 0, 1, 1], [], []>} : vector<66x32xf32>, vector<32x66xf32>, vector<66x66xf32> -> vector<66x66xf32>
    %c2_171 = arith.constant 2 : index
    %c0_172 = arith.constant 0 : index
    %c0_173 = arith.constant 0 : index
    %587 = vector.load %arg12[%c2_171, %c0_172, %c0_173] : memref<4x66x66xf32, #tpu.memory_space<vmem>>, vector<1x66x66xf32>
    %588 = vector.shape_cast %587 : vector<1x66x66xf32> to vector<66x66xf32>
    %589 = vector.shape_cast %586 : vector<66x66xf32> to vector<1x66x66xf32>
    tpu.vector_store %arg12[%c2_171, %c0_172, %c0_173], %589 {strides = array<i32>} : memref<4x66x66xf32, #tpu.memory_space<vmem>>, vector<1x66x66xf32>,
    %cst_174 = arith.constant 0.000000e+00 : f32
    %590 = vector.broadcast %cst_174 : f32 to vector<32x34xf32>
    %cst_175 = arith.constant 0.000000e+00 : f32
    %591 = vector.broadcast %cst_175 : f32 to vector<32x34xf32>
    %cst_176 = arith.constant 0.000000e+00 : f32
    %592 = vector.broadcast %cst_176 : f32 to vector<32x34xf32>
    %c0_177 = arith.constant 0 : index
    %c0_178 = arith.constant 0 : index
    %c0_179 = arith.constant 0 : index
    %593 = vector.load %arg11[%c0_177, %c0_178, %c0_179] : memref<4x34x34xf32, #tpu.memory_space<vmem>>, vector<1x32x34xf32>
    %594 = vector.shape_cast %593 : vector<1x32x34xf32> to vector<32x34xf32>
    %c108 = arith.constant 108 : index
    %595 = memref.load %arg2[%c108] : memref<144xf32, #tpu.memory_space<smem>>
    %596 = vector.broadcast %595 : f32 to vector<32x34xf32>
    %597 = arith.mulf %596, %594 : vector<32x34xf32>
    %598 = arith.addf %590, %597 : vector<32x34xf32>
    %c109 = arith.constant 109 : index
    %599 = memref.load %arg2[%c109] : memref<144xf32, #tpu.memory_space<smem>>
    %600 = vector.broadcast %599 : f32 to vector<32x34xf32>
    %601 = arith.mulf %600, %594 : vector<32x34xf32>
    %602 = arith.addf %591, %601 : vector<32x34xf32>
    %c110 = arith.constant 110 : index
    %603 = memref.load %arg2[%c110] : memref<144xf32, #tpu.memory_space<smem>>
    %604 = vector.broadcast %603 : f32 to vector<32x34xf32>
    %605 = arith.mulf %604, %594 : vector<32x34xf32>
    %606 = arith.addf %592, %605 : vector<32x34xf32>
    %c0_180 = arith.constant 0 : index
    %c1_181 = arith.constant 1 : index
    %c0_182 = arith.constant 0 : index
    %607 = vector.load %arg11[%c0_180, %c1_181, %c0_182] : memref<4x34x34xf32, #tpu.memory_space<vmem>>, vector<1x32x34xf32>
    %608 = vector.shape_cast %607 : vector<1x32x34xf32> to vector<32x34xf32>
    %c111 = arith.constant 111 : index
    %609 = memref.load %arg2[%c111] : memref<144xf32, #tpu.memory_space<smem>>
    %610 = vector.broadcast %609 : f32 to vector<32x34xf32>
    %611 = arith.mulf %610, %608 : vector<32x34xf32>
    %612 = arith.addf %598, %611 : vector<32x34xf32>
    %c112 = arith.constant 112 : index
    %613 = memref.load %arg2[%c112] : memref<144xf32, #tpu.memory_space<smem>>
    %614 = vector.broadcast %613 : f32 to vector<32x34xf32>
    %615 = arith.mulf %614, %608 : vector<32x34xf32>
    %616 = arith.addf %602, %615 : vector<32x34xf32>
    %c113 = arith.constant 113 : index
    %617 = memref.load %arg2[%c113] : memref<144xf32, #tpu.memory_space<smem>>
    %618 = vector.broadcast %617 : f32 to vector<32x34xf32>
    %619 = arith.mulf %618, %608 : vector<32x34xf32>
    %620 = arith.addf %606, %619 : vector<32x34xf32>
    %c0_183 = arith.constant 0 : index
    %c2_184 = arith.constant 2 : index
    %c0_185 = arith.constant 0 : index
    %621 = vector.load %arg11[%c0_183, %c2_184, %c0_185] : memref<4x34x34xf32, #tpu.memory_space<vmem>>, vector<1x32x34xf32>
    %622 = vector.shape_cast %621 : vector<1x32x34xf32> to vector<32x34xf32>
    %c114 = arith.constant 114 : index
    %623 = memref.load %arg2[%c114] : memref<144xf32, #tpu.memory_space<smem>>
    %624 = vector.broadcast %623 : f32 to vector<32x34xf32>
    %625 = arith.mulf %624, %622 : vector<32x34xf32>
    %626 = arith.addf %612, %625 : vector<32x34xf32>
    %c115 = arith.constant 115 : index
    %627 = memref.load %arg2[%c115] : memref<144xf32, #tpu.memory_space<smem>>
    %628 = vector.broadcast %627 : f32 to vector<32x34xf32>
    %629 = arith.mulf %628, %622 : vector<32x34xf32>
    %630 = arith.addf %616, %629 : vector<32x34xf32>
    %c116 = arith.constant 116 : index
    %631 = memref.load %arg2[%c116] : memref<144xf32, #tpu.memory_space<smem>>
    %632 = vector.broadcast %631 : f32 to vector<32x34xf32>
    %633 = arith.mulf %632, %622 : vector<32x34xf32>
    %634 = arith.addf %620, %633 : vector<32x34xf32>
    %c1_186 = arith.constant 1 : index
    %c0_187 = arith.constant 0 : index
    %c0_188 = arith.constant 0 : index
    %635 = vector.load %arg11[%c1_186, %c0_187, %c0_188] : memref<4x34x34xf32, #tpu.memory_space<vmem>>, vector<1x32x34xf32>
    %636 = vector.shape_cast %635 : vector<1x32x34xf32> to vector<32x34xf32>
    %c117 = arith.constant 117 : index
    %637 = memref.load %arg2[%c117] : memref<144xf32, #tpu.memory_space<smem>>
    %638 = vector.broadcast %637 : f32 to vector<32x34xf32>
    %639 = arith.mulf %638, %636 : vector<32x34xf32>
    %640 = arith.addf %626, %639 : vector<32x34xf32>
    %c118 = arith.constant 118 : index
    %641 = memref.load %arg2[%c118] : memref<144xf32, #tpu.memory_space<smem>>
    %642 = vector.broadcast %641 : f32 to vector<32x34xf32>
    %643 = arith.mulf %642, %636 : vector<32x34xf32>
    %644 = arith.addf %630, %643 : vector<32x34xf32>
    %c119 = arith.constant 119 : index
    %645 = memref.load %arg2[%c119] : memref<144xf32, #tpu.memory_space<smem>>
    %646 = vector.broadcast %645 : f32 to vector<32x34xf32>
    %647 = arith.mulf %646, %636 : vector<32x34xf32>
    %648 = arith.addf %634, %647 : vector<32x34xf32>
    %c1_189 = arith.constant 1 : index
    %c1_190 = arith.constant 1 : index
    %c0_191 = arith.constant 0 : index
    %649 = vector.load %arg11[%c1_189, %c1_190, %c0_191] : memref<4x34x34xf32, #tpu.memory_space<vmem>>, vector<1x32x34xf32>
    %650 = vector.shape_cast %649 : vector<1x32x34xf32> to vector<32x34xf32>
    %c120 = arith.constant 120 : index
    %651 = memref.load %arg2[%c120] : memref<144xf32, #tpu.memory_space<smem>>
    %652 = vector.broadcast %651 : f32 to vector<32x34xf32>
    %653 = arith.mulf %652, %650 : vector<32x34xf32>
    %654 = arith.addf %640, %653 : vector<32x34xf32>
    %c121 = arith.constant 121 : index
    %655 = memref.load %arg2[%c121] : memref<144xf32, #tpu.memory_space<smem>>
    %656 = vector.broadcast %655 : f32 to vector<32x34xf32>
    %657 = arith.mulf %656, %650 : vector<32x34xf32>
    %658 = arith.addf %644, %657 : vector<32x34xf32>
    %c122 = arith.constant 122 : index
    %659 = memref.load %arg2[%c122] : memref<144xf32, #tpu.memory_space<smem>>
    %660 = vector.broadcast %659 : f32 to vector<32x34xf32>
    %661 = arith.mulf %660, %650 : vector<32x34xf32>
    %662 = arith.addf %648, %661 : vector<32x34xf32>
    %c1_192 = arith.constant 1 : index
    %c2_193 = arith.constant 2 : index
    %c0_194 = arith.constant 0 : index
    %663 = vector.load %arg11[%c1_192, %c2_193, %c0_194] : memref<4x34x34xf32, #tpu.memory_space<vmem>>, vector<1x32x34xf32>
    %664 = vector.shape_cast %663 : vector<1x32x34xf32> to vector<32x34xf32>
    %c123 = arith.constant 123 : index
    %665 = memref.load %arg2[%c123] : memref<144xf32, #tpu.memory_space<smem>>
    %666 = vector.broadcast %665 : f32 to vector<32x34xf32>
    %667 = arith.mulf %666, %664 : vector<32x34xf32>
    %668 = arith.addf %654, %667 : vector<32x34xf32>
    %c124 = arith.constant 124 : index
    %669 = memref.load %arg2[%c124] : memref<144xf32, #tpu.memory_space<smem>>
    %670 = vector.broadcast %669 : f32 to vector<32x34xf32>
    %671 = arith.mulf %670, %664 : vector<32x34xf32>
    %672 = arith.addf %658, %671 : vector<32x34xf32>
    %c125 = arith.constant 125 : index
    %673 = memref.load %arg2[%c125] : memref<144xf32, #tpu.memory_space<smem>>
    %674 = vector.broadcast %673 : f32 to vector<32x34xf32>
    %675 = arith.mulf %674, %664 : vector<32x34xf32>
    %676 = arith.addf %662, %675 : vector<32x34xf32>
    %c2_195 = arith.constant 2 : index
    %c0_196 = arith.constant 0 : index
    %c0_197 = arith.constant 0 : index
    %677 = vector.load %arg11[%c2_195, %c0_196, %c0_197] : memref<4x34x34xf32, #tpu.memory_space<vmem>>, vector<1x32x34xf32>
    %678 = vector.shape_cast %677 : vector<1x32x34xf32> to vector<32x34xf32>
    %c126 = arith.constant 126 : index
    %679 = memref.load %arg2[%c126] : memref<144xf32, #tpu.memory_space<smem>>
    %680 = vector.broadcast %679 : f32 to vector<32x34xf32>
    %681 = arith.mulf %680, %678 : vector<32x34xf32>
    %682 = arith.addf %668, %681 : vector<32x34xf32>
    %c127 = arith.constant 127 : index
    %683 = memref.load %arg2[%c127] : memref<144xf32, #tpu.memory_space<smem>>
    %684 = vector.broadcast %683 : f32 to vector<32x34xf32>
    %685 = arith.mulf %684, %678 : vector<32x34xf32>
    %686 = arith.addf %672, %685 : vector<32x34xf32>
    %c128 = arith.constant 128 : index
    %687 = memref.load %arg2[%c128] : memref<144xf32, #tpu.memory_space<smem>>
    %688 = vector.broadcast %687 : f32 to vector<32x34xf32>
    %689 = arith.mulf %688, %678 : vector<32x34xf32>
    %690 = arith.addf %676, %689 : vector<32x34xf32>
    %c2_198 = arith.constant 2 : index
    %c1_199 = arith.constant 1 : index
    %c0_200 = arith.constant 0 : index
    %691 = vector.load %arg11[%c2_198, %c1_199, %c0_200] : memref<4x34x34xf32, #tpu.memory_space<vmem>>, vector<1x32x34xf32>
    %692 = vector.shape_cast %691 : vector<1x32x34xf32> to vector<32x34xf32>
    %c129 = arith.constant 129 : index
    %693 = memref.load %arg2[%c129] : memref<144xf32, #tpu.memory_space<smem>>
    %694 = vector.broadcast %693 : f32 to vector<32x34xf32>
    %695 = arith.mulf %694, %692 : vector<32x34xf32>
    %696 = arith.addf %682, %695 : vector<32x34xf32>
    %c130 = arith.constant 130 : index
    %697 = memref.load %arg2[%c130] : memref<144xf32, #tpu.memory_space<smem>>
    %698 = vector.broadcast %697 : f32 to vector<32x34xf32>
    %699 = arith.mulf %698, %692 : vector<32x34xf32>
    %700 = arith.addf %686, %699 : vector<32x34xf32>
    %c131 = arith.constant 131 : index
    %701 = memref.load %arg2[%c131] : memref<144xf32, #tpu.memory_space<smem>>
    %702 = vector.broadcast %701 : f32 to vector<32x34xf32>
    %703 = arith.mulf %702, %692 : vector<32x34xf32>
    %704 = arith.addf %690, %703 : vector<32x34xf32>
    %c2_201 = arith.constant 2 : index
    %c2_202 = arith.constant 2 : index
    %c0_203 = arith.constant 0 : index
    %705 = vector.load %arg11[%c2_201, %c2_202, %c0_203] : memref<4x34x34xf32, #tpu.memory_space<vmem>>, vector<1x32x34xf32>
    %706 = vector.shape_cast %705 : vector<1x32x34xf32> to vector<32x34xf32>
    %c132 = arith.constant 132 : index
    %707 = memref.load %arg2[%c132] : memref<144xf32, #tpu.memory_space<smem>>
    %708 = vector.broadcast %707 : f32 to vector<32x34xf32>
    %709 = arith.mulf %708, %706 : vector<32x34xf32>
    %710 = arith.addf %696, %709 : vector<32x34xf32>
    %c133 = arith.constant 133 : index
    %711 = memref.load %arg2[%c133] : memref<144xf32, #tpu.memory_space<smem>>
    %712 = vector.broadcast %711 : f32 to vector<32x34xf32>
    %713 = arith.mulf %712, %706 : vector<32x34xf32>
    %714 = arith.addf %700, %713 : vector<32x34xf32>
    %c134 = arith.constant 134 : index
    %715 = memref.load %arg2[%c134] : memref<144xf32, #tpu.memory_space<smem>>
    %716 = vector.broadcast %715 : f32 to vector<32x34xf32>
    %717 = arith.mulf %716, %706 : vector<32x34xf32>
    %718 = arith.addf %704, %717 : vector<32x34xf32>
    %c3_204 = arith.constant 3 : index
    %c0_205 = arith.constant 0 : index
    %c0_206 = arith.constant 0 : index
    %719 = vector.load %arg11[%c3_204, %c0_205, %c0_206] : memref<4x34x34xf32, #tpu.memory_space<vmem>>, vector<1x32x34xf32>
    %720 = vector.shape_cast %719 : vector<1x32x34xf32> to vector<32x34xf32>
    %c135 = arith.constant 135 : index
    %721 = memref.load %arg2[%c135] : memref<144xf32, #tpu.memory_space<smem>>
    %722 = vector.broadcast %721 : f32 to vector<32x34xf32>
    %723 = arith.mulf %722, %720 : vector<32x34xf32>
    %724 = arith.addf %710, %723 : vector<32x34xf32>
    %c136 = arith.constant 136 : index
    %725 = memref.load %arg2[%c136] : memref<144xf32, #tpu.memory_space<smem>>
    %726 = vector.broadcast %725 : f32 to vector<32x34xf32>
    %727 = arith.mulf %726, %720 : vector<32x34xf32>
    %728 = arith.addf %714, %727 : vector<32x34xf32>
    %c137 = arith.constant 137 : index
    %729 = memref.load %arg2[%c137] : memref<144xf32, #tpu.memory_space<smem>>
    %730 = vector.broadcast %729 : f32 to vector<32x34xf32>
    %731 = arith.mulf %730, %720 : vector<32x34xf32>
    %732 = arith.addf %718, %731 : vector<32x34xf32>
    %c3_207 = arith.constant 3 : index
    %c1_208 = arith.constant 1 : index
    %c0_209 = arith.constant 0 : index
    %733 = vector.load %arg11[%c3_207, %c1_208, %c0_209] : memref<4x34x34xf32, #tpu.memory_space<vmem>>, vector<1x32x34xf32>
    %734 = vector.shape_cast %733 : vector<1x32x34xf32> to vector<32x34xf32>
    %c138 = arith.constant 138 : index
    %735 = memref.load %arg2[%c138] : memref<144xf32, #tpu.memory_space<smem>>
    %736 = vector.broadcast %735 : f32 to vector<32x34xf32>
    %737 = arith.mulf %736, %734 : vector<32x34xf32>
    %738 = arith.addf %724, %737 : vector<32x34xf32>
    %c139 = arith.constant 139 : index
    %739 = memref.load %arg2[%c139] : memref<144xf32, #tpu.memory_space<smem>>
    %740 = vector.broadcast %739 : f32 to vector<32x34xf32>
    %741 = arith.mulf %740, %734 : vector<32x34xf32>
    %742 = arith.addf %728, %741 : vector<32x34xf32>
    %c140 = arith.constant 140 : index
    %743 = memref.load %arg2[%c140] : memref<144xf32, #tpu.memory_space<smem>>
    %744 = vector.broadcast %743 : f32 to vector<32x34xf32>
    %745 = arith.mulf %744, %734 : vector<32x34xf32>
    %746 = arith.addf %732, %745 : vector<32x34xf32>
    %c3_210 = arith.constant 3 : index
    %c2_211 = arith.constant 2 : index
    %c0_212 = arith.constant 0 : index
    %747 = vector.load %arg11[%c3_210, %c2_211, %c0_212] : memref<4x34x34xf32, #tpu.memory_space<vmem>>, vector<1x32x34xf32>
    %748 = vector.shape_cast %747 : vector<1x32x34xf32> to vector<32x34xf32>
    %c141 = arith.constant 141 : index
    %749 = memref.load %arg2[%c141] : memref<144xf32, #tpu.memory_space<smem>>
    %750 = vector.broadcast %749 : f32 to vector<32x34xf32>
    %751 = arith.mulf %750, %748 : vector<32x34xf32>
    %752 = arith.addf %738, %751 : vector<32x34xf32>
    %c142 = arith.constant 142 : index
    %753 = memref.load %arg2[%c142] : memref<144xf32, #tpu.memory_space<smem>>
    %754 = vector.broadcast %753 : f32 to vector<32x34xf32>
    %755 = arith.mulf %754, %748 : vector<32x34xf32>
    %756 = arith.addf %742, %755 : vector<32x34xf32>
    %c143 = arith.constant 143 : index
    %757 = memref.load %arg2[%c143] : memref<144xf32, #tpu.memory_space<smem>>
    %758 = vector.broadcast %757 : f32 to vector<32x34xf32>
    %759 = arith.mulf %758, %748 : vector<32x34xf32>
    %760 = arith.addf %746, %759 : vector<32x34xf32>
    %761 = vector.extract_strided_slice %752 {offsets = [0, 0], sizes = [32, 32], strides = [1, 1]} : vector<32x34xf32> to vector<32x32xf32>
    %762 = vector.extract_strided_slice %756 {offsets = [0, 1], sizes = [32, 32], strides = [1, 1]} : vector<32x34xf32> to vector<32x32xf32>
    %763 = arith.addf %761, %762 : vector<32x32xf32>
    %764 = vector.extract_strided_slice %760 {offsets = [0, 2], sizes = [32, 32], strides = [1, 1]} : vector<32x34xf32> to vector<32x32xf32>
    %765 = arith.addf %763, %764 : vector<32x32xf32>
    %c3_213 = arith.constant 3 : index
    %766 = memref.load %arg3[%c3_213] : memref<4xf32, #tpu.memory_space<smem>>
    %767 = vector.broadcast %766 : f32 to vector<32x32xf32>
    %768 = arith.addf %765, %767 : vector<32x32xf32>
    %cst_214 = arith.constant 0.000000e+00 : f32
    %769 = vector.broadcast %cst_214 : f32 to vector<32x32xf32>
    %770 = arith.maximumf %768, %769 : vector<32x32xf32>
    %c0_215 = arith.constant 0 : index
    %c0_216 = arith.constant 0 : index
    %771 = vector.load %arg8[%c0_215, %c0_216] : memref<66x32xf32, #tpu.memory_space<vmem>>, vector<66x32xf32>
    %cst_217 = arith.constant dense<0.000000e+00> : vector<66x32xf32>
    %772 = tpu.matmul %771, %770, %cst_217 {dimension_numbers = #tpu.dot_dimension_numbers<[1], [0], [0], [1], [0, 0, 1, 1], [], []>} : vector<66x32xf32>, vector<32x32xf32>, vector<66x32xf32> -> vector<66x32xf32>
    %c0_218 = arith.constant 0 : index
    %c0_219 = arith.constant 0 : index
    %773 = vector.load %arg9[%c0_218, %c0_219] : memref<32x66xf32, #tpu.memory_space<vmem>>, vector<32x66xf32>
    %cst_220 = arith.constant dense<0.000000e+00> : vector<66x66xf32>
    %774 = tpu.matmul %772, %773, %cst_220 {dimension_numbers = #tpu.dot_dimension_numbers<[1], [0], [0], [1], [0, 0, 1, 1], [], []>} : vector<66x32xf32>, vector<32x66xf32>, vector<66x66xf32> -> vector<66x66xf32>
    %c3_221 = arith.constant 3 : index
    %c0_222 = arith.constant 0 : index
    %c0_223 = arith.constant 0 : index
    %775 = vector.load %arg12[%c3_221, %c0_222, %c0_223] : memref<4x66x66xf32, #tpu.memory_space<vmem>>, vector<1x66x66xf32>
    %776 = vector.shape_cast %775 : vector<1x66x66xf32> to vector<66x66xf32>
    %777 = vector.shape_cast %774 : vector<66x66xf32> to vector<1x66x66xf32>
    tpu.vector_store %arg12[%c3_221, %c0_222, %c0_223], %777 {strides = array<i32>} : memref<4x66x66xf32, #tpu.memory_space<vmem>>, vector<1x66x66xf32>,
    %cst_224 = arith.constant 0.000000e+00 : f32
    %778 = vector.broadcast %cst_224 : f32 to vector<64x66xf32>
    %cst_225 = arith.constant 0.000000e+00 : f32
    %779 = vector.broadcast %cst_225 : f32 to vector<64x66xf32>
    %cst_226 = arith.constant 0.000000e+00 : f32
    %780 = vector.broadcast %cst_226 : f32 to vector<64x66xf32>
    %c0_227 = arith.constant 0 : index
    %c0_228 = arith.constant 0 : index
    %c0_229 = arith.constant 0 : index
    %781 = vector.load %arg12[%c0_227, %c0_228, %c0_229] : memref<4x66x66xf32, #tpu.memory_space<vmem>>, vector<1x64x66xf32>
    %782 = vector.shape_cast %781 : vector<1x64x66xf32> to vector<64x66xf32>
    %c0_230 = arith.constant 0 : index
    %783 = memref.load %arg4[%c0_230] : memref<36xf32, #tpu.memory_space<smem>>
    %784 = vector.broadcast %783 : f32 to vector<64x66xf32>
    %785 = arith.mulf %784, %782 : vector<64x66xf32>
    %786 = arith.addf %778, %785 : vector<64x66xf32>
    %c1_231 = arith.constant 1 : index
    %787 = memref.load %arg4[%c1_231] : memref<36xf32, #tpu.memory_space<smem>>
    %788 = vector.broadcast %787 : f32 to vector<64x66xf32>
    %789 = arith.mulf %788, %782 : vector<64x66xf32>
    %790 = arith.addf %779, %789 : vector<64x66xf32>
    %c2_232 = arith.constant 2 : index
    %791 = memref.load %arg4[%c2_232] : memref<36xf32, #tpu.memory_space<smem>>
    %792 = vector.broadcast %791 : f32 to vector<64x66xf32>
    %793 = arith.mulf %792, %782 : vector<64x66xf32>
    %794 = arith.addf %780, %793 : vector<64x66xf32>
    %c0_233 = arith.constant 0 : index
    %c1_234 = arith.constant 1 : index
    %c0_235 = arith.constant 0 : index
    %795 = vector.load %arg12[%c0_233, %c1_234, %c0_235] : memref<4x66x66xf32, #tpu.memory_space<vmem>>, vector<1x64x66xf32>
    %796 = vector.shape_cast %795 : vector<1x64x66xf32> to vector<64x66xf32>
    %c3_236 = arith.constant 3 : index
    %797 = memref.load %arg4[%c3_236] : memref<36xf32, #tpu.memory_space<smem>>
    %798 = vector.broadcast %797 : f32 to vector<64x66xf32>
    %799 = arith.mulf %798, %796 : vector<64x66xf32>
    %800 = arith.addf %786, %799 : vector<64x66xf32>
    %c4_237 = arith.constant 4 : index
    %801 = memref.load %arg4[%c4_237] : memref<36xf32, #tpu.memory_space<smem>>
    %802 = vector.broadcast %801 : f32 to vector<64x66xf32>
    %803 = arith.mulf %802, %796 : vector<64x66xf32>
    %804 = arith.addf %790, %803 : vector<64x66xf32>
    %c5_238 = arith.constant 5 : index
    %805 = memref.load %arg4[%c5_238] : memref<36xf32, #tpu.memory_space<smem>>
    %806 = vector.broadcast %805 : f32 to vector<64x66xf32>
    %807 = arith.mulf %806, %796 : vector<64x66xf32>
    %808 = arith.addf %794, %807 : vector<64x66xf32>
    %c0_239 = arith.constant 0 : index
    %c2_240 = arith.constant 2 : index
    %c0_241 = arith.constant 0 : index
    %809 = vector.load %arg12[%c0_239, %c2_240, %c0_241] : memref<4x66x66xf32, #tpu.memory_space<vmem>>, vector<1x64x66xf32>
    %810 = vector.shape_cast %809 : vector<1x64x66xf32> to vector<64x66xf32>
    %c6_242 = arith.constant 6 : index
    %811 = memref.load %arg4[%c6_242] : memref<36xf32, #tpu.memory_space<smem>>
    %812 = vector.broadcast %811 : f32 to vector<64x66xf32>
    %813 = arith.mulf %812, %810 : vector<64x66xf32>
    %814 = arith.addf %800, %813 : vector<64x66xf32>
    %c7_243 = arith.constant 7 : index
    %815 = memref.load %arg4[%c7_243] : memref<36xf32, #tpu.memory_space<smem>>
    %816 = vector.broadcast %815 : f32 to vector<64x66xf32>
    %817 = arith.mulf %816, %810 : vector<64x66xf32>
    %818 = arith.addf %804, %817 : vector<64x66xf32>
    %c8_244 = arith.constant 8 : index
    %819 = memref.load %arg4[%c8_244] : memref<36xf32, #tpu.memory_space<smem>>
    %820 = vector.broadcast %819 : f32 to vector<64x66xf32>
    %821 = arith.mulf %820, %810 : vector<64x66xf32>
    %822 = arith.addf %808, %821 : vector<64x66xf32>
    %c1_245 = arith.constant 1 : index
    %c0_246 = arith.constant 0 : index
    %c0_247 = arith.constant 0 : index
    %823 = vector.load %arg12[%c1_245, %c0_246, %c0_247] : memref<4x66x66xf32, #tpu.memory_space<vmem>>, vector<1x64x66xf32>
    %824 = vector.shape_cast %823 : vector<1x64x66xf32> to vector<64x66xf32>
    %c9_248 = arith.constant 9 : index
    %825 = memref.load %arg4[%c9_248] : memref<36xf32, #tpu.memory_space<smem>>
    %826 = vector.broadcast %825 : f32 to vector<64x66xf32>
    %827 = arith.mulf %826, %824 : vector<64x66xf32>
    %828 = arith.addf %814, %827 : vector<64x66xf32>
    %c10_249 = arith.constant 10 : index
    %829 = memref.load %arg4[%c10_249] : memref<36xf32, #tpu.memory_space<smem>>
    %830 = vector.broadcast %829 : f32 to vector<64x66xf32>
    %831 = arith.mulf %830, %824 : vector<64x66xf32>
    %832 = arith.addf %818, %831 : vector<64x66xf32>
    %c11_250 = arith.constant 11 : index
    %833 = memref.load %arg4[%c11_250] : memref<36xf32, #tpu.memory_space<smem>>
    %834 = vector.broadcast %833 : f32 to vector<64x66xf32>
    %835 = arith.mulf %834, %824 : vector<64x66xf32>
    %836 = arith.addf %822, %835 : vector<64x66xf32>
    %c1_251 = arith.constant 1 : index
    %c1_252 = arith.constant 1 : index
    %c0_253 = arith.constant 0 : index
    %837 = vector.load %arg12[%c1_251, %c1_252, %c0_253] : memref<4x66x66xf32, #tpu.memory_space<vmem>>, vector<1x64x66xf32>
    %838 = vector.shape_cast %837 : vector<1x64x66xf32> to vector<64x66xf32>
    %c12_254 = arith.constant 12 : index
    %839 = memref.load %arg4[%c12_254] : memref<36xf32, #tpu.memory_space<smem>>
    %840 = vector.broadcast %839 : f32 to vector<64x66xf32>
    %841 = arith.mulf %840, %838 : vector<64x66xf32>
    %842 = arith.addf %828, %841 : vector<64x66xf32>
    %c13_255 = arith.constant 13 : index
    %843 = memref.load %arg4[%c13_255] : memref<36xf32, #tpu.memory_space<smem>>
    %844 = vector.broadcast %843 : f32 to vector<64x66xf32>
    %845 = arith.mulf %844, %838 : vector<64x66xf32>
    %846 = arith.addf %832, %845 : vector<64x66xf32>
    %c14_256 = arith.constant 14 : index
    %847 = memref.load %arg4[%c14_256] : memref<36xf32, #tpu.memory_space<smem>>
    %848 = vector.broadcast %847 : f32 to vector<64x66xf32>
    %849 = arith.mulf %848, %838 : vector<64x66xf32>
    %850 = arith.addf %836, %849 : vector<64x66xf32>
    %c1_257 = arith.constant 1 : index
    %c2_258 = arith.constant 2 : index
    %c0_259 = arith.constant 0 : index
    %851 = vector.load %arg12[%c1_257, %c2_258, %c0_259] : memref<4x66x66xf32, #tpu.memory_space<vmem>>, vector<1x64x66xf32>
    %852 = vector.shape_cast %851 : vector<1x64x66xf32> to vector<64x66xf32>
    %c15_260 = arith.constant 15 : index
    %853 = memref.load %arg4[%c15_260] : memref<36xf32, #tpu.memory_space<smem>>
    %854 = vector.broadcast %853 : f32 to vector<64x66xf32>
    %855 = arith.mulf %854, %852 : vector<64x66xf32>
    %856 = arith.addf %842, %855 : vector<64x66xf32>
    %c16_261 = arith.constant 16 : index
    %857 = memref.load %arg4[%c16_261] : memref<36xf32, #tpu.memory_space<smem>>
    %858 = vector.broadcast %857 : f32 to vector<64x66xf32>
    %859 = arith.mulf %858, %852 : vector<64x66xf32>
    %860 = arith.addf %846, %859 : vector<64x66xf32>
    %c17_262 = arith.constant 17 : index
    %861 = memref.load %arg4[%c17_262] : memref<36xf32, #tpu.memory_space<smem>>
    %862 = vector.broadcast %861 : f32 to vector<64x66xf32>
    %863 = arith.mulf %862, %852 : vector<64x66xf32>
    %864 = arith.addf %850, %863 : vector<64x66xf32>
    %c2_263 = arith.constant 2 : index
    %c0_264 = arith.constant 0 : index
    %c0_265 = arith.constant 0 : index
    %865 = vector.load %arg12[%c2_263, %c0_264, %c0_265] : memref<4x66x66xf32, #tpu.memory_space<vmem>>, vector<1x64x66xf32>
    %866 = vector.shape_cast %865 : vector<1x64x66xf32> to vector<64x66xf32>
    %c18_266 = arith.constant 18 : index
    %867 = memref.load %arg4[%c18_266] : memref<36xf32, #tpu.memory_space<smem>>
    %868 = vector.broadcast %867 : f32 to vector<64x66xf32>
    %869 = arith.mulf %868, %866 : vector<64x66xf32>
    %870 = arith.addf %856, %869 : vector<64x66xf32>
    %c19_267 = arith.constant 19 : index
    %871 = memref.load %arg4[%c19_267] : memref<36xf32, #tpu.memory_space<smem>>
    %872 = vector.broadcast %871 : f32 to vector<64x66xf32>
    %873 = arith.mulf %872, %866 : vector<64x66xf32>
    %874 = arith.addf %860, %873 : vector<64x66xf32>
    %c20_268 = arith.constant 20 : index
    %875 = memref.load %arg4[%c20_268] : memref<36xf32, #tpu.memory_space<smem>>
    %876 = vector.broadcast %875 : f32 to vector<64x66xf32>
    %877 = arith.mulf %876, %866 : vector<64x66xf32>
    %878 = arith.addf %864, %877 : vector<64x66xf32>
    %c2_269 = arith.constant 2 : index
    %c1_270 = arith.constant 1 : index
    %c0_271 = arith.constant 0 : index
    %879 = vector.load %arg12[%c2_269, %c1_270, %c0_271] : memref<4x66x66xf32, #tpu.memory_space<vmem>>, vector<1x64x66xf32>
    %880 = vector.shape_cast %879 : vector<1x64x66xf32> to vector<64x66xf32>
    %c21_272 = arith.constant 21 : index
    %881 = memref.load %arg4[%c21_272] : memref<36xf32, #tpu.memory_space<smem>>
    %882 = vector.broadcast %881 : f32 to vector<64x66xf32>
    %883 = arith.mulf %882, %880 : vector<64x66xf32>
    %884 = arith.addf %870, %883 : vector<64x66xf32>
    %c22_273 = arith.constant 22 : index
    %885 = memref.load %arg4[%c22_273] : memref<36xf32, #tpu.memory_space<smem>>
    %886 = vector.broadcast %885 : f32 to vector<64x66xf32>
    %887 = arith.mulf %886, %880 : vector<64x66xf32>
    %888 = arith.addf %874, %887 : vector<64x66xf32>
    %c23_274 = arith.constant 23 : index
    %889 = memref.load %arg4[%c23_274] : memref<36xf32, #tpu.memory_space<smem>>
    %890 = vector.broadcast %889 : f32 to vector<64x66xf32>
    %891 = arith.mulf %890, %880 : vector<64x66xf32>
    %892 = arith.addf %878, %891 : vector<64x66xf32>
    %c2_275 = arith.constant 2 : index
    %c2_276 = arith.constant 2 : index
    %c0_277 = arith.constant 0 : index
    %893 = vector.load %arg12[%c2_275, %c2_276, %c0_277] : memref<4x66x66xf32, #tpu.memory_space<vmem>>, vector<1x64x66xf32>
    %894 = vector.shape_cast %893 : vector<1x64x66xf32> to vector<64x66xf32>
    %c24_278 = arith.constant 24 : index
    %895 = memref.load %arg4[%c24_278] : memref<36xf32, #tpu.memory_space<smem>>
    %896 = vector.broadcast %895 : f32 to vector<64x66xf32>
    %897 = arith.mulf %896, %894 : vector<64x66xf32>
    %898 = arith.addf %884, %897 : vector<64x66xf32>
    %c25_279 = arith.constant 25 : index
    %899 = memref.load %arg4[%c25_279] : memref<36xf32, #tpu.memory_space<smem>>
    %900 = vector.broadcast %899 : f32 to vector<64x66xf32>
    %901 = arith.mulf %900, %894 : vector<64x66xf32>
    %902 = arith.addf %888, %901 : vector<64x66xf32>
    %c26_280 = arith.constant 26 : index
    %903 = memref.load %arg4[%c26_280] : memref<36xf32, #tpu.memory_space<smem>>
    %904 = vector.broadcast %903 : f32 to vector<64x66xf32>
    %905 = arith.mulf %904, %894 : vector<64x66xf32>
    %906 = arith.addf %892, %905 : vector<64x66xf32>
    %c3_281 = arith.constant 3 : index
    %c0_282 = arith.constant 0 : index
    %c0_283 = arith.constant 0 : index
    %907 = vector.load %arg12[%c3_281, %c0_282, %c0_283] : memref<4x66x66xf32, #tpu.memory_space<vmem>>, vector<1x64x66xf32>
    %908 = vector.shape_cast %907 : vector<1x64x66xf32> to vector<64x66xf32>
    %c27_284 = arith.constant 27 : index
    %909 = memref.load %arg4[%c27_284] : memref<36xf32, #tpu.memory_space<smem>>
    %910 = vector.broadcast %909 : f32 to vector<64x66xf32>
    %911 = arith.mulf %910, %908 : vector<64x66xf32>
    %912 = arith.addf %898, %911 : vector<64x66xf32>
    %c28_285 = arith.constant 28 : index
    %913 = memref.load %arg4[%c28_285] : memref<36xf32, #tpu.memory_space<smem>>
    %914 = vector.broadcast %913 : f32 to vector<64x66xf32>
    %915 = arith.mulf %914, %908 : vector<64x66xf32>
    %916 = arith.addf %902, %915 : vector<64x66xf32>
    %c29_286 = arith.constant 29 : index
    %917 = memref.load %arg4[%c29_286] : memref<36xf32, #tpu.memory_space<smem>>
    %918 = vector.broadcast %917 : f32 to vector<64x66xf32>
    %919 = arith.mulf %918, %908 : vector<64x66xf32>
    %920 = arith.addf %906, %919 : vector<64x66xf32>
    %c3_287 = arith.constant 3 : index
    %c1_288 = arith.constant 1 : index
    %c0_289 = arith.constant 0 : index
    %921 = vector.load %arg12[%c3_287, %c1_288, %c0_289] : memref<4x66x66xf32, #tpu.memory_space<vmem>>, vector<1x64x66xf32>
    %922 = vector.shape_cast %921 : vector<1x64x66xf32> to vector<64x66xf32>
    %c30_290 = arith.constant 30 : index
    %923 = memref.load %arg4[%c30_290] : memref<36xf32, #tpu.memory_space<smem>>
    %924 = vector.broadcast %923 : f32 to vector<64x66xf32>
    %925 = arith.mulf %924, %922 : vector<64x66xf32>
    %926 = arith.addf %912, %925 : vector<64x66xf32>
    %c31_291 = arith.constant 31 : index
    %927 = memref.load %arg4[%c31_291] : memref<36xf32, #tpu.memory_space<smem>>
    %928 = vector.broadcast %927 : f32 to vector<64x66xf32>
    %929 = arith.mulf %928, %922 : vector<64x66xf32>
    %930 = arith.addf %916, %929 : vector<64x66xf32>
    %c32_292 = arith.constant 32 : index
    %931 = memref.load %arg4[%c32_292] : memref<36xf32, #tpu.memory_space<smem>>
    %932 = vector.broadcast %931 : f32 to vector<64x66xf32>
    %933 = arith.mulf %932, %922 : vector<64x66xf32>
    %934 = arith.addf %920, %933 : vector<64x66xf32>
    %c3_293 = arith.constant 3 : index
    %c2_294 = arith.constant 2 : index
    %c0_295 = arith.constant 0 : index
    %935 = vector.load %arg12[%c3_293, %c2_294, %c0_295] : memref<4x66x66xf32, #tpu.memory_space<vmem>>, vector<1x64x66xf32>
    %936 = vector.shape_cast %935 : vector<1x64x66xf32> to vector<64x66xf32>
    %c33_296 = arith.constant 33 : index
    %937 = memref.load %arg4[%c33_296] : memref<36xf32, #tpu.memory_space<smem>>
    %938 = vector.broadcast %937 : f32 to vector<64x66xf32>
    %939 = arith.mulf %938, %936 : vector<64x66xf32>
    %940 = arith.addf %926, %939 : vector<64x66xf32>
    %c34_297 = arith.constant 34 : index
    %941 = memref.load %arg4[%c34_297] : memref<36xf32, #tpu.memory_space<smem>>
    %942 = vector.broadcast %941 : f32 to vector<64x66xf32>
    %943 = arith.mulf %942, %936 : vector<64x66xf32>
    %944 = arith.addf %930, %943 : vector<64x66xf32>
    %c35_298 = arith.constant 35 : index
    %945 = memref.load %arg4[%c35_298] : memref<36xf32, #tpu.memory_space<smem>>
    %946 = vector.broadcast %945 : f32 to vector<64x66xf32>
    %947 = arith.mulf %946, %936 : vector<64x66xf32>
    %948 = arith.addf %934, %947 : vector<64x66xf32>
    %949 = vector.extract_strided_slice %940 {offsets = [0, 0], sizes = [64, 64], strides = [1, 1]} : vector<64x66xf32> to vector<64x64xf32>
    %950 = vector.extract_strided_slice %944 {offsets = [0, 1], sizes = [64, 64], strides = [1, 1]} : vector<64x66xf32> to vector<64x64xf32>
    %951 = arith.addf %949, %950 : vector<64x64xf32>
    %952 = vector.extract_strided_slice %948 {offsets = [0, 2], sizes = [64, 64], strides = [1, 1]} : vector<64x66xf32> to vector<64x64xf32>
    %953 = arith.addf %951, %952 : vector<64x64xf32>
    %c0_299 = arith.constant 0 : index
    %954 = memref.load %arg5[%c0_299] : memref<1xf32, #tpu.memory_space<smem>>
    %955 = vector.broadcast %954 : f32 to vector<64x64xf32>
    %956 = arith.addf %953, %955 : vector<64x64xf32>
    %c0_300 = arith.constant 0 : index
    %c0_301 = arith.constant 0 : index
    %c0_302 = arith.constant 0 : index
    %c0_303 = arith.constant 0 : index
    %957 = vector.load %arg10[%c0_300, %c0_301, %c0_302, %c0_303] : memref<1x1x64x64xf32, #tpu.memory_space<vmem>>, vector<1x1x64x64xf32>
    %958 = vector.shape_cast %957 : vector<1x1x64x64xf32> to vector<64x64xf32>
    %959 = vector.shape_cast %956 : vector<64x64xf32> to vector<1x1x64x64xf32>
    tpu.vector_store %arg10[%c0_300, %c0_301, %c0_302, %c0_303], %959 {strides = array<i32>} : memref<1x1x64x64xf32, #tpu.memory_space<vmem>>, vector<1x1x64x64xf32>,
    return
  }
  func.func @transform_0(%arg0: i32) -> (i32, i32, i32, i32) {
    %c0_i32 = arith.constant 0 : i32
    %c0_i32_0 = arith.constant 0 : i32
    %c0_i32_1 = arith.constant 0 : i32
    %c0_i32_2 = arith.constant 0 : i32
    return %arg0, %c0_i32, %c0_i32_0, %c0_i32_1 : i32, i32, i32, i32
  }
  func.func @transform_1(%arg0: i32) -> i32 {
    %c0_i32 = arith.constant 0 : i32
    %c0_i32_0 = arith.constant 0 : i32
    return %c0_i32 : i32
  }
  func.func @transform_2(%arg0: i32) -> i32 {
    %c0_i32 = arith.constant 0 : i32
    %c0_i32_0 = arith.constant 0 : i32
    return %c0_i32 : i32
  }
  func.func @transform_3(%arg0: i32) -> i32 {
    %c0_i32 = arith.constant 0 : i32
    %c0_i32_0 = arith.constant 0 : i32
    return %c0_i32 : i32
  }
  func.func @transform_4(%arg0: i32) -> i32 {
    %c0_i32 = arith.constant 0 : i32
    %c0_i32_0 = arith.constant 0 : i32
    return %c0_i32 : i32
  }
  func.func @transform_5(%arg0: i32) -> (i32, i32) {
    %c0_i32 = arith.constant 0 : i32
    %c0_i32_0 = arith.constant 0 : i32
    %c0_i32_1 = arith.constant 0 : i32
    return %c0_i32, %c0_i32_0 : i32, i32
  }
  func.func @transform_6(%arg0: i32) -> (i32, i32) {
    %c0_i32 = arith.constant 0 : i32
    %c0_i32_0 = arith.constant 0 : i32
    %c0_i32_1 = arith.constant 0 : i32
    return %c0_i32, %c0_i32_0 : i32, i32
  }
  func.func @transform_7(%arg0: i32) -> (i32, i32) {
    %c0_i32 = arith.constant 0 : i32
    %c0_i32_0 = arith.constant 0 : i32
    %c0_i32_1 = arith.constant 0 : i32
    return %c0_i32, %c0_i32_0 : i32, i32
  }
  func.func @transform_8(%arg0: i32) -> (i32, i32) {
    %c0_i32 = arith.constant 0 : i32
    %c0_i32_0 = arith.constant 0 : i32
    %c0_i32_1 = arith.constant 0 : i32
    return %c0_i32, %c0_i32_0 : i32, i32
  }
  func.func @transform_9(%arg0: i32) -> (i32, i32, i32, i32) {
    %c0_i32 = arith.constant 0 : i32
    %c0_i32_0 = arith.constant 0 : i32
    %c0_i32_1 = arith.constant 0 : i32
    %c0_i32_2 = arith.constant 0 : i32
    return %arg0, %c0_i32, %c0_i32_0, %c0_i32_1 : i32, i32, i32, i32
  }
}

</mosaic_0001>

<llo_original>
// kernel: simple_segmentation_head_forward.1
$region0: #{simple_segmentation_head_forward.1}
  #allocation0 [shape = 'u32[]', space=smem, size = 0x4, offset = 0x4, fixed_abs, tag = 'smem constant byte address 0x4 - core index']
  #allocation1 [shape = 'u32[144,128]{1,0:T(1,128)}', space=vmem, size = 0x12000, scoped, tag = 'internal scratch']
  #allocation2 [shape = 'f32[4,34,34]{2,1,0:T(8,128)}', space=vmem, size = 0x14000, scoped, tag = 'scratch operand']
  #allocation3 [shape = 'f32[4,66,66]{2,1,0:T(8,128)}', space=vmem, size = 0x24000, scoped, tag = 'scratch operand']
  #allocation4 [shape = 'f32[1]{0:T(128)S(6)}', space=smem, size = 0x200, scoped, tag = 'scoped memory for simple_segmentation_head_forward.1']
  %s0 = inlined_call_operand.vmem [shape: f32[2,4,16,16], index: 0, kind: input, shape index: {}]
  %s1 = inlined_call_operand.vmem [shape: f32[144], index: 1, kind: input, shape index: {}]
  %s2 = inlined_call_operand.vmem [shape: f32[4], index: 2, kind: input, shape index: {}]
  %s3 = inlined_call_operand.vmem [shape: f32[36], index: 3, kind: input, shape index: {}]
  %s4 = inlined_call_operand.<no memory space> [shape: f32[1], index: 4, kind: input, shape index: {}]
  %s5 = inlined_call_operand.vmem [shape: f32[34,16], index: 5, kind: input, shape index: {}]
  %s6 = inlined_call_operand.vmem [shape: f32[16,34], index: 6, kind: input, shape index: {}]
  %s7 = inlined_call_operand.vmem [shape: f32[66,32], index: 7, kind: input, shape index: {}]
  %s8 = inlined_call_operand.vmem [shape: f32[32,66], index: 8, kind: input, shape index: {}]
  %s9 = inlined_call_operand.hbm [shape: f32[2,1,64,64], index: 9, kind: output, shape index: {}]
  %s10 = sld [smem:[#allocation0]]
  $region81: #{simple_segmentation_head_forward.1} parent=0
    _
  %s12 = ssub.s32 1, %s10
  %s13 = scalar_select 0, %s12, %s10
  %14 = sst [smem:[#allocation4]] %s4
  $region1: #{simple_segmentation_head_forward.1} parent=0
    #allocation5 [shape = 'u8[1024]{0}', space=smem, size = 0x400, scoped, tag = 'input window, operand 1, single buffered']
    #allocation6 [shape = 's32[2]{0}', space=sflag, size = 0x8, scoped, tag = 'scoped memory for simple_segmentation_head_forward.1']
    #allocation7 [shape = 's32[2]{0}', space=sflag, size = 0x8, scoped, tag = 'scoped memory for simple_segmentation_head_forward.1']
    #allocation8 [shape = 'u8[512]{0}', space=smem, size = 0x200, scoped, tag = 'input window, operand 2, single buffered']
    #allocation9 [shape = 's32[1]{0}', space=sflag, size = 0x4, scoped, tag = 'scoped memory for simple_segmentation_head_forward.1']
    #allocation10 [shape = 'u8[512]{0}', space=smem, size = 0x200, scoped, tag = 'input window, operand 3, single buffered']
    #allocation11 [shape = 'u8[65536]{0}', space=vmem, size = 0x10000, scoped, tag = 'output window, operand 0']
    %15 = vsyncpa [#allocation7], 0
    %16 = vsyncpa [#allocation9], 0
    %17 = vsyncpa [#allocation6], 0
    %s18 = scalar_lea.sflag [#allocation6], 1
    %19 = vsyncpa %s18, 0
    loop: start=0, step=1, limit=4
    $region2: #{simple_segmentation_head_forward.1} parent=1 // loop_pre_header
      _
    $region3: #{simple_segmentation_head_forward.1} parent=1 // loop_header
      %s21 = sphi 0, %s25
      %p22 = scmp.ge.s32.totalorder %s21, 4
      %s31 = sphi 0, %s33
      %s34 = sphi 0, %s31
      %s35 = sphi 0, %s34
      %s51 = sphi 0, %s35
      %s55 = sphi 0, %s55
      %s57 = sphi 0, %s55
      %s58 = sphi 0, %s57
      %s72 = sphi 0, %s58
      %s76 = sphi 0, %s76
      %s78 = sphi 0, %s76
      %s79 = sphi 0, %s78
      %s93 = sphi 0, %s79
      %s97 = sphi 0, %s97
      %s99 = sphi 0, %s97
      %s100 = sphi 0, %s99
      %s114 = sphi 0, %s100
      %s118 = sphi 0, %s118
      %s120 = sphi 0, %s118
      %s121 = sphi 0, %s120
      %s135 = sphi 0, %s121
      %s139 = sphi 0, %s139
      %s141 = sphi 0, %s139
      %s142 = sphi 0, %s141
      %s156 = sphi 0, %s142
      %s160 = sphi 0, %s160
      %s162 = sphi 0, %s160
      %s163 = sphi 0, %s162
      %s177 = sphi 0, %s163
      %s181 = sphi 0, %s181
      %s183 = sphi 0, %s181
      %s184 = sphi 0, %s183
      %s198 = sphi 0, %s184
      %s202 = sphi 0, %s202
      %s204 = sphi 0, %s202
      %s205 = sphi 0, %s204
      %s219 = sphi 0, %s205
      %s225 = sphi 0, %s227
      %s228 = sphi 0, %s225
      %s229 = sphi 0, %s228
      %s245 = sphi 0, %s229
    $region4: #{simple_segmentation_head_forward.1} parent=1 // loop_header_branch
      %24 = sbr.rel (%p22) target = $region8
    $region5: #{simple_segmentation_head_forward.1} parent=1 // loop_body
      %s26 = ssub.s32 %s21, 1
      %s27 = ssub.s32 %s21, 2
      %s28 = sadd.s32 %s21, 1
      %s29 = ssub.s32 %s21, %s28
      %p30 = scmp.eq.s32.totalorder %s29, 0
      %s32 = sadd.s32 %s31, 1
      %s33 = scalar_select %p30, %s31, %s32
      %p36 = pneg %p30
      %p37 = scmp.eq.s32.totalorder %s21, 1
      %p38 = por %p36, %p37
      %p39 = scmp.ne.s32.totalorder %s31, %s34
      %p40 = scmp.eq.s32.totalorder %s21, 0
      %p41 = por %p39, %p40
      %p42 = scmp.ne.s32.totalorder %s31, %s34
      %p43 = scmp.eq.s32.totalorder %s26, 1
      %p44 = por %p42, %p43
      %p45 = scmp.ne.s32.totalorder %s34, %s35
      %p46 = scmp.eq.s32.totalorder %s26, 0
      %p47 = por %p45, %p46
      %p48 = scmp.ne.s32.totalorder %s34, %s35
      %p49 = scmp.eq.s32.totalorder %s27, 1
      %p50 = por %p48, %p49
      %p52 = scmp.ne.s32.totalorder %s35, %s51
      %p53 = scmp.eq.s32.totalorder %s27, 0
      %p54 = por %p52, %p53
      %s56 = sadd.s32 %s55, 1
      %p59 = scmp.eq.s32.totalorder %s21, 1
      %p60 = scmp.ne.s32.totalorder %s55, %s57
      %p61 = scmp.eq.s32.totalorder %s21, 0
      %p62 = por %p60, %p61
      %p63 = scmp.ne.s32.totalorder %s55, %s57
      %p64 = scmp.eq.s32.totalorder %s26, 1
      %p65 = por %p63, %p64
      %p66 = scmp.ne.s32.totalorder %s57, %s58
      %p67 = scmp.eq.s32.totalorder %s26, 0
      %p68 = por %p66, %p67
      %p69 = scmp.ne.s32.totalorder %s57, %s58
      %p70 = scmp.eq.s32.totalorder %s27, 1
      %p71 = por %p69, %p70
      %p73 = scmp.ne.s32.totalorder %s58, %s72
      %p74 = scmp.eq.s32.totalorder %s27, 0
      %p75 = por %p73, %p74
      %s77 = sadd.s32 %s76, 1
      %p80 = scmp.eq.s32.totalorder %s21, 1
      %p81 = scmp.ne.s32.totalorder %s76, %s78
      %p82 = scmp.eq.s32.totalorder %s21, 0
      %p83 = por %p81, %p82
      %p84 = scmp.ne.s32.totalorder %s76, %s78
      %p85 = scmp.eq.s32.totalorder %s26, 1
      %p86 = por %p84, %p85
      %p87 = scmp.ne.s32.totalorder %s78, %s79
      %p88 = scmp.eq.s32.totalorder %s26, 0
      %p89 = por %p87, %p88
      %p90 = scmp.ne.s32.totalorder %s78, %s79
      %p91 = scmp.eq.s32.totalorder %s27, 1
      %p92 = por %p90, %p91
      %p94 = scmp.ne.s32.totalorder %s79, %s93
      %p95 = scmp.eq.s32.totalorder %s27, 0
      %p96 = por %p94, %p95
      %s98 = sadd.s32 %s97, 1
      %p101 = scmp.eq.s32.totalorder %s21, 1
      %p102 = scmp.ne.s32.totalorder %s97, %s99
      %p103 = scmp.eq.s32.totalorder %s21, 0
      %p104 = por %p102, %p103
      %p105 = scmp.ne.s32.totalorder %s97, %s99
      %p106 = scmp.eq.s32.totalorder %s26, 1
      %p107 = por %p105, %p106
      %p108 = scmp.ne.s32.totalorder %s99, %s100
      %p109 = scmp.eq.s32.totalorder %s26, 0
      %p110 = por %p108, %p109
      %p111 = scmp.ne.s32.totalorder %s99, %s100
      %p112 = scmp.eq.s32.totalorder %s27, 1
      %p113 = por %p111, %p112
      %p115 = scmp.ne.s32.totalorder %s100, %s114
      %p116 = scmp.eq.s32.totalorder %s27, 0
      %p117 = por %p115, %p116
      %s119 = sadd.s32 %s118, 1
      %p122 = scmp.eq.s32.totalorder %s21, 1
      %p123 = scmp.ne.s32.totalorder %s118, %s120
      %p124 = scmp.eq.s32.totalorder %s21, 0
      %p125 = por %p123, %p124
      %p126 = scmp.ne.s32.totalorder %s118, %s120
      %p127 = scmp.eq.s32.totalorder %s26, 1
      %p128 = por %p126, %p127
      %p129 = scmp.ne.s32.totalorder %s120, %s121
      %p130 = scmp.eq.s32.totalorder %s26, 0
      %p131 = por %p129, %p130
      %p132 = scmp.ne.s32.totalorder %s120, %s121
      %p133 = scmp.eq.s32.totalorder %s27, 1
      %p134 = por %p132, %p133
      %p136 = scmp.ne.s32.totalorder %s121, %s135
      %p137 = scmp.eq.s32.totalorder %s27, 0
      %p138 = por %p136, %p137
      %s140 = sadd.s32 %s139, 1
      %p143 = scmp.eq.s32.totalorder %s21, 1
      %p144 = scmp.ne.s32.totalorder %s139, %s141
      %p145 = scmp.eq.s32.totalorder %s21, 0
      %p146 = por %p144, %p145
      %p147 = scmp.ne.s32.totalorder %s139, %s141
      %p148 = scmp.eq.s32.totalorder %s26, 1
      %p149 = por %p147, %p148
      %p150 = scmp.ne.s32.totalorder %s141, %s142
      %p151 = scmp.eq.s32.totalorder %s26, 0
      %p152 = por %p150, %p151
      %p153 = scmp.ne.s32.totalorder %s141, %s142
      %p154 = scmp.eq.s32.totalorder %s27, 1
      %p155 = por %p153, %p154
      %p157 = scmp.ne.s32.totalorder %s142, %s156
      %p158 = scmp.eq.s32.totalorder %s27, 0
      %p159 = por %p157, %p158
      %s161 = sadd.s32 %s160, 1
      %p164 = scmp.eq.s32.totalorder %s21, 1
      %p165 = scmp.ne.s32.totalorder %s160, %s162
      %p166 = scmp.eq.s32.totalorder %s21, 0
      %p167 = por %p165, %p166
      %p168 = scmp.ne.s32.totalorder %s160, %s162
      %p169 = scmp.eq.s32.totalorder %s26, 1
      %p170 = por %p168, %p169
      %p171 = scmp.ne.s32.totalorder %s162, %s163
      %p172 = scmp.eq.s32.totalorder %s26, 0
      %p173 = por %p171, %p172
      %p174 = scmp.ne.s32.totalorder %s162, %s163
      %p175 = scmp.eq.s32.totalorder %s27, 1
      %p176 = por %p174, %p175
      %p178 = scmp.ne.s32.totalorder %s163, %s177
      %p179 = scmp.eq.s32.totalorder %s27, 0
      %p180 = por %p178, %p179
      %s182 = sadd.s32 %s181, 1
      %p185 = scmp.eq.s32.totalorder %s21, 1
      %p186 = scmp.ne.s32.totalorder %s181, %s183
      %p187 = scmp.eq.s32.totalorder %s21, 0
      %p188 = por %p186, %p187
      %p189 = scmp.ne.s32.totalorder %s181, %s183
      %p190 = scmp.eq.s32.totalorder %s26, 1
      %p191 = por %p189, %p190
      %p192 = scmp.ne.s32.totalorder %s183, %s184
      %p193 = scmp.eq.s32.totalorder %s26, 0
      %p194 = por %p192, %p193
      %p195 = scmp.ne.s32.totalorder %s183, %s184
      %p196 = scmp.eq.s32.totalorder %s27, 1
      %p197 = por %p195, %p196
      %p199 = scmp.ne.s32.totalorder %s184, %s198
      %p200 = scmp.eq.s32.totalorder %s27, 0
      %p201 = por %p199, %p200
      %s203 = sadd.s32 %s202, 1
      %p206 = scmp.eq.s32.totalorder %s21, 1
      %p207 = scmp.ne.s32.totalorder %s202, %s204
      %p208 = scmp.eq.s32.totalorder %s21, 0
      %p209 = por %p207, %p208
      %p210 = scmp.ne.s32.totalorder %s202, %s204
      %p211 = scmp.eq.s32.totalorder %s26, 1
      %p212 = por %p210, %p211
      %p213 = scmp.ne.s32.totalorder %s204, %s205
      %p214 = scmp.eq.s32.totalorder %s26, 0
      %p215 = por %p213, %p214
      %p216 = scmp.ne.s32.totalorder %s204, %s205
      %p217 = scmp.eq.s32.totalorder %s27, 1
      %p218 = por %p216, %p217
      %p220 = scmp.ne.s32.totalorder %s205, %s219
      %p221 = scmp.eq.s32.totalorder %s27, 0
      %p222 = por %p220, %p221
      %s223 = ssub.s32 %s21, %s28
      %p224 = scmp.eq.s32.totalorder %s223, 0
      %s226 = sadd.s32 %s225, 1
      %s227 = scalar_select %p224, %s225, %s226
      %p230 = pneg %p224
      %p231 = scmp.eq.s32.totalorder %s21, 1
      %p232 = por %p230, %p231
      %p233 = scmp.ne.s32.totalorder %s225, %s228
      %p234 = scmp.eq.s32.totalorder %s21, 0
      %p235 = por %p233, %p234
      %p236 = scmp.ne.s32.totalorder %s225, %s228
      %p237 = scmp.eq.s32.totalorder %s26, 1
      %p238 = por %p236, %p237
      %p239 = scmp.ne.s32.totalorder %s228, %s229
      %p240 = scmp.eq.s32.totalorder %s26, 0
      %p241 = por %p239, %p240
      %p242 = scmp.ne.s32.totalorder %s228, %s229
      %p243 = scmp.eq.s32.totalorder %s27, 1
      %p244 = por %p242, %p243
      %p246 = scmp.ne.s32.totalorder %s229, %s245
      %p247 = scmp.eq.s32.totalorder %s27, 0
      %p248 = por %p246, %p247
      %p249 = scmp.le.s32.totalorder 1, %s21
      %p250 = scmp.lt.s32.totalorder %s21, 3
      %p251 = pnand %p249, %p250
      %p252 = pneg %p251
      // Predicated region
      $region9: #{simple_segmentation_head_forward.1} parent=5 // pred_check
        _
      $region10: #{simple_segmentation_head_forward.1} parent=5 // pred_check_branch
        %254 = sbr.rel (%p251) target = $region12
      $region11: #{simple_segmentation_head_forward.1} parent=5 // pred_region
        %s255 = ssub.s32 %s21, 1
        // Predicated region
        $region13: #{simple_segmentation_head_forward.1} parent=11 // pred_check
          %p256 = pneg %p68
        $region14: #{simple_segmentation_head_forward.1} parent=11 // pred_check_branch
          %258 = sbr.rel (%p256) target = $region16
        $region15: #{simple_segmentation_head_forward.1} parent=11 // pred_region
          %s260 = ssub.s32 32, 32
          %261 = vsyncadd [#allocation7], %s260
          %s263 = sshll.u32 %s1, 4
          %s264 = int_to_ptr.vmem [resolvable:$true] %s263
          %266 = dma.vmem_to_smem %s264, 32, [#allocation5], [#allocation7]
        $region16: #{simple_segmentation_head_forward.1} parent=11 // pred_fallthru
          _
        // Predicated region
        $region17: #{simple_segmentation_head_forward.1} parent=11 // pred_check
          %p267 = pneg %p89
        $region18: #{simple_segmentation_head_forward.1} parent=11 // pred_check_branch
          %269 = sbr.rel (%p267) target = $region20
        $region19: #{simple_segmentation_head_forward.1} parent=11 // pred_region
          %s271 = ssub.s32 16, 16
          %272 = vsyncadd [#allocation9], %s271
          %s274 = sshll.u32 %s2, 4
          %s275 = int_to_ptr.vmem [resolvable:$true] %s274
          %277 = dma.vmem_to_smem %s275, 16, [#allocation8], [#allocation9]
        $region20: #{simple_segmentation_head_forward.1} parent=11 // pred_fallthru
          _
        // Predicated region
        $region21: #{simple_segmentation_head_forward.1} parent=11 // pred_check
          %p278 = pneg %p110
        $region22: #{simple_segmentation_head_forward.1} parent=11 // pred_check_branch
          %280 = sbr.rel (%p278) target = $region24
        $region23: #{simple_segmentation_head_forward.1} parent=11 // pred_region
          %s282 = ssub.s32 16, 16
          %283 = vsyncadd [#allocation9], %s282
          %s285 = sshll.u32 %s3, 4
          %s286 = int_to_ptr.vmem [resolvable:$true] %s285
          %288 = dma.vmem_to_smem %s286, 16, [#allocation10], [#allocation9]
        $region24: #{simple_segmentation_head_forward.1} parent=11 // pred_fallthru
          _
        // Predicated region
        $region25: #{simple_segmentation_head_forward.1} parent=11 // pred_check
          %p289 = pneg %p131
        $region26: #{simple_segmentation_head_forward.1} parent=11 // pred_check_branch
          %291 = sbr.rel (%p289) target = $region28
        $region27: #{simple_segmentation_head_forward.1} parent=11 // pred_region
          _
        $region28: #{simple_segmentation_head_forward.1} parent=11 // pred_fallthru
          _
        // Predicated region
        $region29: #{simple_segmentation_head_forward.1} parent=11 // pred_check
          %p292 = pneg %p152
        $region30: #{simple_segmentation_head_forward.1} parent=11 // pred_check_branch
          %294 = sbr.rel (%p292) target = $region32
        $region31: #{simple_segmentation_head_forward.1} parent=11 // pred_region
          _
        $region32: #{simple_segmentation_head_forward.1} parent=11 // pred_fallthru
          _
        // Predicated region
        $region33: #{simple_segmentation_head_forward.1} parent=11 // pred_check
          %p295 = pneg %p173
        $region34: #{simple_segmentation_head_forward.1} parent=11 // pred_check_branch
          %297 = sbr.rel (%p295) target = $region36
        $region35: #{simple_segmentation_head_forward.1} parent=11 // pred_region
          _
        $region36: #{simple_segmentation_head_forward.1} parent=11 // pred_fallthru
          _
        // Predicated region
        $region37: #{simple_segmentation_head_forward.1} parent=11 // pred_check
          %p298 = pneg %p194
        $region38: #{simple_segmentation_head_forward.1} parent=11 // pred_check_branch
          %300 = sbr.rel (%p298) target = $region40
        $region39: #{simple_segmentation_head_forward.1} parent=11 // pred_region
          _
        $region40: #{simple_segmentation_head_forward.1} parent=11 // pred_fallthru
          _
        // Predicated region
        $region41: #{simple_segmentation_head_forward.1} parent=11 // pred_check
          %p301 = pneg %p215
        $region42: #{simple_segmentation_head_forward.1} parent=11 // pred_check_branch
          %303 = sbr.rel (%p301) target = $region44
        $region43: #{simple_segmentation_head_forward.1} parent=11 // pred_region
          _
        $region44: #{simple_segmentation_head_forward.1} parent=11 // pred_fallthru
          _
      $region12: #{simple_segmentation_head_forward.1} parent=5 // pred_fallthru
        _
      %p304 = scmp.lt.s32.totalorder %s21, 2
      // Predicated region
      $region45: #{simple_segmentation_head_forward.1} parent=5 // pred_check
        %p305 = pneg %p304
      $region46: #{simple_segmentation_head_forward.1} parent=5 // pred_check_branch
        %307 = sbr.rel (%p305) target = $region48
      $region47: #{simple_segmentation_head_forward.1} parent=5 // pred_region
        // Predicated region
        $region49: #{simple_segmentation_head_forward.1} parent=47 // pred_check
          %p308 = pneg %p41
        $region50: #{simple_segmentation_head_forward.1} parent=47 // pred_check_branch
          %310 = sbr.rel (%p308) target = $region52
        $region51: #{simple_segmentation_head_forward.1} parent=47 // pred_region
          %p311 = scmp.lt.s32.totalorder %s21, 1
          %s312 = scalar_select %p311, %s21, 1
          %s313 = smul.addr %s312, 8
          %s314 = smul.addr %s313, 8
          %s315 = scalar_lea.vmem %s0, %s314
        $region52: #{simple_segmentation_head_forward.1} parent=47 // pred_fallthru
          _
      $region48: #{simple_segmentation_head_forward.1} parent=5 // pred_fallthru
        _
      %p316 = scmp.le.s32.totalorder 1, %s21
      %p317 = scmp.lt.s32.totalorder %s21, 3
      %p318 = pnand %p316, %p317
      %p319 = pneg %p318
      // Predicated region
      $region53: #{simple_segmentation_head_forward.1} parent=5 // pred_check
        _
      $region54: #{simple_segmentation_head_forward.1} parent=5 // pred_check_branch
        %321 = sbr.rel (%p318) target = $region56
      $region55: #{simple_segmentation_head_forward.1} parent=5 // pred_region
        %s322 = ssub.s32 %s21, 1
        // Predicated region
        $region57: #{simple_segmentation_head_forward.1} parent=55 // pred_check
          %p323 = pneg %p68
        $region58: #{simple_segmentation_head_forward.1} parent=55 // pred_check_branch
          %325 = sbr.rel (%p323) target = $region60
        $region59: #{simple_segmentation_head_forward.1} parent=55 // pred_region
          %326 = dma.done [#allocation7], 32
        $region60: #{simple_segmentation_head_forward.1} parent=55 // pred_fallthru
          _
        // Predicated region
        $region61: #{simple_segmentation_head_forward.1} parent=55 // pred_check
          %p327 = pneg %p89
        $region62: #{simple_segmentation_head_forward.1} parent=55 // pred_check_branch
          %329 = sbr.rel (%p327) target = $region64
        $region63: #{simple_segmentation_head_forward.1} parent=55 // pred_region
          %330 = dma.done [#allocation9], 16
        $region64: #{simple_segmentation_head_forward.1} parent=55 // pred_fallthru
          _
        // Predicated region
        $region65: #{simple_segmentation_head_forward.1} parent=55 // pred_check
          %p331 = pneg %p110
        $region66: #{simple_segmentation_head_forward.1} parent=55 // pred_check_branch
          %333 = sbr.rel (%p331) target = $region68
        $region67: #{simple_segmentation_head_forward.1} parent=55 // pred_region
          %334 = dma.done [#allocation9], 16
        $region68: #{simple_segmentation_head_forward.1} parent=55 // pred_fallthru
          _
        %335 = sfence
        %p336 = scmp.lt.s32.totalorder %s26, 1
        %s337 = scalar_select %p336, %s26, 1
        %s338 = smul.addr %s337, 8
        %s339 = smul.addr %s338, 8
        %s340 = scalar_lea.vmem %s0, %s339
        %p341 = pneg %p47
        %p342 = pneg %p44
        %p343 = pneg %p68
        %p344 = pneg %p65
        %p345 = pneg %p89
        %p346 = pneg %p86
        %p347 = pneg %p110
        %p348 = pneg %p107
        %p349 = pneg %p131
        %p350 = pneg %p128
        %p351 = pneg %p152
        %p352 = pneg %p149
        %p353 = pneg %p173
        %p354 = pneg %p170
        %p355 = pneg %p194
        %p356 = pneg %p191
        %p357 = pneg %p215
        %p358 = pneg %p212
        %p359 = pneg %p241
        %p360 = pneg %p238
        %s361 = sand.u32 %s228, 1
        %s362 = scalar_lea.sflag [#allocation6], %s361
        %s363 = sand.u32 %s228, 1
        %s364 = smul.addr %s363, 64
        %s365 = scalar_lea.vmem [#allocation11], %s364
        %p366 = scmp.lt.s32.totalorder %s26, 1
        %s367 = scalar_select %p366, %s26, 1
        %s368 = smul.addr %s367, 8
        %s369 = smul.addr %s368, 8
        %s370 = scalar_lea.vmem %s0, %s369
        %v371 = vld [vmem:[%s5] sm:$0xff]
        %v372 = vld [vmem:[%s5 + $0x8] sm:$0xff]
        %v373 = vld [vmem:[%s5 + $0x10] sm:$0xff]
        %v374 = vld [vmem:[%s5 + $0x18] sm:$0xff]
        %v375 = vld [vmem:[%s5 + $0x20] sm:$0x3]
        %v376 = vld [vmem:[%s370] sm:$0xff]
        %v377 = vld [vmem:[%s370 + $0x8] sm:$0xff]
        %v378 = vld [vmem:[%s370 + $0x10] sm:$0xff]
        %v379 = vld [vmem:[%s370 + $0x18] sm:$0xff]
        %v380 = vld [vmem:[%s370 + $0x20] sm:$0xff]
        %v381 = vld [vmem:[%s370 + $0x28] sm:$0xff]
        %v382 = vld [vmem:[%s370 + $0x30] sm:$0xff]
        %v383 = vld [vmem:[%s370 + $0x38] sm:$0xff]
        %v384 = vld [vmem:[%s6] sm:$0xff]
        %v385 = vld [vmem:[%s6 + $0x8] sm:$0xff]
        %vm386 = vcmask 130048
        %v388 = vsel %vm386, %v376, 0
        %v391 = vsel %vm386, %v377, 0
        %v394 = vsel %vm386, %v378, 0
        %v397 = vsel %vm386, %v379, 0
        %v400 = vsel %vm386, %v380, 0
        %v403 = vsel %vm386, %v381, 0
        %v406 = vsel %vm386, %v382, 0
        %v409 = vsel %vm386, %v383, 0
        %411 = vmatprep.subr.mxu0 0.0
        %412 = vmatpush1.msra.mxu0 %v384
        %413 = vmatprep.subr.mxu0 0.0
        %414 = vmatpush1.msra.mxu0 %v385
        %415 = vmatprep.subr.mxu0 0.0
        %416 = vmatpush1.msra.mxu0 0.0
        %417 = vmatprep.subr.mxu0 0.0
        %418 = vmatpush1.msra.mxu0 0.0
        %419 = vmatprep.subr.mxu0 0.0
        %420 = vmatpush1.msra.mxu0 0.0
        %421 = vmatprep.subr.mxu0 0.0
        %422 = vmatpush1.msra.mxu0 0.0
        %423 = vmatprep.subr.mxu0 0.0
        %424 = vmatpush1.msra.mxu0 0.0
        %425 = vmatprep.subr.mxu0 0.0
        %426 = vmatpush1.msra.mxu0 0.0
        %427 = vmatprep.subr.mxu0 0.0
        %428 = vmatpush1.msra.mxu0 0.0
        %429 = vmatprep.subr.mxu0 0.0
        %430 = vmatpush1.msra.mxu0 0.0
        %431 = vmatprep.subr.mxu0 0.0
        %432 = vmatpush1.msra.mxu0 0.0
        %433 = vmatprep.subr.mxu0 0.0
        %434 = vmatpush1.msra.mxu0 0.0
        %435 = vmatprep.subr.mxu0 0.0
        %436 = vmatpush1.msra.mxu0 0.0
        %437 = vmatprep.subr.mxu0 0.0
        %438 = vmatpush1.msra.mxu0 0.0
        %439 = vmatprep.subr.mxu0 0.0
        %440 = vmatpush1.msra.mxu0 0.0
        %441 = vmatprep.subr.mxu0 0.0
        %442 = vmatpush1.msra.mxu0 0.0
        %443 = vmatprep.subr.mxu0 0.0
        %444 = vmatpush1.msra.mxu0 0.0
        %445 = vmatprep.subr.mxu0 0.0
        %446 = vmatpush1.msra.mxu0 0.0
        %447 = vmatprep.subr.mxu0 0.0
        %448 = vmatpush1.msra.mxu0 0.0
        %449 = vmatprep.subr.mxu0 0.0
        %450 = vmatpush1.msra.mxu0 0.0
        %451 = vmatprep.subr.mxu0 0.0
        %452 = vmatpush1.msra.mxu0 0.0
        %453 = vmatprep.subr.mxu0 0.0
        %454 = vmatpush1.msra.mxu0 0.0
        %455 = vmatprep.subr.mxu0 0.0
        %456 = vmatpush1.msra.mxu0 0.0
        %457 = vmatprep.subr.mxu0 0.0
        %458 = vmatpush1.msra.mxu0 0.0
        %459 = vmatprep.subr.mxu0 0.0
        %460 = vmatpush1.msra.mxu0 0.0
        %461 = vmatprep.subr.mxu0 0.0
        %462 = vmatpush1.msra.mxu0 0.0
        %463 = vmatprep.subr.mxu0 0.0
        %464 = vmatpush1.msra.mxu0 0.0
        %465 = vmatprep.subr.mxu0 0.0
        %466 = vmatpush1.msra.mxu0 0.0
        %467 = vmatprep.subr.mxu0 0.0
        %468 = vmatpush1.msra.mxu0 0.0
        %469 = vmatprep.subr.mxu0 0.0
        %470 = vmatpush1.msra.mxu0 0.0
        %471 = vmatprep.subr.mxu0 0.0
        %472 = vmatpush1.msra.mxu0 0.0
        %473 = vmatprep.subr.mxu0 0.0
        %474 = vmatpush1.msra.mxu0 0.0
        %475 = vmatprep.mubr.f32.mxu0 0.0
        %476 = vmatmul.mubr.f32.gmra.mrb[0].mxu0 %v388
        %v477 = vpop.f32.mrb[0].mxu0
        %v478 = vadd.f32 0.0, %v477
        %v479 = vpop.f32.mrb[0].mxu0
        %480 = vmatprep.mubr.f32.mxu0 0.0
        %481 = vmatmul.mubr.f32.gmra.mrb[0].mxu0 %v391
        %v482 = vpop.f32.mrb[0].mxu0
        %v483 = vadd.f32 0.0, %v482
        %v484 = vpop.f32.mrb[0].mxu0
        %485 = vmatprep.mubr.f32.mxu0 0.0
        %486 = vmatmul.mubr.f32.gmra.mrb[0].mxu0 %v394
        %v487 = vpop.f32.mrb[0].mxu0
        %v488 = vadd.f32 0.0, %v487
        %v489 = vpop.f32.mrb[0].mxu0
        %490 = vmatprep.mubr.f32.mxu0 0.0
        %491 = vmatmul.mubr.f32.gmra.mrb[0].mxu0 %v397
        %v492 = vpop.f32.mrb[0].mxu0
        %v493 = vadd.f32 0.0, %v492
        %v494 = vpop.f32.mrb[0].mxu0
        %495 = vmatprep.mubr.f32.mxu0 0.0
        %496 = vmatmul.mubr.f32.gmra.mrb[0].mxu0 %v400
        %v497 = vpop.f32.mrb[0].mxu0
        %v498 = vadd.f32 0.0, %v497
        %v499 = vpop.f32.mrb[0].mxu0
        %500 = vmatprep.mubr.f32.mxu0 0.0
        %501 = vmatmul.mubr.f32.gmra.mrb[0].mxu0 %v403
        %v502 = vpop.f32.mrb[0].mxu0
        %v503 = vadd.f32 0.0, %v502
        %v504 = vpop.f32.mrb[0].mxu0
        %505 = vmatprep.mubr.f32.mxu0 0.0
        %506 = vmatmul.mubr.f32.gmra.mrb[0].mxu0 %v406
        %v507 = vpop.f32.mrb[0].mxu0
        %v508 = vadd.f32 0.0, %v507
        %v509 = vpop.f32.mrb[0].mxu0
        %510 = vmatprep.mubr.f32.mxu0 0.0
        %511 = vmatmul.mubr.f32.gmra.mrb[0].mxu0 %v409
        %v512 = vpop.f32.mrb[0].mxu0
        %v513 = vadd.f32 0.0, %v512
        %v514 = vpop.f32.mrb[0].mxu0
        %515 = vdwg.mxu0
        %v517 = vsel %vm386, %v371, 0
        %v520 = vsel %vm386, %v372, 0
        %v523 = vsel %vm386, %v373, 0
        %v526 = vsel %vm386, %v374, 0
        %v529 = vsel %vm386, %v375, 0
        %531 = vmatprep.subr.mxu0 0.0
        %532 = vmatpush1.msra.mxu0 %v478
        %533 = vmatprep.subr.mxu0 0.0
        %534 = vmatpush1.msra.mxu0 %v483
        %535 = vmatprep.subr.mxu0 0.0
        %536 = vmatpush1.msra.mxu0 0.0
        %537 = vmatprep.subr.mxu0 0.0
        %538 = vmatpush1.msra.mxu0 0.0
        %539 = vmatprep.subr.mxu0 0.0
        %540 = vmatpush1.msra.mxu0 0.0
        %541 = vmatprep.subr.mxu0 0.0
        %542 = vmatpush1.msra.mxu0 0.0
        %543 = vmatprep.subr.mxu0 0.0
        %544 = vmatpush1.msra.mxu0 0.0
        %545 = vmatprep.subr.mxu0 0.0
        %546 = vmatpush1.msra.mxu0 0.0
        %547 = vmatprep.subr.mxu0 0.0
        %548 = vmatpush1.msra.mxu0 0.0
        %549 = vmatprep.subr.mxu0 0.0
        %550 = vmatpush1.msra.mxu0 0.0
        %551 = vmatprep.subr.mxu0 0.0
        %552 = vmatpush1.msra.mxu0 0.0
        %553 = vmatprep.subr.mxu0 0.0
        %554 = vmatpush1.msra.mxu0 0.0
        %555 = vmatprep.subr.mxu0 0.0
        %556 = vmatpush1.msra.mxu0 0.0
        %557 = vmatprep.subr.mxu0 0.0
        %558 = vmatpush1.msra.mxu0 0.0
        %559 = vmatprep.subr.mxu0 0.0
        %560 = vmatpush1.msra.mxu0 0.0
        %561 = vmatprep.subr.mxu0 0.0
        %562 = vmatpush1.msra.mxu0 0.0
        %563 = vmatprep.subr.mxu0 0.0
        %564 = vmatpush1.msra.mxu0 0.0
        %565 = vmatprep.subr.mxu0 0.0
        %566 = vmatpush1.msra.mxu0 0.0
        %567 = vmatprep.subr.mxu0 0.0
        %568 = vmatpush1.msra.mxu0 0.0
        %569 = vmatprep.subr.mxu0 0.0
        %570 = vmatpush1.msra.mxu0 0.0
        %571 = vmatprep.subr.mxu0 0.0
        %572 = vmatpush1.msra.mxu0 0.0
        %573 = vmatprep.subr.mxu0 0.0
        %574 = vmatpush1.msra.mxu0 0.0
        %575 = vmatprep.subr.mxu0 0.0
        %576 = vmatpush1.msra.mxu0 0.0
        %577 = vmatprep.subr.mxu0 0.0
        %578 = vmatpush1.msra.mxu0 0.0
        %579 = vmatprep.subr.mxu0 0.0
        %580 = vmatpush1.msra.mxu0 0.0
        %581 = vmatprep.subr.mxu0 0.0
        %582 = vmatpush1.msra.mxu0 0.0
        %583 = vmatprep.subr.mxu0 0.0
        %584 = vmatpush1.msra.mxu0 0.0
        %585 = vmatprep.subr.mxu0 0.0
        %586 = vmatpush1.msra.mxu0 0.0
        %587 = vmatprep.subr.mxu0 0.0
        %588 = vmatpush1.msra.mxu0 0.0
        %589 = vmatprep.subr.mxu0 0.0
        %590 = vmatpush1.msra.mxu0 0.0
        %591 = vmatprep.subr.mxu0 0.0
        %592 = vmatpush1.msra.mxu0 0.0
        %593 = vmatprep.subr.mxu0 0.0
        %594 = vmatpush1.msra.mxu0 0.0
        %595 = vmatprep.mubr.f32.mxu0 0.0
        %596 = vmatmul.mubr.f32.gmra.mrb[0].mxu0 %v517
        %v597 = vpop.f32.mrb[0].mxu0
        %v598 = vadd.f32 0.0, %v597
        %v599 = vpop.f32.mrb[0].mxu0
        %600 = vmatprep.mubr.f32.mxu0 0.0
        %601 = vmatmul.mubr.f32.gmra.mrb[0].mxu0 %v520
        %v602 = vpop.f32.mrb[0].mxu0
        %v603 = vadd.f32 0.0, %v602
        %v604 = vpop.f32.mrb[0].mxu0
        %605 = vmatprep.mubr.f32.mxu0 0.0
        %606 = vmatmul.mubr.f32.gmra.mrb[0].mxu0 %v523
        %v607 = vpop.f32.mrb[0].mxu0
        %v608 = vadd.f32 0.0, %v607
        %v609 = vpop.f32.mrb[0].mxu0
        %610 = vmatprep.mubr.f32.mxu0 0.0
        %611 = vmatmul.mubr.f32.gmra.mrb[0].mxu0 %v526
        %v612 = vpop.f32.mrb[0].mxu0
        %v613 = vadd.f32 0.0, %v612
        %v614 = vpop.f32.mrb[0].mxu0
        %615 = vmatprep.mubr.f32.mxu0 0.0
        %616 = vmatmul.mubr.f32.gmra.mrb[0].mxu0 %v529
        %v617 = vpop.f32.mrb[0].mxu0
        %v618 = vadd.f32 0.0, %v617
        %v619 = vpop.f32.mrb[0].mxu0
        %620 = vdwg.mxu0
        %vm621 = vcmask 277504
        %622 = vst.msk [vmem:[#allocation2] sm:$0xff] %vm621, %v598
        %623 = vst.msk [vmem:[#allocation2 + $0x8] sm:$0xff] %vm621, %v603
        %624 = vst.msk [vmem:[#allocation2 + $0x10] sm:$0xff] %vm621, %v608
        %625 = vst.msk [vmem:[#allocation2 + $0x18] sm:$0xff] %vm621, %v613
        %vm626 = vcmask 271360
        %627 = vst.msk [vmem:[#allocation2 + $0x20] sm:$0x3] %vm626, %v618
        %628 = vmatprep.subr.mxu0 0.0
        %629 = vmatpush1.msra.mxu0 %v488
        %630 = vmatprep.subr.mxu0 0.0
        %631 = vmatpush1.msra.mxu0 %v493
        %632 = vmatprep.subr.mxu0 0.0
        %633 = vmatpush1.msra.mxu0 0.0
        %634 = vmatprep.subr.mxu0 0.0
        %635 = vmatpush1.msra.mxu0 0.0
        %636 = vmatprep.subr.mxu0 0.0
        %637 = vmatpush1.msra.mxu0 0.0
        %638 = vmatprep.subr.mxu0 0.0
        %639 = vmatpush1.msra.mxu0 0.0
        %640 = vmatprep.subr.mxu0 0.0
        %641 = vmatpush1.msra.mxu0 0.0
        %642 = vmatprep.subr.mxu0 0.0
        %643 = vmatpush1.msra.mxu0 0.0
        %644 = vmatprep.subr.mxu0 0.0
        %645 = vmatpush1.msra.mxu0 0.0
        %646 = vmatprep.subr.mxu0 0.0
        %647 = vmatpush1.msra.mxu0 0.0
        %648 = vmatprep.subr.mxu0 0.0
        %649 = vmatpush1.msra.mxu0 0.0
        %650 = vmatprep.subr.mxu0 0.0
        %651 = vmatpush1.msra.mxu0 0.0
        %652 = vmatprep.subr.mxu0 0.0
        %653 = vmatpush1.msra.mxu0 0.0
        %654 = vmatprep.subr.mxu0 0.0
        %655 = vmatpush1.msra.mxu0 0.0
        %656 = vmatprep.subr.mxu0 0.0
        %657 = vmatpush1.msra.mxu0 0.0
        %658 = vmatprep.subr.mxu0 0.0
        %659 = vmatpush1.msra.mxu0 0.0
        %660 = vmatprep.subr.mxu0 0.0
        %661 = vmatpush1.msra.mxu0 0.0
        %662 = vmatprep.subr.mxu0 0.0
        %663 = vmatpush1.msra.mxu0 0.0
        %664 = vmatprep.subr.mxu0 0.0
        %665 = vmatpush1.msra.mxu0 0.0
        %666 = vmatprep.subr.mxu0 0.0
        %667 = vmatpush1.msra.mxu0 0.0
        %668 = vmatprep.subr.mxu0 0.0
        %669 = vmatpush1.msra.mxu0 0.0
        %670 = vmatprep.subr.mxu0 0.0
        %671 = vmatpush1.msra.mxu0 0.0
        %672 = vmatprep.subr.mxu0 0.0
        %673 = vmatpush1.msra.mxu0 0.0
        %674 = vmatprep.subr.mxu0 0.0
        %675 = vmatpush1.msra.mxu0 0.0
        %676 = vmatprep.subr.mxu0 0.0
        %677 = vmatpush1.msra.mxu0 0.0
        %678 = vmatprep.subr.mxu0 0.0
        %679 = vmatpush1.msra.mxu0 0.0
        %680 = vmatprep.subr.mxu0 0.0
        %681 = vmatpush1.msra.mxu0 0.0
        %682 = vmatprep.subr.mxu0 0.0
        %683 = vmatpush1.msra.mxu0 0.0
        %684 = vmatprep.subr.mxu0 0.0
        %685 = vmatpush1.msra.mxu0 0.0
        %686 = vmatprep.subr.mxu0 0.0
        %687 = vmatpush1.msra.mxu0 0.0
        %688 = vmatprep.subr.mxu0 0.0
        %689 = vmatpush1.msra.mxu0 0.0
        %690 = vmatprep.subr.mxu0 0.0
        %691 = vmatpush1.msra.mxu0 0.0
        %692 = vmatprep.mubr.f32.mxu0 0.0
        %693 = vmatmul.mubr.f32.gmra.mrb[0].mxu0 %v517
        %v694 = vpop.f32.mrb[0].mxu0
        %v695 = vadd.f32 0.0, %v694
        %v696 = vpop.f32.mrb[0].mxu0
        %697 = vmatprep.mubr.f32.mxu0 0.0
        %698 = vmatmul.mubr.f32.gmra.mrb[0].mxu0 %v520
        %v699 = vpop.f32.mrb[0].mxu0
        %v700 = vadd.f32 0.0, %v699
        %v701 = vpop.f32.mrb[0].mxu0
        %702 = vmatprep.mubr.f32.mxu0 0.0
        %703 = vmatmul.mubr.f32.gmra.mrb[0].mxu0 %v523
        %v704 = vpop.f32.mrb[0].mxu0
        %v705 = vadd.f32 0.0, %v704
        %v706 = vpop.f32.mrb[0].mxu0
        %707 = vmatprep.mubr.f32.mxu0 0.0
        %708 = vmatmul.mubr.f32.gmra.mrb[0].mxu0 %v526
        %v709 = vpop.f32.mrb[0].mxu0
        %v710 = vadd.f32 0.0, %v709
        %v711 = vpop.f32.mrb[0].mxu0
        %712 = vmatprep.mubr.f32.mxu0 0.0
        %713 = vmatmul.mubr.f32.gmra.mrb[0].mxu0 %v529
        %v714 = vpop.f32.mrb[0].mxu0
        %v715 = vadd.f32 0.0, %v714
        %v716 = vpop.f32.mrb[0].mxu0
        %717 = vdwg.mxu0
        %s718 = scalar_lea.vmem [#allocation2], 40
        %719 = vst.msk [vmem:[%s718] sm:$0xff] %vm621, %v695
        %720 = vst.msk [vmem:[%s718 + $0x8] sm:$0xff] %vm621, %v700
        %721 = vst.msk [vmem:[%s718 + $0x10] sm:$0xff] %vm621, %v705
        %722 = vst.msk [vmem:[%s718 + $0x18] sm:$0xff] %vm621, %v710
        %723 = vst.msk [vmem:[%s718 + $0x20] sm:$0x3] %vm626, %v715
        %724 = vmatprep.subr.mxu0 0.0
        %725 = vmatpush1.msra.mxu0 %v498
        %726 = vmatprep.subr.mxu0 0.0
        %727 = vmatpush1.msra.mxu0 %v503
        %728 = vmatprep.subr.mxu0 0.0
        %729 = vmatpush1.msra.mxu0 0.0
        %730 = vmatprep.subr.mxu0 0.0
        %731 = vmatpush1.msra.mxu0 0.0
        %732 = vmatprep.subr.mxu0 0.0
        %733 = vmatpush1.msra.mxu0 0.0
        %734 = vmatprep.subr.mxu0 0.0
        %735 = vmatpush1.msra.mxu0 0.0
        %736 = vmatprep.subr.mxu0 0.0
        %737 = vmatpush1.msra.mxu0 0.0
        %738 = vmatprep.subr.mxu0 0.0
        %739 = vmatpush1.msra.mxu0 0.0
        %740 = vmatprep.subr.mxu0 0.0
        %741 = vmatpush1.msra.mxu0 0.0
        %742 = vmatprep.subr.mxu0 0.0
        %743 = vmatpush1.msra.mxu0 0.0
        %744 = vmatprep.subr.mxu0 0.0
        %745 = vmatpush1.msra.mxu0 0.0
        %746 = vmatprep.subr.mxu0 0.0
        %747 = vmatpush1.msra.mxu0 0.0
        %748 = vmatprep.subr.mxu0 0.0
        %749 = vmatpush1.msra.mxu0 0.0
        %750 = vmatprep.subr.mxu0 0.0
        %751 = vmatpush1.msra.mxu0 0.0
        %752 = vmatprep.subr.mxu0 0.0
        %753 = vmatpush1.msra.mxu0 0.0
        %754 = vmatprep.subr.mxu0 0.0
        %755 = vmatpush1.msra.mxu0 0.0
        %756 = vmatprep.subr.mxu0 0.0
        %757 = vmatpush1.msra.mxu0 0.0
        %758 = vmatprep.subr.mxu0 0.0
        %759 = vmatpush1.msra.mxu0 0.0
        %760 = vmatprep.subr.mxu0 0.0
        %761 = vmatpush1.msra.mxu0 0.0
        %762 = vmatprep.subr.mxu0 0.0
        %763 = vmatpush1.msra.mxu0 0.0
        %764 = vmatprep.subr.mxu0 0.0
        %765 = vmatpush1.msra.mxu0 0.0
        %766 = vmatprep.subr.mxu0 0.0
        %767 = vmatpush1.msra.mxu0 0.0
        %768 = vmatprep.subr.mxu0 0.0
        %769 = vmatpush1.msra.mxu0 0.0
        %770 = vmatprep.subr.mxu0 0.0
        %771 = vmatpush1.msra.mxu0 0.0
        %772 = vmatprep.subr.mxu0 0.0
        %773 = vmatpush1.msra.mxu0 0.0
        %774 = vmatprep.subr.mxu0 0.0
        %775 = vmatpush1.msra.mxu0 0.0
        %776 = vmatprep.subr.mxu0 0.0
        %777 = vmatpush1.msra.mxu0 0.0
        %778 = vmatprep.subr.mxu0 0.0
        %779 = vmatpush1.msra.mxu0 0.0
        %780 = vmatprep.subr.mxu0 0.0
        %781 = vmatpush1.msra.mxu0 0.0
        %782 = vmatprep.subr.mxu0 0.0
        %783 = vmatpush1.msra.mxu0 0.0
        %784 = vmatprep.subr.mxu0 0.0
        %785 = vmatpush1.msra.mxu0 0.0
        %786 = vmatprep.subr.mxu0 0.0
        %787 = vmatpush1.msra.mxu0 0.0
        %788 = vmatprep.mubr.f32.mxu0 0.0
        %789 = vmatmul.mubr.f32.gmra.mrb[0].mxu0 %v517
        %v790 = vpop.f32.mrb[0].mxu0
        %v791 = vadd.f32 0.0, %v790
        %v792 = vpop.f32.mrb[0].mxu0
        %793 = vmatprep.mubr.f32.mxu0 0.0
        %794 = vmatmul.mubr.f32.gmra.mrb[0].mxu0 %v520
        %v795 = vpop.f32.mrb[0].mxu0
        %v796 = vadd.f32 0.0, %v795
        %v797 = vpop.f32.mrb[0].mxu0
        %798 = vmatprep.mubr.f32.mxu0 0.0
        %799 = vmatmul.mubr.f32.gmra.mrb[0].mxu0 %v523
        %v800 = vpop.f32.mrb[0].mxu0
        %v801 = vadd.f32 0.0, %v800
        %v802 = vpop.f32.mrb[0].mxu0
        %803 = vmatprep.mubr.f32.mxu0 0.0
        %804 = vmatmul.mubr.f32.gmra.mrb[0].mxu0 %v526
        %v805 = vpop.f32.mrb[0].mxu0
        %v806 = vadd.f32 0.0, %v805
        %v807 = vpop.f32.mrb[0].mxu0
        %808 = vmatprep.mubr.f32.mxu0 0.0
        %809 = vmatmul.mubr.f32.gmra.mrb[0].mxu0 %v529
        %v810 = vpop.f32.mrb[0].mxu0
        %v811 = vadd.f32 0.0, %v810
        %v812 = vpop.f32.mrb[0].mxu0
        %813 = vdwg.mxu0
        %s814 = scalar_lea.vmem [#allocation2], 80
        %815 = vst.msk [vmem:[%s814] sm:$0xff] %vm621, %v791
        %816 = vst.msk [vmem:[%s814 + $0x8] sm:$0xff] %vm621, %v796
        %817 = vst.msk [vmem:[%s814 + $0x10] sm:$0xff] %vm621, %v801
        %818 = vst.msk [vmem:[%s814 + $0x18] sm:$0xff] %vm621, %v806
        %819 = vst.msk [vmem:[%s814 + $0x20] sm:$0x3] %vm626, %v811
        %820 = vmatprep.subr.mxu0 0.0
        %821 = vmatpush1.msra.mxu0 %v508
        %822 = vmatprep.subr.mxu0 0.0
        %823 = vmatpush1.msra.mxu0 %v513
        %824 = vmatprep.subr.mxu0 0.0
        %825 = vmatpush1.msra.mxu0 0.0
        %826 = vmatprep.subr.mxu0 0.0
        %827 = vmatpush1.msra.mxu0 0.0
        %828 = vmatprep.subr.mxu0 0.0
        %829 = vmatpush1.msra.mxu0 0.0
        %830 = vmatprep.subr.mxu0 0.0
        %831 = vmatpush1.msra.mxu0 0.0
        %832 = vmatprep.subr.mxu0 0.0
        %833 = vmatpush1.msra.mxu0 0.0
        %834 = vmatprep.subr.mxu0 0.0
        %835 = vmatpush1.msra.mxu0 0.0
        %836 = vmatprep.subr.mxu0 0.0
        %837 = vmatpush1.msra.mxu0 0.0
        %838 = vmatprep.subr.mxu0 0.0
        %839 = vmatpush1.msra.mxu0 0.0
        %840 = vmatprep.subr.mxu0 0.0
        %841 = vmatpush1.msra.mxu0 0.0
        %842 = vmatprep.subr.mxu0 0.0
        %843 = vmatpush1.msra.mxu0 0.0
        %844 = vmatprep.subr.mxu0 0.0
        %845 = vmatpush1.msra.mxu0 0.0
        %846 = vmatprep.subr.mxu0 0.0
        %847 = vmatpush1.msra.mxu0 0.0
        %848 = vmatprep.subr.mxu0 0.0
        %849 = vmatpush1.msra.mxu0 0.0
        %850 = vmatprep.subr.mxu0 0.0
        %851 = vmatpush1.msra.mxu0 0.0
        %852 = vmatprep.subr.mxu0 0.0
        %853 = vmatpush1.msra.mxu0 0.0
        %854 = vmatprep.subr.mxu0 0.0
        %855 = vmatpush1.msra.mxu0 0.0
        %856 = vmatprep.subr.mxu0 0.0
        %857 = vmatpush1.msra.mxu0 0.0
        %858 = vmatprep.subr.mxu0 0.0
        %859 = vmatpush1.msra.mxu0 0.0
        %860 = vmatprep.subr.mxu0 0.0
        %861 = vmatpush1.msra.mxu0 0.0
        %862 = vmatprep.subr.mxu0 0.0
        %863 = vmatpush1.msra.mxu0 0.0
        %864 = vmatprep.subr.mxu0 0.0
        %865 = vmatpush1.msra.mxu0 0.0
        %866 = vmatprep.subr.mxu0 0.0
        %867 = vmatpush1.msra.mxu0 0.0
        %868 = vmatprep.subr.mxu0 0.0
        %869 = vmatpush1.msra.mxu0 0.0
        %870 = vmatprep.subr.mxu0 0.0
        %871 = vmatpush1.msra.mxu0 0.0
        %872 = vmatprep.subr.mxu0 0.0
        %873 = vmatpush1.msra.mxu0 0.0
        %874 = vmatprep.subr.mxu0 0.0
        %875 = vmatpush1.msra.mxu0 0.0
        %876 = vmatprep.subr.mxu0 0.0
        %877 = vmatpush1.msra.mxu0 0.0
        %878 = vmatprep.subr.mxu0 0.0
        %879 = vmatpush1.msra.mxu0 0.0
        %880 = vmatprep.subr.mxu0 0.0
        %881 = vmatpush1.msra.mxu0 0.0
        %882 = vmatprep.subr.mxu0 0.0
        %883 = vmatpush1.msra.mxu0 0.0
        %884 = vmatprep.mubr.f32.mxu0 0.0
        %885 = vmatmul.mubr.f32.gmra.mrb[0].mxu0 %v517
        %v886 = vpop.f32.mrb[0].mxu0
        %v887 = vadd.f32 0.0, %v886
        %v888 = vpop.f32.mrb[0].mxu0
        %889 = vmatprep.mubr.f32.mxu0 0.0
        %890 = vmatmul.mubr.f32.gmra.mrb[0].mxu0 %v520
        %v891 = vpop.f32.mrb[0].mxu0
        %v892 = vadd.f32 0.0, %v891
        %v893 = vpop.f32.mrb[0].mxu0
        %894 = vmatprep.mubr.f32.mxu0 0.0
        %895 = vmatmul.mubr.f32.gmra.mrb[0].mxu0 %v523
        %v896 = vpop.f32.mrb[0].mxu0
        %v897 = vadd.f32 0.0, %v896
        %v898 = vpop.f32.mrb[0].mxu0
        %899 = vmatprep.mubr.f32.mxu0 0.0
        %900 = vmatmul.mubr.f32.gmra.mrb[0].mxu0 %v526
        %v901 = vpop.f32.mrb[0].mxu0
        %v902 = vadd.f32 0.0, %v901
        %v903 = vpop.f32.mrb[0].mxu0
        %904 = vmatprep.mubr.f32.mxu0 0.0
        %905 = vmatmul.mubr.f32.gmra.mrb[0].mxu0 %v529
        %v906 = vpop.f32.mrb[0].mxu0
        %v907 = vadd.f32 0.0, %v906
        %v908 = vpop.f32.mrb[0].mxu0
        %909 = vdwg.mxu0
        %s910 = scalar_lea.vmem [#allocation2], 120
        %911 = vst.msk [vmem:[%s910] sm:$0xff] %vm621, %v887
        %912 = vst.msk [vmem:[%s910 + $0x8] sm:$0xff] %vm621, %v892
        %913 = vst.msk [vmem:[%s910 + $0x10] sm:$0xff] %vm621, %v897
        %914 = vst.msk [vmem:[%s910 + $0x18] sm:$0xff] %vm621, %v902
        %915 = vst.msk [vmem:[%s910 + $0x20] sm:$0x3] %vm626, %v907
        %v916 = vld [vmem:[#allocation2] sm:$0xff]
        %v917 = vld [vmem:[#allocation2 + $0x8] sm:$0xff]
        %v918 = vld [vmem:[#allocation2 + $0x10] sm:$0xff]
        %v919 = vld [vmem:[#allocation2 + $0x18] sm:$0xff]
        %s920 = sld [smem:[#allocation5]]
        %v921 = vstv %s920
        %v922 = vmul.f32 %v921, %v916
        %v923 = vmul.f32 %v921, %v917
        %v924 = vmul.f32 %v921, %v918
        %v925 = vmul.f32 %v921, %v919
        %v926 = vadd.f32 %v922, 0.0
        %v927 = vadd.f32 %v923, 0.0
        %v928 = vadd.f32 %v924, 0.0
        %v929 = vadd.f32 %v925, 0.0
        %s930 = sld [smem:[#allocation5 + $0x1]]
        %v931 = vstv %s930
        %v932 = vmul.f32 %v931, %v916
        %v933 = vmul.f32 %v931, %v917
        %v934 = vmul.f32 %v931, %v918
        %v935 = vmul.f32 %v931, %v919
        %v936 = vadd.f32 %v932, 0.0
        %v937 = vadd.f32 %v933, 0.0
        %v938 = vadd.f32 %v934, 0.0
        %v939 = vadd.f32 %v935, 0.0
        %s940 = sld [smem:[#allocation5 + $0x2]]
        %v941 = vstv %s940
        %v942 = vmul.f32 %v941, %v916
        %v943 = vmul.f32 %v941, %v917
        %v944 = vmul.f32 %v941, %v918
        %v945 = vmul.f32 %v941, %v919
        %v946 = vadd.f32 %v942, 0.0
        %v947 = vadd.f32 %v943, 0.0
        %v948 = vadd.f32 %v944, 0.0
        %v949 = vadd.f32 %v945, 0.0
        %v950 = vld [vmem:[#allocation2 + $0x1] sm:$0xff]
        %v951 = vld [vmem:[#allocation2 + $0x9] sm:$0xff]
        %v952 = vld [vmem:[#allocation2 + $0x11] sm:$0xff]
        %v953 = vld [vmem:[#allocation2 + $0x19] sm:$0xff]
        %s954 = sld [smem:[#allocation5 + $0x3]]
        %v955 = vstv %s954
        %v956 = vmul.f32 %v955, %v950
        %v957 = vmul.f32 %v955, %v951
        %v958 = vmul.f32 %v955, %v952
        %v959 = vmul.f32 %v955, %v953
        %v960 = vadd.f32 %v926, %v956
        %v961 = vadd.f32 %v927, %v957
        %v962 = vadd.f32 %v928, %v958
        %v963 = vadd.f32 %v929, %v959
        %s964 = sld [smem:[#allocation5 + $0x4]]
        %v965 = vstv %s964
        %v966 = vmul.f32 %v965, %v950
        %v967 = vmul.f32 %v965, %v951
        %v968 = vmul.f32 %v965, %v952
        %v969 = vmul.f32 %v965, %v953
        %v970 = vadd.f32 %v936, %v966
        %v971 = vadd.f32 %v937, %v967
        %v972 = vadd.f32 %v938, %v968
        %v973 = vadd.f32 %v939, %v969
        %s974 = sld [smem:[#allocation5 + $0x5]]
        %v975 = vstv %s974
        %v976 = vmul.f32 %v975, %v950
        %v977 = vmul.f32 %v975, %v951
        %v978 = vmul.f32 %v975, %v952
        %v979 = vmul.f32 %v975, %v953
        %v980 = vadd.f32 %v946, %v976
        %v981 = vadd.f32 %v947, %v977
        %v982 = vadd.f32 %v948, %v978
        %v983 = vadd.f32 %v949, %v979
        %v984 = vld [vmem:[#allocation2 + $0x2] sm:$0xff]
        %v985 = vld [vmem:[#allocation2 + $0xa] sm:$0xff]
        %v986 = vld [vmem:[#allocation2 + $0x12] sm:$0xff]
        %v987 = vld [vmem:[#allocation2 + $0x1a] sm:$0xff]
        %s988 = sld [smem:[#allocation5 + $0x6]]
        %v989 = vstv %s988
        %v990 = vmul.f32 %v989, %v984
        %v991 = vmul.f32 %v989, %v985
        %v992 = vmul.f32 %v989, %v986
        %v993 = vmul.f32 %v989, %v987
        %v994 = vadd.f32 %v960, %v990
        %v995 = vadd.f32 %v961, %v991
        %v996 = vadd.f32 %v962, %v992
        %v997 = vadd.f32 %v963, %v993
        %s998 = sld [smem:[#allocation5 + $0x7]]
        %v999 = vstv %s998
        %v1000 = vmul.f32 %v999, %v984
        %v1001 = vmul.f32 %v999, %v985
        %v1002 = vmul.f32 %v999, %v986
        %v1003 = vmul.f32 %v999, %v987
        %v1004 = vadd.f32 %v970, %v1000
        %v1005 = vadd.f32 %v971, %v1001
        %v1006 = vadd.f32 %v972, %v1002
        %v1007 = vadd.f32 %v973, %v1003
        %s1008 = sld [smem:[#allocation5 + $0x8]]
        %v1009 = vstv %s1008
        %v1010 = vmul.f32 %v1009, %v984
        %v1011 = vmul.f32 %v1009, %v985
        %v1012 = vmul.f32 %v1009, %v986
        %v1013 = vmul.f32 %v1009, %v987
        %v1014 = vadd.f32 %v980, %v1010
        %v1015 = vadd.f32 %v981, %v1011
        %v1016 = vadd.f32 %v982, %v1012
        %v1017 = vadd.f32 %v983, %v1013
        %v1018 = vld [vmem:[%s718] sm:$0xff]
        %v1019 = vld [vmem:[%s718 + $0x8] sm:$0xff]
        %v1020 = vld [vmem:[%s718 + $0x10] sm:$0xff]
        %v1021 = vld [vmem:[%s718 + $0x18] sm:$0xff]
        %s1022 = sld [smem:[#allocation5 + $0x9]]
        %v1023 = vstv %s1022
        %v1024 = vmul.f32 %v1023, %v1018
        %v1025 = vmul.f32 %v1023, %v1019
        %v1026 = vmul.f32 %v1023, %v1020
        %v1027 = vmul.f32 %v1023, %v1021
        %v1028 = vadd.f32 %v994, %v1024
        %v1029 = vadd.f32 %v995, %v1025
        %v1030 = vadd.f32 %v996, %v1026
        %v1031 = vadd.f32 %v997, %v1027
        %s1032 = sld [smem:[#allocation5 + $0xa]]
        %v1033 = vstv %s1032
        %v1034 = vmul.f32 %v1033, %v1018
        %v1035 = vmul.f32 %v1033, %v1019
        %v1036 = vmul.f32 %v1033, %v1020
        %v1037 = vmul.f32 %v1033, %v1021
        %v1038 = vadd.f32 %v1004, %v1034
        %v1039 = vadd.f32 %v1005, %v1035
        %v1040 = vadd.f32 %v1006, %v1036
        %v1041 = vadd.f32 %v1007, %v1037
        %s1042 = sld [smem:[#allocation5 + $0xb]]
        %v1043 = vstv %s1042
        %v1044 = vmul.f32 %v1043, %v1018
        %v1045 = vmul.f32 %v1043, %v1019
        %v1046 = vmul.f32 %v1043, %v1020
        %v1047 = vmul.f32 %v1043, %v1021
        %v1048 = vadd.f32 %v1014, %v1044
        %v1049 = vadd.f32 %v1015, %v1045
        %v1050 = vadd.f32 %v1016, %v1046
        %v1051 = vadd.f32 %v1017, %v1047
        %v1052 = vld [vmem:[%s718 + $0x1] sm:$0xff]
        %v1053 = vld [vmem:[%s718 + $0x9] sm:$0xff]
        %v1054 = vld [vmem:[%s718 + $0x11] sm:$0xff]
        %v1055 = vld [vmem:[%s718 + $0x19] sm:$0xff]
        %s1056 = sld [smem:[#allocation5 + $0xc]]
        %v1057 = vstv %s1056
        %v1058 = vmul.f32 %v1057, %v1052
        %v1059 = vmul.f32 %v1057, %v1053
        %v1060 = vmul.f32 %v1057, %v1054
        %v1061 = vmul.f32 %v1057, %v1055
        %v1062 = vadd.f32 %v1028, %v1058
        %v1063 = vadd.f32 %v1029, %v1059
        %v1064 = vadd.f32 %v1030, %v1060
        %v1065 = vadd.f32 %v1031, %v1061
        %s1066 = sld [smem:[#allocation5 + $0xd]]
        %v1067 = vstv %s1066
        %v1068 = vmul.f32 %v1067, %v1052
        %v1069 = vmul.f32 %v1067, %v1053
        %v1070 = vmul.f32 %v1067, %v1054
        %v1071 = vmul.f32 %v1067, %v1055
        %v1072 = vadd.f32 %v1038, %v1068
        %v1073 = vadd.f32 %v1039, %v1069
        %v1074 = vadd.f32 %v1040, %v1070
        %v1075 = vadd.f32 %v1041, %v1071
        %s1076 = sld [smem:[#allocation5 + $0xe]]
        %v1077 = vstv %s1076
        %v1078 = vmul.f32 %v1077, %v1052
        %v1079 = vmul.f32 %v1077, %v1053
        %v1080 = vmul.f32 %v1077, %v1054
        %v1081 = vmul.f32 %v1077, %v1055
        %v1082 = vadd.f32 %v1048, %v1078
        %v1083 = vadd.f32 %v1049, %v1079
        %v1084 = vadd.f32 %v1050, %v1080
        %v1085 = vadd.f32 %v1051, %v1081
        %v1086 = vld [vmem:[%s718 + $0x2] sm:$0xff]
        %v1087 = vld [vmem:[%s718 + $0xa] sm:$0xff]
        %v1088 = vld [vmem:[%s718 + $0x12] sm:$0xff]
        %v1089 = vld [vmem:[%s718 + $0x1a] sm:$0xff]
        %s1090 = sld [smem:[#allocation5 + $0xf]]
        %v1091 = vstv %s1090
        %v1092 = vmul.f32 %v1091, %v1086
        %v1093 = vmul.f32 %v1091, %v1087
        %v1094 = vmul.f32 %v1091, %v1088
        %v1095 = vmul.f32 %v1091, %v1089
        %v1096 = vadd.f32 %v1062, %v1092
        %v1097 = vadd.f32 %v1063, %v1093
        %v1098 = vadd.f32 %v1064, %v1094
        %v1099 = vadd.f32 %v1065, %v1095
        %s1100 = sld [smem:[#allocation5 + $0x10]]
        %v1101 = vstv %s1100
        %v1102 = vmul.f32 %v1101, %v1086
        %v1103 = vmul.f32 %v1101, %v1087
        %v1104 = vmul.f32 %v1101, %v1088
        %v1105 = vmul.f32 %v1101, %v1089
        %v1106 = vadd.f32 %v1072, %v1102
        %v1107 = vadd.f32 %v1073, %v1103
        %v1108 = vadd.f32 %v1074, %v1104
        %v1109 = vadd.f32 %v1075, %v1105
        %s1110 = sld [smem:[#allocation5 + $0x11]]
        %v1111 = vstv %s1110
        %v1112 = vmul.f32 %v1111, %v1086
        %v1113 = vmul.f32 %v1111, %v1087
        %v1114 = vmul.f32 %v1111, %v1088
        %v1115 = vmul.f32 %v1111, %v1089
        %v1116 = vadd.f32 %v1082, %v1112
        %v1117 = vadd.f32 %v1083, %v1113
        %v1118 = vadd.f32 %v1084, %v1114
        %v1119 = vadd.f32 %v1085, %v1115
        %v1120 = vld [vmem:[%s814] sm:$0xff]
        %v1121 = vld [vmem:[%s814 + $0x8] sm:$0xff]
        %v1122 = vld [vmem:[%s814 + $0x10] sm:$0xff]
        %v1123 = vld [vmem:[%s814 + $0x18] sm:$0xff]
        %s1124 = sld [smem:[#allocation5 + $0x12]]
        %v1125 = vstv %s1124
        %v1126 = vmul.f32 %v1125, %v1120
        %v1127 = vmul.f32 %v1125, %v1121
        %v1128 = vmul.f32 %v1125, %v1122
        %v1129 = vmul.f32 %v1125, %v1123
        %v1130 = vadd.f32 %v1096, %v1126
        %v1131 = vadd.f32 %v1097, %v1127
        %v1132 = vadd.f32 %v1098, %v1128
        %v1133 = vadd.f32 %v1099, %v1129
        %s1134 = sld [smem:[#allocation5 + $0x13]]
        %v1135 = vstv %s1134
        %v1136 = vmul.f32 %v1135, %v1120
        %v1137 = vmul.f32 %v1135, %v1121
        %v1138 = vmul.f32 %v1135, %v1122
        %v1139 = vmul.f32 %v1135, %v1123
        %v1140 = vadd.f32 %v1106, %v1136
        %v1141 = vadd.f32 %v1107, %v1137
        %v1142 = vadd.f32 %v1108, %v1138
        %v1143 = vadd.f32 %v1109, %v1139
        %s1144 = sld [smem:[#allocation5 + $0x14]]
        %v1145 = vstv %s1144
        %v1146 = vmul.f32 %v1145, %v1120
        %v1147 = vmul.f32 %v1145, %v1121
        %v1148 = vmul.f32 %v1145, %v1122
        %v1149 = vmul.f32 %v1145, %v1123
        %v1150 = vadd.f32 %v1116, %v1146
        %v1151 = vadd.f32 %v1117, %v1147
        %v1152 = vadd.f32 %v1118, %v1148
        %v1153 = vadd.f32 %v1119, %v1149
        %v1154 = vld [vmem:[%s814 + $0x1] sm:$0xff]
        %v1155 = vld [vmem:[%s814 + $0x9] sm:$0xff]
        %v1156 = vld [vmem:[%s814 + $0x11] sm:$0xff]
        %v1157 = vld [vmem:[%s814 + $0x19] sm:$0xff]
        %s1158 = sld [smem:[#allocation5 + $0x15]]
        %v1159 = vstv %s1158
        %v1160 = vmul.f32 %v1159, %v1154
        %v1161 = vmul.f32 %v1159, %v1155
        %v1162 = vmul.f32 %v1159, %v1156
        %v1163 = vmul.f32 %v1159, %v1157
        %v1164 = vadd.f32 %v1130, %v1160
        %v1165 = vadd.f32 %v1131, %v1161
        %v1166 = vadd.f32 %v1132, %v1162
        %v1167 = vadd.f32 %v1133, %v1163
        %s1168 = sld [smem:[#allocation5 + $0x16]]
        %v1169 = vstv %s1168
        %v1170 = vmul.f32 %v1169, %v1154
        %v1171 = vmul.f32 %v1169, %v1155
        %v1172 = vmul.f32 %v1169, %v1156
        %v1173 = vmul.f32 %v1169, %v1157
        %v1174 = vadd.f32 %v1140, %v1170
        %v1175 = vadd.f32 %v1141, %v1171
        %v1176 = vadd.f32 %v1142, %v1172
        %v1177 = vadd.f32 %v1143, %v1173
        %s1178 = sld [smem:[#allocation5 + $0x17]]
        %v1179 = vstv %s1178
        %v1180 = vmul.f32 %v1179, %v1154
        %v1181 = vmul.f32 %v1179, %v1155
        %v1182 = vmul.f32 %v1179, %v1156
        %v1183 = vmul.f32 %v1179, %v1157
        %v1184 = vadd.f32 %v1150, %v1180
        %v1185 = vadd.f32 %v1151, %v1181
        %v1186 = vadd.f32 %v1152, %v1182
        %v1187 = vadd.f32 %v1153, %v1183
        %v1188 = vld [vmem:[%s814 + $0x2] sm:$0xff]
        %v1189 = vld [vmem:[%s814 + $0xa] sm:$0xff]
        %v1190 = vld [vmem:[%s814 + $0x12] sm:$0xff]
        %v1191 = vld [vmem:[%s814 + $0x1a] sm:$0xff]
        %s1192 = sld [smem:[#allocation5 + $0x18]]
        %v1193 = vstv %s1192
        %v1194 = vmul.f32 %v1193, %v1188
        %v1195 = vmul.f32 %v1193, %v1189
        %v1196 = vmul.f32 %v1193, %v1190
        %v1197 = vmul.f32 %v1193, %v1191
        %v1198 = vadd.f32 %v1164, %v1194
        %v1199 = vadd.f32 %v1165, %v1195
        %v1200 = vadd.f32 %v1166, %v1196
        %v1201 = vadd.f32 %v1167, %v1197
        %s1202 = sld [smem:[#allocation5 + $0x19]]
        %v1203 = vstv %s1202
        %v1204 = vmul.f32 %v1203, %v1188
        %v1205 = vmul.f32 %v1203, %v1189
        %v1206 = vmul.f32 %v1203, %v1190
        %v1207 = vmul.f32 %v1203, %v1191
        %v1208 = vadd.f32 %v1174, %v1204
        %v1209 = vadd.f32 %v1175, %v1205
        %v1210 = vadd.f32 %v1176, %v1206
        %v1211 = vadd.f32 %v1177, %v1207
        %s1212 = sld [smem:[#allocation5 + $0x1a]]
        %v1213 = vstv %s1212
        %v1214 = vmul.f32 %v1213, %v1188
        %v1215 = vmul.f32 %v1213, %v1189
        %v1216 = vmul.f32 %v1213, %v1190
        %v1217 = vmul.f32 %v1213, %v1191
        %v1218 = vadd.f32 %v1184, %v1214
        %v1219 = vadd.f32 %v1185, %v1215
        %v1220 = vadd.f32 %v1186, %v1216
        %v1221 = vadd.f32 %v1187, %v1217
        %v1222 = vld [vmem:[%s910] sm:$0xff]
        %v1223 = vld [vmem:[%s910 + $0x8] sm:$0xff]
        %v1224 = vld [vmem:[%s910 + $0x10] sm:$0xff]
        %v1225 = vld [vmem:[%s910 + $0x18] sm:$0xff]
        %s1226 = sld [smem:[#allocation5 + $0x1b]]
        %v1227 = vstv %s1226
        %v1228 = vmul.f32 %v1227, %v1222
        %v1229 = vmul.f32 %v1227, %v1223
        %v1230 = vmul.f32 %v1227, %v1224
        %v1231 = vmul.f32 %v1227, %v1225
        %v1232 = vadd.f32 %v1198, %v1228
        %v1233 = vadd.f32 %v1199, %v1229
        %v1234 = vadd.f32 %v1200, %v1230
        %v1235 = vadd.f32 %v1201, %v1231
        %s1236 = sld [smem:[#allocation5 + $0x1c]]
        %v1237 = vstv %s1236
        %v1238 = vmul.f32 %v1237, %v1222
        %v1239 = vmul.f32 %v1237, %v1223
        %v1240 = vmul.f32 %v1237, %v1224
        %v1241 = vmul.f32 %v1237, %v1225
        %v1242 = vadd.f32 %v1208, %v1238
        %v1243 = vadd.f32 %v1209, %v1239
        %v1244 = vadd.f32 %v1210, %v1240
        %v1245 = vadd.f32 %v1211, %v1241
        %s1246 = sld [smem:[#allocation5 + $0x1d]]
        %v1247 = vstv %s1246
        %v1248 = vmul.f32 %v1247, %v1222
        %v1249 = vmul.f32 %v1247, %v1223
        %v1250 = vmul.f32 %v1247, %v1224
        %v1251 = vmul.f32 %v1247, %v1225
        %v1252 = vadd.f32 %v1218, %v1248
        %v1253 = vadd.f32 %v1219, %v1249
        %v1254 = vadd.f32 %v1220, %v1250
        %v1255 = vadd.f32 %v1221, %v1251
        %v1256 = vld [vmem:[%s910 + $0x1] sm:$0xff]
        %v1257 = vld [vmem:[%s910 + $0x9] sm:$0xff]
        %v1258 = vld [vmem:[%s910 + $0x11] sm:$0xff]
        %v1259 = vld [vmem:[%s910 + $0x19] sm:$0xff]
        %s1260 = sld [smem:[#allocation5 + $0x1e]]
        %v1261 = vstv %s1260
        %v1262 = vmul.f32 %v1261, %v1256
        %v1263 = vmul.f32 %v1261, %v1257
        %v1264 = vmul.f32 %v1261, %v1258
        %v1265 = vmul.f32 %v1261, %v1259
        %v1266 = vadd.f32 %v1232, %v1262
        %v1267 = vadd.f32 %v1233, %v1263
        %v1268 = vadd.f32 %v1234, %v1264
        %v1269 = vadd.f32 %v1235, %v1265
        %s1270 = sld [smem:[#allocation5 + $0x1f]]
        %v1271 = vstv %s1270
        %v1272 = vmul.f32 %v1271, %v1256
        %v1273 = vmul.f32 %v1271, %v1257
        %v1274 = vmul.f32 %v1271, %v1258
        %v1275 = vmul.f32 %v1271, %v1259
        %v1276 = vadd.f32 %v1242, %v1272
        %v1277 = vadd.f32 %v1243, %v1273
        %v1278 = vadd.f32 %v1244, %v1274
        %v1279 = vadd.f32 %v1245, %v1275
        %s1280 = sld [smem:[#allocation5 + $0x20]]
        %v1281 = vstv %s1280
        %v1282 = vmul.f32 %v1281, %v1256
        %v1283 = vmul.f32 %v1281, %v1257
        %v1284 = vmul.f32 %v1281, %v1258
        %v1285 = vmul.f32 %v1281, %v1259
        %v1286 = vadd.f32 %v1252, %v1282
        %v1287 = vadd.f32 %v1253, %v1283
        %v1288 = vadd.f32 %v1254, %v1284
        %v1289 = vadd.f32 %v1255, %v1285
        %v1290 = vld [vmem:[%s910 + $0x2] sm:$0xff]
        %v1291 = vld [vmem:[%s910 + $0xa] sm:$0xff]
        %v1292 = vld [vmem:[%s910 + $0x12] sm:$0xff]
        %v1293 = vld [vmem:[%s910 + $0x1a] sm:$0xff]
        %s1294 = sld [smem:[#allocation5 + $0x21]]
        %v1295 = vstv %s1294
        %v1296 = vmul.f32 %v1295, %v1290
        %v1297 = vmul.f32 %v1295, %v1291
        %v1298 = vmul.f32 %v1295, %v1292
        %v1299 = vmul.f32 %v1295, %v1293
        %v1300 = vadd.f32 %v1266, %v1296
        %v1301 = vadd.f32 %v1267, %v1297
        %v1302 = vadd.f32 %v1268, %v1298
        %v1303 = vadd.f32 %v1269, %v1299
        %s1304 = sld [smem:[#allocation5 + $0x22]]
        %v1305 = vstv %s1304
        %v1306 = vmul.f32 %v1305, %v1290
        %v1307 = vmul.f32 %v1305, %v1291
        %v1308 = vmul.f32 %v1305, %v1292
        %v1309 = vmul.f32 %v1305, %v1293
        %v1310 = vadd.f32 %v1276, %v1306
        %v1311 = vadd.f32 %v1277, %v1307
        %v1312 = vadd.f32 %v1278, %v1308
        %v1313 = vadd.f32 %v1279, %v1309
        %s1314 = sld [smem:[#allocation5 + $0x23]]
        %v1315 = vstv %s1314
        %v1316 = vmul.f32 %v1315, %v1290
        %v1317 = vmul.f32 %v1315, %v1291
        %v1318 = vmul.f32 %v1315, %v1292
        %v1319 = vmul.f32 %v1315, %v1293
        %v1320 = vadd.f32 %v1286, %v1316
        %v1321 = vadd.f32 %v1287, %v1317
        %v1322 = vadd.f32 %v1288, %v1318
        %v1323 = vadd.f32 %v1289, %v1319
        %1328 = vrot.lane.b32.xlu0 %v1310, 127
        %v1329 = vpop.permute.xlu0 %1328
        %1330 = vrot.lane.b32.xlu0 %v1311, 127
        %v1331 = vpop.permute.xlu0 %1330
        %1332 = vrot.lane.b32.xlu0 %v1312, 127
        %v1333 = vpop.permute.xlu0 %1332
        %1334 = vrot.lane.b32.xlu0 %v1313, 127
        %v1335 = vpop.permute.xlu0 %1334
        %v1340 = vadd.f32 %v1300, %v1329
        %v1341 = vadd.f32 %v1301, %v1331
        %v1342 = vadd.f32 %v1302, %v1333
        %v1343 = vadd.f32 %v1303, %v1335
        %1348 = vrot.lane.b32.xlu0 %v1320, 126
        %v1349 = vpop.permute.xlu0 %1348
        %1350 = vrot.lane.b32.xlu0 %v1321, 126
        %v1351 = vpop.permute.xlu0 %1350
        %1352 = vrot.lane.b32.xlu0 %v1322, 126
        %v1353 = vpop.permute.xlu0 %1352
        %1354 = vrot.lane.b32.xlu0 %v1323, 126
        %v1355 = vpop.permute.xlu0 %1354
        %v1360 = vadd.f32 %v1340, %v1349
        %v1361 = vadd.f32 %v1341, %v1351
        %v1362 = vadd.f32 %v1342, %v1353
        %v1363 = vadd.f32 %v1343, %v1355
        %s1364 = sld [smem:[#allocation8]]
        %v1365 = vstv %s1364
        %v1366 = vadd.f32 %v1360, %v1365
        %v1367 = vadd.f32 %v1361, %v1365
        %v1368 = vadd.f32 %v1362, %v1365
        %v1369 = vadd.f32 %v1363, %v1365
        %v1370 = vmax.f32 %v1366, 0.0
        %v1371 = vmax.f32 %v1367, 0.0
        %v1372 = vmax.f32 %v1368, 0.0
        %v1373 = vmax.f32 %v1369, 0.0
        %v1374 = vld [vmem:[%s7] sm:$0xff]
        %v1375 = vld [vmem:[%s7 + $0x8] sm:$0xff]
        %v1376 = vld [vmem:[%s7 + $0x10] sm:$0xff]
        %v1377 = vld [vmem:[%s7 + $0x18] sm:$0xff]
        %v1378 = vld [vmem:[%s7 + $0x20] sm:$0xff]
        %v1379 = vld [vmem:[%s7 + $0x28] sm:$0xff]
        %v1380 = vld [vmem:[%s7 + $0x30] sm:$0xff]
        %v1381 = vld [vmem:[%s7 + $0x38] sm:$0xff]
        %v1382 = vld [vmem:[%s7 + $0x40] sm:$0x3]
        %vm1383 = vcmask 261120
        %v1385 = vsel %vm1383, %v1374, 0
        %v1388 = vsel %vm1383, %v1375, 0
        %v1391 = vsel %vm1383, %v1376, 0
        %v1394 = vsel %vm1383, %v1377, 0
        %v1397 = vsel %vm1383, %v1378, 0
        %v1400 = vsel %vm1383, %v1379, 0
        %v1403 = vsel %vm1383, %v1380, 0
        %v1406 = vsel %vm1383, %v1381, 0
        %v1409 = vsel %vm1383, %v1382, 0
        %1411 = vmatprep.subr.mxu0 0.0
        %1412 = vmatpush1.msra.mxu0 %v1370
        %1413 = vmatprep.subr.mxu0 0.0
        %1414 = vmatpush1.msra.mxu0 %v1371
        %1415 = vmatprep.subr.mxu0 0.0
        %1416 = vmatpush1.msra.mxu0 %v1372
        %1417 = vmatprep.subr.mxu0 0.0
        %1418 = vmatpush1.msra.mxu0 %v1373
        %1419 = vmatprep.subr.mxu0 0.0
        %1420 = vmatpush1.msra.mxu0 0.0
        %1421 = vmatprep.subr.mxu0 0.0
        %1422 = vmatpush1.msra.mxu0 0.0
        %1423 = vmatprep.subr.mxu0 0.0
        %1424 = vmatpush1.msra.mxu0 0.0
        %1425 = vmatprep.subr.mxu0 0.0
        %1426 = vmatpush1.msra.mxu0 0.0
        %1427 = vmatprep.subr.mxu0 0.0
        %1428 = vmatpush1.msra.mxu0 0.0
        %1429 = vmatprep.subr.mxu0 0.0
        %1430 = vmatpush1.msra.mxu0 0.0
        %1431 = vmatprep.subr.mxu0 0.0
        %1432 = vmatpush1.msra.mxu0 0.0
        %1433 = vmatprep.subr.mxu0 0.0
        %1434 = vmatpush1.msra.mxu0 0.0
        %1435 = vmatprep.subr.mxu0 0.0
        %1436 = vmatpush1.msra.mxu0 0.0
        %1437 = vmatprep.subr.mxu0 0.0
        %1438 = vmatpush1.msra.mxu0 0.0
        %1439 = vmatprep.subr.mxu0 0.0
        %1440 = vmatpush1.msra.mxu0 0.0
        %1441 = vmatprep.subr.mxu0 0.0
        %1442 = vmatpush1.msra.mxu0 0.0
        %1443 = vmatprep.subr.mxu0 0.0
        %1444 = vmatpush1.msra.mxu0 0.0
        %1445 = vmatprep.subr.mxu0 0.0
        %1446 = vmatpush1.msra.mxu0 0.0
        %1447 = vmatprep.subr.mxu0 0.0
        %1448 = vmatpush1.msra.mxu0 0.0
        %1449 = vmatprep.subr.mxu0 0.0
        %1450 = vmatpush1.msra.mxu0 0.0
        %1451 = vmatprep.subr.mxu0 0.0
        %1452 = vmatpush1.msra.mxu0 0.0
        %1453 = vmatprep.subr.mxu0 0.0
        %1454 = vmatpush1.msra.mxu0 0.0
        %1455 = vmatprep.subr.mxu0 0.0
        %1456 = vmatpush1.msra.mxu0 0.0
        %1457 = vmatprep.subr.mxu0 0.0
        %1458 = vmatpush1.msra.mxu0 0.0
        %1459 = vmatprep.subr.mxu0 0.0
        %1460 = vmatpush1.msra.mxu0 0.0
        %1461 = vmatprep.subr.mxu0 0.0
        %1462 = vmatpush1.msra.mxu0 0.0
        %1463 = vmatprep.subr.mxu0 0.0
        %1464 = vmatpush1.msra.mxu0 0.0
        %1465 = vmatprep.subr.mxu0 0.0
        %1466 = vmatpush1.msra.mxu0 0.0
        %1467 = vmatprep.subr.mxu0 0.0
        %1468 = vmatpush1.msra.mxu0 0.0
        %1469 = vmatprep.subr.mxu0 0.0
        %1470 = vmatpush1.msra.mxu0 0.0
        %1471 = vmatprep.subr.mxu0 0.0
        %1472 = vmatpush1.msra.mxu0 0.0
        %1473 = vmatprep.subr.mxu0 0.0
        %1474 = vmatpush1.msra.mxu0 0.0
        %1475 = vmatprep.mubr.f32.mxu0 0.0
        %1476 = vmatmul.mubr.f32.gmra.mrb[0].mxu0 %v1385
        %v1477 = vpop.f32.mrb[0].mxu0
        %v1478 = vadd.f32 0.0, %v1477
        %v1479 = vpop.f32.mrb[0].mxu0
        %1480 = vmatprep.mubr.f32.mxu0 0.0
        %1481 = vmatmul.mubr.f32.gmra.mrb[0].mxu0 %v1388
        %v1482 = vpop.f32.mrb[0].mxu0
        %v1483 = vadd.f32 0.0, %v1482
        %v1484 = vpop.f32.mrb[0].mxu0
        %1485 = vmatprep.mubr.f32.mxu0 0.0
        %1486 = vmatmul.mubr.f32.gmra.mrb[0].mxu0 %v1391
        %v1487 = vpop.f32.mrb[0].mxu0
        %v1488 = vadd.f32 0.0, %v1487
        %v1489 = vpop.f32.mrb[0].mxu0
        %1490 = vmatprep.mubr.f32.mxu0 0.0
        %1491 = vmatmul.mubr.f32.gmra.mrb[0].mxu0 %v1394
        %v1492 = vpop.f32.mrb[0].mxu0
        %v1493 = vadd.f32 0.0, %v1492
        %v1494 = vpop.f32.mrb[0].mxu0
        %1495 = vmatprep.mubr.f32.mxu0 0.0
        %1496 = vmatmul.mubr.f32.gmra.mrb[0].mxu0 %v1397
        %v1497 = vpop.f32.mrb[0].mxu0
        %v1498 = vadd.f32 0.0, %v1497
        %v1499 = vpop.f32.mrb[0].mxu0
        %1500 = vmatprep.mubr.f32.mxu0 0.0
        %1501 = vmatmul.mubr.f32.gmra.mrb[0].mxu0 %v1400
        %v1502 = vpop.f32.mrb[0].mxu0
        %v1503 = vadd.f32 0.0, %v1502
        %v1504 = vpop.f32.mrb[0].mxu0
        %1505 = vmatprep.mubr.f32.mxu0 0.0
        %1506 = vmatmul.mubr.f32.gmra.mrb[0].mxu0 %v1403
        %v1507 = vpop.f32.mrb[0].mxu0
        %v1508 = vadd.f32 0.0, %v1507
        %v1509 = vpop.f32.mrb[0].mxu0
        %1510 = vmatprep.mubr.f32.mxu0 0.0
        %1511 = vmatmul.mubr.f32.gmra.mrb[0].mxu0 %v1406
        %v1512 = vpop.f32.mrb[0].mxu0
        %v1513 = vadd.f32 0.0, %v1512
        %v1514 = vpop.f32.mrb[0].mxu0
        %1515 = vmatprep.mubr.f32.mxu0 0.0
        %1516 = vmatmul.mubr.f32.gmra.mrb[0].mxu0 %v1409
        %v1517 = vpop.f32.mrb[0].mxu0
        %v1518 = vadd.f32 0.0, %v1517
        %v1519 = vpop.f32.mrb[0].mxu0
        %1520 = vdwg.mxu0
        %v1521 = vld [vmem:[%s8] sm:$0xff]
        %v1522 = vld [vmem:[%s8 + $0x8] sm:$0xff]
        %v1523 = vld [vmem:[%s8 + $0x10] sm:$0xff]
        %v1524 = vld [vmem:[%s8 + $0x18] sm:$0xff]
        %v1526 = vsel %vm1383, %v1478, 0
        %v1529 = vsel %vm1383, %v1483, 0
        %v1532 = vsel %vm1383, %v1488, 0
        %v1535 = vsel %vm1383, %v1493, 0
        %v1538 = vsel %vm1383, %v1498, 0
        %v1541 = vsel %vm1383, %v1503, 0
        %v1544 = vsel %vm1383, %v1508, 0
        %v1547 = vsel %vm1383, %v1513, 0
        %v1550 = vsel %vm1383, %v1518, 0
        %1552 = vmatprep.subr.mxu0 0.0
        %1553 = vmatpush1.msra.mxu0 %v1521
        %1554 = vmatprep.subr.mxu0 0.0
        %1555 = vmatpush1.msra.mxu0 %v1522
        %1556 = vmatprep.subr.mxu0 0.0
        %1557 = vmatpush1.msra.mxu0 %v1523
        %1558 = vmatprep.subr.mxu0 0.0
        %1559 = vmatpush1.msra.mxu0 %v1524
        %1560 = vmatprep.subr.mxu0 0.0
        %1561 = vmatpush1.msra.mxu0 0.0
        %1562 = vmatprep.subr.mxu0 0.0
        %1563 = vmatpush1.msra.mxu0 0.0
        %1564 = vmatprep.subr.mxu0 0.0
        %1565 = vmatpush1.msra.mxu0 0.0
        %1566 = vmatprep.subr.mxu0 0.0
        %1567 = vmatpush1.msra.mxu0 0.0
        %1568 = vmatprep.subr.mxu0 0.0
        %1569 = vmatpush1.msra.mxu0 0.0
        %1570 = vmatprep.subr.mxu0 0.0
        %1571 = vmatpush1.msra.mxu0 0.0
        %1572 = vmatprep.subr.mxu0 0.0
        %1573 = vmatpush1.msra.mxu0 0.0
        %1574 = vmatprep.subr.mxu0 0.0
        %1575 = vmatpush1.msra.mxu0 0.0
        %1576 = vmatprep.subr.mxu0 0.0
        %1577 = vmatpush1.msra.mxu0 0.0
        %1578 = vmatprep.subr.mxu0 0.0
        %1579 = vmatpush1.msra.mxu0 0.0
        %1580 = vmatprep.subr.mxu0 0.0
        %1581 = vmatpush1.msra.mxu0 0.0
        %1582 = vmatprep.subr.mxu0 0.0
        %1583 = vmatpush1.msra.mxu0 0.0
        %1584 = vmatprep.subr.mxu0 0.0
        %1585 = vmatpush1.msra.mxu0 0.0
        %1586 = vmatprep.subr.mxu0 0.0
        %1587 = vmatpush1.msra.mxu0 0.0
        %1588 = vmatprep.subr.mxu0 0.0
        %1589 = vmatpush1.msra.mxu0 0.0
        %1590 = vmatprep.subr.mxu0 0.0
        %1591 = vmatpush1.msra.mxu0 0.0
        %1592 = vmatprep.subr.mxu0 0.0
        %1593 = vmatpush1.msra.mxu0 0.0
        %1594 = vmatprep.subr.mxu0 0.0
        %1595 = vmatpush1.msra.mxu0 0.0
        %1596 = vmatprep.subr.mxu0 0.0
        %1597 = vmatpush1.msra.mxu0 0.0
        %1598 = vmatprep.subr.mxu0 0.0
        %1599 = vmatpush1.msra.mxu0 0.0
        %1600 = vmatprep.subr.mxu0 0.0
        %1601 = vmatpush1.msra.mxu0 0.0
        %1602 = vmatprep.subr.mxu0 0.0
        %1603 = vmatpush1.msra.mxu0 0.0
        %1604 = vmatprep.subr.mxu0 0.0
        %1605 = vmatpush1.msra.mxu0 0.0
        %1606 = vmatprep.subr.mxu0 0.0
        %1607 = vmatpush1.msra.mxu0 0.0
        %1608 = vmatprep.subr.mxu0 0.0
        %1609 = vmatpush1.msra.mxu0 0.0
        %1610 = vmatprep.subr.mxu0 0.0
        %1611 = vmatpush1.msra.mxu0 0.0
        %1612 = vmatprep.subr.mxu0 0.0
        %1613 = vmatpush1.msra.mxu0 0.0
        %1614 = vmatprep.subr.mxu0 0.0
        %1615 = vmatpush1.msra.mxu0 0.0
        %1616 = vmatprep.mubr.f32.mxu0 0.0
        %1617 = vmatmul.mubr.f32.gmra.mrb[0].mxu0 %v1526
        %v1618 = vpop.f32.mrb[0].mxu0
        %v1619 = vadd.f32 0.0, %v1618
        %v1620 = vpop.f32.mrb[0].mxu0
        %1621 = vmatprep.mubr.f32.mxu0 0.0
        %1622 = vmatmul.mubr.f32.gmra.mrb[0].mxu0 %v1529
        %v1623 = vpop.f32.mrb[0].mxu0
        %v1624 = vadd.f32 0.0, %v1623
        %v1625 = vpop.f32.mrb[0].mxu0
        %1626 = vmatprep.mubr.f32.mxu0 0.0
        %1627 = vmatmul.mubr.f32.gmra.mrb[0].mxu0 %v1532
        %v1628 = vpop.f32.mrb[0].mxu0
        %v1629 = vadd.f32 0.0, %v1628
        %v1630 = vpop.f32.mrb[0].mxu0
        %1631 = vmatprep.mubr.f32.mxu0 0.0
        %1632 = vmatmul.mubr.f32.gmra.mrb[0].mxu0 %v1535
        %v1633 = vpop.f32.mrb[0].mxu0
        %v1634 = vadd.f32 0.0, %v1633
        %v1635 = vpop.f32.mrb[0].mxu0
        %1636 = vmatprep.mubr.f32.mxu0 0.0
        %1637 = vmatmul.mubr.f32.gmra.mrb[0].mxu0 %v1538
        %v1638 = vpop.f32.mrb[0].mxu0
        %v1639 = vadd.f32 0.0, %v1638
        %v1640 = vpop.f32.mrb[0].mxu0
        %1641 = vmatprep.mubr.f32.mxu0 0.0
        %1642 = vmatmul.mubr.f32.gmra.mrb[0].mxu0 %v1541
        %v1643 = vpop.f32.mrb[0].mxu0
        %v1644 = vadd.f32 0.0, %v1643
        %v1645 = vpop.f32.mrb[0].mxu0
        %1646 = vmatprep.mubr.f32.mxu0 0.0
        %1647 = vmatmul.mubr.f32.gmra.mrb[0].mxu0 %v1544
        %v1648 = vpop.f32.mrb[0].mxu0
        %v1649 = vadd.f32 0.0, %v1648
        %v1650 = vpop.f32.mrb[0].mxu0
        %1651 = vmatprep.mubr.f32.mxu0 0.0
        %1652 = vmatmul.mubr.f32.gmra.mrb[0].mxu0 %v1547
        %v1653 = vpop.f32.mrb[0].mxu0
        %v1654 = vadd.f32 0.0, %v1653
        %v1655 = vpop.f32.mrb[0].mxu0
        %1656 = vmatprep.mubr.f32.mxu0 0.0
        %1657 = vmatmul.mubr.f32.gmra.mrb[0].mxu0 %v1550
        %v1658 = vpop.f32.mrb[0].mxu0
        %v1659 = vadd.f32 0.0, %v1658
        %v1660 = vpop.f32.mrb[0].mxu0
        %1661 = vdwg.mxu0
        %vm1662 = vcmask 539648
        %1663 = vst.msk [vmem:[#allocation3] sm:$0xff] %vm1662, %v1619
        %1664 = vst.msk [vmem:[#allocation3 + $0x8] sm:$0xff] %vm1662, %v1624
        %1665 = vst.msk [vmem:[#allocation3 + $0x10] sm:$0xff] %vm1662, %v1629
        %1666 = vst.msk [vmem:[#allocation3 + $0x18] sm:$0xff] %vm1662, %v1634
        %1667 = vst.msk [vmem:[#allocation3 + $0x20] sm:$0xff] %vm1662, %v1639
        %1668 = vst.msk [vmem:[#allocation3 + $0x28] sm:$0xff] %vm1662, %v1644
        %1669 = vst.msk [vmem:[#allocation3 + $0x30] sm:$0xff] %vm1662, %v1649
        %1670 = vst.msk [vmem:[#allocation3 + $0x38] sm:$0xff] %vm1662, %v1654
        %vm1671 = vcmask 533504
        %1672 = vst.msk [vmem:[#allocation3 + $0x40] sm:$0x3] %vm1671, %v1659
        %v1673 = vld [vmem:[#allocation2] sm:$0xff]
        %v1674 = vld [vmem:[#allocation2 + $0x8] sm:$0xff]
        %v1675 = vld [vmem:[#allocation2 + $0x10] sm:$0xff]
        %v1676 = vld [vmem:[#allocation2 + $0x18] sm:$0xff]
        %s1677 = sld [smem:[#allocation5 + $0x24]]
        %v1678 = vstv %s1677
        %v1679 = vmul.f32 %v1678, %v1673
        %v1680 = vmul.f32 %v1678, %v1674
        %v1681 = vmul.f32 %v1678, %v1675
        %v1682 = vmul.f32 %v1678, %v1676
        %v1683 = vadd.f32 %v1679, 0.0
        %v1684 = vadd.f32 %v1680, 0.0
        %v1685 = vadd.f32 %v1681, 0.0
        %v1686 = vadd.f32 %v1682, 0.0
        %s1687 = sld [smem:[#allocation5 + $0x25]]
        %v1688 = vstv %s1687
        %v1689 = vmul.f32 %v1688, %v1673
        %v1690 = vmul.f32 %v1688, %v1674
        %v1691 = vmul.f32 %v1688, %v1675
        %v1692 = vmul.f32 %v1688, %v1676
        %v1693 = vadd.f32 %v1689, 0.0
        %v1694 = vadd.f32 %v1690, 0.0
        %v1695 = vadd.f32 %v1691, 0.0
        %v1696 = vadd.f32 %v1692, 0.0
        %s1697 = sld [smem:[#allocation5 + $0x26]]
        %v1698 = vstv %s1697
        %v1699 = vmul.f32 %v1698, %v1673
        %v1700 = vmul.f32 %v1698, %v1674
        %v1701 = vmul.f32 %v1698, %v1675
        %v1702 = vmul.f32 %v1698, %v1676
        %v1703 = vadd.f32 %v1699, 0.0
        %v1704 = vadd.f32 %v1700, 0.0
        %v1705 = vadd.f32 %v1701, 0.0
        %v1706 = vadd.f32 %v1702, 0.0
        %v1707 = vld [vmem:[#allocation2 + $0x1] sm:$0xff]
        %v1708 = vld [vmem:[#allocation2 + $0x9] sm:$0xff]
        %v1709 = vld [vmem:[#allocation2 + $0x11] sm:$0xff]
        %v1710 = vld [vmem:[#allocation2 + $0x19] sm:$0xff]
        %s1711 = sld [smem:[#allocation5 + $0x27]]
        %v1712 = vstv %s1711
        %v1713 = vmul.f32 %v1712, %v1707
        %v1714 = vmul.f32 %v1712, %v1708
        %v1715 = vmul.f32 %v1712, %v1709
        %v1716 = vmul.f32 %v1712, %v1710
        %v1717 = vadd.f32 %v1683, %v1713
        %v1718 = vadd.f32 %v1684, %v1714
        %v1719 = vadd.f32 %v1685, %v1715
        %v1720 = vadd.f32 %v1686, %v1716
        %s1721 = sld [smem:[#allocation5 + $0x28]]
        %v1722 = vstv %s1721
        %v1723 = vmul.f32 %v1722, %v1707
        %v1724 = vmul.f32 %v1722, %v1708
        %v1725 = vmul.f32 %v1722, %v1709
        %v1726 = vmul.f32 %v1722, %v1710
        %v1727 = vadd.f32 %v1693, %v1723
        %v1728 = vadd.f32 %v1694, %v1724
        %v1729 = vadd.f32 %v1695, %v1725
        %v1730 = vadd.f32 %v1696, %v1726
        %s1731 = sld [smem:[#allocation5 + $0x29]]
        %v1732 = vstv %s1731
        %v1733 = vmul.f32 %v1732, %v1707
        %v1734 = vmul.f32 %v1732, %v1708
        %v1735 = vmul.f32 %v1732, %v1709
        %v1736 = vmul.f32 %v1732, %v1710
        %v1737 = vadd.f32 %v1703, %v1733
        %v1738 = vadd.f32 %v1704, %v1734
        %v1739 = vadd.f32 %v1705, %v1735
        %v1740 = vadd.f32 %v1706, %v1736
        %v1741 = vld [vmem:[#allocation2 + $0x2] sm:$0xff]
        %v1742 = vld [vmem:[#allocation2 + $0xa] sm:$0xff]
        %v1743 = vld [vmem:[#allocation2 + $0x12] sm:$0xff]
        %v1744 = vld [vmem:[#allocation2 + $0x1a] sm:$0xff]
        %s1745 = sld [smem:[#allocation5 + $0x2a]]
        %v1746 = vstv %s1745
        %v1747 = vmul.f32 %v1746, %v1741
        %v1748 = vmul.f32 %v1746, %v1742
        %v1749 = vmul.f32 %v1746, %v1743
        %v1750 = vmul.f32 %v1746, %v1744
        %v1751 = vadd.f32 %v1717, %v1747
        %v1752 = vadd.f32 %v1718, %v1748
        %v1753 = vadd.f32 %v1719, %v1749
        %v1754 = vadd.f32 %v1720, %v1750
        %s1755 = sld [smem:[#allocation5 + $0x2b]]
        %v1756 = vstv %s1755
        %v1757 = vmul.f32 %v1756, %v1741
        %v1758 = vmul.f32 %v1756, %v1742
        %v1759 = vmul.f32 %v1756, %v1743
        %v1760 = vmul.f32 %v1756, %v1744
        %v1761 = vadd.f32 %v1727, %v1757
        %v1762 = vadd.f32 %v1728, %v1758
        %v1763 = vadd.f32 %v1729, %v1759
        %v1764 = vadd.f32 %v1730, %v1760
        %s1765 = sld [smem:[#allocation5 + $0x2c]]
        %v1766 = vstv %s1765
        %v1767 = vmul.f32 %v1766, %v1741
        %v1768 = vmul.f32 %v1766, %v1742
        %v1769 = vmul.f32 %v1766, %v1743
        %v1770 = vmul.f32 %v1766, %v1744
        %v1771 = vadd.f32 %v1737, %v1767
        %v1772 = vadd.f32 %v1738, %v1768
        %v1773 = vadd.f32 %v1739, %v1769
        %v1774 = vadd.f32 %v1740, %v1770
        %v1775 = vld [vmem:[%s718] sm:$0xff]
        %v1776 = vld [vmem:[%s718 + $0x8] sm:$0xff]
        %v1777 = vld [vmem:[%s718 + $0x10] sm:$0xff]
        %v1778 = vld [vmem:[%s718 + $0x18] sm:$0xff]
        %s1779 = sld [smem:[#allocation5 + $0x2d]]
        %v1780 = vstv %s1779
        %v1781 = vmul.f32 %v1780, %v1775
        %v1782 = vmul.f32 %v1780, %v1776
        %v1783 = vmul.f32 %v1780, %v1777
        %v1784 = vmul.f32 %v1780, %v1778
        %v1785 = vadd.f32 %v1751, %v1781
        %v1786 = vadd.f32 %v1752, %v1782
        %v1787 = vadd.f32 %v1753, %v1783
        %v1788 = vadd.f32 %v1754, %v1784
        %s1789 = sld [smem:[#allocation5 + $0x2e]]
        %v1790 = vstv %s1789
        %v1791 = vmul.f32 %v1790, %v1775
        %v1792 = vmul.f32 %v1790, %v1776
        %v1793 = vmul.f32 %v1790, %v1777
        %v1794 = vmul.f32 %v1790, %v1778
        %v1795 = vadd.f32 %v1761, %v1791
        %v1796 = vadd.f32 %v1762, %v1792
        %v1797 = vadd.f32 %v1763, %v1793
        %v1798 = vadd.f32 %v1764, %v1794
        %s1799 = sld [smem:[#allocation5 + $0x2f]]
        %v1800 = vstv %s1799
        %v1801 = vmul.f32 %v1800, %v1775
        %v1802 = vmul.f32 %v1800, %v1776
        %v1803 = vmul.f32 %v1800, %v1777
        %v1804 = vmul.f32 %v1800, %v1778
        %v1805 = vadd.f32 %v1771, %v1801
        %v1806 = vadd.f32 %v1772, %v1802
        %v1807 = vadd.f32 %v1773, %v1803
        %v1808 = vadd.f32 %v1774, %v1804
        %v1809 = vld [vmem:[%s718 + $0x1] sm:$0xff]
        %v1810 = vld [vmem:[%s718 + $0x9] sm:$0xff]
        %v1811 = vld [vmem:[%s718 + $0x11] sm:$0xff]
        %v1812 = vld [vmem:[%s718 + $0x19] sm:$0xff]
        %s1813 = sld [smem:[#allocation5 + $0x30]]
        %v1814 = vstv %s1813
        %v1815 = vmul.f32 %v1814, %v1809
        %v1816 = vmul.f32 %v1814, %v1810
        %v1817 = vmul.f32 %v1814, %v1811
        %v1818 = vmul.f32 %v1814, %v1812
        %v1819 = vadd.f32 %v1785, %v1815
        %v1820 = vadd.f32 %v1786, %v1816
        %v1821 = vadd.f32 %v1787, %v1817
        %v1822 = vadd.f32 %v1788, %v1818
        %s1823 = sld [smem:[#allocation5 + $0x31]]
        %v1824 = vstv %s1823
        %v1825 = vmul.f32 %v1824, %v1809
        %v1826 = vmul.f32 %v1824, %v1810
        %v1827 = vmul.f32 %v1824, %v1811
        %v1828 = vmul.f32 %v1824, %v1812
        %v1829 = vadd.f32 %v1795, %v1825
        %v1830 = vadd.f32 %v1796, %v1826
        %v1831 = vadd.f32 %v1797, %v1827
        %v1832 = vadd.f32 %v1798, %v1828
        %s1833 = sld [smem:[#allocation5 + $0x32]]
        %v1834 = vstv %s1833
        %v1835 = vmul.f32 %v1834, %v1809
        %v1836 = vmul.f32 %v1834, %v1810
        %v1837 = vmul.f32 %v1834, %v1811
        %v1838 = vmul.f32 %v1834, %v1812
        %v1839 = vadd.f32 %v1805, %v1835
        %v1840 = vadd.f32 %v1806, %v1836
        %v1841 = vadd.f32 %v1807, %v1837
        %v1842 = vadd.f32 %v1808, %v1838
        %v1843 = vld [vmem:[%s718 + $0x2] sm:$0xff]
        %v1844 = vld [vmem:[%s718 + $0xa] sm:$0xff]
        %v1845 = vld [vmem:[%s718 + $0x12] sm:$0xff]
        %v1846 = vld [vmem:[%s718 + $0x1a] sm:$0xff]
        %s1847 = sld [smem:[#allocation5 + $0x33]]
        %v1848 = vstv %s1847
        %v1849 = vmul.f32 %v1848, %v1843
        %v1850 = vmul.f32 %v1848, %v1844
        %v1851 = vmul.f32 %v1848, %v1845
        %v1852 = vmul.f32 %v1848, %v1846
        %v1853 = vadd.f32 %v1819, %v1849
        %v1854 = vadd.f32 %v1820, %v1850
        %v1855 = vadd.f32 %v1821, %v1851
        %v1856 = vadd.f32 %v1822, %v1852
        %s1857 = sld [smem:[#allocation5 + $0x34]]
        %v1858 = vstv %s1857
        %v1859 = vmul.f32 %v1858, %v1843
        %v1860 = vmul.f32 %v1858, %v1844
        %v1861 = vmul.f32 %v1858, %v1845
        %v1862 = vmul.f32 %v1858, %v1846
        %v1863 = vadd.f32 %v1829, %v1859
        %v1864 = vadd.f32 %v1830, %v1860
        %v1865 = vadd.f32 %v1831, %v1861
        %v1866 = vadd.f32 %v1832, %v1862
        %s1867 = sld [smem:[#allocation5 + $0x35]]
        %v1868 = vstv %s1867
        %v1869 = vmul.f32 %v1868, %v1843
        %v1870 = vmul.f32 %v1868, %v1844
        %v1871 = vmul.f32 %v1868, %v1845
        %v1872 = vmul.f32 %v1868, %v1846
        %v1873 = vadd.f32 %v1839, %v1869
        %v1874 = vadd.f32 %v1840, %v1870
        %v1875 = vadd.f32 %v1841, %v1871
        %v1876 = vadd.f32 %v1842, %v1872
        %v1877 = vld [vmem:[%s814] sm:$0xff]
        %v1878 = vld [vmem:[%s814 + $0x8] sm:$0xff]
        %v1879 = vld [vmem:[%s814 + $0x10] sm:$0xff]
        %v1880 = vld [vmem:[%s814 + $0x18] sm:$0xff]
        %s1881 = sld [smem:[#allocation5 + $0x36]]
        %v1882 = vstv %s1881
        %v1883 = vmul.f32 %v1882, %v1877
        %v1884 = vmul.f32 %v1882, %v1878
        %v1885 = vmul.f32 %v1882, %v1879
        %v1886 = vmul.f32 %v1882, %v1880
        %v1887 = vadd.f32 %v1853, %v1883
        %v1888 = vadd.f32 %v1854, %v1884
        %v1889 = vadd.f32 %v1855, %v1885
        %v1890 = vadd.f32 %v1856, %v1886
        %s1891 = sld [smem:[#allocation5 + $0x37]]
        %v1892 = vstv %s1891
        %v1893 = vmul.f32 %v1892, %v1877
        %v1894 = vmul.f32 %v1892, %v1878
        %v1895 = vmul.f32 %v1892, %v1879
        %v1896 = vmul.f32 %v1892, %v1880
        %v1897 = vadd.f32 %v1863, %v1893
        %v1898 = vadd.f32 %v1864, %v1894
        %v1899 = vadd.f32 %v1865, %v1895
        %v1900 = vadd.f32 %v1866, %v1896
        %s1901 = sld [smem:[#allocation5 + $0x38]]
        %v1902 = vstv %s1901
        %v1903 = vmul.f32 %v1902, %v1877
        %v1904 = vmul.f32 %v1902, %v1878
        %v1905 = vmul.f32 %v1902, %v1879
        %v1906 = vmul.f32 %v1902, %v1880
        %v1907 = vadd.f32 %v1873, %v1903
        %v1908 = vadd.f32 %v1874, %v1904
        %v1909 = vadd.f32 %v1875, %v1905
        %v1910 = vadd.f32 %v1876, %v1906
        %v1911 = vld [vmem:[%s814 + $0x1] sm:$0xff]
        %v1912 = vld [vmem:[%s814 + $0x9] sm:$0xff]
        %v1913 = vld [vmem:[%s814 + $0x11] sm:$0xff]
        %v1914 = vld [vmem:[%s814 + $0x19] sm:$0xff]
        %s1915 = sld [smem:[#allocation5 + $0x39]]
        %v1916 = vstv %s1915
        %v1917 = vmul.f32 %v1916, %v1911
        %v1918 = vmul.f32 %v1916, %v1912
        %v1919 = vmul.f32 %v1916, %v1913
        %v1920 = vmul.f32 %v1916, %v1914
        %v1921 = vadd.f32 %v1887, %v1917
        %v1922 = vadd.f32 %v1888, %v1918
        %v1923 = vadd.f32 %v1889, %v1919
        %v1924 = vadd.f32 %v1890, %v1920
        %s1925 = sld [smem:[#allocation5 + $0x3a]]
        %v1926 = vstv %s1925
        %v1927 = vmul.f32 %v1926, %v1911
        %v1928 = vmul.f32 %v1926, %v1912
        %v1929 = vmul.f32 %v1926, %v1913
        %v1930 = vmul.f32 %v1926, %v1914
        %v1931 = vadd.f32 %v1897, %v1927
        %v1932 = vadd.f32 %v1898, %v1928
        %v1933 = vadd.f32 %v1899, %v1929
        %v1934 = vadd.f32 %v1900, %v1930
        %s1935 = sld [smem:[#allocation5 + $0x3b]]
        %v1936 = vstv %s1935
        %v1937 = vmul.f32 %v1936, %v1911
        %v1938 = vmul.f32 %v1936, %v1912
        %v1939 = vmul.f32 %v1936, %v1913
        %v1940 = vmul.f32 %v1936, %v1914
        %v1941 = vadd.f32 %v1907, %v1937
        %v1942 = vadd.f32 %v1908, %v1938
        %v1943 = vadd.f32 %v1909, %v1939
        %v1944 = vadd.f32 %v1910, %v1940
        %v1945 = vld [vmem:[%s814 + $0x2] sm:$0xff]
        %v1946 = vld [vmem:[%s814 + $0xa] sm:$0xff]
        %v1947 = vld [vmem:[%s814 + $0x12] sm:$0xff]
        %v1948 = vld [vmem:[%s814 + $0x1a] sm:$0xff]
        %s1949 = sld [smem:[#allocation5 + $0x3c]]
        %v1950 = vstv %s1949
        %v1951 = vmul.f32 %v1950, %v1945
        %v1952 = vmul.f32 %v1950, %v1946
        %v1953 = vmul.f32 %v1950, %v1947
        %v1954 = vmul.f32 %v1950, %v1948
        %v1955 = vadd.f32 %v1921, %v1951
        %v1956 = vadd.f32 %v1922, %v1952
        %v1957 = vadd.f32 %v1923, %v1953
        %v1958 = vadd.f32 %v1924, %v1954
        %s1959 = sld [smem:[#allocation5 + $0x3d]]
        %v1960 = vstv %s1959
        %v1961 = vmul.f32 %v1960, %v1945
        %v1962 = vmul.f32 %v1960, %v1946
        %v1963 = vmul.f32 %v1960, %v1947
        %v1964 = vmul.f32 %v1960, %v1948
        %v1965 = vadd.f32 %v1931, %v1961
        %v1966 = vadd.f32 %v1932, %v1962
        %v1967 = vadd.f32 %v1933, %v1963
        %v1968 = vadd.f32 %v1934, %v1964
        %s1969 = sld [smem:[#allocation5 + $0x3e]]
        %v1970 = vstv %s1969
        %v1971 = vmul.f32 %v1970, %v1945
        %v1972 = vmul.f32 %v1970, %v1946
        %v1973 = vmul.f32 %v1970, %v1947
        %v1974 = vmul.f32 %v1970, %v1948
        %v1975 = vadd.f32 %v1941, %v1971
        %v1976 = vadd.f32 %v1942, %v1972
        %v1977 = vadd.f32 %v1943, %v1973
        %v1978 = vadd.f32 %v1944, %v1974
        %v1979 = vld [vmem:[%s910] sm:$0xff]
        %v1980 = vld [vmem:[%s910 + $0x8] sm:$0xff]
        %v1981 = vld [vmem:[%s910 + $0x10] sm:$0xff]
        %v1982 = vld [vmem:[%s910 + $0x18] sm:$0xff]
        %s1983 = sld [smem:[#allocation5 + $0x3f]]
        %v1984 = vstv %s1983
        %v1985 = vmul.f32 %v1984, %v1979
        %v1986 = vmul.f32 %v1984, %v1980
        %v1987 = vmul.f32 %v1984, %v1981
        %v1988 = vmul.f32 %v1984, %v1982
        %v1989 = vadd.f32 %v1955, %v1985
        %v1990 = vadd.f32 %v1956, %v1986
        %v1991 = vadd.f32 %v1957, %v1987
        %v1992 = vadd.f32 %v1958, %v1988
        %s1993 = sld [smem:[#allocation5 + $0x40]]
        %v1994 = vstv %s1993
        %v1995 = vmul.f32 %v1994, %v1979
        %v1996 = vmul.f32 %v1994, %v1980
        %v1997 = vmul.f32 %v1994, %v1981
        %v1998 = vmul.f32 %v1994, %v1982
        %v1999 = vadd.f32 %v1965, %v1995
        %v2000 = vadd.f32 %v1966, %v1996
        %v2001 = vadd.f32 %v1967, %v1997
        %v2002 = vadd.f32 %v1968, %v1998
        %s2003 = sld [smem:[#allocation5 + $0x41]]
        %v2004 = vstv %s2003
        %v2005 = vmul.f32 %v2004, %v1979
        %v2006 = vmul.f32 %v2004, %v1980
        %v2007 = vmul.f32 %v2004, %v1981
        %v2008 = vmul.f32 %v2004, %v1982
        %v2009 = vadd.f32 %v1975, %v2005
        %v2010 = vadd.f32 %v1976, %v2006
        %v2011 = vadd.f32 %v1977, %v2007
        %v2012 = vadd.f32 %v1978, %v2008
        %v2013 = vld [vmem:[%s910 + $0x1] sm:$0xff]
        %v2014 = vld [vmem:[%s910 + $0x9] sm:$0xff]
        %v2015 = vld [vmem:[%s910 + $0x11] sm:$0xff]
        %v2016 = vld [vmem:[%s910 + $0x19] sm:$0xff]
        %s2017 = sld [smem:[#allocation5 + $0x42]]
        %v2018 = vstv %s2017
        %v2019 = vmul.f32 %v2018, %v2013
        %v2020 = vmul.f32 %v2018, %v2014
        %v2021 = vmul.f32 %v2018, %v2015
        %v2022 = vmul.f32 %v2018, %v2016
        %v2023 = vadd.f32 %v1989, %v2019
        %v2024 = vadd.f32 %v1990, %v2020
        %v2025 = vadd.f32 %v1991, %v2021
        %v2026 = vadd.f32 %v1992, %v2022
        %s2027 = sld [smem:[#allocation5 + $0x43]]
        %v2028 = vstv %s2027
        %v2029 = vmul.f32 %v2028, %v2013
        %v2030 = vmul.f32 %v2028, %v2014
        %v2031 = vmul.f32 %v2028, %v2015
        %v2032 = vmul.f32 %v2028, %v2016
        %v2033 = vadd.f32 %v1999, %v2029
        %v2034 = vadd.f32 %v2000, %v2030
        %v2035 = vadd.f32 %v2001, %v2031
        %v2036 = vadd.f32 %v2002, %v2032
        %s2037 = sld [smem:[#allocation5 + $0x44]]
        %v2038 = vstv %s2037
        %v2039 = vmul.f32 %v2038, %v2013
        %v2040 = vmul.f32 %v2038, %v2014
        %v2041 = vmul.f32 %v2038, %v2015
        %v2042 = vmul.f32 %v2038, %v2016
        %v2043 = vadd.f32 %v2009, %v2039
        %v2044 = vadd.f32 %v2010, %v2040
        %v2045 = vadd.f32 %v2011, %v2041
        %v2046 = vadd.f32 %v2012, %v2042
        %v2047 = vld [vmem:[%s910 + $0x2] sm:$0xff]
        %v2048 = vld [vmem:[%s910 + $0xa] sm:$0xff]
        %v2049 = vld [vmem:[%s910 + $0x12] sm:$0xff]
        %v2050 = vld [vmem:[%s910 + $0x1a] sm:$0xff]
        %s2051 = sld [smem:[#allocation5 + $0x45]]
        %v2052 = vstv %s2051
        %v2053 = vmul.f32 %v2052, %v2047
        %v2054 = vmul.f32 %v2052, %v2048
        %v2055 = vmul.f32 %v2052, %v2049
        %v2056 = vmul.f32 %v2052, %v2050
        %v2057 = vadd.f32 %v2023, %v2053
        %v2058 = vadd.f32 %v2024, %v2054
        %v2059 = vadd.f32 %v2025, %v2055
        %v2060 = vadd.f32 %v2026, %v2056
        %s2061 = sld [smem:[#allocation5 + $0x46]]
        %v2062 = vstv %s2061
        %v2063 = vmul.f32 %v2062, %v2047
        %v2064 = vmul.f32 %v2062, %v2048
        %v2065 = vmul.f32 %v2062, %v2049
        %v2066 = vmul.f32 %v2062, %v2050
        %v2067 = vadd.f32 %v2033, %v2063
        %v2068 = vadd.f32 %v2034, %v2064
        %v2069 = vadd.f32 %v2035, %v2065
        %v2070 = vadd.f32 %v2036, %v2066
        %s2071 = sld [smem:[#allocation5 + $0x47]]
        %v2072 = vstv %s2071
        %v2073 = vmul.f32 %v2072, %v2047
        %v2074 = vmul.f32 %v2072, %v2048
        %v2075 = vmul.f32 %v2072, %v2049
        %v2076 = vmul.f32 %v2072, %v2050
        %v2077 = vadd.f32 %v2043, %v2073
        %v2078 = vadd.f32 %v2044, %v2074
        %v2079 = vadd.f32 %v2045, %v2075
        %v2080 = vadd.f32 %v2046, %v2076
        %2085 = vrot.lane.b32.xlu0 %v2067, 127
        %v2086 = vpop.permute.xlu0 %2085
        %2087 = vrot.lane.b32.xlu0 %v2068, 127
        %v2088 = vpop.permute.xlu0 %2087
        %2089 = vrot.lane.b32.xlu0 %v2069, 127
        %v2090 = vpop.permute.xlu0 %2089
        %2091 = vrot.lane.b32.xlu0 %v2070, 127
        %v2092 = vpop.permute.xlu0 %2091
        %v2097 = vadd.f32 %v2057, %v2086
        %v2098 = vadd.f32 %v2058, %v2088
        %v2099 = vadd.f32 %v2059, %v2090
        %v2100 = vadd.f32 %v2060, %v2092
        %2105 = vrot.lane.b32.xlu0 %v2077, 126
        %v2106 = vpop.permute.xlu0 %2105
        %2107 = vrot.lane.b32.xlu0 %v2078, 126
        %v2108 = vpop.permute.xlu0 %2107
        %2109 = vrot.lane.b32.xlu0 %v2079, 126
        %v2110 = vpop.permute.xlu0 %2109
        %2111 = vrot.lane.b32.xlu0 %v2080, 126
        %v2112 = vpop.permute.xlu0 %2111
        %v2117 = vadd.f32 %v2097, %v2106
        %v2118 = vadd.f32 %v2098, %v2108
        %v2119 = vadd.f32 %v2099, %v2110
        %v2120 = vadd.f32 %v2100, %v2112
        %s2121 = sld [smem:[#allocation8 + $0x1]]
        %v2122 = vstv %s2121
        %v2123 = vadd.f32 %v2117, %v2122
        %v2124 = vadd.f32 %v2118, %v2122
        %v2125 = vadd.f32 %v2119, %v2122
        %v2126 = vadd.f32 %v2120, %v2122
        %v2127 = vmax.f32 %v2123, 0.0
        %v2128 = vmax.f32 %v2124, 0.0
        %v2129 = vmax.f32 %v2125, 0.0
        %v2130 = vmax.f32 %v2126, 0.0
        %v2131 = vld [vmem:[%s7] sm:$0xff]
        %v2132 = vld [vmem:[%s7 + $0x8] sm:$0xff]
        %v2133 = vld [vmem:[%s7 + $0x10] sm:$0xff]
        %v2134 = vld [vmem:[%s7 + $0x18] sm:$0xff]
        %v2135 = vld [vmem:[%s7 + $0x20] sm:$0xff]
        %v2136 = vld [vmem:[%s7 + $0x28] sm:$0xff]
        %v2137 = vld [vmem:[%s7 + $0x30] sm:$0xff]
        %v2138 = vld [vmem:[%s7 + $0x38] sm:$0xff]
        %v2139 = vld [vmem:[%s7 + $0x40] sm:$0x3]
        %v2141 = vsel %vm1383, %v2131, 0
        %v2144 = vsel %vm1383, %v2132, 0
        %v2147 = vsel %vm1383, %v2133, 0
        %v2150 = vsel %vm1383, %v2134, 0
        %v2153 = vsel %vm1383, %v2135, 0
        %v2156 = vsel %vm1383, %v2136, 0
        %v2159 = vsel %vm1383, %v2137, 0
        %v2162 = vsel %vm1383, %v2138, 0
        %v2165 = vsel %vm1383, %v2139, 0
        %2167 = vmatprep.subr.mxu0 0.0
        %2168 = vmatpush1.msra.mxu0 %v2127
        %2169 = vmatprep.subr.mxu0 0.0
        %2170 = vmatpush1.msra.mxu0 %v2128
        %2171 = vmatprep.subr.mxu0 0.0
        %2172 = vmatpush1.msra.mxu0 %v2129
        %2173 = vmatprep.subr.mxu0 0.0
        %2174 = vmatpush1.msra.mxu0 %v2130
        %2175 = vmatprep.subr.mxu0 0.0
        %2176 = vmatpush1.msra.mxu0 0.0
        %2177 = vmatprep.subr.mxu0 0.0
        %2178 = vmatpush1.msra.mxu0 0.0
        %2179 = vmatprep.subr.mxu0 0.0
        %2180 = vmatpush1.msra.mxu0 0.0
        %2181 = vmatprep.subr.mxu0 0.0
        %2182 = vmatpush1.msra.mxu0 0.0
        %2183 = vmatprep.subr.mxu0 0.0
        %2184 = vmatpush1.msra.mxu0 0.0
        %2185 = vmatprep.subr.mxu0 0.0
        %2186 = vmatpush1.msra.mxu0 0.0
        %2187 = vmatprep.subr.mxu0 0.0
        %2188 = vmatpush1.msra.mxu0 0.0
        %2189 = vmatprep.subr.mxu0 0.0
        %2190 = vmatpush1.msra.mxu0 0.0
        %2191 = vmatprep.subr.mxu0 0.0
        %2192 = vmatpush1.msra.mxu0 0.0
        %2193 = vmatprep.subr.mxu0 0.0
        %2194 = vmatpush1.msra.mxu0 0.0
        %2195 = vmatprep.subr.mxu0 0.0
        %2196 = vmatpush1.msra.mxu0 0.0
        %2197 = vmatprep.subr.mxu0 0.0
        %2198 = vmatpush1.msra.mxu0 0.0
        %2199 = vmatprep.subr.mxu0 0.0
        %2200 = vmatpush1.msra.mxu0 0.0
        %2201 = vmatprep.subr.mxu0 0.0
        %2202 = vmatpush1.msra.mxu0 0.0
        %2203 = vmatprep.subr.mxu0 0.0
        %2204 = vmatpush1.msra.mxu0 0.0
        %2205 = vmatprep.subr.mxu0 0.0
        %2206 = vmatpush1.msra.mxu0 0.0
        %2207 = vmatprep.subr.mxu0 0.0
        %2208 = vmatpush1.msra.mxu0 0.0
        %2209 = vmatprep.subr.mxu0 0.0
        %2210 = vmatpush1.msra.mxu0 0.0
        %2211 = vmatprep.subr.mxu0 0.0
        %2212 = vmatpush1.msra.mxu0 0.0
        %2213 = vmatprep.subr.mxu0 0.0
        %2214 = vmatpush1.msra.mxu0 0.0
        %2215 = vmatprep.subr.mxu0 0.0
        %2216 = vmatpush1.msra.mxu0 0.0
        %2217 = vmatprep.subr.mxu0 0.0
        %2218 = vmatpush1.msra.mxu0 0.0
        %2219 = vmatprep.subr.mxu0 0.0
        %2220 = vmatpush1.msra.mxu0 0.0
        %2221 = vmatprep.subr.mxu0 0.0
        %2222 = vmatpush1.msra.mxu0 0.0
        %2223 = vmatprep.subr.mxu0 0.0
        %2224 = vmatpush1.msra.mxu0 0.0
        %2225 = vmatprep.subr.mxu0 0.0
        %2226 = vmatpush1.msra.mxu0 0.0
        %2227 = vmatprep.subr.mxu0 0.0
        %2228 = vmatpush1.msra.mxu0 0.0
        %2229 = vmatprep.subr.mxu0 0.0
        %2230 = vmatpush1.msra.mxu0 0.0
        %2231 = vmatprep.mubr.f32.mxu0 0.0
        %2232 = vmatmul.mubr.f32.gmra.mrb[0].mxu0 %v2141
        %v2233 = vpop.f32.mrb[0].mxu0
        %v2234 = vadd.f32 0.0, %v2233
        %v2235 = vpop.f32.mrb[0].mxu0
        %2236 = vmatprep.mubr.f32.mxu0 0.0
        %2237 = vmatmul.mubr.f32.gmra.mrb[0].mxu0 %v2144
        %v2238 = vpop.f32.mrb[0].mxu0
        %v2239 = vadd.f32 0.0, %v2238
        %v2240 = vpop.f32.mrb[0].mxu0
        %2241 = vmatprep.mubr.f32.mxu0 0.0
        %2242 = vmatmul.mubr.f32.gmra.mrb[0].mxu0 %v2147
        %v2243 = vpop.f32.mrb[0].mxu0
        %v2244 = vadd.f32 0.0, %v2243
        %v2245 = vpop.f32.mrb[0].mxu0
        %2246 = vmatprep.mubr.f32.mxu0 0.0
        %2247 = vmatmul.mubr.f32.gmra.mrb[0].mxu0 %v2150
        %v2248 = vpop.f32.mrb[0].mxu0
        %v2249 = vadd.f32 0.0, %v2248
        %v2250 = vpop.f32.mrb[0].mxu0
        %2251 = vmatprep.mubr.f32.mxu0 0.0
        %2252 = vmatmul.mubr.f32.gmra.mrb[0].mxu0 %v2153
        %v2253 = vpop.f32.mrb[0].mxu0
        %v2254 = vadd.f32 0.0, %v2253
        %v2255 = vpop.f32.mrb[0].mxu0
        %2256 = vmatprep.mubr.f32.mxu0 0.0
        %2257 = vmatmul.mubr.f32.gmra.mrb[0].mxu0 %v2156
        %v2258 = vpop.f32.mrb[0].mxu0
        %v2259 = vadd.f32 0.0, %v2258
        %v2260 = vpop.f32.mrb[0].mxu0
        %2261 = vmatprep.mubr.f32.mxu0 0.0
        %2262 = vmatmul.mubr.f32.gmra.mrb[0].mxu0 %v2159
        %v2263 = vpop.f32.mrb[0].mxu0
        %v2264 = vadd.f32 0.0, %v2263
        %v2265 = vpop.f32.mrb[0].mxu0
        %2266 = vmatprep.mubr.f32.mxu0 0.0
        %2267 = vmatmul.mubr.f32.gmra.mrb[0].mxu0 %v2162
        %v2268 = vpop.f32.mrb[0].mxu0
        %v2269 = vadd.f32 0.0, %v2268
        %v2270 = vpop.f32.mrb[0].mxu0
        %2271 = vmatprep.mubr.f32.mxu0 0.0
        %2272 = vmatmul.mubr.f32.gmra.mrb[0].mxu0 %v2165
        %v2273 = vpop.f32.mrb[0].mxu0
        %v2274 = vadd.f32 0.0, %v2273
        %v2275 = vpop.f32.mrb[0].mxu0
        %2276 = vdwg.mxu0
        %v2277 = vld [vmem:[%s8] sm:$0xff]
        %v2278 = vld [vmem:[%s8 + $0x8] sm:$0xff]
        %v2279 = vld [vmem:[%s8 + $0x10] sm:$0xff]
        %v2280 = vld [vmem:[%s8 + $0x18] sm:$0xff]
        %v2282 = vsel %vm1383, %v2234, 0
        %v2285 = vsel %vm1383, %v2239, 0
        %v2288 = vsel %vm1383, %v2244, 0
        %v2291 = vsel %vm1383, %v2249, 0
        %v2294 = vsel %vm1383, %v2254, 0
        %v2297 = vsel %vm1383, %v2259, 0
        %v2300 = vsel %vm1383, %v2264, 0
        %v2303 = vsel %vm1383, %v2269, 0
        %v2306 = vsel %vm1383, %v2274, 0
        %2308 = vmatprep.subr.mxu0 0.0
        %2309 = vmatpush1.msra.mxu0 %v2277
        %2310 = vmatprep.subr.mxu0 0.0
        %2311 = vmatpush1.msra.mxu0 %v2278
        %2312 = vmatprep.subr.mxu0 0.0
        %2313 = vmatpush1.msra.mxu0 %v2279
        %2314 = vmatprep.subr.mxu0 0.0
        %2315 = vmatpush1.msra.mxu0 %v2280
        %2316 = vmatprep.subr.mxu0 0.0
        %2317 = vmatpush1.msra.mxu0 0.0
        %2318 = vmatprep.subr.mxu0 0.0
        %2319 = vmatpush1.msra.mxu0 0.0
        %2320 = vmatprep.subr.mxu0 0.0
        %2321 = vmatpush1.msra.mxu0 0.0
        %2322 = vmatprep.subr.mxu0 0.0
        %2323 = vmatpush1.msra.mxu0 0.0
        %2324 = vmatprep.subr.mxu0 0.0
        %2325 = vmatpush1.msra.mxu0 0.0
        %2326 = vmatprep.subr.mxu0 0.0
        %2327 = vmatpush1.msra.mxu0 0.0
        %2328 = vmatprep.subr.mxu0 0.0
        %2329 = vmatpush1.msra.mxu0 0.0
        %2330 = vmatprep.subr.mxu0 0.0
        %2331 = vmatpush1.msra.mxu0 0.0
        %2332 = vmatprep.subr.mxu0 0.0
        %2333 = vmatpush1.msra.mxu0 0.0
        %2334 = vmatprep.subr.mxu0 0.0
        %2335 = vmatpush1.msra.mxu0 0.0
        %2336 = vmatprep.subr.mxu0 0.0
        %2337 = vmatpush1.msra.mxu0 0.0
        %2338 = vmatprep.subr.mxu0 0.0
        %2339 = vmatpush1.msra.mxu0 0.0
        %2340 = vmatprep.subr.mxu0 0.0
        %2341 = vmatpush1.msra.mxu0 0.0
        %2342 = vmatprep.subr.mxu0 0.0
        %2343 = vmatpush1.msra.mxu0 0.0
        %2344 = vmatprep.subr.mxu0 0.0
        %2345 = vmatpush1.msra.mxu0 0.0
        %2346 = vmatprep.subr.mxu0 0.0
        %2347 = vmatpush1.msra.mxu0 0.0
        %2348 = vmatprep.subr.mxu0 0.0
        %2349 = vmatpush1.msra.mxu0 0.0
        %2350 = vmatprep.subr.mxu0 0.0
        %2351 = vmatpush1.msra.mxu0 0.0
        %2352 = vmatprep.subr.mxu0 0.0
        %2353 = vmatpush1.msra.mxu0 0.0
        %2354 = vmatprep.subr.mxu0 0.0
        %2355 = vmatpush1.msra.mxu0 0.0
        %2356 = vmatprep.subr.mxu0 0.0
        %2357 = vmatpush1.msra.mxu0 0.0
        %2358 = vmatprep.subr.mxu0 0.0
        %2359 = vmatpush1.msra.mxu0 0.0
        %2360 = vmatprep.subr.mxu0 0.0
        %2361 = vmatpush1.msra.mxu0 0.0
        %2362 = vmatprep.subr.mxu0 0.0
        %2363 = vmatpush1.msra.mxu0 0.0
        %2364 = vmatprep.subr.mxu0 0.0
        %2365 = vmatpush1.msra.mxu0 0.0
        %2366 = vmatprep.subr.mxu0 0.0
        %2367 = vmatpush1.msra.mxu0 0.0
        %2368 = vmatprep.subr.mxu0 0.0
        %2369 = vmatpush1.msra.mxu0 0.0
        %2370 = vmatprep.subr.mxu0 0.0
        %2371 = vmatpush1.msra.mxu0 0.0
        %2372 = vmatprep.mubr.f32.mxu0 0.0
        %2373 = vmatmul.mubr.f32.gmra.mrb[0].mxu0 %v2282
        %v2374 = vpop.f32.mrb[0].mxu0
        %v2375 = vadd.f32 0.0, %v2374
        %v2376 = vpop.f32.mrb[0].mxu0
        %2377 = vmatprep.mubr.f32.mxu0 0.0
        %2378 = vmatmul.mubr.f32.gmra.mrb[0].mxu0 %v2285
        %v2379 = vpop.f32.mrb[0].mxu0
        %v2380 = vadd.f32 0.0, %v2379
        %v2381 = vpop.f32.mrb[0].mxu0
        %2382 = vmatprep.mubr.f32.mxu0 0.0
        %2383 = vmatmul.mubr.f32.gmra.mrb[0].mxu0 %v2288
        %v2384 = vpop.f32.mrb[0].mxu0
        %v2385 = vadd.f32 0.0, %v2384
        %v2386 = vpop.f32.mrb[0].mxu0
        %2387 = vmatprep.mubr.f32.mxu0 0.0
        %2388 = vmatmul.mubr.f32.gmra.mrb[0].mxu0 %v2291
        %v2389 = vpop.f32.mrb[0].mxu0
        %v2390 = vadd.f32 0.0, %v2389
        %v2391 = vpop.f32.mrb[0].mxu0
        %2392 = vmatprep.mubr.f32.mxu0 0.0
        %2393 = vmatmul.mubr.f32.gmra.mrb[0].mxu0 %v2294
        %v2394 = vpop.f32.mrb[0].mxu0
        %v2395 = vadd.f32 0.0, %v2394
        %v2396 = vpop.f32.mrb[0].mxu0
        %2397 = vmatprep.mubr.f32.mxu0 0.0
        %2398 = vmatmul.mubr.f32.gmra.mrb[0].mxu0 %v2297
        %v2399 = vpop.f32.mrb[0].mxu0
        %v2400 = vadd.f32 0.0, %v2399
        %v2401 = vpop.f32.mrb[0].mxu0
        %2402 = vmatprep.mubr.f32.mxu0 0.0
        %2403 = vmatmul.mubr.f32.gmra.mrb[0].mxu0 %v2300
        %v2404 = vpop.f32.mrb[0].mxu0
        %v2405 = vadd.f32 0.0, %v2404
        %v2406 = vpop.f32.mrb[0].mxu0
        %2407 = vmatprep.mubr.f32.mxu0 0.0
        %2408 = vmatmul.mubr.f32.gmra.mrb[0].mxu0 %v2303
        %v2409 = vpop.f32.mrb[0].mxu0
        %v2410 = vadd.f32 0.0, %v2409
        %v2411 = vpop.f32.mrb[0].mxu0
        %2412 = vmatprep.mubr.f32.mxu0 0.0
        %2413 = vmatmul.mubr.f32.gmra.mrb[0].mxu0 %v2306
        %v2414 = vpop.f32.mrb[0].mxu0
        %v2415 = vadd.f32 0.0, %v2414
        %v2416 = vpop.f32.mrb[0].mxu0
        %2417 = vdwg.mxu0
        %s2418 = scalar_lea.vmem [#allocation3], 72
        %2419 = vst.msk [vmem:[%s2418] sm:$0xff] %vm1662, %v2375
        %2420 = vst.msk [vmem:[%s2418 + $0x8] sm:$0xff] %vm1662, %v2380
        %2421 = vst.msk [vmem:[%s2418 + $0x10] sm:$0xff] %vm1662, %v2385
        %2422 = vst.msk [vmem:[%s2418 + $0x18] sm:$0xff] %vm1662, %v2390
        %2423 = vst.msk [vmem:[%s2418 + $0x20] sm:$0xff] %vm1662, %v2395
        %2424 = vst.msk [vmem:[%s2418 + $0x28] sm:$0xff] %vm1662, %v2400
        %2425 = vst.msk [vmem:[%s2418 + $0x30] sm:$0xff] %vm1662, %v2405
        %2426 = vst.msk [vmem:[%s2418 + $0x38] sm:$0xff] %vm1662, %v2410
        %2427 = vst.msk [vmem:[%s2418 + $0x40] sm:$0x3] %vm1671, %v2415
        %v2428 = vld [vmem:[#allocation2] sm:$0xff]
        %v2429 = vld [vmem:[#allocation2 + $0x8] sm:$0xff]
        %v2430 = vld [vmem:[#allocation2 + $0x10] sm:$0xff]
        %v2431 = vld [vmem:[#allocation2 + $0x18] sm:$0xff]
        %s2432 = sld [smem:[#allocation5 + $0x48]]
        %v2433 = vstv %s2432
        %v2434 = vmul.f32 %v2433, %v2428
        %v2435 = vmul.f32 %v2433, %v2429
        %v2436 = vmul.f32 %v2433, %v2430
        %v2437 = vmul.f32 %v2433, %v2431
        %v2438 = vadd.f32 %v2434, 0.0
        %v2439 = vadd.f32 %v2435, 0.0
        %v2440 = vadd.f32 %v2436, 0.0
        %v2441 = vadd.f32 %v2437, 0.0
        %s2442 = sld [smem:[#allocation5 + $0x49]]
        %v2443 = vstv %s2442
        %v2444 = vmul.f32 %v2443, %v2428
        %v2445 = vmul.f32 %v2443, %v2429
        %v2446 = vmul.f32 %v2443, %v2430
        %v2447 = vmul.f32 %v2443, %v2431
        %v2448 = vadd.f32 %v2444, 0.0
        %v2449 = vadd.f32 %v2445, 0.0
        %v2450 = vadd.f32 %v2446, 0.0
        %v2451 = vadd.f32 %v2447, 0.0
        %s2452 = sld [smem:[#allocation5 + $0x4a]]
        %v2453 = vstv %s2452
        %v2454 = vmul.f32 %v2453, %v2428
        %v2455 = vmul.f32 %v2453, %v2429
        %v2456 = vmul.f32 %v2453, %v2430
        %v2457 = vmul.f32 %v2453, %v2431
        %v2458 = vadd.f32 %v2454, 0.0
        %v2459 = vadd.f32 %v2455, 0.0
        %v2460 = vadd.f32 %v2456, 0.0
        %v2461 = vadd.f32 %v2457, 0.0
        %v2462 = vld [vmem:[#allocation2 + $0x1] sm:$0xff]
        %v2463 = vld [vmem:[#allocation2 + $0x9] sm:$0xff]
        %v2464 = vld [vmem:[#allocation2 + $0x11] sm:$0xff]
        %v2465 = vld [vmem:[#allocation2 + $0x19] sm:$0xff]
        %s2466 = sld [smem:[#allocation5 + $0x4b]]
        %v2467 = vstv %s2466
        %v2468 = vmul.f32 %v2467, %v2462
        %v2469 = vmul.f32 %v2467, %v2463
        %v2470 = vmul.f32 %v2467, %v2464
        %v2471 = vmul.f32 %v2467, %v2465
        %v2472 = vadd.f32 %v2438, %v2468
        %v2473 = vadd.f32 %v2439, %v2469
        %v2474 = vadd.f32 %v2440, %v2470
        %v2475 = vadd.f32 %v2441, %v2471
        %s2476 = sld [smem:[#allocation5 + $0x4c]]
        %v2477 = vstv %s2476
        %v2478 = vmul.f32 %v2477, %v2462
        %v2479 = vmul.f32 %v2477, %v2463
        %v2480 = vmul.f32 %v2477, %v2464
        %v2481 = vmul.f32 %v2477, %v2465
        %v2482 = vadd.f32 %v2448, %v2478
        %v2483 = vadd.f32 %v2449, %v2479
        %v2484 = vadd.f32 %v2450, %v2480
        %v2485 = vadd.f32 %v2451, %v2481
        %s2486 = sld [smem:[#allocation5 + $0x4d]]
        %v2487 = vstv %s2486
        %v2488 = vmul.f32 %v2487, %v2462
        %v2489 = vmul.f32 %v2487, %v2463
        %v2490 = vmul.f32 %v2487, %v2464
        %v2491 = vmul.f32 %v2487, %v2465
        %v2492 = vadd.f32 %v2458, %v2488
        %v2493 = vadd.f32 %v2459, %v2489
        %v2494 = vadd.f32 %v2460, %v2490
        %v2495 = vadd.f32 %v2461, %v2491
        %v2496 = vld [vmem:[#allocation2 + $0x2] sm:$0xff]
        %v2497 = vld [vmem:[#allocation2 + $0xa] sm:$0xff]
        %v2498 = vld [vmem:[#allocation2 + $0x12] sm:$0xff]
        %v2499 = vld [vmem:[#allocation2 + $0x1a] sm:$0xff]
        %s2500 = sld [smem:[#allocation5 + $0x4e]]
        %v2501 = vstv %s2500
        %v2502 = vmul.f32 %v2501, %v2496
        %v2503 = vmul.f32 %v2501, %v2497
        %v2504 = vmul.f32 %v2501, %v2498
        %v2505 = vmul.f32 %v2501, %v2499
        %v2506 = vadd.f32 %v2472, %v2502
        %v2507 = vadd.f32 %v2473, %v2503
        %v2508 = vadd.f32 %v2474, %v2504
        %v2509 = vadd.f32 %v2475, %v2505
        %s2510 = sld [smem:[#allocation5 + $0x4f]]
        %v2511 = vstv %s2510
        %v2512 = vmul.f32 %v2511, %v2496
        %v2513 = vmul.f32 %v2511, %v2497
        %v2514 = vmul.f32 %v2511, %v2498
        %v2515 = vmul.f32 %v2511, %v2499
        %v2516 = vadd.f32 %v2482, %v2512
        %v2517 = vadd.f32 %v2483, %v2513
        %v2518 = vadd.f32 %v2484, %v2514
        %v2519 = vadd.f32 %v2485, %v2515
        %s2520 = sld [smem:[#allocation5 + $0x50]]
        %v2521 = vstv %s2520
        %v2522 = vmul.f32 %v2521, %v2496
        %v2523 = vmul.f32 %v2521, %v2497
        %v2524 = vmul.f32 %v2521, %v2498
        %v2525 = vmul.f32 %v2521, %v2499
        %v2526 = vadd.f32 %v2492, %v2522
        %v2527 = vadd.f32 %v2493, %v2523
        %v2528 = vadd.f32 %v2494, %v2524
        %v2529 = vadd.f32 %v2495, %v2525
        %v2530 = vld [vmem:[%s718] sm:$0xff]
        %v2531 = vld [vmem:[%s718 + $0x8] sm:$0xff]
        %v2532 = vld [vmem:[%s718 + $0x10] sm:$0xff]
        %v2533 = vld [vmem:[%s718 + $0x18] sm:$0xff]
        %s2534 = sld [smem:[#allocation5 + $0x51]]
        %v2535 = vstv %s2534
        %v2536 = vmul.f32 %v2535, %v2530
        %v2537 = vmul.f32 %v2535, %v2531
        %v2538 = vmul.f32 %v2535, %v2532
        %v2539 = vmul.f32 %v2535, %v2533
        %v2540 = vadd.f32 %v2506, %v2536
        %v2541 = vadd.f32 %v2507, %v2537
        %v2542 = vadd.f32 %v2508, %v2538
        %v2543 = vadd.f32 %v2509, %v2539
        %s2544 = sld [smem:[#allocation5 + $0x52]]
        %v2545 = vstv %s2544
        %v2546 = vmul.f32 %v2545, %v2530
        %v2547 = vmul.f32 %v2545, %v2531
        %v2548 = vmul.f32 %v2545, %v2532
        %v2549 = vmul.f32 %v2545, %v2533
        %v2550 = vadd.f32 %v2516, %v2546
        %v2551 = vadd.f32 %v2517, %v2547
        %v2552 = vadd.f32 %v2518, %v2548
        %v2553 = vadd.f32 %v2519, %v2549
        %s2554 = sld [smem:[#allocation5 + $0x53]]
        %v2555 = vstv %s2554
        %v2556 = vmul.f32 %v2555, %v2530
        %v2557 = vmul.f32 %v2555, %v2531
        %v2558 = vmul.f32 %v2555, %v2532
        %v2559 = vmul.f32 %v2555, %v2533
        %v2560 = vadd.f32 %v2526, %v2556
        %v2561 = vadd.f32 %v2527, %v2557
        %v2562 = vadd.f32 %v2528, %v2558
        %v2563 = vadd.f32 %v2529, %v2559
        %v2564 = vld [vmem:[%s718 + $0x1] sm:$0xff]
        %v2565 = vld [vmem:[%s718 + $0x9] sm:$0xff]
        %v2566 = vld [vmem:[%s718 + $0x11] sm:$0xff]
        %v2567 = vld [vmem:[%s718 + $0x19] sm:$0xff]
        %s2568 = sld [smem:[#allocation5 + $0x54]]
        %v2569 = vstv %s2568
        %v2570 = vmul.f32 %v2569, %v2564
        %v2571 = vmul.f32 %v2569, %v2565
        %v2572 = vmul.f32 %v2569, %v2566
        %v2573 = vmul.f32 %v2569, %v2567
        %v2574 = vadd.f32 %v2540, %v2570
        %v2575 = vadd.f32 %v2541, %v2571
        %v2576 = vadd.f32 %v2542, %v2572
        %v2577 = vadd.f32 %v2543, %v2573
        %s2578 = sld [smem:[#allocation5 + $0x55]]
        %v2579 = vstv %s2578
        %v2580 = vmul.f32 %v2579, %v2564
        %v2581 = vmul.f32 %v2579, %v2565
        %v2582 = vmul.f32 %v2579, %v2566
        %v2583 = vmul.f32 %v2579, %v2567
        %v2584 = vadd.f32 %v2550, %v2580
        %v2585 = vadd.f32 %v2551, %v2581
        %v2586 = vadd.f32 %v2552, %v2582
        %v2587 = vadd.f32 %v2553, %v2583
        %s2588 = sld [smem:[#allocation5 + $0x56]]
        %v2589 = vstv %s2588
        %v2590 = vmul.f32 %v2589, %v2564
        %v2591 = vmul.f32 %v2589, %v2565
        %v2592 = vmul.f32 %v2589, %v2566
        %v2593 = vmul.f32 %v2589, %v2567
        %v2594 = vadd.f32 %v2560, %v2590
        %v2595 = vadd.f32 %v2561, %v2591
        %v2596 = vadd.f32 %v2562, %v2592
        %v2597 = vadd.f32 %v2563, %v2593
        %v2598 = vld [vmem:[%s718 + $0x2] sm:$0xff]
        %v2599 = vld [vmem:[%s718 + $0xa] sm:$0xff]
        %v2600 = vld [vmem:[%s718 + $0x12] sm:$0xff]
        %v2601 = vld [vmem:[%s718 + $0x1a] sm:$0xff]
        %s2602 = sld [smem:[#allocation5 + $0x57]]
        %v2603 = vstv %s2602
        %v2604 = vmul.f32 %v2603, %v2598
        %v2605 = vmul.f32 %v2603, %v2599
        %v2606 = vmul.f32 %v2603, %v2600
        %v2607 = vmul.f32 %v2603, %v2601
        %v2608 = vadd.f32 %v2574, %v2604
        %v2609 = vadd.f32 %v2575, %v2605
        %v2610 = vadd.f32 %v2576, %v2606
        %v2611 = vadd.f32 %v2577, %v2607
        %s2612 = sld [smem:[#allocation5 + $0x58]]
        %v2613 = vstv %s2612
        %v2614 = vmul.f32 %v2613, %v2598
        %v2615 = vmul.f32 %v2613, %v2599
        %v2616 = vmul.f32 %v2613, %v2600
        %v2617 = vmul.f32 %v2613, %v2601
        %v2618 = vadd.f32 %v2584, %v2614
        %v2619 = vadd.f32 %v2585, %v2615
        %v2620 = vadd.f32 %v2586, %v2616
        %v2621 = vadd.f32 %v2587, %v2617
        %s2622 = sld [smem:[#allocation5 + $0x59]]
        %v2623 = vstv %s2622
        %v2624 = vmul.f32 %v2623, %v2598
        %v2625 = vmul.f32 %v2623, %v2599
        %v2626 = vmul.f32 %v2623, %v2600
        %v2627 = vmul.f32 %v2623, %v2601
        %v2628 = vadd.f32 %v2594, %v2624
        %v2629 = vadd.f32 %v2595, %v2625
        %v2630 = vadd.f32 %v2596, %v2626
        %v2631 = vadd.f32 %v2597, %v2627
        %v2632 = vld [vmem:[%s814] sm:$0xff]
        %v2633 = vld [vmem:[%s814 + $0x8] sm:$0xff]
        %v2634 = vld [vmem:[%s814 + $0x10] sm:$0xff]
        %v2635 = vld [vmem:[%s814 + $0x18] sm:$0xff]
        %s2636 = sld [smem:[#allocation5 + $0x5a]]
        %v2637 = vstv %s2636
        %v2638 = vmul.f32 %v2637, %v2632
        %v2639 = vmul.f32 %v2637, %v2633
        %v2640 = vmul.f32 %v2637, %v2634
        %v2641 = vmul.f32 %v2637, %v2635
        %v2642 = vadd.f32 %v2608, %v2638
        %v2643 = vadd.f32 %v2609, %v2639
        %v2644 = vadd.f32 %v2610, %v2640
        %v2645 = vadd.f32 %v2611, %v2641
        %s2646 = sld [smem:[#allocation5 + $0x5b]]
        %v2647 = vstv %s2646
        %v2648 = vmul.f32 %v2647, %v2632
        %v2649 = vmul.f32 %v2647, %v2633
        %v2650 = vmul.f32 %v2647, %v2634
        %v2651 = vmul.f32 %v2647, %v2635
        %v2652 = vadd.f32 %v2618, %v2648
        %v2653 = vadd.f32 %v2619, %v2649
        %v2654 = vadd.f32 %v2620, %v2650
        %v2655 = vadd.f32 %v2621, %v2651
        %s2656 = sld [smem:[#allocation5 + $0x5c]]
        %v2657 = vstv %s2656
        %v2658 = vmul.f32 %v2657, %v2632
        %v2659 = vmul.f32 %v2657, %v2633
        %v2660 = vmul.f32 %v2657, %v2634
        %v2661 = vmul.f32 %v2657, %v2635
        %v2662 = vadd.f32 %v2628, %v2658
        %v2663 = vadd.f32 %v2629, %v2659
        %v2664 = vadd.f32 %v2630, %v2660
        %v2665 = vadd.f32 %v2631, %v2661
        %v2666 = vld [vmem:[%s814 + $0x1] sm:$0xff]
        %v2667 = vld [vmem:[%s814 + $0x9] sm:$0xff]
        %v2668 = vld [vmem:[%s814 + $0x11] sm:$0xff]
        %v2669 = vld [vmem:[%s814 + $0x19] sm:$0xff]
        %s2670 = sld [smem:[#allocation5 + $0x5d]]
        %v2671 = vstv %s2670
        %v2672 = vmul.f32 %v2671, %v2666
        %v2673 = vmul.f32 %v2671, %v2667
        %v2674 = vmul.f32 %v2671, %v2668
        %v2675 = vmul.f32 %v2671, %v2669
        %v2676 = vadd.f32 %v2642, %v2672
        %v2677 = vadd.f32 %v2643, %v2673
        %v2678 = vadd.f32 %v2644, %v2674
        %v2679 = vadd.f32 %v2645, %v2675
        %s2680 = sld [smem:[#allocation5 + $0x5e]]
        %v2681 = vstv %s2680
        %v2682 = vmul.f32 %v2681, %v2666
        %v2683 = vmul.f32 %v2681, %v2667
        %v2684 = vmul.f32 %v2681, %v2668
        %v2685 = vmul.f32 %v2681, %v2669
        %v2686 = vadd.f32 %v2652, %v2682
        %v2687 = vadd.f32 %v2653, %v2683
        %v2688 = vadd.f32 %v2654, %v2684
        %v2689 = vadd.f32 %v2655, %v2685
        %s2690 = sld [smem:[#allocation5 + $0x5f]]
        %v2691 = vstv %s2690
        %v2692 = vmul.f32 %v2691, %v2666
        %v2693 = vmul.f32 %v2691, %v2667
        %v2694 = vmul.f32 %v2691, %v2668
        %v2695 = vmul.f32 %v2691, %v2669
        %v2696 = vadd.f32 %v2662, %v2692
        %v2697 = vadd.f32 %v2663, %v2693
        %v2698 = vadd.f32 %v2664, %v2694
        %v2699 = vadd.f32 %v2665, %v2695
        %v2700 = vld [vmem:[%s814 + $0x2] sm:$0xff]
        %v2701 = vld [vmem:[%s814 + $0xa] sm:$0xff]
        %v2702 = vld [vmem:[%s814 + $0x12] sm:$0xff]
        %v2703 = vld [vmem:[%s814 + $0x1a] sm:$0xff]
        %s2704 = sld [smem:[#allocation5 + $0x60]]
        %v2705 = vstv %s2704
        %v2706 = vmul.f32 %v2705, %v2700
        %v2707 = vmul.f32 %v2705, %v2701
        %v2708 = vmul.f32 %v2705, %v2702
        %v2709 = vmul.f32 %v2705, %v2703
        %v2710 = vadd.f32 %v2676, %v2706
        %v2711 = vadd.f32 %v2677, %v2707
        %v2712 = vadd.f32 %v2678, %v2708
        %v2713 = vadd.f32 %v2679, %v2709
        %s2714 = sld [smem:[#allocation5 + $0x61]]
        %v2715 = vstv %s2714
        %v2716 = vmul.f32 %v2715, %v2700
        %v2717 = vmul.f32 %v2715, %v2701
        %v2718 = vmul.f32 %v2715, %v2702
        %v2719 = vmul.f32 %v2715, %v2703
        %v2720 = vadd.f32 %v2686, %v2716
        %v2721 = vadd.f32 %v2687, %v2717
        %v2722 = vadd.f32 %v2688, %v2718
        %v2723 = vadd.f32 %v2689, %v2719
        %s2724 = sld [smem:[#allocation5 + $0x62]]
        %v2725 = vstv %s2724
        %v2726 = vmul.f32 %v2725, %v2700
        %v2727 = vmul.f32 %v2725, %v2701
        %v2728 = vmul.f32 %v2725, %v2702
        %v2729 = vmul.f32 %v2725, %v2703
        %v2730 = vadd.f32 %v2696, %v2726
        %v2731 = vadd.f32 %v2697, %v2727
        %v2732 = vadd.f32 %v2698, %v2728
        %v2733 = vadd.f32 %v2699, %v2729
        %v2734 = vld [vmem:[%s910] sm:$0xff]
        %v2735 = vld [vmem:[%s910 + $0x8] sm:$0xff]
        %v2736 = vld [vmem:[%s910 + $0x10] sm:$0xff]
        %v2737 = vld [vmem:[%s910 + $0x18] sm:$0xff]
        %s2738 = sld [smem:[#allocation5 + $0x63]]
        %v2739 = vstv %s2738
        %v2740 = vmul.f32 %v2739, %v2734
        %v2741 = vmul.f32 %v2739, %v2735
        %v2742 = vmul.f32 %v2739, %v2736
        %v2743 = vmul.f32 %v2739, %v2737
        %v2744 = vadd.f32 %v2710, %v2740
        %v2745 = vadd.f32 %v2711, %v2741
        %v2746 = vadd.f32 %v2712, %v2742
        %v2747 = vadd.f32 %v2713, %v2743
        %s2748 = sld [smem:[#allocation5 + $0x64]]
        %v2749 = vstv %s2748
        %v2750 = vmul.f32 %v2749, %v2734
        %v2751 = vmul.f32 %v2749, %v2735
        %v2752 = vmul.f32 %v2749, %v2736
        %v2753 = vmul.f32 %v2749, %v2737
        %v2754 = vadd.f32 %v2720, %v2750
        %v2755 = vadd.f32 %v2721, %v2751
        %v2756 = vadd.f32 %v2722, %v2752
        %v2757 = vadd.f32 %v2723, %v2753
        %s2758 = sld [smem:[#allocation5 + $0x65]]
        %v2759 = vstv %s2758
        %v2760 = vmul.f32 %v2759, %v2734
        %v2761 = vmul.f32 %v2759, %v2735
        %v2762 = vmul.f32 %v2759, %v2736
        %v2763 = vmul.f32 %v2759, %v2737
        %v2764 = vadd.f32 %v2730, %v2760
        %v2765 = vadd.f32 %v2731, %v2761
        %v2766 = vadd.f32 %v2732, %v2762
        %v2767 = vadd.f32 %v2733, %v2763
        %v2768 = vld [vmem:[%s910 + $0x1] sm:$0xff]
        %v2769 = vld [vmem:[%s910 + $0x9] sm:$0xff]
        %v2770 = vld [vmem:[%s910 + $0x11] sm:$0xff]
        %v2771 = vld [vmem:[%s910 + $0x19] sm:$0xff]
        %s2772 = sld [smem:[#allocation5 + $0x66]]
        %v2773 = vstv %s2772
        %v2774 = vmul.f32 %v2773, %v2768
        %v2775 = vmul.f32 %v2773, %v2769
        %v2776 = vmul.f32 %v2773, %v2770
        %v2777 = vmul.f32 %v2773, %v2771
        %v2778 = vadd.f32 %v2744, %v2774
        %v2779 = vadd.f32 %v2745, %v2775
        %v2780 = vadd.f32 %v2746, %v2776
        %v2781 = vadd.f32 %v2747, %v2777
        %s2782 = sld [smem:[#allocation5 + $0x67]]
        %v2783 = vstv %s2782
        %v2784 = vmul.f32 %v2783, %v2768
        %v2785 = vmul.f32 %v2783, %v2769
        %v2786 = vmul.f32 %v2783, %v2770
        %v2787 = vmul.f32 %v2783, %v2771
        %v2788 = vadd.f32 %v2754, %v2784
        %v2789 = vadd.f32 %v2755, %v2785
        %v2790 = vadd.f32 %v2756, %v2786
        %v2791 = vadd.f32 %v2757, %v2787
        %s2792 = sld [smem:[#allocation5 + $0x68]]
        %v2793 = vstv %s2792
        %v2794 = vmul.f32 %v2793, %v2768
        %v2795 = vmul.f32 %v2793, %v2769
        %v2796 = vmul.f32 %v2793, %v2770
        %v2797 = vmul.f32 %v2793, %v2771
        %v2798 = vadd.f32 %v2764, %v2794
        %v2799 = vadd.f32 %v2765, %v2795
        %v2800 = vadd.f32 %v2766, %v2796
        %v2801 = vadd.f32 %v2767, %v2797
        %v2802 = vld [vmem:[%s910 + $0x2] sm:$0xff]
        %v2803 = vld [vmem:[%s910 + $0xa] sm:$0xff]
        %v2804 = vld [vmem:[%s910 + $0x12] sm:$0xff]
        %v2805 = vld [vmem:[%s910 + $0x1a] sm:$0xff]
        %s2806 = sld [smem:[#allocation5 + $0x69]]
        %v2807 = vstv %s2806
        %v2808 = vmul.f32 %v2807, %v2802
        %v2809 = vmul.f32 %v2807, %v2803
        %v2810 = vmul.f32 %v2807, %v2804
        %v2811 = vmul.f32 %v2807, %v2805
        %v2812 = vadd.f32 %v2778, %v2808
        %v2813 = vadd.f32 %v2779, %v2809
        %v2814 = vadd.f32 %v2780, %v2810
        %v2815 = vadd.f32 %v2781, %v2811
        %s2816 = sld [smem:[#allocation5 + $0x6a]]
        %v2817 = vstv %s2816
        %v2818 = vmul.f32 %v2817, %v2802
        %v2819 = vmul.f32 %v2817, %v2803
        %v2820 = vmul.f32 %v2817, %v2804
        %v2821 = vmul.f32 %v2817, %v2805
        %v2822 = vadd.f32 %v2788, %v2818
        %v2823 = vadd.f32 %v2789, %v2819
        %v2824 = vadd.f32 %v2790, %v2820
        %v2825 = vadd.f32 %v2791, %v2821
        %s2826 = sld [smem:[#allocation5 + $0x6b]]
        %v2827 = vstv %s2826
        %v2828 = vmul.f32 %v2827, %v2802
        %v2829 = vmul.f32 %v2827, %v2803
        %v2830 = vmul.f32 %v2827, %v2804
        %v2831 = vmul.f32 %v2827, %v2805
        %v2832 = vadd.f32 %v2798, %v2828
        %v2833 = vadd.f32 %v2799, %v2829
        %v2834 = vadd.f32 %v2800, %v2830
        %v2835 = vadd.f32 %v2801, %v2831
        %2840 = vrot.lane.b32.xlu0 %v2822, 127
        %v2841 = vpop.permute.xlu0 %2840
        %2842 = vrot.lane.b32.xlu0 %v2823, 127
        %v2843 = vpop.permute.xlu0 %2842
        %2844 = vrot.lane.b32.xlu0 %v2824, 127
        %v2845 = vpop.permute.xlu0 %2844
        %2846 = vrot.lane.b32.xlu0 %v2825, 127
        %v2847 = vpop.permute.xlu0 %2846
        %v2852 = vadd.f32 %v2812, %v2841
        %v2853 = vadd.f32 %v2813, %v2843
        %v2854 = vadd.f32 %v2814, %v2845
        %v2855 = vadd.f32 %v2815, %v2847
        %2860 = vrot.lane.b32.xlu0 %v2832, 126
        %v2861 = vpop.permute.xlu0 %2860
        %2862 = vrot.lane.b32.xlu0 %v2833, 126
        %v2863 = vpop.permute.xlu0 %2862
        %2864 = vrot.lane.b32.xlu0 %v2834, 126
        %v2865 = vpop.permute.xlu0 %2864
        %2866 = vrot.lane.b32.xlu0 %v2835, 126
        %v2867 = vpop.permute.xlu0 %2866
        %v2872 = vadd.f32 %v2852, %v2861
        %v2873 = vadd.f32 %v2853, %v2863
        %v2874 = vadd.f32 %v2854, %v2865
        %v2875 = vadd.f32 %v2855, %v2867
        %s2876 = sld [smem:[#allocation8 + $0x2]]
        %v2877 = vstv %s2876
        %v2878 = vadd.f32 %v2872, %v2877
        %v2879 = vadd.f32 %v2873, %v2877
        %v2880 = vadd.f32 %v2874, %v2877
        %v2881 = vadd.f32 %v2875, %v2877
        %v2882 = vmax.f32 %v2878, 0.0
        %v2883 = vmax.f32 %v2879, 0.0
        %v2884 = vmax.f32 %v2880, 0.0
        %v2885 = vmax.f32 %v2881, 0.0
        %v2886 = vld [vmem:[%s7] sm:$0xff]
        %v2887 = vld [vmem:[%s7 + $0x8] sm:$0xff]
        %v2888 = vld [vmem:[%s7 + $0x10] sm:$0xff]
        %v2889 = vld [vmem:[%s7 + $0x18] sm:$0xff]
        %v2890 = vld [vmem:[%s7 + $0x20] sm:$0xff]
        %v2891 = vld [vmem:[%s7 + $0x28] sm:$0xff]
        %v2892 = vld [vmem:[%s7 + $0x30] sm:$0xff]
        %v2893 = vld [vmem:[%s7 + $0x38] sm:$0xff]
        %v2894 = vld [vmem:[%s7 + $0x40] sm:$0x3]
        %v2896 = vsel %vm1383, %v2886, 0
        %v2899 = vsel %vm1383, %v2887, 0
        %v2902 = vsel %vm1383, %v2888, 0
        %v2905 = vsel %vm1383, %v2889, 0
        %v2908 = vsel %vm1383, %v2890, 0
        %v2911 = vsel %vm1383, %v2891, 0
        %v2914 = vsel %vm1383, %v2892, 0
        %v2917 = vsel %vm1383, %v2893, 0
        %v2920 = vsel %vm1383, %v2894, 0
        %2922 = vmatprep.subr.mxu0 0.0
        %2923 = vmatpush1.msra.mxu0 %v2882
        %2924 = vmatprep.subr.mxu0 0.0
        %2925 = vmatpush1.msra.mxu0 %v2883
        %2926 = vmatprep.subr.mxu0 0.0
        %2927 = vmatpush1.msra.mxu0 %v2884
        %2928 = vmatprep.subr.mxu0 0.0
        %2929 = vmatpush1.msra.mxu0 %v2885
        %2930 = vmatprep.subr.mxu0 0.0
        %2931 = vmatpush1.msra.mxu0 0.0
        %2932 = vmatprep.subr.mxu0 0.0
        %2933 = vmatpush1.msra.mxu0 0.0
        %2934 = vmatprep.subr.mxu0 0.0
        %2935 = vmatpush1.msra.mxu0 0.0
        %2936 = vmatprep.subr.mxu0 0.0
        %2937 = vmatpush1.msra.mxu0 0.0
        %2938 = vmatprep.subr.mxu0 0.0
        %2939 = vmatpush1.msra.mxu0 0.0
        %2940 = vmatprep.subr.mxu0 0.0
        %2941 = vmatpush1.msra.mxu0 0.0
        %2942 = vmatprep.subr.mxu0 0.0
        %2943 = vmatpush1.msra.mxu0 0.0
        %2944 = vmatprep.subr.mxu0 0.0
        %2945 = vmatpush1.msra.mxu0 0.0
        %2946 = vmatprep.subr.mxu0 0.0
        %2947 = vmatpush1.msra.mxu0 0.0
        %2948 = vmatprep.subr.mxu0 0.0
        %2949 = vmatpush1.msra.mxu0 0.0
        %2950 = vmatprep.subr.mxu0 0.0
        %2951 = vmatpush1.msra.mxu0 0.0
        %2952 = vmatprep.subr.mxu0 0.0
        %2953 = vmatpush1.msra.mxu0 0.0
        %2954 = vmatprep.subr.mxu0 0.0
        %2955 = vmatpush1.msra.mxu0 0.0
        %2956 = vmatprep.subr.mxu0 0.0
        %2957 = vmatpush1.msra.mxu0 0.0
        %2958 = vmatprep.subr.mxu0 0.0
        %2959 = vmatpush1.msra.mxu0 0.0
        %2960 = vmatprep.subr.mxu0 0.0
        %2961 = vmatpush1.msra.mxu0 0.0
        %2962 = vmatprep.subr.mxu0 0.0
        %2963 = vmatpush1.msra.mxu0 0.0
        %2964 = vmatprep.subr.mxu0 0.0
        %2965 = vmatpush1.msra.mxu0 0.0
        %2966 = vmatprep.subr.mxu0 0.0
        %2967 = vmatpush1.msra.mxu0 0.0
        %2968 = vmatprep.subr.mxu0 0.0
        %2969 = vmatpush1.msra.mxu0 0.0
        %2970 = vmatprep.subr.mxu0 0.0
        %2971 = vmatpush1.msra.mxu0 0.0
        %2972 = vmatprep.subr.mxu0 0.0
        %2973 = vmatpush1.msra.mxu0 0.0
        %2974 = vmatprep.subr.mxu0 0.0
        %2975 = vmatpush1.msra.mxu0 0.0
        %2976 = vmatprep.subr.mxu0 0.0
        %2977 = vmatpush1.msra.mxu0 0.0
        %2978 = vmatprep.subr.mxu0 0.0
        %2979 = vmatpush1.msra.mxu0 0.0
        %2980 = vmatprep.subr.mxu0 0.0
        %2981 = vmatpush1.msra.mxu0 0.0
        %2982 = vmatprep.subr.mxu0 0.0
        %2983 = vmatpush1.msra.mxu0 0.0
        %2984 = vmatprep.subr.mxu0 0.0
        %2985 = vmatpush1.msra.mxu0 0.0
        %2986 = vmatprep.mubr.f32.mxu0 0.0
        %2987 = vmatmul.mubr.f32.gmra.mrb[0].mxu0 %v2896
        %v2988 = vpop.f32.mrb[0].mxu0
        %v2989 = vadd.f32 0.0, %v2988
        %v2990 = vpop.f32.mrb[0].mxu0
        %2991 = vmatprep.mubr.f32.mxu0 0.0
        %2992 = vmatmul.mubr.f32.gmra.mrb[0].mxu0 %v2899
        %v2993 = vpop.f32.mrb[0].mxu0
        %v2994 = vadd.f32 0.0, %v2993
        %v2995 = vpop.f32.mrb[0].mxu0
        %2996 = vmatprep.mubr.f32.mxu0 0.0
        %2997 = vmatmul.mubr.f32.gmra.mrb[0].mxu0 %v2902
        %v2998 = vpop.f32.mrb[0].mxu0
        %v2999 = vadd.f32 0.0, %v2998
        %v3000 = vpop.f32.mrb[0].mxu0
        %3001 = vmatprep.mubr.f32.mxu0 0.0
        %3002 = vmatmul.mubr.f32.gmra.mrb[0].mxu0 %v2905
        %v3003 = vpop.f32.mrb[0].mxu0
        %v3004 = vadd.f32 0.0, %v3003
        %v3005 = vpop.f32.mrb[0].mxu0
        %3006 = vmatprep.mubr.f32.mxu0 0.0
        %3007 = vmatmul.mubr.f32.gmra.mrb[0].mxu0 %v2908
        %v3008 = vpop.f32.mrb[0].mxu0
        %v3009 = vadd.f32 0.0, %v3008
        %v3010 = vpop.f32.mrb[0].mxu0
        %3011 = vmatprep.mubr.f32.mxu0 0.0
        %3012 = vmatmul.mubr.f32.gmra.mrb[0].mxu0 %v2911
        %v3013 = vpop.f32.mrb[0].mxu0
        %v3014 = vadd.f32 0.0, %v3013
        %v3015 = vpop.f32.mrb[0].mxu0
        %3016 = vmatprep.mubr.f32.mxu0 0.0
        %3017 = vmatmul.mubr.f32.gmra.mrb[0].mxu0 %v2914
        %v3018 = vpop.f32.mrb[0].mxu0
        %v3019 = vadd.f32 0.0, %v3018
        %v3020 = vpop.f32.mrb[0].mxu0
        %3021 = vmatprep.mubr.f32.mxu0 0.0
        %3022 = vmatmul.mubr.f32.gmra.mrb[0].mxu0 %v2917
        %v3023 = vpop.f32.mrb[0].mxu0
        %v3024 = vadd.f32 0.0, %v3023
        %v3025 = vpop.f32.mrb[0].mxu0
        %3026 = vmatprep.mubr.f32.mxu0 0.0
        %3027 = vmatmul.mubr.f32.gmra.mrb[0].mxu0 %v2920
        %v3028 = vpop.f32.mrb[0].mxu0
        %v3029 = vadd.f32 0.0, %v3028
        %v3030 = vpop.f32.mrb[0].mxu0
        %3031 = vdwg.mxu0
        %v3032 = vld [vmem:[%s8] sm:$0xff]
        %v3033 = vld [vmem:[%s8 + $0x8] sm:$0xff]
        %v3034 = vld [vmem:[%s8 + $0x10] sm:$0xff]
        %v3035 = vld [vmem:[%s8 + $0x18] sm:$0xff]
        %v3037 = vsel %vm1383, %v2989, 0
        %v3040 = vsel %vm1383, %v2994, 0
        %v3043 = vsel %vm1383, %v2999, 0
        %v3046 = vsel %vm1383, %v3004, 0
        %v3049 = vsel %vm1383, %v3009, 0
        %v3052 = vsel %vm1383, %v3014, 0
        %v3055 = vsel %vm1383, %v3019, 0
        %v3058 = vsel %vm1383, %v3024, 0
        %v3061 = vsel %vm1383, %v3029, 0
        %3063 = vmatprep.subr.mxu0 0.0
        %3064 = vmatpush1.msra.mxu0 %v3032
        %3065 = vmatprep.subr.mxu0 0.0
        %3066 = vmatpush1.msra.mxu0 %v3033
        %3067 = vmatprep.subr.mxu0 0.0
        %3068 = vmatpush1.msra.mxu0 %v3034
        %3069 = vmatprep.subr.mxu0 0.0
        %3070 = vmatpush1.msra.mxu0 %v3035
        %3071 = vmatprep.subr.mxu0 0.0
        %3072 = vmatpush1.msra.mxu0 0.0
        %3073 = vmatprep.subr.mxu0 0.0
        %3074 = vmatpush1.msra.mxu0 0.0
        %3075 = vmatprep.subr.mxu0 0.0
        %3076 = vmatpush1.msra.mxu0 0.0
        %3077 = vmatprep.subr.mxu0 0.0
        %3078 = vmatpush1.msra.mxu0 0.0
        %3079 = vmatprep.subr.mxu0 0.0
        %3080 = vmatpush1.msra.mxu0 0.0
        %3081 = vmatprep.subr.mxu0 0.0
        %3082 = vmatpush1.msra.mxu0 0.0
        %3083 = vmatprep.subr.mxu0 0.0
        %3084 = vmatpush1.msra.mxu0 0.0
        %3085 = vmatprep.subr.mxu0 0.0
        %3086 = vmatpush1.msra.mxu0 0.0
        %3087 = vmatprep.subr.mxu0 0.0
        %3088 = vmatpush1.msra.mxu0 0.0
        %3089 = vmatprep.subr.mxu0 0.0
        %3090 = vmatpush1.msra.mxu0 0.0
        %3091 = vmatprep.subr.mxu0 0.0
        %3092 = vmatpush1.msra.mxu0 0.0
        %3093 = vmatprep.subr.mxu0 0.0
        %3094 = vmatpush1.msra.mxu0 0.0
        %3095 = vmatprep.subr.mxu0 0.0
        %3096 = vmatpush1.msra.mxu0 0.0
        %3097 = vmatprep.subr.mxu0 0.0
        %3098 = vmatpush1.msra.mxu0 0.0
        %3099 = vmatprep.subr.mxu0 0.0
        %3100 = vmatpush1.msra.mxu0 0.0
        %3101 = vmatprep.subr.mxu0 0.0
        %3102 = vmatpush1.msra.mxu0 0.0
        %3103 = vmatprep.subr.mxu0 0.0
        %3104 = vmatpush1.msra.mxu0 0.0
        %3105 = vmatprep.subr.mxu0 0.0
        %3106 = vmatpush1.msra.mxu0 0.0
        %3107 = vmatprep.subr.mxu0 0.0
        %3108 = vmatpush1.msra.mxu0 0.0
        %3109 = vmatprep.subr.mxu0 0.0
        %3110 = vmatpush1.msra.mxu0 0.0
        %3111 = vmatprep.subr.mxu0 0.0
        %3112 = vmatpush1.msra.mxu0 0.0
        %3113 = vmatprep.subr.mxu0 0.0
        %3114 = vmatpush1.msra.mxu0 0.0
        %3115 = vmatprep.subr.mxu0 0.0
        %3116 = vmatpush1.msra.mxu0 0.0
        %3117 = vmatprep.subr.mxu0 0.0
        %3118 = vmatpush1.msra.mxu0 0.0
        %3119 = vmatprep.subr.mxu0 0.0
        %3120 = vmatpush1.msra.mxu0 0.0
        %3121 = vmatprep.subr.mxu0 0.0
        %3122 = vmatpush1.msra.mxu0 0.0
        %3123 = vmatprep.subr.mxu0 0.0
        %3124 = vmatpush1.msra.mxu0 0.0
        %3125 = vmatprep.subr.mxu0 0.0
        %3126 = vmatpush1.msra.mxu0 0.0
        %3127 = vmatprep.mubr.f32.mxu0 0.0
        %3128 = vmatmul.mubr.f32.gmra.mrb[0].mxu0 %v3037
        %v3129 = vpop.f32.mrb[0].mxu0
        %v3130 = vadd.f32 0.0, %v3129
        %v3131 = vpop.f32.mrb[0].mxu0
        %3132 = vmatprep.mubr.f32.mxu0 0.0
        %3133 = vmatmul.mubr.f32.gmra.mrb[0].mxu0 %v3040
        %v3134 = vpop.f32.mrb[0].mxu0
        %v3135 = vadd.f32 0.0, %v3134
        %v3136 = vpop.f32.mrb[0].mxu0
        %3137 = vmatprep.mubr.f32.mxu0 0.0
        %3138 = vmatmul.mubr.f32.gmra.mrb[0].mxu0 %v3043
        %v3139 = vpop.f32.mrb[0].mxu0
        %v3140 = vadd.f32 0.0, %v3139
        %v3141 = vpop.f32.mrb[0].mxu0
        %3142 = vmatprep.mubr.f32.mxu0 0.0
        %3143 = vmatmul.mubr.f32.gmra.mrb[0].mxu0 %v3046
        %v3144 = vpop.f32.mrb[0].mxu0
        %v3145 = vadd.f32 0.0, %v3144
        %v3146 = vpop.f32.mrb[0].mxu0
        %3147 = vmatprep.mubr.f32.mxu0 0.0
        %3148 = vmatmul.mubr.f32.gmra.mrb[0].mxu0 %v3049
        %v3149 = vpop.f32.mrb[0].mxu0
        %v3150 = vadd.f32 0.0, %v3149
        %v3151 = vpop.f32.mrb[0].mxu0
        %3152 = vmatprep.mubr.f32.mxu0 0.0
        %3153 = vmatmul.mubr.f32.gmra.mrb[0].mxu0 %v3052
        %v3154 = vpop.f32.mrb[0].mxu0
        %v3155 = vadd.f32 0.0, %v3154
        %v3156 = vpop.f32.mrb[0].mxu0
        %3157 = vmatprep.mubr.f32.mxu0 0.0
        %3158 = vmatmul.mubr.f32.gmra.mrb[0].mxu0 %v3055
        %v3159 = vpop.f32.mrb[0].mxu0
        %v3160 = vadd.f32 0.0, %v3159
        %v3161 = vpop.f32.mrb[0].mxu0
        %3162 = vmatprep.mubr.f32.mxu0 0.0
        %3163 = vmatmul.mubr.f32.gmra.mrb[0].mxu0 %v3058
        %v3164 = vpop.f32.mrb[0].mxu0
        %v3165 = vadd.f32 0.0, %v3164
        %v3166 = vpop.f32.mrb[0].mxu0
        %3167 = vmatprep.mubr.f32.mxu0 0.0
        %3168 = vmatmul.mubr.f32.gmra.mrb[0].mxu0 %v3061
        %v3169 = vpop.f32.mrb[0].mxu0
        %v3170 = vadd.f32 0.0, %v3169
        %v3171 = vpop.f32.mrb[0].mxu0
        %3172 = vdwg.mxu0
        %s3173 = scalar_lea.vmem [#allocation3], 144
        %3174 = vst.msk [vmem:[%s3173] sm:$0xff] %vm1662, %v3130
        %3175 = vst.msk [vmem:[%s3173 + $0x8] sm:$0xff] %vm1662, %v3135
        %3176 = vst.msk [vmem:[%s3173 + $0x10] sm:$0xff] %vm1662, %v3140
        %3177 = vst.msk [vmem:[%s3173 + $0x18] sm:$0xff] %vm1662, %v3145
        %3178 = vst.msk [vmem:[%s3173 + $0x20] sm:$0xff] %vm1662, %v3150
        %3179 = vst.msk [vmem:[%s3173 + $0x28] sm:$0xff] %vm1662, %v3155
        %3180 = vst.msk [vmem:[%s3173 + $0x30] sm:$0xff] %vm1662, %v3160
        %3181 = vst.msk [vmem:[%s3173 + $0x38] sm:$0xff] %vm1662, %v3165
        %3182 = vst.msk [vmem:[%s3173 + $0x40] sm:$0x3] %vm1671, %v3170
        %v3183 = vld [vmem:[#allocation2] sm:$0xff]
        %v3184 = vld [vmem:[#allocation2 + $0x8] sm:$0xff]
        %v3185 = vld [vmem:[#allocation2 + $0x10] sm:$0xff]
        %v3186 = vld [vmem:[#allocation2 + $0x18] sm:$0xff]
        %s3187 = sld [smem:[#allocation5 + $0x6c]]
        %v3188 = vstv %s3187
        %v3189 = vmul.f32 %v3188, %v3183
        %v3190 = vmul.f32 %v3188, %v3184
        %v3191 = vmul.f32 %v3188, %v3185
        %v3192 = vmul.f32 %v3188, %v3186
        %v3193 = vadd.f32 %v3189, 0.0
        %v3194 = vadd.f32 %v3190, 0.0
        %v3195 = vadd.f32 %v3191, 0.0
        %v3196 = vadd.f32 %v3192, 0.0
        %s3197 = sld [smem:[#allocation5 + $0x6d]]
        %v3198 = vstv %s3197
        %v3199 = vmul.f32 %v3198, %v3183
        %v3200 = vmul.f32 %v3198, %v3184
        %v3201 = vmul.f32 %v3198, %v3185
        %v3202 = vmul.f32 %v3198, %v3186
        %v3203 = vadd.f32 %v3199, 0.0
        %v3204 = vadd.f32 %v3200, 0.0
        %v3205 = vadd.f32 %v3201, 0.0
        %v3206 = vadd.f32 %v3202, 0.0
        %s3207 = sld [smem:[#allocation5 + $0x6e]]
        %v3208 = vstv %s3207
        %v3209 = vmul.f32 %v3208, %v3183
        %v3210 = vmul.f32 %v3208, %v3184
        %v3211 = vmul.f32 %v3208, %v3185
        %v3212 = vmul.f32 %v3208, %v3186
        %v3213 = vadd.f32 %v3209, 0.0
        %v3214 = vadd.f32 %v3210, 0.0
        %v3215 = vadd.f32 %v3211, 0.0
        %v3216 = vadd.f32 %v3212, 0.0
        %v3217 = vld [vmem:[#allocation2 + $0x1] sm:$0xff]
        %v3218 = vld [vmem:[#allocation2 + $0x9] sm:$0xff]
        %v3219 = vld [vmem:[#allocation2 + $0x11] sm:$0xff]
        %v3220 = vld [vmem:[#allocation2 + $0x19] sm:$0xff]
        %s3221 = sld [smem:[#allocation5 + $0x6f]]
        %v3222 = vstv %s3221
        %v3223 = vmul.f32 %v3222, %v3217
        %v3224 = vmul.f32 %v3222, %v3218
        %v3225 = vmul.f32 %v3222, %v3219
        %v3226 = vmul.f32 %v3222, %v3220
        %v3227 = vadd.f32 %v3193, %v3223
        %v3228 = vadd.f32 %v3194, %v3224
        %v3229 = vadd.f32 %v3195, %v3225
        %v3230 = vadd.f32 %v3196, %v3226
        %s3231 = sld [smem:[#allocation5 + $0x70]]
        %v3232 = vstv %s3231
        %v3233 = vmul.f32 %v3232, %v3217
        %v3234 = vmul.f32 %v3232, %v3218
        %v3235 = vmul.f32 %v3232, %v3219
        %v3236 = vmul.f32 %v3232, %v3220
        %v3237 = vadd.f32 %v3203, %v3233
        %v3238 = vadd.f32 %v3204, %v3234
        %v3239 = vadd.f32 %v3205, %v3235
        %v3240 = vadd.f32 %v3206, %v3236
        %s3241 = sld [smem:[#allocation5 + $0x71]]
        %v3242 = vstv %s3241
        %v3243 = vmul.f32 %v3242, %v3217
        %v3244 = vmul.f32 %v3242, %v3218
        %v3245 = vmul.f32 %v3242, %v3219
        %v3246 = vmul.f32 %v3242, %v3220
        %v3247 = vadd.f32 %v3213, %v3243
        %v3248 = vadd.f32 %v3214, %v3244
        %v3249 = vadd.f32 %v3215, %v3245
        %v3250 = vadd.f32 %v3216, %v3246
        %v3251 = vld [vmem:[#allocation2 + $0x2] sm:$0xff]
        %v3252 = vld [vmem:[#allocation2 + $0xa] sm:$0xff]
        %v3253 = vld [vmem:[#allocation2 + $0x12] sm:$0xff]
        %v3254 = vld [vmem:[#allocation2 + $0x1a] sm:$0xff]
        %s3255 = sld [smem:[#allocation5 + $0x72]]
        %v3256 = vstv %s3255
        %v3257 = vmul.f32 %v3256, %v3251
        %v3258 = vmul.f32 %v3256, %v3252
        %v3259 = vmul.f32 %v3256, %v3253
        %v3260 = vmul.f32 %v3256, %v3254
        %v3261 = vadd.f32 %v3227, %v3257
        %v3262 = vadd.f32 %v3228, %v3258
        %v3263 = vadd.f32 %v3229, %v3259
        %v3264 = vadd.f32 %v3230, %v3260
        %s3265 = sld [smem:[#allocation5 + $0x73]]
        %v3266 = vstv %s3265
        %v3267 = vmul.f32 %v3266, %v3251
        %v3268 = vmul.f32 %v3266, %v3252
        %v3269 = vmul.f32 %v3266, %v3253
        %v3270 = vmul.f32 %v3266, %v3254
        %v3271 = vadd.f32 %v3237, %v3267
        %v3272 = vadd.f32 %v3238, %v3268
        %v3273 = vadd.f32 %v3239, %v3269
        %v3274 = vadd.f32 %v3240, %v3270
        %s3275 = sld [smem:[#allocation5 + $0x74]]
        %v3276 = vstv %s3275
        %v3277 = vmul.f32 %v3276, %v3251
        %v3278 = vmul.f32 %v3276, %v3252
        %v3279 = vmul.f32 %v3276, %v3253
        %v3280 = vmul.f32 %v3276, %v3254
        %v3281 = vadd.f32 %v3247, %v3277
        %v3282 = vadd.f32 %v3248, %v3278
        %v3283 = vadd.f32 %v3249, %v3279
        %v3284 = vadd.f32 %v3250, %v3280
        %v3285 = vld [vmem:[%s718] sm:$0xff]
        %v3286 = vld [vmem:[%s718 + $0x8] sm:$0xff]
        %v3287 = vld [vmem:[%s718 + $0x10] sm:$0xff]
        %v3288 = vld [vmem:[%s718 + $0x18] sm:$0xff]
        %s3289 = sld [smem:[#allocation5 + $0x75]]
        %v3290 = vstv %s3289
        %v3291 = vmul.f32 %v3290, %v3285
        %v3292 = vmul.f32 %v3290, %v3286
        %v3293 = vmul.f32 %v3290, %v3287
        %v3294 = vmul.f32 %v3290, %v3288
        %v3295 = vadd.f32 %v3261, %v3291
        %v3296 = vadd.f32 %v3262, %v3292
        %v3297 = vadd.f32 %v3263, %v3293
        %v3298 = vadd.f32 %v3264, %v3294
        %s3299 = sld [smem:[#allocation5 + $0x76]]
        %v3300 = vstv %s3299
        %v3301 = vmul.f32 %v3300, %v3285
        %v3302 = vmul.f32 %v3300, %v3286
        %v3303 = vmul.f32 %v3300, %v3287
        %v3304 = vmul.f32 %v3300, %v3288
        %v3305 = vadd.f32 %v3271, %v3301
        %v3306 = vadd.f32 %v3272, %v3302
        %v3307 = vadd.f32 %v3273, %v3303
        %v3308 = vadd.f32 %v3274, %v3304
        %s3309 = sld [smem:[#allocation5 + $0x77]]
        %v3310 = vstv %s3309
        %v3311 = vmul.f32 %v3310, %v3285
        %v3312 = vmul.f32 %v3310, %v3286
        %v3313 = vmul.f32 %v3310, %v3287
        %v3314 = vmul.f32 %v3310, %v3288
        %v3315 = vadd.f32 %v3281, %v3311
        %v3316 = vadd.f32 %v3282, %v3312
        %v3317 = vadd.f32 %v3283, %v3313
        %v3318 = vadd.f32 %v3284, %v3314
        %v3319 = vld [vmem:[%s718 + $0x1] sm:$0xff]
        %v3320 = vld [vmem:[%s718 + $0x9] sm:$0xff]
        %v3321 = vld [vmem:[%s718 + $0x11] sm:$0xff]
        %v3322 = vld [vmem:[%s718 + $0x19] sm:$0xff]
        %s3323 = sld [smem:[#allocation5 + $0x78]]
        %v3324 = vstv %s3323
        %v3325 = vmul.f32 %v3324, %v3319
        %v3326 = vmul.f32 %v3324, %v3320
        %v3327 = vmul.f32 %v3324, %v3321
        %v3328 = vmul.f32 %v3324, %v3322
        %v3329 = vadd.f32 %v3295, %v3325
        %v3330 = vadd.f32 %v3296, %v3326
        %v3331 = vadd.f32 %v3297, %v3327
        %v3332 = vadd.f32 %v3298, %v3328
        %s3333 = sld [smem:[#allocation5 + $0x79]]
        %v3334 = vstv %s3333
        %v3335 = vmul.f32 %v3334, %v3319
        %v3336 = vmul.f32 %v3334, %v3320
        %v3337 = vmul.f32 %v3334, %v3321
        %v3338 = vmul.f32 %v3334, %v3322
        %v3339 = vadd.f32 %v3305, %v3335
        %v3340 = vadd.f32 %v3306, %v3336
        %v3341 = vadd.f32 %v3307, %v3337
        %v3342 = vadd.f32 %v3308, %v3338
        %s3343 = sld [smem:[#allocation5 + $0x7a]]
        %v3344 = vstv %s3343
        %v3345 = vmul.f32 %v3344, %v3319
        %v3346 = vmul.f32 %v3344, %v3320
        %v3347 = vmul.f32 %v3344, %v3321
        %v3348 = vmul.f32 %v3344, %v3322
        %v3349 = vadd.f32 %v3315, %v3345
        %v3350 = vadd.f32 %v3316, %v3346
        %v3351 = vadd.f32 %v3317, %v3347
        %v3352 = vadd.f32 %v3318, %v3348
        %v3353 = vld [vmem:[%s718 + $0x2] sm:$0xff]
        %v3354 = vld [vmem:[%s718 + $0xa] sm:$0xff]
        %v3355 = vld [vmem:[%s718 + $0x12] sm:$0xff]
        %v3356 = vld [vmem:[%s718 + $0x1a] sm:$0xff]
        %s3357 = sld [smem:[#allocation5 + $0x7b]]
        %v3358 = vstv %s3357
        %v3359 = vmul.f32 %v3358, %v3353
        %v3360 = vmul.f32 %v3358, %v3354
        %v3361 = vmul.f32 %v3358, %v3355
        %v3362 = vmul.f32 %v3358, %v3356
        %v3363 = vadd.f32 %v3329, %v3359
        %v3364 = vadd.f32 %v3330, %v3360
        %v3365 = vadd.f32 %v3331, %v3361
        %v3366 = vadd.f32 %v3332, %v3362
        %s3367 = sld [smem:[#allocation5 + $0x7c]]
        %v3368 = vstv %s3367
        %v3369 = vmul.f32 %v3368, %v3353
        %v3370 = vmul.f32 %v3368, %v3354
        %v3371 = vmul.f32 %v3368, %v3355
        %v3372 = vmul.f32 %v3368, %v3356
        %v3373 = vadd.f32 %v3339, %v3369
        %v3374 = vadd.f32 %v3340, %v3370
        %v3375 = vadd.f32 %v3341, %v3371
        %v3376 = vadd.f32 %v3342, %v3372
        %s3377 = sld [smem:[#allocation5 + $0x7d]]
        %v3378 = vstv %s3377
        %v3379 = vmul.f32 %v3378, %v3353
        %v3380 = vmul.f32 %v3378, %v3354
        %v3381 = vmul.f32 %v3378, %v3355
        %v3382 = vmul.f32 %v3378, %v3356
        %v3383 = vadd.f32 %v3349, %v3379
        %v3384 = vadd.f32 %v3350, %v3380
        %v3385 = vadd.f32 %v3351, %v3381
        %v3386 = vadd.f32 %v3352, %v3382
        %v3387 = vld [vmem:[%s814] sm:$0xff]
        %v3388 = vld [vmem:[%s814 + $0x8] sm:$0xff]
        %v3389 = vld [vmem:[%s814 + $0x10] sm:$0xff]
        %v3390 = vld [vmem:[%s814 + $0x18] sm:$0xff]
        %s3391 = sld [smem:[#allocation5 + $0x7e]]
        %v3392 = vstv %s3391
        %v3393 = vmul.f32 %v3392, %v3387
        %v3394 = vmul.f32 %v3392, %v3388
        %v3395 = vmul.f32 %v3392, %v3389
        %v3396 = vmul.f32 %v3392, %v3390
        %v3397 = vadd.f32 %v3363, %v3393
        %v3398 = vadd.f32 %v3364, %v3394
        %v3399 = vadd.f32 %v3365, %v3395
        %v3400 = vadd.f32 %v3366, %v3396
        %s3401 = sld [smem:[#allocation5 + $0x7f]]
        %v3402 = vstv %s3401
        %v3403 = vmul.f32 %v3402, %v3387
        %v3404 = vmul.f32 %v3402, %v3388
        %v3405 = vmul.f32 %v3402, %v3389
        %v3406 = vmul.f32 %v3402, %v3390
        %v3407 = vadd.f32 %v3373, %v3403
        %v3408 = vadd.f32 %v3374, %v3404
        %v3409 = vadd.f32 %v3375, %v3405
        %v3410 = vadd.f32 %v3376, %v3406
        %s3411 = sld [smem:[#allocation5 + $0x80]]
        %v3412 = vstv %s3411
        %v3413 = vmul.f32 %v3412, %v3387
        %v3414 = vmul.f32 %v3412, %v3388
        %v3415 = vmul.f32 %v3412, %v3389
        %v3416 = vmul.f32 %v3412, %v3390
        %v3417 = vadd.f32 %v3383, %v3413
        %v3418 = vadd.f32 %v3384, %v3414
        %v3419 = vadd.f32 %v3385, %v3415
        %v3420 = vadd.f32 %v3386, %v3416
        %v3421 = vld [vmem:[%s814 + $0x1] sm:$0xff]
        %v3422 = vld [vmem:[%s814 + $0x9] sm:$0xff]
        %v3423 = vld [vmem:[%s814 + $0x11] sm:$0xff]
        %v3424 = vld [vmem:[%s814 + $0x19] sm:$0xff]
        %s3425 = sld [smem:[#allocation5 + $0x81]]
        %v3426 = vstv %s3425
        %v3427 = vmul.f32 %v3426, %v3421
        %v3428 = vmul.f32 %v3426, %v3422
        %v3429 = vmul.f32 %v3426, %v3423
        %v3430 = vmul.f32 %v3426, %v3424
        %v3431 = vadd.f32 %v3397, %v3427
        %v3432 = vadd.f32 %v3398, %v3428
        %v3433 = vadd.f32 %v3399, %v3429
        %v3434 = vadd.f32 %v3400, %v3430
        %s3435 = sld [smem:[#allocation5 + $0x82]]
        %v3436 = vstv %s3435
        %v3437 = vmul.f32 %v3436, %v3421
        %v3438 = vmul.f32 %v3436, %v3422
        %v3439 = vmul.f32 %v3436, %v3423
        %v3440 = vmul.f32 %v3436, %v3424
        %v3441 = vadd.f32 %v3407, %v3437
        %v3442 = vadd.f32 %v3408, %v3438
        %v3443 = vadd.f32 %v3409, %v3439
        %v3444 = vadd.f32 %v3410, %v3440
        %s3445 = sld [smem:[#allocation5 + $0x83]]
        %v3446 = vstv %s3445
        %v3447 = vmul.f32 %v3446, %v3421
        %v3448 = vmul.f32 %v3446, %v3422
        %v3449 = vmul.f32 %v3446, %v3423
        %v3450 = vmul.f32 %v3446, %v3424
        %v3451 = vadd.f32 %v3417, %v3447
        %v3452 = vadd.f32 %v3418, %v3448
        %v3453 = vadd.f32 %v3419, %v3449
        %v3454 = vadd.f32 %v3420, %v3450
        %v3455 = vld [vmem:[%s814 + $0x2] sm:$0xff]
        %v3456 = vld [vmem:[%s814 + $0xa] sm:$0xff]
        %v3457 = vld [vmem:[%s814 + $0x12] sm:$0xff]
        %v3458 = vld [vmem:[%s814 + $0x1a] sm:$0xff]
        %s3459 = sld [smem:[#allocation5 + $0x84]]
        %v3460 = vstv %s3459
        %v3461 = vmul.f32 %v3460, %v3455
        %v3462 = vmul.f32 %v3460, %v3456
        %v3463 = vmul.f32 %v3460, %v3457
        %v3464 = vmul.f32 %v3460, %v3458
        %v3465 = vadd.f32 %v3431, %v3461
        %v3466 = vadd.f32 %v3432, %v3462
        %v3467 = vadd.f32 %v3433, %v3463
        %v3468 = vadd.f32 %v3434, %v3464
        %s3469 = sld [smem:[#allocation5 + $0x85]]
        %v3470 = vstv %s3469
        %v3471 = vmul.f32 %v3470, %v3455
        %v3472 = vmul.f32 %v3470, %v3456
        %v3473 = vmul.f32 %v3470, %v3457
        %v3474 = vmul.f32 %v3470, %v3458
        %v3475 = vadd.f32 %v3441, %v3471
        %v3476 = vadd.f32 %v3442, %v3472
        %v3477 = vadd.f32 %v3443, %v3473
        %v3478 = vadd.f32 %v3444, %v3474
        %s3479 = sld [smem:[#allocation5 + $0x86]]
        %v3480 = vstv %s3479
        %v3481 = vmul.f32 %v3480, %v3455
        %v3482 = vmul.f32 %v3480, %v3456
        %v3483 = vmul.f32 %v3480, %v3457
        %v3484 = vmul.f32 %v3480, %v3458
        %v3485 = vadd.f32 %v3451, %v3481
        %v3486 = vadd.f32 %v3452, %v3482
        %v3487 = vadd.f32 %v3453, %v3483
        %v3488 = vadd.f32 %v3454, %v3484
        %v3489 = vld [vmem:[%s910] sm:$0xff]
        %v3490 = vld [vmem:[%s910 + $0x8] sm:$0xff]
        %v3491 = vld [vmem:[%s910 + $0x10] sm:$0xff]
        %v3492 = vld [vmem:[%s910 + $0x18] sm:$0xff]
        %s3493 = sld [smem:[#allocation5 + $0x87]]
        %v3494 = vstv %s3493
        %v3495 = vmul.f32 %v3494, %v3489
        %v3496 = vmul.f32 %v3494, %v3490
        %v3497 = vmul.f32 %v3494, %v3491
        %v3498 = vmul.f32 %v3494, %v3492
        %v3499 = vadd.f32 %v3465, %v3495
        %v3500 = vadd.f32 %v3466, %v3496
        %v3501 = vadd.f32 %v3467, %v3497
        %v3502 = vadd.f32 %v3468, %v3498
        %s3503 = sld [smem:[#allocation5 + $0x88]]
        %v3504 = vstv %s3503
        %v3505 = vmul.f32 %v3504, %v3489
        %v3506 = vmul.f32 %v3504, %v3490
        %v3507 = vmul.f32 %v3504, %v3491
        %v3508 = vmul.f32 %v3504, %v3492
        %v3509 = vadd.f32 %v3475, %v3505
        %v3510 = vadd.f32 %v3476, %v3506
        %v3511 = vadd.f32 %v3477, %v3507
        %v3512 = vadd.f32 %v3478, %v3508
        %s3513 = sld [smem:[#allocation5 + $0x89]]
        %v3514 = vstv %s3513
        %v3515 = vmul.f32 %v3514, %v3489
        %v3516 = vmul.f32 %v3514, %v3490
        %v3517 = vmul.f32 %v3514, %v3491
        %v3518 = vmul.f32 %v3514, %v3492
        %v3519 = vadd.f32 %v3485, %v3515
        %v3520 = vadd.f32 %v3486, %v3516
        %v3521 = vadd.f32 %v3487, %v3517
        %v3522 = vadd.f32 %v3488, %v3518
        %v3523 = vld [vmem:[%s910 + $0x1] sm:$0xff]
        %v3524 = vld [vmem:[%s910 + $0x9] sm:$0xff]
        %v3525 = vld [vmem:[%s910 + $0x11] sm:$0xff]
        %v3526 = vld [vmem:[%s910 + $0x19] sm:$0xff]
        %s3527 = sld [smem:[#allocation5 + $0x8a]]
        %v3528 = vstv %s3527
        %v3529 = vmul.f32 %v3528, %v3523
        %v3530 = vmul.f32 %v3528, %v3524
        %v3531 = vmul.f32 %v3528, %v3525
        %v3532 = vmul.f32 %v3528, %v3526
        %v3533 = vadd.f32 %v3499, %v3529
        %v3534 = vadd.f32 %v3500, %v3530
        %v3535 = vadd.f32 %v3501, %v3531
        %v3536 = vadd.f32 %v3502, %v3532
        %s3537 = sld [smem:[#allocation5 + $0x8b]]
        %v3538 = vstv %s3537
        %v3539 = vmul.f32 %v3538, %v3523
        %v3540 = vmul.f32 %v3538, %v3524
        %v3541 = vmul.f32 %v3538, %v3525
        %v3542 = vmul.f32 %v3538, %v3526
        %v3543 = vadd.f32 %v3509, %v3539
        %v3544 = vadd.f32 %v3510, %v3540
        %v3545 = vadd.f32 %v3511, %v3541
        %v3546 = vadd.f32 %v3512, %v3542
        %s3547 = sld [smem:[#allocation5 + $0x8c]]
        %v3548 = vstv %s3547
        %v3549 = vmul.f32 %v3548, %v3523
        %v3550 = vmul.f32 %v3548, %v3524
        %v3551 = vmul.f32 %v3548, %v3525
        %v3552 = vmul.f32 %v3548, %v3526
        %v3553 = vadd.f32 %v3519, %v3549
        %v3554 = vadd.f32 %v3520, %v3550
        %v3555 = vadd.f32 %v3521, %v3551
        %v3556 = vadd.f32 %v3522, %v3552
        %v3557 = vld [vmem:[%s910 + $0x2] sm:$0xff]
        %v3558 = vld [vmem:[%s910 + $0xa] sm:$0xff]
        %v3559 = vld [vmem:[%s910 + $0x12] sm:$0xff]
        %v3560 = vld [vmem:[%s910 + $0x1a] sm:$0xff]
        %s3561 = sld [smem:[#allocation5 + $0x8d]]
        %v3562 = vstv %s3561
        %v3563 = vmul.f32 %v3562, %v3557
        %v3564 = vmul.f32 %v3562, %v3558
        %v3565 = vmul.f32 %v3562, %v3559
        %v3566 = vmul.f32 %v3562, %v3560
        %v3567 = vadd.f32 %v3533, %v3563
        %v3568 = vadd.f32 %v3534, %v3564
        %v3569 = vadd.f32 %v3535, %v3565
        %v3570 = vadd.f32 %v3536, %v3566
        %s3571 = sld [smem:[#allocation5 + $0x8e]]
        %v3572 = vstv %s3571
        %v3573 = vmul.f32 %v3572, %v3557
        %v3574 = vmul.f32 %v3572, %v3558
        %v3575 = vmul.f32 %v3572, %v3559
        %v3576 = vmul.f32 %v3572, %v3560
        %v3577 = vadd.f32 %v3543, %v3573
        %v3578 = vadd.f32 %v3544, %v3574
        %v3579 = vadd.f32 %v3545, %v3575
        %v3580 = vadd.f32 %v3546, %v3576
        %s3581 = sld [smem:[#allocation5 + $0x8f]]
        %v3582 = vstv %s3581
        %v3583 = vmul.f32 %v3582, %v3557
        %v3584 = vmul.f32 %v3582, %v3558
        %v3585 = vmul.f32 %v3582, %v3559
        %v3586 = vmul.f32 %v3582, %v3560
        %v3587 = vadd.f32 %v3553, %v3583
        %v3588 = vadd.f32 %v3554, %v3584
        %v3589 = vadd.f32 %v3555, %v3585
        %v3590 = vadd.f32 %v3556, %v3586
        %3595 = vrot.lane.b32.xlu0 %v3577, 127
        %v3596 = vpop.permute.xlu0 %3595
        %3597 = vrot.lane.b32.xlu0 %v3578, 127
        %v3598 = vpop.permute.xlu0 %3597
        %3599 = vrot.lane.b32.xlu0 %v3579, 127
        %v3600 = vpop.permute.xlu0 %3599
        %3601 = vrot.lane.b32.xlu0 %v3580, 127
        %v3602 = vpop.permute.xlu0 %3601
        %v3607 = vadd.f32 %v3567, %v3596
        %v3608 = vadd.f32 %v3568, %v3598
        %v3609 = vadd.f32 %v3569, %v3600
        %v3610 = vadd.f32 %v3570, %v3602
        %3615 = vrot.lane.b32.xlu0 %v3587, 126
        %v3616 = vpop.permute.xlu0 %3615
        %3617 = vrot.lane.b32.xlu0 %v3588, 126
        %v3618 = vpop.permute.xlu0 %3617
        %3619 = vrot.lane.b32.xlu0 %v3589, 126
        %v3620 = vpop.permute.xlu0 %3619
        %3621 = vrot.lane.b32.xlu0 %v3590, 126
        %v3622 = vpop.permute.xlu0 %3621
        %v3627 = vadd.f32 %v3607, %v3616
        %v3628 = vadd.f32 %v3608, %v3618
        %v3629 = vadd.f32 %v3609, %v3620
        %v3630 = vadd.f32 %v3610, %v3622
        %s3631 = sld [smem:[#allocation8 + $0x3]]
        %v3632 = vstv %s3631
        %v3633 = vadd.f32 %v3627, %v3632
        %v3634 = vadd.f32 %v3628, %v3632
        %v3635 = vadd.f32 %v3629, %v3632
        %v3636 = vadd.f32 %v3630, %v3632
        %v3637 = vmax.f32 %v3633, 0.0
        %v3638 = vmax.f32 %v3634, 0.0
        %v3639 = vmax.f32 %v3635, 0.0
        %v3640 = vmax.f32 %v3636, 0.0
        %v3641 = vld [vmem:[%s7] sm:$0xff]
        %v3642 = vld [vmem:[%s7 + $0x8] sm:$0xff]
        %v3643 = vld [vmem:[%s7 + $0x10] sm:$0xff]
        %v3644 = vld [vmem:[%s7 + $0x18] sm:$0xff]
        %v3645 = vld [vmem:[%s7 + $0x20] sm:$0xff]
        %v3646 = vld [vmem:[%s7 + $0x28] sm:$0xff]
        %v3647 = vld [vmem:[%s7 + $0x30] sm:$0xff]
        %v3648 = vld [vmem:[%s7 + $0x38] sm:$0xff]
        %v3649 = vld [vmem:[%s7 + $0x40] sm:$0x3]
        %v3651 = vsel %vm1383, %v3641, 0
        %v3654 = vsel %vm1383, %v3642, 0
        %v3657 = vsel %vm1383, %v3643, 0
        %v3660 = vsel %vm1383, %v3644, 0
        %v3663 = vsel %vm1383, %v3645, 0
        %v3666 = vsel %vm1383, %v3646, 0
        %v3669 = vsel %vm1383, %v3647, 0
        %v3672 = vsel %vm1383, %v3648, 0
        %v3675 = vsel %vm1383, %v3649, 0
        %3677 = vmatprep.subr.mxu0 0.0
        %3678 = vmatpush1.msra.mxu0 %v3637
        %3679 = vmatprep.subr.mxu0 0.0
        %3680 = vmatpush1.msra.mxu0 %v3638
        %3681 = vmatprep.subr.mxu0 0.0
        %3682 = vmatpush1.msra.mxu0 %v3639
        %3683 = vmatprep.subr.mxu0 0.0
        %3684 = vmatpush1.msra.mxu0 %v3640
        %3685 = vmatprep.subr.mxu0 0.0
        %3686 = vmatpush1.msra.mxu0 0.0
        %3687 = vmatprep.subr.mxu0 0.0
        %3688 = vmatpush1.msra.mxu0 0.0
        %3689 = vmatprep.subr.mxu0 0.0
        %3690 = vmatpush1.msra.mxu0 0.0
        %3691 = vmatprep.subr.mxu0 0.0
        %3692 = vmatpush1.msra.mxu0 0.0
        %3693 = vmatprep.subr.mxu0 0.0
        %3694 = vmatpush1.msra.mxu0 0.0
        %3695 = vmatprep.subr.mxu0 0.0
        %3696 = vmatpush1.msra.mxu0 0.0
        %3697 = vmatprep.subr.mxu0 0.0
        %3698 = vmatpush1.msra.mxu0 0.0
        %3699 = vmatprep.subr.mxu0 0.0
        %3700 = vmatpush1.msra.mxu0 0.0
        %3701 = vmatprep.subr.mxu0 0.0
        %3702 = vmatpush1.msra.mxu0 0.0
        %3703 = vmatprep.subr.mxu0 0.0
        %3704 = vmatpush1.msra.mxu0 0.0
        %3705 = vmatprep.subr.mxu0 0.0
        %3706 = vmatpush1.msra.mxu0 0.0
        %3707 = vmatprep.subr.mxu0 0.0
        %3708 = vmatpush1.msra.mxu0 0.0
        %3709 = vmatprep.subr.mxu0 0.0
        %3710 = vmatpush1.msra.mxu0 0.0
        %3711 = vmatprep.subr.mxu0 0.0
        %3712 = vmatpush1.msra.mxu0 0.0
        %3713 = vmatprep.subr.mxu0 0.0
        %3714 = vmatpush1.msra.mxu0 0.0
        %3715 = vmatprep.subr.mxu0 0.0
        %3716 = vmatpush1.msra.mxu0 0.0
        %3717 = vmatprep.subr.mxu0 0.0
        %3718 = vmatpush1.msra.mxu0 0.0
        %3719 = vmatprep.subr.mxu0 0.0
        %3720 = vmatpush1.msra.mxu0 0.0
        %3721 = vmatprep.subr.mxu0 0.0
        %3722 = vmatpush1.msra.mxu0 0.0
        %3723 = vmatprep.subr.mxu0 0.0
        %3724 = vmatpush1.msra.mxu0 0.0
        %3725 = vmatprep.subr.mxu0 0.0
        %3726 = vmatpush1.msra.mxu0 0.0
        %3727 = vmatprep.subr.mxu0 0.0
        %3728 = vmatpush1.msra.mxu0 0.0
        %3729 = vmatprep.subr.mxu0 0.0
        %3730 = vmatpush1.msra.mxu0 0.0
        %3731 = vmatprep.subr.mxu0 0.0
        %3732 = vmatpush1.msra.mxu0 0.0
        %3733 = vmatprep.subr.mxu0 0.0
        %3734 = vmatpush1.msra.mxu0 0.0
        %3735 = vmatprep.subr.mxu0 0.0
        %3736 = vmatpush1.msra.mxu0 0.0
        %3737 = vmatprep.subr.mxu0 0.0
        %3738 = vmatpush1.msra.mxu0 0.0
        %3739 = vmatprep.subr.mxu0 0.0
        %3740 = vmatpush1.msra.mxu0 0.0
        %3741 = vmatprep.mubr.f32.mxu0 0.0
        %3742 = vmatmul.mubr.f32.gmra.mrb[0].mxu0 %v3651
        %v3743 = vpop.f32.mrb[0].mxu0
        %v3744 = vadd.f32 0.0, %v3743
        %v3745 = vpop.f32.mrb[0].mxu0
        %3746 = vmatprep.mubr.f32.mxu0 0.0
        %3747 = vmatmul.mubr.f32.gmra.mrb[0].mxu0 %v3654
        %v3748 = vpop.f32.mrb[0].mxu0
        %v3749 = vadd.f32 0.0, %v3748
        %v3750 = vpop.f32.mrb[0].mxu0
        %3751 = vmatprep.mubr.f32.mxu0 0.0
        %3752 = vmatmul.mubr.f32.gmra.mrb[0].mxu0 %v3657
        %v3753 = vpop.f32.mrb[0].mxu0
        %v3754 = vadd.f32 0.0, %v3753
        %v3755 = vpop.f32.mrb[0].mxu0
        %3756 = vmatprep.mubr.f32.mxu0 0.0
        %3757 = vmatmul.mubr.f32.gmra.mrb[0].mxu0 %v3660
        %v3758 = vpop.f32.mrb[0].mxu0
        %v3759 = vadd.f32 0.0, %v3758
        %v3760 = vpop.f32.mrb[0].mxu0
        %3761 = vmatprep.mubr.f32.mxu0 0.0
        %3762 = vmatmul.mubr.f32.gmra.mrb[0].mxu0 %v3663
        %v3763 = vpop.f32.mrb[0].mxu0
        %v3764 = vadd.f32 0.0, %v3763
        %v3765 = vpop.f32.mrb[0].mxu0
        %3766 = vmatprep.mubr.f32.mxu0 0.0
        %3767 = vmatmul.mubr.f32.gmra.mrb[0].mxu0 %v3666
        %v3768 = vpop.f32.mrb[0].mxu0
        %v3769 = vadd.f32 0.0, %v3768
        %v3770 = vpop.f32.mrb[0].mxu0
        %3771 = vmatprep.mubr.f32.mxu0 0.0
        %3772 = vmatmul.mubr.f32.gmra.mrb[0].mxu0 %v3669
        %v3773 = vpop.f32.mrb[0].mxu0
        %v3774 = vadd.f32 0.0, %v3773
        %v3775 = vpop.f32.mrb[0].mxu0
        %3776 = vmatprep.mubr.f32.mxu0 0.0
        %3777 = vmatmul.mubr.f32.gmra.mrb[0].mxu0 %v3672
        %v3778 = vpop.f32.mrb[0].mxu0
        %v3779 = vadd.f32 0.0, %v3778
        %v3780 = vpop.f32.mrb[0].mxu0
        %3781 = vmatprep.mubr.f32.mxu0 0.0
        %3782 = vmatmul.mubr.f32.gmra.mrb[0].mxu0 %v3675
        %v3783 = vpop.f32.mrb[0].mxu0
        %v3784 = vadd.f32 0.0, %v3783
        %v3785 = vpop.f32.mrb[0].mxu0
        %3786 = vdwg.mxu0
        %v3787 = vld [vmem:[%s8] sm:$0xff]
        %v3788 = vld [vmem:[%s8 + $0x8] sm:$0xff]
        %v3789 = vld [vmem:[%s8 + $0x10] sm:$0xff]
        %v3790 = vld [vmem:[%s8 + $0x18] sm:$0xff]
        %v3792 = vsel %vm1383, %v3744, 0
        %v3795 = vsel %vm1383, %v3749, 0
        %v3798 = vsel %vm1383, %v3754, 0
        %v3801 = vsel %vm1383, %v3759, 0
        %v3804 = vsel %vm1383, %v3764, 0
        %v3807 = vsel %vm1383, %v3769, 0
        %v3810 = vsel %vm1383, %v3774, 0
        %v3813 = vsel %vm1383, %v3779, 0
        %v3816 = vsel %vm1383, %v3784, 0
        %3818 = vmatprep.subr.mxu0 0.0
        %3819 = vmatpush1.msra.mxu0 %v3787
        %3820 = vmatprep.subr.mxu0 0.0
        %3821 = vmatpush1.msra.mxu0 %v3788
        %3822 = vmatprep.subr.mxu0 0.0
        %3823 = vmatpush1.msra.mxu0 %v3789
        %3824 = vmatprep.subr.mxu0 0.0
        %3825 = vmatpush1.msra.mxu0 %v3790
        %3826 = vmatprep.subr.mxu0 0.0
        %3827 = vmatpush1.msra.mxu0 0.0
        %3828 = vmatprep.subr.mxu0 0.0
        %3829 = vmatpush1.msra.mxu0 0.0
        %3830 = vmatprep.subr.mxu0 0.0
        %3831 = vmatpush1.msra.mxu0 0.0
        %3832 = vmatprep.subr.mxu0 0.0
        %3833 = vmatpush1.msra.mxu0 0.0
        %3834 = vmatprep.subr.mxu0 0.0
        %3835 = vmatpush1.msra.mxu0 0.0
        %3836 = vmatprep.subr.mxu0 0.0
        %3837 = vmatpush1.msra.mxu0 0.0
        %3838 = vmatprep.subr.mxu0 0.0
        %3839 = vmatpush1.msra.mxu0 0.0
        %3840 = vmatprep.subr.mxu0 0.0
        %3841 = vmatpush1.msra.mxu0 0.0
        %3842 = vmatprep.subr.mxu0 0.0
        %3843 = vmatpush1.msra.mxu0 0.0
        %3844 = vmatprep.subr.mxu0 0.0
        %3845 = vmatpush1.msra.mxu0 0.0
        %3846 = vmatprep.subr.mxu0 0.0
        %3847 = vmatpush1.msra.mxu0 0.0
        %3848 = vmatprep.subr.mxu0 0.0
        %3849 = vmatpush1.msra.mxu0 0.0
        %3850 = vmatprep.subr.mxu0 0.0
        %3851 = vmatpush1.msra.mxu0 0.0
        %3852 = vmatprep.subr.mxu0 0.0
        %3853 = vmatpush1.msra.mxu0 0.0
        %3854 = vmatprep.subr.mxu0 0.0
        %3855 = vmatpush1.msra.mxu0 0.0
        %3856 = vmatprep.subr.mxu0 0.0
        %3857 = vmatpush1.msra.mxu0 0.0
        %3858 = vmatprep.subr.mxu0 0.0
        %3859 = vmatpush1.msra.mxu0 0.0
        %3860 = vmatprep.subr.mxu0 0.0
        %3861 = vmatpush1.msra.mxu0 0.0
        %3862 = vmatprep.subr.mxu0 0.0
        %3863 = vmatpush1.msra.mxu0 0.0
        %3864 = vmatprep.subr.mxu0 0.0
        %3865 = vmatpush1.msra.mxu0 0.0
        %3866 = vmatprep.subr.mxu0 0.0
        %3867 = vmatpush1.msra.mxu0 0.0
        %3868 = vmatprep.subr.mxu0 0.0
        %3869 = vmatpush1.msra.mxu0 0.0
        %3870 = vmatprep.subr.mxu0 0.0
        %3871 = vmatpush1.msra.mxu0 0.0
        %3872 = vmatprep.subr.mxu0 0.0
        %3873 = vmatpush1.msra.mxu0 0.0
        %3874 = vmatprep.subr.mxu0 0.0
        %3875 = vmatpush1.msra.mxu0 0.0
        %3876 = vmatprep.subr.mxu0 0.0
        %3877 = vmatpush1.msra.mxu0 0.0
        %3878 = vmatprep.subr.mxu0 0.0
        %3879 = vmatpush1.msra.mxu0 0.0
        %3880 = vmatprep.subr.mxu0 0.0
        %3881 = vmatpush1.msra.mxu0 0.0
        %3882 = vmatprep.mubr.f32.mxu0 0.0
        %3883 = vmatmul.mubr.f32.gmra.mrb[0].mxu0 %v3792
        %v3884 = vpop.f32.mrb[0].mxu0
        %v3885 = vadd.f32 0.0, %v3884
        %v3886 = vpop.f32.mrb[0].mxu0
        %3887 = vmatprep.mubr.f32.mxu0 0.0
        %3888 = vmatmul.mubr.f32.gmra.mrb[0].mxu0 %v3795
        %v3889 = vpop.f32.mrb[0].mxu0
        %v3890 = vadd.f32 0.0, %v3889
        %v3891 = vpop.f32.mrb[0].mxu0
        %3892 = vmatprep.mubr.f32.mxu0 0.0
        %3893 = vmatmul.mubr.f32.gmra.mrb[0].mxu0 %v3798
        %v3894 = vpop.f32.mrb[0].mxu0
        %v3895 = vadd.f32 0.0, %v3894
        %v3896 = vpop.f32.mrb[0].mxu0
        %3897 = vmatprep.mubr.f32.mxu0 0.0
        %3898 = vmatmul.mubr.f32.gmra.mrb[0].mxu0 %v3801
        %v3899 = vpop.f32.mrb[0].mxu0
        %v3900 = vadd.f32 0.0, %v3899
        %v3901 = vpop.f32.mrb[0].mxu0
        %3902 = vmatprep.mubr.f32.mxu0 0.0
        %3903 = vmatmul.mubr.f32.gmra.mrb[0].mxu0 %v3804
        %v3904 = vpop.f32.mrb[0].mxu0
        %v3905 = vadd.f32 0.0, %v3904
        %v3906 = vpop.f32.mrb[0].mxu0
        %3907 = vmatprep.mubr.f32.mxu0 0.0
        %3908 = vmatmul.mubr.f32.gmra.mrb[0].mxu0 %v3807
        %v3909 = vpop.f32.mrb[0].mxu0
        %v3910 = vadd.f32 0.0, %v3909
        %v3911 = vpop.f32.mrb[0].mxu0
        %3912 = vmatprep.mubr.f32.mxu0 0.0
        %3913 = vmatmul.mubr.f32.gmra.mrb[0].mxu0 %v3810
        %v3914 = vpop.f32.mrb[0].mxu0
        %v3915 = vadd.f32 0.0, %v3914
        %v3916 = vpop.f32.mrb[0].mxu0
        %3917 = vmatprep.mubr.f32.mxu0 0.0
        %3918 = vmatmul.mubr.f32.gmra.mrb[0].mxu0 %v3813
        %v3919 = vpop.f32.mrb[0].mxu0
        %v3920 = vadd.f32 0.0, %v3919
        %v3921 = vpop.f32.mrb[0].mxu0
        %3922 = vmatprep.mubr.f32.mxu0 0.0
        %3923 = vmatmul.mubr.f32.gmra.mrb[0].mxu0 %v3816
        %v3924 = vpop.f32.mrb[0].mxu0
        %v3925 = vadd.f32 0.0, %v3924
        %v3926 = vpop.f32.mrb[0].mxu0
        %3927 = vdwg.mxu0
        %s3928 = scalar_lea.vmem [#allocation3], 216
        %3929 = vst.msk [vmem:[%s3928] sm:$0xff] %vm1662, %v3885
        %3930 = vst.msk [vmem:[%s3928 + $0x8] sm:$0xff] %vm1662, %v3890
        %3931 = vst.msk [vmem:[%s3928 + $0x10] sm:$0xff] %vm1662, %v3895
        %3932 = vst.msk [vmem:[%s3928 + $0x18] sm:$0xff] %vm1662, %v3900
        %3933 = vst.msk [vmem:[%s3928 + $0x20] sm:$0xff] %vm1662, %v3905
        %3934 = vst.msk [vmem:[%s3928 + $0x28] sm:$0xff] %vm1662, %v3910
        %3935 = vst.msk [vmem:[%s3928 + $0x30] sm:$0xff] %vm1662, %v3915
        %3936 = vst.msk [vmem:[%s3928 + $0x38] sm:$0xff] %vm1662, %v3920
        %3937 = vst.msk [vmem:[%s3928 + $0x40] sm:$0x3] %vm1671, %v3925
        %v3938 = vld [vmem:[#allocation3] sm:$0xff]
        %v3939 = vld [vmem:[#allocation3 + $0x8] sm:$0xff]
        %v3940 = vld [vmem:[#allocation3 + $0x10] sm:$0xff]
        %v3941 = vld [vmem:[#allocation3 + $0x18] sm:$0xff]
        %v3942 = vld [vmem:[#allocation3 + $0x20] sm:$0xff]
        %v3943 = vld [vmem:[#allocation3 + $0x28] sm:$0xff]
        %v3944 = vld [vmem:[#allocation3 + $0x30] sm:$0xff]
        %v3945 = vld [vmem:[#allocation3 + $0x38] sm:$0xff]
        %s3946 = sld [smem:[#allocation10]]
        %v3947 = vstv %s3946
        %v3948 = vmul.f32 %v3947, %v3938
        %v3949 = vmul.f32 %v3947, %v3939
        %v3950 = vmul.f32 %v3947, %v3940
        %v3951 = vmul.f32 %v3947, %v3941
        %v3952 = vmul.f32 %v3947, %v3942
        %v3953 = vmul.f32 %v3947, %v3943
        %v3954 = vmul.f32 %v3947, %v3944
        %v3955 = vmul.f32 %v3947, %v3945
        %v3956 = vadd.f32 %v3948, 0.0
        %v3957 = vadd.f32 %v3949, 0.0
        %v3958 = vadd.f32 %v3950, 0.0
        %v3959 = vadd.f32 %v3951, 0.0
        %v3960 = vadd.f32 %v3952, 0.0
        %v3961 = vadd.f32 %v3953, 0.0
        %v3962 = vadd.f32 %v3954, 0.0
        %v3963 = vadd.f32 %v3955, 0.0
        %s3964 = sld [smem:[#allocation10 + $0x1]]
        %v3965 = vstv %s3964
        %v3966 = vmul.f32 %v3965, %v3938
        %v3967 = vmul.f32 %v3965, %v3939
        %v3968 = vmul.f32 %v3965, %v3940
        %v3969 = vmul.f32 %v3965, %v3941
        %v3970 = vmul.f32 %v3965, %v3942
        %v3971 = vmul.f32 %v3965, %v3943
        %v3972 = vmul.f32 %v3965, %v3944
        %v3973 = vmul.f32 %v3965, %v3945
        %v3974 = vadd.f32 %v3966, 0.0
        %v3975 = vadd.f32 %v3967, 0.0
        %v3976 = vadd.f32 %v3968, 0.0
        %v3977 = vadd.f32 %v3969, 0.0
        %v3978 = vadd.f32 %v3970, 0.0
        %v3979 = vadd.f32 %v3971, 0.0
        %v3980 = vadd.f32 %v3972, 0.0
        %v3981 = vadd.f32 %v3973, 0.0
        %s3982 = sld [smem:[#allocation10 + $0x2]]
        %v3983 = vstv %s3982
        %v3984 = vmul.f32 %v3983, %v3938
        %v3985 = vmul.f32 %v3983, %v3939
        %v3986 = vmul.f32 %v3983, %v3940
        %v3987 = vmul.f32 %v3983, %v3941
        %v3988 = vmul.f32 %v3983, %v3942
        %v3989 = vmul.f32 %v3983, %v3943
        %v3990 = vmul.f32 %v3983, %v3944
        %v3991 = vmul.f32 %v3983, %v3945
        %v3992 = vadd.f32 %v3984, 0.0
        %v3993 = vadd.f32 %v3985, 0.0
        %v3994 = vadd.f32 %v3986, 0.0
        %v3995 = vadd.f32 %v3987, 0.0
        %v3996 = vadd.f32 %v3988, 0.0
        %v3997 = vadd.f32 %v3989, 0.0
        %v3998 = vadd.f32 %v3990, 0.0
        %v3999 = vadd.f32 %v3991, 0.0
        %v4000 = vld [vmem:[#allocation3 + $0x1] sm:$0xff]
        %v4001 = vld [vmem:[#allocation3 + $0x9] sm:$0xff]
        %v4002 = vld [vmem:[#allocation3 + $0x11] sm:$0xff]
        %v4003 = vld [vmem:[#allocation3 + $0x19] sm:$0xff]
        %v4004 = vld [vmem:[#allocation3 + $0x21] sm:$0xff]
        %v4005 = vld [vmem:[#allocation3 + $0x29] sm:$0xff]
        %v4006 = vld [vmem:[#allocation3 + $0x31] sm:$0xff]
        %v4007 = vld [vmem:[#allocation3 + $0x39] sm:$0xff]
        %s4008 = sld [smem:[#allocation10 + $0x3]]
        %v4009 = vstv %s4008
        %v4010 = vmul.f32 %v4009, %v4000
        %v4011 = vmul.f32 %v4009, %v4001
        %v4012 = vmul.f32 %v4009, %v4002
        %v4013 = vmul.f32 %v4009, %v4003
        %v4014 = vmul.f32 %v4009, %v4004
        %v4015 = vmul.f32 %v4009, %v4005
        %v4016 = vmul.f32 %v4009, %v4006
        %v4017 = vmul.f32 %v4009, %v4007
        %v4018 = vadd.f32 %v3956, %v4010
        %v4019 = vadd.f32 %v3957, %v4011
        %v4020 = vadd.f32 %v3958, %v4012
        %v4021 = vadd.f32 %v3959, %v4013
        %v4022 = vadd.f32 %v3960, %v4014
        %v4023 = vadd.f32 %v3961, %v4015
        %v4024 = vadd.f32 %v3962, %v4016
        %v4025 = vadd.f32 %v3963, %v4017
        %s4026 = sld [smem:[#allocation10 + $0x4]]
        %v4027 = vstv %s4026
        %v4028 = vmul.f32 %v4027, %v4000
        %v4029 = vmul.f32 %v4027, %v4001
        %v4030 = vmul.f32 %v4027, %v4002
        %v4031 = vmul.f32 %v4027, %v4003
        %v4032 = vmul.f32 %v4027, %v4004
        %v4033 = vmul.f32 %v4027, %v4005
        %v4034 = vmul.f32 %v4027, %v4006
        %v4035 = vmul.f32 %v4027, %v4007
        %v4036 = vadd.f32 %v3974, %v4028
        %v4037 = vadd.f32 %v3975, %v4029
        %v4038 = vadd.f32 %v3976, %v4030
        %v4039 = vadd.f32 %v3977, %v4031
        %v4040 = vadd.f32 %v3978, %v4032
        %v4041 = vadd.f32 %v3979, %v4033
        %v4042 = vadd.f32 %v3980, %v4034
        %v4043 = vadd.f32 %v3981, %v4035
        %s4044 = sld [smem:[#allocation10 + $0x5]]
        %v4045 = vstv %s4044
        %v4046 = vmul.f32 %v4045, %v4000
        %v4047 = vmul.f32 %v4045, %v4001
        %v4048 = vmul.f32 %v4045, %v4002
        %v4049 = vmul.f32 %v4045, %v4003
        %v4050 = vmul.f32 %v4045, %v4004
        %v4051 = vmul.f32 %v4045, %v4005
        %v4052 = vmul.f32 %v4045, %v4006
        %v4053 = vmul.f32 %v4045, %v4007
        %v4054 = vadd.f32 %v3992, %v4046
        %v4055 = vadd.f32 %v3993, %v4047
        %v4056 = vadd.f32 %v3994, %v4048
        %v4057 = vadd.f32 %v3995, %v4049
        %v4058 = vadd.f32 %v3996, %v4050
        %v4059 = vadd.f32 %v3997, %v4051
        %v4060 = vadd.f32 %v3998, %v4052
        %v4061 = vadd.f32 %v3999, %v4053
        %v4062 = vld [vmem:[#allocation3 + $0x2] sm:$0xff]
        %v4063 = vld [vmem:[#allocation3 + $0xa] sm:$0xff]
        %v4064 = vld [vmem:[#allocation3 + $0x12] sm:$0xff]
        %v4065 = vld [vmem:[#allocation3 + $0x1a] sm:$0xff]
        %v4066 = vld [vmem:[#allocation3 + $0x22] sm:$0xff]
        %v4067 = vld [vmem:[#allocation3 + $0x2a] sm:$0xff]
        %v4068 = vld [vmem:[#allocation3 + $0x32] sm:$0xff]
        %v4069 = vld [vmem:[#allocation3 + $0x3a] sm:$0xff]
        %s4070 = sld [smem:[#allocation10 + $0x6]]
        %v4071 = vstv %s4070
        %v4072 = vmul.f32 %v4071, %v4062
        %v4073 = vmul.f32 %v4071, %v4063
        %v4074 = vmul.f32 %v4071, %v4064
        %v4075 = vmul.f32 %v4071, %v4065
        %v4076 = vmul.f32 %v4071, %v4066
        %v4077 = vmul.f32 %v4071, %v4067
        %v4078 = vmul.f32 %v4071, %v4068
        %v4079 = vmul.f32 %v4071, %v4069
        %v4080 = vadd.f32 %v4018, %v4072
        %v4081 = vadd.f32 %v4019, %v4073
        %v4082 = vadd.f32 %v4020, %v4074
        %v4083 = vadd.f32 %v4021, %v4075
        %v4084 = vadd.f32 %v4022, %v4076
        %v4085 = vadd.f32 %v4023, %v4077
        %v4086 = vadd.f32 %v4024, %v4078
        %v4087 = vadd.f32 %v4025, %v4079
        %s4088 = sld [smem:[#allocation10 + $0x7]]
        %v4089 = vstv %s4088
        %v4090 = vmul.f32 %v4089, %v4062
        %v4091 = vmul.f32 %v4089, %v4063
        %v4092 = vmul.f32 %v4089, %v4064
        %v4093 = vmul.f32 %v4089, %v4065
        %v4094 = vmul.f32 %v4089, %v4066
        %v4095 = vmul.f32 %v4089, %v4067
        %v4096 = vmul.f32 %v4089, %v4068
        %v4097 = vmul.f32 %v4089, %v4069
        %v4098 = vadd.f32 %v4036, %v4090
        %v4099 = vadd.f32 %v4037, %v4091
        %v4100 = vadd.f32 %v4038, %v4092
        %v4101 = vadd.f32 %v4039, %v4093
        %v4102 = vadd.f32 %v4040, %v4094
        %v4103 = vadd.f32 %v4041, %v4095
        %v4104 = vadd.f32 %v4042, %v4096
        %v4105 = vadd.f32 %v4043, %v4097
        %s4106 = sld [smem:[#allocation10 + $0x8]]
        %v4107 = vstv %s4106
        %v4108 = vmul.f32 %v4107, %v4062
        %v4109 = vmul.f32 %v4107, %v4063
        %v4110 = vmul.f32 %v4107, %v4064
        %v4111 = vmul.f32 %v4107, %v4065
        %v4112 = vmul.f32 %v4107, %v4066
        %v4113 = vmul.f32 %v4107, %v4067
        %v4114 = vmul.f32 %v4107, %v4068
        %v4115 = vmul.f32 %v4107, %v4069
        %v4116 = vadd.f32 %v4054, %v4108
        %v4117 = vadd.f32 %v4055, %v4109
        %v4118 = vadd.f32 %v4056, %v4110
        %v4119 = vadd.f32 %v4057, %v4111
        %v4120 = vadd.f32 %v4058, %v4112
        %v4121 = vadd.f32 %v4059, %v4113
        %v4122 = vadd.f32 %v4060, %v4114
        %v4123 = vadd.f32 %v4061, %v4115
        %v4124 = vld [vmem:[%s2418] sm:$0xff]
        %v4125 = vld [vmem:[%s2418 + $0x8] sm:$0xff]
        %v4126 = vld [vmem:[%s2418 + $0x10] sm:$0xff]
        %v4127 = vld [vmem:[%s2418 + $0x18] sm:$0xff]
        %v4128 = vld [vmem:[%s2418 + $0x20] sm:$0xff]
        %v4129 = vld [vmem:[%s2418 + $0x28] sm:$0xff]
        %v4130 = vld [vmem:[%s2418 + $0x30] sm:$0xff]
        %v4131 = vld [vmem:[%s2418 + $0x38] sm:$0xff]
        %s4132 = sld [smem:[#allocation10 + $0x9]]
        %v4133 = vstv %s4132
        %v4134 = vmul.f32 %v4133, %v4124
        %v4135 = vmul.f32 %v4133, %v4125
        %v4136 = vmul.f32 %v4133, %v4126
        %v4137 = vmul.f32 %v4133, %v4127
        %v4138 = vmul.f32 %v4133, %v4128
        %v4139 = vmul.f32 %v4133, %v4129
        %v4140 = vmul.f32 %v4133, %v4130
        %v4141 = vmul.f32 %v4133, %v4131
        %v4142 = vadd.f32 %v4080, %v4134
        %v4143 = vadd.f32 %v4081, %v4135
        %v4144 = vadd.f32 %v4082, %v4136
        %v4145 = vadd.f32 %v4083, %v4137
        %v4146 = vadd.f32 %v4084, %v4138
        %v4147 = vadd.f32 %v4085, %v4139
        %v4148 = vadd.f32 %v4086, %v4140
        %v4149 = vadd.f32 %v4087, %v4141
        %s4150 = sld [smem:[#allocation10 + $0xa]]
        %v4151 = vstv %s4150
        %v4152 = vmul.f32 %v4151, %v4124
        %v4153 = vmul.f32 %v4151, %v4125
        %v4154 = vmul.f32 %v4151, %v4126
        %v4155 = vmul.f32 %v4151, %v4127
        %v4156 = vmul.f32 %v4151, %v4128
        %v4157 = vmul.f32 %v4151, %v4129
        %v4158 = vmul.f32 %v4151, %v4130
        %v4159 = vmul.f32 %v4151, %v4131
        %v4160 = vadd.f32 %v4098, %v4152
        %v4161 = vadd.f32 %v4099, %v4153
        %v4162 = vadd.f32 %v4100, %v4154
        %v4163 = vadd.f32 %v4101, %v4155
        %v4164 = vadd.f32 %v4102, %v4156
        %v4165 = vadd.f32 %v4103, %v4157
        %v4166 = vadd.f32 %v4104, %v4158
        %v4167 = vadd.f32 %v4105, %v4159
        %s4168 = sld [smem:[#allocation10 + $0xb]]
        %v4169 = vstv %s4168
        %v4170 = vmul.f32 %v4169, %v4124
        %v4171 = vmul.f32 %v4169, %v4125
        %v4172 = vmul.f32 %v4169, %v4126
        %v4173 = vmul.f32 %v4169, %v4127
        %v4174 = vmul.f32 %v4169, %v4128
        %v4175 = vmul.f32 %v4169, %v4129
        %v4176 = vmul.f32 %v4169, %v4130
        %v4177 = vmul.f32 %v4169, %v4131
        %v4178 = vadd.f32 %v4116, %v4170
        %v4179 = vadd.f32 %v4117, %v4171
        %v4180 = vadd.f32 %v4118, %v4172
        %v4181 = vadd.f32 %v4119, %v4173
        %v4182 = vadd.f32 %v4120, %v4174
        %v4183 = vadd.f32 %v4121, %v4175
        %v4184 = vadd.f32 %v4122, %v4176
        %v4185 = vadd.f32 %v4123, %v4177
        %v4186 = vld [vmem:[%s2418 + $0x1] sm:$0xff]
        %v4187 = vld [vmem:[%s2418 + $0x9] sm:$0xff]
        %v4188 = vld [vmem:[%s2418 + $0x11] sm:$0xff]
        %v4189 = vld [vmem:[%s2418 + $0x19] sm:$0xff]
        %v4190 = vld [vmem:[%s2418 + $0x21] sm:$0xff]
        %v4191 = vld [vmem:[%s2418 + $0x29] sm:$0xff]
        %v4192 = vld [vmem:[%s2418 + $0x31] sm:$0xff]
        %v4193 = vld [vmem:[%s2418 + $0x39] sm:$0xff]
        %s4194 = sld [smem:[#allocation10 + $0xc]]
        %v4195 = vstv %s4194
        %v4196 = vmul.f32 %v4195, %v4186
        %v4197 = vmul.f32 %v4195, %v4187
        %v4198 = vmul.f32 %v4195, %v4188
        %v4199 = vmul.f32 %v4195, %v4189
        %v4200 = vmul.f32 %v4195, %v4190
        %v4201 = vmul.f32 %v4195, %v4191
        %v4202 = vmul.f32 %v4195, %v4192
        %v4203 = vmul.f32 %v4195, %v4193
        %v4204 = vadd.f32 %v4142, %v4196
        %v4205 = vadd.f32 %v4143, %v4197
        %v4206 = vadd.f32 %v4144, %v4198
        %v4207 = vadd.f32 %v4145, %v4199
        %v4208 = vadd.f32 %v4146, %v4200
        %v4209 = vadd.f32 %v4147, %v4201
        %v4210 = vadd.f32 %v4148, %v4202
        %v4211 = vadd.f32 %v4149, %v4203
        %s4212 = sld [smem:[#allocation10 + $0xd]]
        %v4213 = vstv %s4212
        %v4214 = vmul.f32 %v4213, %v4186
        %v4215 = vmul.f32 %v4213, %v4187
        %v4216 = vmul.f32 %v4213, %v4188
        %v4217 = vmul.f32 %v4213, %v4189
        %v4218 = vmul.f32 %v4213, %v4190
        %v4219 = vmul.f32 %v4213, %v4191
        %v4220 = vmul.f32 %v4213, %v4192
        %v4221 = vmul.f32 %v4213, %v4193
        %v4222 = vadd.f32 %v4160, %v4214
        %v4223 = vadd.f32 %v4161, %v4215
        %v4224 = vadd.f32 %v4162, %v4216
        %v4225 = vadd.f32 %v4163, %v4217
        %v4226 = vadd.f32 %v4164, %v4218
        %v4227 = vadd.f32 %v4165, %v4219
        %v4228 = vadd.f32 %v4166, %v4220
        %v4229 = vadd.f32 %v4167, %v4221
        %s4230 = sld [smem:[#allocation10 + $0xe]]
        %v4231 = vstv %s4230
        %v4232 = vmul.f32 %v4231, %v4186
        %v4233 = vmul.f32 %v4231, %v4187
        %v4234 = vmul.f32 %v4231, %v4188
        %v4235 = vmul.f32 %v4231, %v4189
        %v4236 = vmul.f32 %v4231, %v4190
        %v4237 = vmul.f32 %v4231, %v4191
        %v4238 = vmul.f32 %v4231, %v4192
        %v4239 = vmul.f32 %v4231, %v4193
        %v4240 = vadd.f32 %v4178, %v4232
        %v4241 = vadd.f32 %v4179, %v4233
        %v4242 = vadd.f32 %v4180, %v4234
        %v4243 = vadd.f32 %v4181, %v4235
        %v4244 = vadd.f32 %v4182, %v4236
        %v4245 = vadd.f32 %v4183, %v4237
        %v4246 = vadd.f32 %v4184, %v4238
        %v4247 = vadd.f32 %v4185, %v4239
        %v4248 = vld [vmem:[%s2418 + $0x2] sm:$0xff]
        %v4249 = vld [vmem:[%s2418 + $0xa] sm:$0xff]
        %v4250 = vld [vmem:[%s2418 + $0x12] sm:$0xff]
        %v4251 = vld [vmem:[%s2418 + $0x1a] sm:$0xff]
        %v4252 = vld [vmem:[%s2418 + $0x22] sm:$0xff]
        %v4253 = vld [vmem:[%s2418 + $0x2a] sm:$0xff]
        %v4254 = vld [vmem:[%s2418 + $0x32] sm:$0xff]
        %v4255 = vld [vmem:[%s2418 + $0x3a] sm:$0xff]
        %s4256 = sld [smem:[#allocation10 + $0xf]]
        %v4257 = vstv %s4256
        %v4258 = vmul.f32 %v4257, %v4248
        %v4259 = vmul.f32 %v4257, %v4249
        %v4260 = vmul.f32 %v4257, %v4250
        %v4261 = vmul.f32 %v4257, %v4251
        %v4262 = vmul.f32 %v4257, %v4252
        %v4263 = vmul.f32 %v4257, %v4253
        %v4264 = vmul.f32 %v4257, %v4254
        %v4265 = vmul.f32 %v4257, %v4255
        %v4266 = vadd.f32 %v4204, %v4258
        %v4267 = vadd.f32 %v4205, %v4259
        %v4268 = vadd.f32 %v4206, %v4260
        %v4269 = vadd.f32 %v4207, %v4261
        %v4270 = vadd.f32 %v4208, %v4262
        %v4271 = vadd.f32 %v4209, %v4263
        %v4272 = vadd.f32 %v4210, %v4264
        %v4273 = vadd.f32 %v4211, %v4265
        %s4274 = sld [smem:[#allocation10 + $0x10]]
        %v4275 = vstv %s4274
        %v4276 = vmul.f32 %v4275, %v4248
        %v4277 = vmul.f32 %v4275, %v4249
        %v4278 = vmul.f32 %v4275, %v4250
        %v4279 = vmul.f32 %v4275, %v4251
        %v4280 = vmul.f32 %v4275, %v4252
        %v4281 = vmul.f32 %v4275, %v4253
        %v4282 = vmul.f32 %v4275, %v4254
        %v4283 = vmul.f32 %v4275, %v4255
        %v4284 = vadd.f32 %v4222, %v4276
        %v4285 = vadd.f32 %v4223, %v4277
        %v4286 = vadd.f32 %v4224, %v4278
        %v4287 = vadd.f32 %v4225, %v4279
        %v4288 = vadd.f32 %v4226, %v4280
        %v4289 = vadd.f32 %v4227, %v4281
        %v4290 = vadd.f32 %v4228, %v4282
        %v4291 = vadd.f32 %v4229, %v4283
        %s4292 = sld [smem:[#allocation10 + $0x11]]
        %v4293 = vstv %s4292
        %v4294 = vmul.f32 %v4293, %v4248
        %v4295 = vmul.f32 %v4293, %v4249
        %v4296 = vmul.f32 %v4293, %v4250
        %v4297 = vmul.f32 %v4293, %v4251
        %v4298 = vmul.f32 %v4293, %v4252
        %v4299 = vmul.f32 %v4293, %v4253
        %v4300 = vmul.f32 %v4293, %v4254
        %v4301 = vmul.f32 %v4293, %v4255
        %v4302 = vadd.f32 %v4240, %v4294
        %v4303 = vadd.f32 %v4241, %v4295
        %v4304 = vadd.f32 %v4242, %v4296
        %v4305 = vadd.f32 %v4243, %v4297
        %v4306 = vadd.f32 %v4244, %v4298
        %v4307 = vadd.f32 %v4245, %v4299
        %v4308 = vadd.f32 %v4246, %v4300
        %v4309 = vadd.f32 %v4247, %v4301
        %v4310 = vld [vmem:[%s3173] sm:$0xff]
        %v4311 = vld [vmem:[%s3173 + $0x8] sm:$0xff]
        %v4312 = vld [vmem:[%s3173 + $0x10] sm:$0xff]
        %v4313 = vld [vmem:[%s3173 + $0x18] sm:$0xff]
        %v4314 = vld [vmem:[%s3173 + $0x20] sm:$0xff]
        %v4315 = vld [vmem:[%s3173 + $0x28] sm:$0xff]
        %v4316 = vld [vmem:[%s3173 + $0x30] sm:$0xff]
        %v4317 = vld [vmem:[%s3173 + $0x38] sm:$0xff]
        %s4318 = sld [smem:[#allocation10 + $0x12]]
        %v4319 = vstv %s4318
        %v4320 = vmul.f32 %v4319, %v4310
        %v4321 = vmul.f32 %v4319, %v4311
        %v4322 = vmul.f32 %v4319, %v4312
        %v4323 = vmul.f32 %v4319, %v4313
        %v4324 = vmul.f32 %v4319, %v4314
        %v4325 = vmul.f32 %v4319, %v4315
        %v4326 = vmul.f32 %v4319, %v4316
        %v4327 = vmul.f32 %v4319, %v4317
        %v4328 = vadd.f32 %v4266, %v4320
        %v4329 = vadd.f32 %v4267, %v4321
        %v4330 = vadd.f32 %v4268, %v4322
        %v4331 = vadd.f32 %v4269, %v4323
        %v4332 = vadd.f32 %v4270, %v4324
        %v4333 = vadd.f32 %v4271, %v4325
        %v4334 = vadd.f32 %v4272, %v4326
        %v4335 = vadd.f32 %v4273, %v4327
        %s4336 = sld [smem:[#allocation10 + $0x13]]
        %v4337 = vstv %s4336
        %v4338 = vmul.f32 %v4337, %v4310
        %v4339 = vmul.f32 %v4337, %v4311
        %v4340 = vmul.f32 %v4337, %v4312
        %v4341 = vmul.f32 %v4337, %v4313
        %v4342 = vmul.f32 %v4337, %v4314
        %v4343 = vmul.f32 %v4337, %v4315
        %v4344 = vmul.f32 %v4337, %v4316
        %v4345 = vmul.f32 %v4337, %v4317
        %v4346 = vadd.f32 %v4284, %v4338
        %v4347 = vadd.f32 %v4285, %v4339
        %v4348 = vadd.f32 %v4286, %v4340
        %v4349 = vadd.f32 %v4287, %v4341
        %v4350 = vadd.f32 %v4288, %v4342
        %v4351 = vadd.f32 %v4289, %v4343
        %v4352 = vadd.f32 %v4290, %v4344
        %v4353 = vadd.f32 %v4291, %v4345
        %s4354 = sld [smem:[#allocation10 + $0x14]]
        %v4355 = vstv %s4354
        %v4356 = vmul.f32 %v4355, %v4310
        %v4357 = vmul.f32 %v4355, %v4311
        %v4358 = vmul.f32 %v4355, %v4312
        %v4359 = vmul.f32 %v4355, %v4313
        %v4360 = vmul.f32 %v4355, %v4314
        %v4361 = vmul.f32 %v4355, %v4315
        %v4362 = vmul.f32 %v4355, %v4316
        %v4363 = vmul.f32 %v4355, %v4317
        %v4364 = vadd.f32 %v4302, %v4356
        %v4365 = vadd.f32 %v4303, %v4357
        %v4366 = vadd.f32 %v4304, %v4358
        %v4367 = vadd.f32 %v4305, %v4359
        %v4368 = vadd.f32 %v4306, %v4360
        %v4369 = vadd.f32 %v4307, %v4361
        %v4370 = vadd.f32 %v4308, %v4362
        %v4371 = vadd.f32 %v4309, %v4363
        %v4372 = vld [vmem:[%s3173 + $0x1] sm:$0xff]
        %v4373 = vld [vmem:[%s3173 + $0x9] sm:$0xff]
        %v4374 = vld [vmem:[%s3173 + $0x11] sm:$0xff]
        %v4375 = vld [vmem:[%s3173 + $0x19] sm:$0xff]
        %v4376 = vld [vmem:[%s3173 + $0x21] sm:$0xff]
        %v4377 = vld [vmem:[%s3173 + $0x29] sm:$0xff]
        %v4378 = vld [vmem:[%s3173 + $0x31] sm:$0xff]
        %v4379 = vld [vmem:[%s3173 + $0x39] sm:$0xff]
        %s4380 = sld [smem:[#allocation10 + $0x15]]
        %v4381 = vstv %s4380
        %v4382 = vmul.f32 %v4381, %v4372
        %v4383 = vmul.f32 %v4381, %v4373
        %v4384 = vmul.f32 %v4381, %v4374
        %v4385 = vmul.f32 %v4381, %v4375
        %v4386 = vmul.f32 %v4381, %v4376
        %v4387 = vmul.f32 %v4381, %v4377
        %v4388 = vmul.f32 %v4381, %v4378
        %v4389 = vmul.f32 %v4381, %v4379
        %v4390 = vadd.f32 %v4328, %v4382
        %v4391 = vadd.f32 %v4329, %v4383
        %v4392 = vadd.f32 %v4330, %v4384
        %v4393 = vadd.f32 %v4331, %v4385
        %v4394 = vadd.f32 %v4332, %v4386
        %v4395 = vadd.f32 %v4333, %v4387
        %v4396 = vadd.f32 %v4334, %v4388
        %v4397 = vadd.f32 %v4335, %v4389
        %s4398 = sld [smem:[#allocation10 + $0x16]]
        %v4399 = vstv %s4398
        %v4400 = vmul.f32 %v4399, %v4372
        %v4401 = vmul.f32 %v4399, %v4373
        %v4402 = vmul.f32 %v4399, %v4374
        %v4403 = vmul.f32 %v4399, %v4375
        %v4404 = vmul.f32 %v4399, %v4376
        %v4405 = vmul.f32 %v4399, %v4377
        %v4406 = vmul.f32 %v4399, %v4378
        %v4407 = vmul.f32 %v4399, %v4379
        %v4408 = vadd.f32 %v4346, %v4400
        %v4409 = vadd.f32 %v4347, %v4401
        %v4410 = vadd.f32 %v4348, %v4402
        %v4411 = vadd.f32 %v4349, %v4403
        %v4412 = vadd.f32 %v4350, %v4404
        %v4413 = vadd.f32 %v4351, %v4405
        %v4414 = vadd.f32 %v4352, %v4406
        %v4415 = vadd.f32 %v4353, %v4407
        %s4416 = sld [smem:[#allocation10 + $0x17]]
        %v4417 = vstv %s4416
        %v4418 = vmul.f32 %v4417, %v4372
        %v4419 = vmul.f32 %v4417, %v4373
        %v4420 = vmul.f32 %v4417, %v4374
        %v4421 = vmul.f32 %v4417, %v4375
        %v4422 = vmul.f32 %v4417, %v4376
        %v4423 = vmul.f32 %v4417, %v4377
        %v4424 = vmul.f32 %v4417, %v4378
        %v4425 = vmul.f32 %v4417, %v4379
        %v4426 = vadd.f32 %v4364, %v4418
        %v4427 = vadd.f32 %v4365, %v4419
        %v4428 = vadd.f32 %v4366, %v4420
        %v4429 = vadd.f32 %v4367, %v4421
        %v4430 = vadd.f32 %v4368, %v4422
        %v4431 = vadd.f32 %v4369, %v4423
        %v4432 = vadd.f32 %v4370, %v4424
        %v4433 = vadd.f32 %v4371, %v4425
        %v4434 = vld [vmem:[%s3173 + $0x2] sm:$0xff]
        %v4435 = vld [vmem:[%s3173 + $0xa] sm:$0xff]
        %v4436 = vld [vmem:[%s3173 + $0x12] sm:$0xff]
        %v4437 = vld [vmem:[%s3173 + $0x1a] sm:$0xff]
        %v4438 = vld [vmem:[%s3173 + $0x22] sm:$0xff]
        %v4439 = vld [vmem:[%s3173 + $0x2a] sm:$0xff]
        %v4440 = vld [vmem:[%s3173 + $0x32] sm:$0xff]
        %v4441 = vld [vmem:[%s3173 + $0x3a] sm:$0xff]
        %s4442 = sld [smem:[#allocation10 + $0x18]]
        %v4443 = vstv %s4442
        %v4444 = vmul.f32 %v4443, %v4434
        %v4445 = vmul.f32 %v4443, %v4435
        %v4446 = vmul.f32 %v4443, %v4436
        %v4447 = vmul.f32 %v4443, %v4437
        %v4448 = vmul.f32 %v4443, %v4438
        %v4449 = vmul.f32 %v4443, %v4439
        %v4450 = vmul.f32 %v4443, %v4440
        %v4451 = vmul.f32 %v4443, %v4441
        %v4452 = vadd.f32 %v4390, %v4444
        %v4453 = vadd.f32 %v4391, %v4445
        %v4454 = vadd.f32 %v4392, %v4446
        %v4455 = vadd.f32 %v4393, %v4447
        %v4456 = vadd.f32 %v4394, %v4448
        %v4457 = vadd.f32 %v4395, %v4449
        %v4458 = vadd.f32 %v4396, %v4450
        %v4459 = vadd.f32 %v4397, %v4451
        %s4460 = sld [smem:[#allocation10 + $0x19]]
        %v4461 = vstv %s4460
        %v4462 = vmul.f32 %v4461, %v4434
        %v4463 = vmul.f32 %v4461, %v4435
        %v4464 = vmul.f32 %v4461, %v4436
        %v4465 = vmul.f32 %v4461, %v4437
        %v4466 = vmul.f32 %v4461, %v4438
        %v4467 = vmul.f32 %v4461, %v4439
        %v4468 = vmul.f32 %v4461, %v4440
        %v4469 = vmul.f32 %v4461, %v4441
        %v4470 = vadd.f32 %v4408, %v4462
        %v4471 = vadd.f32 %v4409, %v4463
        %v4472 = vadd.f32 %v4410, %v4464
        %v4473 = vadd.f32 %v4411, %v4465
        %v4474 = vadd.f32 %v4412, %v4466
        %v4475 = vadd.f32 %v4413, %v4467
        %v4476 = vadd.f32 %v4414, %v4468
        %v4477 = vadd.f32 %v4415, %v4469
        %s4478 = sld [smem:[#allocation10 + $0x1a]]
        %v4479 = vstv %s4478
        %v4480 = vmul.f32 %v4479, %v4434
        %v4481 = vmul.f32 %v4479, %v4435
        %v4482 = vmul.f32 %v4479, %v4436
        %v4483 = vmul.f32 %v4479, %v4437
        %v4484 = vmul.f32 %v4479, %v4438
        %v4485 = vmul.f32 %v4479, %v4439
        %v4486 = vmul.f32 %v4479, %v4440
        %v4487 = vmul.f32 %v4479, %v4441
        %v4488 = vadd.f32 %v4426, %v4480
        %v4489 = vadd.f32 %v4427, %v4481
        %v4490 = vadd.f32 %v4428, %v4482
        %v4491 = vadd.f32 %v4429, %v4483
        %v4492 = vadd.f32 %v4430, %v4484
        %v4493 = vadd.f32 %v4431, %v4485
        %v4494 = vadd.f32 %v4432, %v4486
        %v4495 = vadd.f32 %v4433, %v4487
        %v4496 = vld [vmem:[%s3928] sm:$0xff]
        %v4497 = vld [vmem:[%s3928 + $0x8] sm:$0xff]
        %v4498 = vld [vmem:[%s3928 + $0x10] sm:$0xff]
        %v4499 = vld [vmem:[%s3928 + $0x18] sm:$0xff]
        %v4500 = vld [vmem:[%s3928 + $0x20] sm:$0xff]
        %v4501 = vld [vmem:[%s3928 + $0x28] sm:$0xff]
        %v4502 = vld [vmem:[%s3928 + $0x30] sm:$0xff]
        %v4503 = vld [vmem:[%s3928 + $0x38] sm:$0xff]
        %s4504 = sld [smem:[#allocation10 + $0x1b]]
        %v4505 = vstv %s4504
        %v4506 = vmul.f32 %v4505, %v4496
        %v4507 = vmul.f32 %v4505, %v4497
        %v4508 = vmul.f32 %v4505, %v4498
        %v4509 = vmul.f32 %v4505, %v4499
        %v4510 = vmul.f32 %v4505, %v4500
        %v4511 = vmul.f32 %v4505, %v4501
        %v4512 = vmul.f32 %v4505, %v4502
        %v4513 = vmul.f32 %v4505, %v4503
        %v4514 = vadd.f32 %v4452, %v4506
        %v4515 = vadd.f32 %v4453, %v4507
        %v4516 = vadd.f32 %v4454, %v4508
        %v4517 = vadd.f32 %v4455, %v4509
        %v4518 = vadd.f32 %v4456, %v4510
        %v4519 = vadd.f32 %v4457, %v4511
        %v4520 = vadd.f32 %v4458, %v4512
        %v4521 = vadd.f32 %v4459, %v4513
        %s4522 = sld [smem:[#allocation10 + $0x1c]]
        %v4523 = vstv %s4522
        %v4524 = vmul.f32 %v4523, %v4496
        %v4525 = vmul.f32 %v4523, %v4497
        %v4526 = vmul.f32 %v4523, %v4498
        %v4527 = vmul.f32 %v4523, %v4499
        %v4528 = vmul.f32 %v4523, %v4500
        %v4529 = vmul.f32 %v4523, %v4501
        %v4530 = vmul.f32 %v4523, %v4502
        %v4531 = vmul.f32 %v4523, %v4503
        %v4532 = vadd.f32 %v4470, %v4524
        %v4533 = vadd.f32 %v4471, %v4525
        %v4534 = vadd.f32 %v4472, %v4526
        %v4535 = vadd.f32 %v4473, %v4527
        %v4536 = vadd.f32 %v4474, %v4528
        %v4537 = vadd.f32 %v4475, %v4529
        %v4538 = vadd.f32 %v4476, %v4530
        %v4539 = vadd.f32 %v4477, %v4531
        %s4540 = sld [smem:[#allocation10 + $0x1d]]
        %v4541 = vstv %s4540
        %v4542 = vmul.f32 %v4541, %v4496
        %v4543 = vmul.f32 %v4541, %v4497
        %v4544 = vmul.f32 %v4541, %v4498
        %v4545 = vmul.f32 %v4541, %v4499
        %v4546 = vmul.f32 %v4541, %v4500
        %v4547 = vmul.f32 %v4541, %v4501
        %v4548 = vmul.f32 %v4541, %v4502
        %v4549 = vmul.f32 %v4541, %v4503
        %v4550 = vadd.f32 %v4488, %v4542
        %v4551 = vadd.f32 %v4489, %v4543
        %v4552 = vadd.f32 %v4490, %v4544
        %v4553 = vadd.f32 %v4491, %v4545
        %v4554 = vadd.f32 %v4492, %v4546
        %v4555 = vadd.f32 %v4493, %v4547
        %v4556 = vadd.f32 %v4494, %v4548
        %v4557 = vadd.f32 %v4495, %v4549
        %v4558 = vld [vmem:[%s3928 + $0x1] sm:$0xff]
        %v4559 = vld [vmem:[%s3928 + $0x9] sm:$0xff]
        %v4560 = vld [vmem:[%s3928 + $0x11] sm:$0xff]
        %v4561 = vld [vmem:[%s3928 + $0x19] sm:$0xff]
        %v4562 = vld [vmem:[%s3928 + $0x21] sm:$0xff]
        %v4563 = vld [vmem:[%s3928 + $0x29] sm:$0xff]
        %v4564 = vld [vmem:[%s3928 + $0x31] sm:$0xff]
        %v4565 = vld [vmem:[%s3928 + $0x39] sm:$0xff]
        %s4566 = sld [smem:[#allocation10 + $0x1e]]
        %v4567 = vstv %s4566
        %v4568 = vmul.f32 %v4567, %v4558
        %v4569 = vmul.f32 %v4567, %v4559
        %v4570 = vmul.f32 %v4567, %v4560
        %v4571 = vmul.f32 %v4567, %v4561
        %v4572 = vmul.f32 %v4567, %v4562
        %v4573 = vmul.f32 %v4567, %v4563
        %v4574 = vmul.f32 %v4567, %v4564
        %v4575 = vmul.f32 %v4567, %v4565
        %v4576 = vadd.f32 %v4514, %v4568
        %v4577 = vadd.f32 %v4515, %v4569
        %v4578 = vadd.f32 %v4516, %v4570
        %v4579 = vadd.f32 %v4517, %v4571
        %v4580 = vadd.f32 %v4518, %v4572
        %v4581 = vadd.f32 %v4519, %v4573
        %v4582 = vadd.f32 %v4520, %v4574
        %v4583 = vadd.f32 %v4521, %v4575
        %s4584 = sld [smem:[#allocation10 + $0x1f]]
        %v4585 = vstv %s4584
        %v4586 = vmul.f32 %v4585, %v4558
        %v4587 = vmul.f32 %v4585, %v4559
        %v4588 = vmul.f32 %v4585, %v4560
        %v4589 = vmul.f32 %v4585, %v4561
        %v4590 = vmul.f32 %v4585, %v4562
        %v4591 = vmul.f32 %v4585, %v4563
        %v4592 = vmul.f32 %v4585, %v4564
        %v4593 = vmul.f32 %v4585, %v4565
        %v4594 = vadd.f32 %v4532, %v4586
        %v4595 = vadd.f32 %v4533, %v4587
        %v4596 = vadd.f32 %v4534, %v4588
        %v4597 = vadd.f32 %v4535, %v4589
        %v4598 = vadd.f32 %v4536, %v4590
        %v4599 = vadd.f32 %v4537, %v4591
        %v4600 = vadd.f32 %v4538, %v4592
        %v4601 = vadd.f32 %v4539, %v4593
        %s4602 = sld [smem:[#allocation10 + $0x20]]
        %v4603 = vstv %s4602
        %v4604 = vmul.f32 %v4603, %v4558
        %v4605 = vmul.f32 %v4603, %v4559
        %v4606 = vmul.f32 %v4603, %v4560
        %v4607 = vmul.f32 %v4603, %v4561
        %v4608 = vmul.f32 %v4603, %v4562
        %v4609 = vmul.f32 %v4603, %v4563
        %v4610 = vmul.f32 %v4603, %v4564
        %v4611 = vmul.f32 %v4603, %v4565
        %v4612 = vadd.f32 %v4550, %v4604
        %v4613 = vadd.f32 %v4551, %v4605
        %v4614 = vadd.f32 %v4552, %v4606
        %v4615 = vadd.f32 %v4553, %v4607
        %v4616 = vadd.f32 %v4554, %v4608
        %v4617 = vadd.f32 %v4555, %v4609
        %v4618 = vadd.f32 %v4556, %v4610
        %v4619 = vadd.f32 %v4557, %v4611
        %v4620 = vld [vmem:[%s3928 + $0x2] sm:$0xff]
        %v4621 = vld [vmem:[%s3928 + $0xa] sm:$0xff]
        %v4622 = vld [vmem:[%s3928 + $0x12] sm:$0xff]
        %v4623 = vld [vmem:[%s3928 + $0x1a] sm:$0xff]
        %v4624 = vld [vmem:[%s3928 + $0x22] sm:$0xff]
        %v4625 = vld [vmem:[%s3928 + $0x2a] sm:$0xff]
        %v4626 = vld [vmem:[%s3928 + $0x32] sm:$0xff]
        %v4627 = vld [vmem:[%s3928 + $0x3a] sm:$0xff]
        %s4628 = sld [smem:[#allocation10 + $0x21]]
        %v4629 = vstv %s4628
        %v4630 = vmul.f32 %v4629, %v4620
        %v4631 = vmul.f32 %v4629, %v4621
        %v4632 = vmul.f32 %v4629, %v4622
        %v4633 = vmul.f32 %v4629, %v4623
        %v4634 = vmul.f32 %v4629, %v4624
        %v4635 = vmul.f32 %v4629, %v4625
        %v4636 = vmul.f32 %v4629, %v4626
        %v4637 = vmul.f32 %v4629, %v4627
        %v4638 = vadd.f32 %v4576, %v4630
        %v4639 = vadd.f32 %v4577, %v4631
        %v4640 = vadd.f32 %v4578, %v4632
        %v4641 = vadd.f32 %v4579, %v4633
        %v4642 = vadd.f32 %v4580, %v4634
        %v4643 = vadd.f32 %v4581, %v4635
        %v4644 = vadd.f32 %v4582, %v4636
        %v4645 = vadd.f32 %v4583, %v4637
        %s4646 = sld [smem:[#allocation10 + $0x22]]
        %v4647 = vstv %s4646
        %v4648 = vmul.f32 %v4647, %v4620
        %v4649 = vmul.f32 %v4647, %v4621
        %v4650 = vmul.f32 %v4647, %v4622
        %v4651 = vmul.f32 %v4647, %v4623
        %v4652 = vmul.f32 %v4647, %v4624
        %v4653 = vmul.f32 %v4647, %v4625
        %v4654 = vmul.f32 %v4647, %v4626
        %v4655 = vmul.f32 %v4647, %v4627
        %v4656 = vadd.f32 %v4594, %v4648
        %v4657 = vadd.f32 %v4595, %v4649
        %v4658 = vadd.f32 %v4596, %v4650
        %v4659 = vadd.f32 %v4597, %v4651
        %v4660 = vadd.f32 %v4598, %v4652
        %v4661 = vadd.f32 %v4599, %v4653
        %v4662 = vadd.f32 %v4600, %v4654
        %v4663 = vadd.f32 %v4601, %v4655
        %s4664 = sld [smem:[#allocation10 + $0x23]]
        %v4665 = vstv %s4664
        %v4666 = vmul.f32 %v4665, %v4620
        %v4667 = vmul.f32 %v4665, %v4621
        %v4668 = vmul.f32 %v4665, %v4622
        %v4669 = vmul.f32 %v4665, %v4623
        %v4670 = vmul.f32 %v4665, %v4624
        %v4671 = vmul.f32 %v4665, %v4625
        %v4672 = vmul.f32 %v4665, %v4626
        %v4673 = vmul.f32 %v4665, %v4627
        %v4674 = vadd.f32 %v4612, %v4666
        %v4675 = vadd.f32 %v4613, %v4667
        %v4676 = vadd.f32 %v4614, %v4668
        %v4677 = vadd.f32 %v4615, %v4669
        %v4678 = vadd.f32 %v4616, %v4670
        %v4679 = vadd.f32 %v4617, %v4671
        %v4680 = vadd.f32 %v4618, %v4672
        %v4681 = vadd.f32 %v4619, %v4673
        %4690 = vrot.lane.b32.xlu0 %v4656, 127
        %v4691 = vpop.permute.xlu0 %4690
        %4692 = vrot.lane.b32.xlu0 %v4657, 127
        %v4693 = vpop.permute.xlu0 %4692
        %4694 = vrot.lane.b32.xlu0 %v4658, 127
        %v4695 = vpop.permute.xlu0 %4694
        %4696 = vrot.lane.b32.xlu0 %v4659, 127
        %v4697 = vpop.permute.xlu0 %4696
        %4698 = vrot.lane.b32.xlu0 %v4660, 127
        %v4699 = vpop.permute.xlu0 %4698
        %4700 = vrot.lane.b32.xlu0 %v4661, 127
        %v4701 = vpop.permute.xlu0 %4700
        %4702 = vrot.lane.b32.xlu0 %v4662, 127
        %v4703 = vpop.permute.xlu0 %4702
        %4704 = vrot.lane.b32.xlu0 %v4663, 127
        %v4705 = vpop.permute.xlu0 %4704
        %v4714 = vadd.f32 %v4638, %v4691
        %v4715 = vadd.f32 %v4639, %v4693
        %v4716 = vadd.f32 %v4640, %v4695
        %v4717 = vadd.f32 %v4641, %v4697
        %v4718 = vadd.f32 %v4642, %v4699
        %v4719 = vadd.f32 %v4643, %v4701
        %v4720 = vadd.f32 %v4644, %v4703
        %v4721 = vadd.f32 %v4645, %v4705
        %4730 = vrot.lane.b32.xlu0 %v4674, 126
        %v4731 = vpop.permute.xlu0 %4730
        %4732 = vrot.lane.b32.xlu0 %v4675, 126
        %v4733 = vpop.permute.xlu0 %4732
        %4734 = vrot.lane.b32.xlu0 %v4676, 126
        %v4735 = vpop.permute.xlu0 %4734
        %4736 = vrot.lane.b32.xlu0 %v4677, 126
        %v4737 = vpop.permute.xlu0 %4736
        %4738 = vrot.lane.b32.xlu0 %v4678, 126
        %v4739 = vpop.permute.xlu0 %4738
        %4740 = vrot.lane.b32.xlu0 %v4679, 126
        %v4741 = vpop.permute.xlu0 %4740
        %4742 = vrot.lane.b32.xlu0 %v4680, 126
        %v4743 = vpop.permute.xlu0 %4742
        %4744 = vrot.lane.b32.xlu0 %v4681, 126
        %v4745 = vpop.permute.xlu0 %4744
        %v4754 = vadd.f32 %v4714, %v4731
        %v4755 = vadd.f32 %v4715, %v4733
        %v4756 = vadd.f32 %v4716, %v4735
        %v4757 = vadd.f32 %v4717, %v4737
        %v4758 = vadd.f32 %v4718, %v4739
        %v4759 = vadd.f32 %v4719, %v4741
        %v4760 = vadd.f32 %v4720, %v4743
        %v4761 = vadd.f32 %v4721, %v4745
        %s4762 = sld [smem:[#allocation4]]
        %v4763 = vstv %s4762
        %v4764 = vadd.f32 %v4754, %v4763
        %v4765 = vadd.f32 %v4755, %v4763
        %v4766 = vadd.f32 %v4756, %v4763
        %v4767 = vadd.f32 %v4757, %v4763
        %v4768 = vadd.f32 %v4758, %v4763
        %v4769 = vadd.f32 %v4759, %v4763
        %v4770 = vadd.f32 %v4760, %v4763
        %v4771 = vadd.f32 %v4761, %v4763
        %vm4772 = vcmask 523264
        %4773 = vst.msk [vmem:[%s365] sm:$0xff] %vm4772, %v4764
        %4774 = vst.msk [vmem:[%s365 + $0x8] sm:$0xff] %vm4772, %v4765
        %4775 = vst.msk [vmem:[%s365 + $0x10] sm:$0xff] %vm4772, %v4766
        %4776 = vst.msk [vmem:[%s365 + $0x18] sm:$0xff] %vm4772, %v4767
        %4777 = vst.msk [vmem:[%s365 + $0x20] sm:$0xff] %vm4772, %v4768
        %4778 = vst.msk [vmem:[%s365 + $0x28] sm:$0xff] %vm4772, %v4769
        %4779 = vst.msk [vmem:[%s365 + $0x30] sm:$0xff] %vm4772, %v4770
        %4780 = vst.msk [vmem:[%s365 + $0x38] sm:$0xff] %vm4772, %v4771
        %s4781 = sand.u32 %s228, 1
        %s4782 = scalar_lea.sflag [#allocation6], %s4781
        %s4783 = sand.u32 %s228, 1
        %s4784 = smul.addr %s4783, 64
        %s4785 = scalar_lea.vmem [#allocation11], %s4784
        // Predicated region
        $region69: #{simple_segmentation_head_forward.1} parent=55 // pred_check
          %p4786 = pneg %p238
        $region70: #{simple_segmentation_head_forward.1} parent=55 // pred_check_branch
          %4788 = sbr.rel (%p4786) target = $region72
        $region71: #{simple_segmentation_head_forward.1} parent=55 // pred_region
          %s4790 = ssub.s32 1024, 1024
          %4791 = vsyncadd %s4782, %s4790
          %s4792 = smul.addr %s26, 8
          %s4793 = smul.addr %s4792, 128
          %s4794 = scalar_lea.hbm %s9, %s4793
          %s4795 = sshll.u32 %s4785, 4
          %s4796 = int_to_ptr.vmem [resolvable:$true] %s4795
          %4801 = dma.vmem_to_hbm [thread:$0]  %s4796, 1024, %s4794, %s4782, 128, 128, 8
        $region72: #{simple_segmentation_head_forward.1} parent=55 // pred_fallthru
          _
      $region56: #{simple_segmentation_head_forward.1} parent=5 // pred_fallthru
        _
      %p4802 = scmp.le.s32.totalorder 2, %s21
      // Predicated region
      $region73: #{simple_segmentation_head_forward.1} parent=5 // pred_check
        %p4803 = pneg %p4802
      $region74: #{simple_segmentation_head_forward.1} parent=5 // pred_check_branch
        %4805 = sbr.rel (%p4803) target = $region76
      $region75: #{simple_segmentation_head_forward.1} parent=5 // pred_region
        %s4806 = ssub.s32 %s21, 2
        // Predicated region
        $region77: #{simple_segmentation_head_forward.1} parent=75 // pred_check
          %p4807 = pneg %p244
        $region78: #{simple_segmentation_head_forward.1} parent=75 // pred_check_branch
          %4809 = sbr.rel (%p4807) target = $region80
        $region79: #{simple_segmentation_head_forward.1} parent=75 // pred_region
          %s4810 = sand.u32 %s229, 1
          %s4811 = scalar_lea.sflag [#allocation6], %s4810
          %s4812 = sand.u32 %s229, 1
          %s4813 = smul.addr %s4812, 64
          %s4814 = scalar_lea.vmem [#allocation11], %s4813
          %4815 = dma.done %s4811, 1024
        $region80: #{simple_segmentation_head_forward.1} parent=75 // pred_fallthru
          _
      $region76: #{simple_segmentation_head_forward.1} parent=5 // pred_fallthru
        _
    $region6: #{simple_segmentation_head_forward.1} parent=1 // loop_footer
      %s25 = sadd.s32 1, %s21
    $region7: #{simple_segmentation_head_forward.1} parent=1 // loop_footer_branch
      %20 = sbr.rel target = $region3
    $region8: #{simple_segmentation_head_forward.1} parent=1 // loop_exit
      _
    %4816 = vsyncpa [#allocation6], 1
    %s4817 = scalar_lea.sflag [#allocation6], 1
    %4818 = vsyncpa %s4817, 1
    %4819 = vsyncpa [#allocation7], 1
    %s4820 = scalar_lea.sflag [#allocation7], 1
    %4821 = vsyncpa %s4820, 1
    %4822 = vsyncpa [#allocation9], 1

</llo_original>
